<compile_context>
chip_gen: v5e
topology: v5e:2x2
jax: 0.10.0
libtpu: 0.0.40
codegen_flags: <defaults>
</compile_context>

<pallas_src>
import functools

import numpy as np
import jax
import jax.numpy as jnp
from jax.experimental import pallas as pl
from jax.experimental.pallas import tpu as pltpu  # noqa: F401  (TPU backend)


def _round_up(x, m):
    return ((x + m - 1) // m) * m


# ---------------------------------------------------------------------------
# Pallas kernels (one fused kernel per network layer)
# ---------------------------------------------------------------------------

def _taps_matmul(x_ref, w_ref, offsets, m):
    """sum_t  W[t] @ X[:, off_t : off_t + m]   -> (cout_p, m) f32."""
    acc = jnp.dot(w_ref[0], x_ref[:, offsets[0]:offsets[0] + m],
                  preferred_element_type=jnp.float32)
    for t in range(1, len(offsets)):
        off = offsets[t]
        acc = acc + jnp.dot(w_ref[t], x_ref[:, off:off + m],
                            preferred_element_type=jnp.float32)
    return acc


def _conv_bn_relu_kernel(x_ref, w_ref, g_ref, b_ref, mask_ref, o_ref, *,
                         offsets, inv_n):
    """3x3 conv (9 shifted tap matmuls) + batch-stat BatchNorm + ReLU.

    x_ref    : (cin_p, m_out + 128)  channel-major flattened padded image(s)
    w_ref    : (9, cout_p, cin_p)    one (Cout, Cin) matrix per kernel tap
    g_ref/b_ref : (cout_p, 1)        BN gamma / beta
    mask_ref : (1, m_out)            1.0 at columns that are real conv outputs
    o_ref    : (cout_p, m_out)       lane-dense (m_out % 128 == 0)
    """
    m = o_ref.shape[-1]
    acc = _taps_matmul(x_ref, w_ref, offsets, m)
    mask = mask_ref[...]
    mean = jnp.sum(acc * mask, axis=1, keepdims=True) * inv_n
    cent = acc - mean
    var = jnp.sum(cent * cent * mask, axis=1, keepdims=True) * inv_n
    y = cent * (jax.lax.rsqrt(var + 1e-5) * g_ref[...]) + b_ref[...]
    o_ref[...] = jnp.maximum(y, 0.0)


def _conv_bias_relu_kernel(x_ref, w_ref, b_ref, o_ref, *, offsets):
    """3x3 conv (9 tap matmuls) + bias + ReLU (no BatchNorm)."""
    m = o_ref.shape[-1]
    acc = _taps_matmul(x_ref, w_ref, offsets, m)
    o_ref[...] = jnp.maximum(acc + b_ref[...], 0.0)


def _deconv_bn_relu_kernel(x_ref, w_ref, g_ref, b_ref, mask_ref, o_ref, *,
                           wp1, inv_n, cout_p):
    """ConvTranspose2d(k=3, s=2, p=1, op=1) + BN + ReLU, 4-phase sub-pixel.

    Each of the 4 output phases (even/odd row x even/odd col) only uses the
    kernel taps that hit real (non-dilated) input pixels, so no MXU work is
    spent on inserted zeros.  BN statistics are taken jointly over all four
    phases (== the full output feature map).
    o_ref: (4 * cout_p, m_out), phases stacked on sublanes in order
           (0,0), (0,1), (1,0), (1,1).
    """
    m = o_ref.shape[-1]

    def tap(t, off):
        return jnp.dot(w_ref[t], x_ref[:, off:off + m],
                       preferred_element_type=jnp.float32)

    y00 = tap(0, 0)
    y01 = tap(1, 1) + tap(2, 0)
    y10 = tap(3, wp1) + tap(4, 0)
    y11 = tap(5, wp1 + 1) + tap(6, wp1) + tap(7, 1) + tap(8, 0)
    phases = (y00, y01, y10, y11)

    mask = mask_ref[...]
    mean = sum(jnp.sum(p * mask, axis=1, keepdims=True) for p in phases) * inv_n
    var = sum(jnp.sum((p - mean) ** 2 * mask, axis=1, keepdims=True)
              for p in phases) * inv_n
    scale = jax.lax.rsqrt(var + 1e-5) * g_ref[...]
    shift = b_ref[...] - mean * scale
    for i, p in enumerate(phases):
        o_ref[i * cout_p:(i + 1) * cout_p, :] = jnp.maximum(p * scale + shift,
                                                            0.0)


def _latent_kernel(x_ref, wm_ref, bm_ref, wv_ref, bv_ref, eps_ref,
                   wp_ref, bp_ref, o_ref):
    """mean/var linears + reparameterisation + decoder projection, fused."""
    x = x_ref[...]
    mean = jnp.dot(x, wm_ref[...], preferred_element_type=jnp.float32) + bm_ref[...]
    logvar = jnp.dot(x, wv_ref[...], preferred_element_type=jnp.float32) + bv_ref[...]
    z = eps_ref[...] * jnp.exp(0.5 * logvar) + mean
    xd = jnp.dot(z, wp_ref[...], preferred_element_type=jnp.float32) + bp_ref[...]
    o_ref[...] = jnp.concatenate([mean, logvar, z, xd], axis=1)


# ---------------------------------------------------------------------------
# XLA-side layout glue (cheap O(activation) ops; no im2col expansion)
# ---------------------------------------------------------------------------

def _to_flat_cm(x_nhwc, cin_p, m_in):
    """NHWC -> (cin_p, m_in): channel-major, pixels flattened, zero padded."""
    N, H, W, C = x_nhwc.shape
    x = jnp.transpose(x_nhwc, (3, 0, 1, 2)).reshape(C, N * H * W)
    return jnp.pad(x, ((0, cin_p - C), (0, m_in - N * H * W)))


def conv_bn_relu_s2(x_nhwc, p):
    """Conv2d(k=3, s=2, pad=1) + BatchNorm(train stats) + ReLU: 1 pallas_call."""
    N, H, W, _ = x_nhwc.shape
    xp = jnp.pad(x_nhwc, ((0, 0), (1, 1), (1, 1), (0, 0)))
    x2 = _to_flat_cm(xp, p["cin_p"], p["m_in"])
    out = pl.pallas_call(
        functools.partial(_conv_bn_relu_kernel, offsets=p["offsets"],
                          inv_n=p["inv_n"]),
        out_shape=jax.ShapeDtypeStruct((p["cout_p"], p["m_out"]), jnp.float32),
    )(x2, p["w"], p["gamma"], p["beta"], p["mask"])
    Hp, Wp, OH, OW = H + 2, W + 2, H // 2, W // 2
    y = out[:p["cout"], :N * Hp * Wp].reshape(p["cout"], N, Hp, Wp)
    y = y[:, :, 0:2 * OH:2, 0:2 * OW:2]          # keep the stride-2 positions
    return jnp.transpose(y, (1, 2, 3, 0))


def conv_bias_relu_s1(x_nhwc, p):
    """Conv2d(k=3, s=1, pad=1) + bias + ReLU: 1 pallas_call."""
    N, H, W, _ = x_nhwc.shape
    xp = jnp.pad(x_nhwc, ((0, 0), (1, 1), (1, 1), (0, 0)))
    x2 = _to_flat_cm(xp, p["cin_p"], p["m_in"])
    out = pl.pallas_call(
        functools.partial(_conv_bias_relu_kernel, offsets=p["offsets"]),
        out_shape=jax.ShapeDtypeStruct((p["cout_p"], p["m_out"]), jnp.float32),
    )(x2, p["w"], p["bias"])
    Hp, Wp = H + 2, W + 2
    y = out[:p["cout"], :N * Hp * Wp].reshape(p["cout"], N, Hp, Wp)
    y = y[:, :, :H, :W]
    return jnp.transpose(y, (1, 2, 3, 0))


def deconv_bn_relu(x_nhwc, p):
    """ConvTranspose2d(k=3, s=2, p=1, op=1) + BN + ReLU: 1 pallas_call."""
    N, H, W, _ = x_nhwc.shape
    xp = jnp.pad(x_nhwc, ((0, 0), (0, 1), (0, 1), (0, 0)))  # bottom/right halo
    x2 = _to_flat_cm(xp, p["cin_p"], p["m_in"])
    out = pl.pallas_call(
        functools.partial(_deconv_bn_relu_kernel, wp1=W + 1,
                          inv_n=p["inv_n"], cout_p=p["cout_p"]),
        out_shape=jax.ShapeDtypeStruct((4 * p["cout_p"], p["m_out"]),
                                       jnp.float32),
    )(x2, p["w"], p["gamma"], p["beta"], p["mask"])
    cout, cp = p["cout"], p["cout_p"]
    Hp1, Wp1 = H + 1, W + 1
    ph = out.reshape(4, cp, p["m_out"])[:, :cout, :N * Hp1 * Wp1]
    ph = ph.reshape(2, 2, cout, N, Hp1, Wp1)[:, :, :, :, :H, :W]
    # (pi, pj, c, n, a, b) -> (n, a, pi, b, pj, c) -> (N, 2H, 2W, C)
    y = jnp.transpose(ph, (3, 4, 0, 5, 1, 2)).reshape(N, 2 * H, 2 * W, cout)
    return y


# ---------------------------------------------------------------------------
# Parameter init: weights generated once, then packed into kernel layouts
# ---------------------------------------------------------------------------

def _chan_col(v, cout_p):
    return jnp.pad(v, (0, cout_p - v.shape[0])).reshape(cout_p, 1)


def _mask_from_grid(valid_hw, n, m_out):
    flat = np.tile(valid_hw.reshape(-1), n)
    mask = np.zeros((m_out,), np.float32)
    mask[:flat.size] = flat
    return jnp.asarray(mask).reshape(1, m_out)


def _conv_plan(key, batch, h_in, cin, cout, *, stride):
    """Packed params + layout plan for a 3x3 conv (pad=1) layer."""
    hp = h_in + 2
    cin_p, cout_p = _round_up(cin, 8), _round_up(cout, 8)
    m_flat = batch * hp * hp
    m_out = _round_up(m_flat, 128)
    m_in = m_out + 128                      # halo for the largest tap offset
    oh = h_in // stride
    kw, kb = jax.random.split(key)
    w = jax.random.normal(kw, (cout, cin, 3, 3), jnp.float32) * 0.1
    w_taps = jnp.pad(jnp.transpose(w, (2, 3, 0, 1)).reshape(9, cout, cin),
                     ((0, 0), (0, cout_p - cout), (0, cin_p - cin)))
    valid = np.zeros((hp, hp), np.float32)
    valid[0:stride * oh:stride, 0:stride * oh:stride] = 1.0
    return dict(
        w=w_taps,
        bias=_chan_col(jax.random.normal(kb, (cout,), jnp.float32) * 0.01,
                       cout_p),
        gamma=_chan_col(jnp.ones((cout,), jnp.float32), cout_p),
        beta=jnp.zeros((cout_p, 1), jnp.float32),
        mask=_mask_from_grid(valid, batch, m_out),
        offsets=[ki * hp + kj for ki in range(3) for kj in range(3)],
        inv_n=1.0 / float(batch * oh * oh),
        cin=cin, cout=cout, cin_p=cin_p, cout_p=cout_p,
        m_in=m_in, m_out=m_out,
    )


def _deconv_plan(key, batch, h_in, cin, cout):
    """Packed params + layout plan for ConvTranspose2d(k=3,s=2,p=1,op=1)."""
    hp1 = h_in + 1
    cin_p, cout_p = _round_up(cin, 8), _round_up(cout, 8)
    m_flat = batch * hp1 * hp1
    m_out = _round_up(m_flat, 128)
    m_in = m_out + 128
    w_t = jax.random.normal(key, (cin, cout, 3, 3), jnp.float32) * 0.1
    # Fixed tap order matching _deconv_bn_relu_kernel's phase structure.
    taps = [(1, 1), (1, 0), (1, 2), (0, 1), (2, 1), (0, 0), (0, 2), (2, 0), (2, 2)]
    mats = jnp.stack([w_t[:, :, ki, kj].T for ki, kj in taps], axis=0)
    w_taps = jnp.pad(mats, ((0, 0), (0, cout_p - cout), (0, cin_p - cin)))
    valid = np.zeros((hp1, hp1), np.float32)
    valid[:h_in, :h_in] = 1.0
    return dict(
        w=w_taps,
        gamma=_chan_col(jnp.ones((cout,), jnp.float32), cout_p),
        beta=jnp.zeros((cout_p, 1), jnp.float32),
        mask=_mask_from_grid(valid, batch, m_out),
        inv_n=1.0 / float(4 * batch * h_in * h_in),
        cin=cin, cout=cout, cin_p=cin_p, cout_p=cout_p,
        m_in=m_in, m_out=m_out,
    )


def init_params(key, hiddens, latent_dim, img_length, batch):
    keys = iter(jax.random.split(key, 32))
    f32 = jnp.float32
    params = {"latent_dim": latent_dim}

    prev_c, L = 1, img_length
    enc = []
    for c in hiddens:
        enc.append(_conv_plan(next(keys), batch, L, prev_c, c, stride=2))
        prev_c, L = c, L // 2
    params["encoder"] = enc
    params["chw"] = (prev_c, L, L)

    flat = prev_c * L * L
    params["mean_w"] = jax.random.normal(next(keys), (flat, latent_dim), f32) * 0.05
    params["mean_b"] = jnp.zeros((1, latent_dim), f32)
    params["var_w"] = jax.random.normal(next(keys), (flat, latent_dim), f32) * 0.05
    params["var_b"] = jnp.zeros((1, latent_dim), f32)
    params["proj_w"] = jax.random.normal(next(keys), (latent_dim, flat), f32) * 0.05
    params["proj_b"] = jnp.zeros((1, flat), f32)

    dec = []
    Ld = L
    for i in range(len(hiddens) - 1, 0, -1):
        dec.append(_deconv_plan(next(keys), batch, Ld, hiddens[i], hiddens[i - 1]))
        Ld *= 2
    params["decoder"] = dec
    params["final_deconv"] = _deconv_plan(next(keys), batch, Ld,
                                          hiddens[0], hiddens[0])
    Ld *= 2
    params["final_conv"] = _conv_plan(next(keys), batch, Ld, hiddens[0], 1,
                                      stride=1)
    return params


# ---------------------------------------------------------------------------
# Forward pass (module-boundary layout is NCHW, like the PyTorch reference)
# ---------------------------------------------------------------------------

def vae_forward(params, x_nchw, eps):
    x = jnp.transpose(x_nchw, (0, 2, 3, 1))          # NCHW -> NHWC

    for p in params["encoder"]:
        x = conv_bn_relu_s2(x, p)

    N = x.shape[0]
    C, H, W = params["chw"]
    L = params["latent_dim"]
    # torch.flatten(encoded, 1) flattens in channel-major (C,H,W) order.
    enc_flat = jnp.transpose(x, (0, 3, 1, 2)).reshape(N, C * H * W)

    lat = pl.pallas_call(
        _latent_kernel,
        out_shape=jax.ShapeDtypeStruct((N, 3 * L + C * H * W), jnp.float32),
    )(enc_flat, params["mean_w"], params["mean_b"], params["var_w"],
      params["var_b"], eps, params["proj_w"], params["proj_b"])
    mean = lat[:, :L]
    logvar = lat[:, L:2 * L]
    z = lat[:, 2 * L:3 * L]
    xd = lat[:, 3 * L:]

    xd = jnp.transpose(xd.reshape(N, C, H, W), (0, 2, 3, 1))  # NCHW -> NHWC
    for p in params["decoder"]:
        xd = deconv_bn_relu(xd, p)
    xd = deconv_bn_relu(xd, params["final_deconv"])
    xd = conv_bias_relu_s1(xd, params["final_conv"])

    decoded = jnp.transpose(xd, (0, 3, 1, 2))        # back to NCHW
    return decoded, mean, logvar, z


# ---------------------------------------------------------------------------

if __name__ == "__main__":
    hiddens = [4, 8, 16]
    latent_dim = 16
    img_length = 16
    batch = 2

    root = jax.random.PRNGKey(0)
    k_params, k_x, k_eps = jax.random.split(root, 3)

    params = init_params(k_params, hiddens, latent_dim, img_length, batch)
    x = jax.random.normal(k_x, (batch, 1, img_length, img_length), jnp.float32)
    # TODO(synk): torch.randn_like RNG inside forward has no in-kernel
    # analogue here; eps is drawn deterministically outside and passed in.
    eps = jax.random.normal(k_eps, (batch, latent_dim), jnp.float32)

    fwd = jax.jit(functools.partial(vae_forward, params))
    decoded, mean, logvar, z = fwd(x, eps)
    jax.block_until_ready((decoded, mean, logvar, z))

    assert decoded.shape == (batch, 1, img_length, img_length)
    assert mean.shape == (batch, latent_dim)
    assert logvar.shape == (batch, latent_dim)
    assert z.shape == (batch, latent_dim)
    assert bool(jnp.all(jnp.isfinite(decoded)))

    print("KERNEL_OK")
</pallas_src>

<mosaic_0001>
module attributes {stable_mosaic.version = 11 : i64} {
  func.func @_conv_bn_relu_kernel(%arg0: memref<8x896xf32, #tpu.memory_space<vmem>>, %arg1: memref<9x8x8xf32, #tpu.memory_space<vmem>>, %arg2: memref<8x1xf32, #tpu.memory_space<vmem>>, %arg3: memref<8x1xf32, #tpu.memory_space<vmem>>, %arg4: memref<1x768xf32, #tpu.memory_space<vmem>>, %arg5: memref<8x768xf32, #tpu.memory_space<vmem>>) attributes {dimension_semantics = [], scalar_prefetch = 0 : i64, scratch_operands = 0 : i64, tpu.core_type = #tpu.core_type<tc>} {
    %c0 = arith.constant 0 : index
    %c0_0 = arith.constant 0 : index
    %c0_1 = arith.constant 0 : index
    %0 = vector.load %arg1[%c0, %c0_0, %c0_1] : memref<9x8x8xf32, #tpu.memory_space<vmem>>, vector<1x8x8xf32>
    %1 = vector.shape_cast %0 : vector<1x8x8xf32> to vector<8x8xf32>
    %c0_2 = arith.constant 0 : index
    %c0_3 = arith.constant 0 : index
    %2 = vector.load %arg0[%c0_2, %c0_3] : memref<8x896xf32, #tpu.memory_space<vmem>>, vector<8x768xf32>
    %cst = arith.constant dense<0.000000e+00> : vector<8x768xf32>
    %3 = tpu.matmul %1, %2, %cst {dimension_numbers = #tpu.dot_dimension_numbers<[1], [0], [0], [1], [0, 0, 1, 1], [], []>} : vector<8x8xf32>, vector<8x768xf32>, vector<8x768xf32> -> vector<8x768xf32>
    %c1 = arith.constant 1 : index
    %c0_4 = arith.constant 0 : index
    %c0_5 = arith.constant 0 : index
    %4 = vector.load %arg1[%c1, %c0_4, %c0_5] : memref<9x8x8xf32, #tpu.memory_space<vmem>>, vector<1x8x8xf32>
    %5 = vector.shape_cast %4 : vector<1x8x8xf32> to vector<8x8xf32>
    %c0_6 = arith.constant 0 : index
    %c1_7 = arith.constant 1 : index
    %6 = vector.load %arg0[%c0_6, %c1_7] : memref<8x896xf32, #tpu.memory_space<vmem>>, vector<8x768xf32>
    %cst_8 = arith.constant dense<0.000000e+00> : vector<8x768xf32>
    %7 = tpu.matmul %5, %6, %cst_8 {dimension_numbers = #tpu.dot_dimension_numbers<[1], [0], [0], [1], [0, 0, 1, 1], [], []>} : vector<8x8xf32>, vector<8x768xf32>, vector<8x768xf32> -> vector<8x768xf32>
    %8 = arith.addf %3, %7 : vector<8x768xf32>
    %c2 = arith.constant 2 : index
    %c0_9 = arith.constant 0 : index
    %c0_10 = arith.constant 0 : index
    %9 = vector.load %arg1[%c2, %c0_9, %c0_10] : memref<9x8x8xf32, #tpu.memory_space<vmem>>, vector<1x8x8xf32>
    %10 = vector.shape_cast %9 : vector<1x8x8xf32> to vector<8x8xf32>
    %c0_11 = arith.constant 0 : index
    %c2_12 = arith.constant 2 : index
    %11 = vector.load %arg0[%c0_11, %c2_12] : memref<8x896xf32, #tpu.memory_space<vmem>>, vector<8x768xf32>
    %cst_13 = arith.constant dense<0.000000e+00> : vector<8x768xf32>
    %12 = tpu.matmul %10, %11, %cst_13 {dimension_numbers = #tpu.dot_dimension_numbers<[1], [0], [0], [1], [0, 0, 1, 1], [], []>} : vector<8x8xf32>, vector<8x768xf32>, vector<8x768xf32> -> vector<8x768xf32>
    %13 = arith.addf %8, %12 : vector<8x768xf32>
    %c3 = arith.constant 3 : index
    %c0_14 = arith.constant 0 : index
    %c0_15 = arith.constant 0 : index
    %14 = vector.load %arg1[%c3, %c0_14, %c0_15] : memref<9x8x8xf32, #tpu.memory_space<vmem>>, vector<1x8x8xf32>
    %15 = vector.shape_cast %14 : vector<1x8x8xf32> to vector<8x8xf32>
    %c0_16 = arith.constant 0 : index
    %c18 = arith.constant 18 : index
    %16 = vector.load %arg0[%c0_16, %c18] : memref<8x896xf32, #tpu.memory_space<vmem>>, vector<8x768xf32>
    %cst_17 = arith.constant dense<0.000000e+00> : vector<8x768xf32>
    %17 = tpu.matmul %15, %16, %cst_17 {dimension_numbers = #tpu.dot_dimension_numbers<[1], [0], [0], [1], [0, 0, 1, 1], [], []>} : vector<8x8xf32>, vector<8x768xf32>, vector<8x768xf32> -> vector<8x768xf32>
    %18 = arith.addf %13, %17 : vector<8x768xf32>
    %c4 = arith.constant 4 : index
    %c0_18 = arith.constant 0 : index
    %c0_19 = arith.constant 0 : index
    %19 = vector.load %arg1[%c4, %c0_18, %c0_19] : memref<9x8x8xf32, #tpu.memory_space<vmem>>, vector<1x8x8xf32>
    %20 = vector.shape_cast %19 : vector<1x8x8xf32> to vector<8x8xf32>
    %c0_20 = arith.constant 0 : index
    %c19 = arith.constant 19 : index
    %21 = vector.load %arg0[%c0_20, %c19] : memref<8x896xf32, #tpu.memory_space<vmem>>, vector<8x768xf32>
    %cst_21 = arith.constant dense<0.000000e+00> : vector<8x768xf32>
    %22 = tpu.matmul %20, %21, %cst_21 {dimension_numbers = #tpu.dot_dimension_numbers<[1], [0], [0], [1], [0, 0, 1, 1], [], []>} : vector<8x8xf32>, vector<8x768xf32>, vector<8x768xf32> -> vector<8x768xf32>
    %23 = arith.addf %18, %22 : vector<8x768xf32>
    %c5 = arith.constant 5 : index
    %c0_22 = arith.constant 0 : index
    %c0_23 = arith.constant 0 : index
    %24 = vector.load %arg1[%c5, %c0_22, %c0_23] : memref<9x8x8xf32, #tpu.memory_space<vmem>>, vector<1x8x8xf32>
    %25 = vector.shape_cast %24 : vector<1x8x8xf32> to vector<8x8xf32>
    %c0_24 = arith.constant 0 : index
    %c20 = arith.constant 20 : index
    %26 = vector.load %arg0[%c0_24, %c20] : memref<8x896xf32, #tpu.memory_space<vmem>>, vector<8x768xf32>
    %cst_25 = arith.constant dense<0.000000e+00> : vector<8x768xf32>
    %27 = tpu.matmul %25, %26, %cst_25 {dimension_numbers = #tpu.dot_dimension_numbers<[1], [0], [0], [1], [0, 0, 1, 1], [], []>} : vector<8x8xf32>, vector<8x768xf32>, vector<8x768xf32> -> vector<8x768xf32>
    %28 = arith.addf %23, %27 : vector<8x768xf32>
    %c6 = arith.constant 6 : index
    %c0_26 = arith.constant 0 : index
    %c0_27 = arith.constant 0 : index
    %29 = vector.load %arg1[%c6, %c0_26, %c0_27] : memref<9x8x8xf32, #tpu.memory_space<vmem>>, vector<1x8x8xf32>
    %30 = vector.shape_cast %29 : vector<1x8x8xf32> to vector<8x8xf32>
    %c0_28 = arith.constant 0 : index
    %c36 = arith.constant 36 : index
    %31 = vector.load %arg0[%c0_28, %c36] : memref<8x896xf32, #tpu.memory_space<vmem>>, vector<8x768xf32>
    %cst_29 = arith.constant dense<0.000000e+00> : vector<8x768xf32>
    %32 = tpu.matmul %30, %31, %cst_29 {dimension_numbers = #tpu.dot_dimension_numbers<[1], [0], [0], [1], [0, 0, 1, 1], [], []>} : vector<8x8xf32>, vector<8x768xf32>, vector<8x768xf32> -> vector<8x768xf32>
    %33 = arith.addf %28, %32 : vector<8x768xf32>
    %c7 = arith.constant 7 : index
    %c0_30 = arith.constant 0 : index
    %c0_31 = arith.constant 0 : index
    %34 = vector.load %arg1[%c7, %c0_30, %c0_31] : memref<9x8x8xf32, #tpu.memory_space<vmem>>, vector<1x8x8xf32>
    %35 = vector.shape_cast %34 : vector<1x8x8xf32> to vector<8x8xf32>
    %c0_32 = arith.constant 0 : index
    %c37 = arith.constant 37 : index
    %36 = vector.load %arg0[%c0_32, %c37] : memref<8x896xf32, #tpu.memory_space<vmem>>, vector<8x768xf32>
    %cst_33 = arith.constant dense<0.000000e+00> : vector<8x768xf32>
    %37 = tpu.matmul %35, %36, %cst_33 {dimension_numbers = #tpu.dot_dimension_numbers<[1], [0], [0], [1], [0, 0, 1, 1], [], []>} : vector<8x8xf32>, vector<8x768xf32>, vector<8x768xf32> -> vector<8x768xf32>
    %38 = arith.addf %33, %37 : vector<8x768xf32>
    %c8 = arith.constant 8 : index
    %c0_34 = arith.constant 0 : index
    %c0_35 = arith.constant 0 : index
    %39 = vector.load %arg1[%c8, %c0_34, %c0_35] : memref<9x8x8xf32, #tpu.memory_space<vmem>>, vector<1x8x8xf32>
    %40 = vector.shape_cast %39 : vector<1x8x8xf32> to vector<8x8xf32>
    %c0_36 = arith.constant 0 : index
    %c38 = arith.constant 38 : index
    %41 = vector.load %arg0[%c0_36, %c38] : memref<8x896xf32, #tpu.memory_space<vmem>>, vector<8x768xf32>
    %cst_37 = arith.constant dense<0.000000e+00> : vector<8x768xf32>
    %42 = tpu.matmul %40, %41, %cst_37 {dimension_numbers = #tpu.dot_dimension_numbers<[1], [0], [0], [1], [0, 0, 1, 1], [], []>} : vector<8x8xf32>, vector<8x768xf32>, vector<8x768xf32> -> vector<8x768xf32>
    %43 = arith.addf %38, %42 : vector<8x768xf32>
    %c0_38 = arith.constant 0 : index
    %c0_39 = arith.constant 0 : index
    %44 = vector.load %arg4[%c0_38, %c0_39] : memref<1x768xf32, #tpu.memory_space<vmem>>, vector<1x768xf32>
    %45 = vector.broadcast %44 : vector<1x768xf32> to vector<8x768xf32>
    %46 = arith.mulf %43, %45 : vector<8x768xf32>
    %cst_40 = arith.constant dense<0.000000e+00> : vector<8xf32>
    %47 = vector.multi_reduction <add>, %46, %cst_40 [1] : vector<8x768xf32> to vector<8xf32>
    %48 = vector.shape_cast %47 : vector<8xf32> to vector<8x1xf32>
    %cst_41 = arith.constant 7.812500e-03 : f32
    %49 = vector.broadcast %cst_41 : f32 to vector<8x1xf32>
    %50 = arith.mulf %48, %49 : vector<8x1xf32>
    %51 = vector.broadcast %50 : vector<8x1xf32> to vector<8x768xf32>
    %52 = arith.subf %43, %51 : vector<8x768xf32>
    %53 = arith.mulf %52, %52 : vector<8x768xf32>
    %54 = vector.broadcast %44 : vector<1x768xf32> to vector<8x768xf32>
    %55 = arith.mulf %53, %54 : vector<8x768xf32>
    %cst_42 = arith.constant dense<0.000000e+00> : vector<8xf32>
    %56 = vector.multi_reduction <add>, %55, %cst_42 [1] : vector<8x768xf32> to vector<8xf32>
    %57 = vector.shape_cast %56 : vector<8xf32> to vector<8x1xf32>
    %cst_43 = arith.constant 7.812500e-03 : f32
    %58 = vector.broadcast %cst_43 : f32 to vector<8x1xf32>
    %59 = arith.mulf %57, %58 : vector<8x1xf32>
    %cst_44 = arith.constant 9.99999974E-6 : f32
    %60 = vector.broadcast %cst_44 : f32 to vector<8x1xf32>
    %61 = arith.addf %59, %60 : vector<8x1xf32>
    %62 = math.rsqrt %61 : vector<8x1xf32>
    %c0_45 = arith.constant 0 : index
    %c0_46 = arith.constant 0 : index
    %63 = vector.load %arg2[%c0_45, %c0_46] : memref<8x1xf32, #tpu.memory_space<vmem>>, vector<8x1xf32>
    %64 = arith.mulf %62, %63 : vector<8x1xf32>
    %65 = vector.broadcast %64 : vector<8x1xf32> to vector<8x768xf32>
    %66 = arith.mulf %52, %65 : vector<8x768xf32>
    %c0_47 = arith.constant 0 : index
    %c0_48 = arith.constant 0 : index
    %67 = vector.load %arg3[%c0_47, %c0_48] : memref<8x1xf32, #tpu.memory_space<vmem>>, vector<8x1xf32>
    %68 = vector.broadcast %67 : vector<8x1xf32> to vector<8x768xf32>
    %69 = arith.addf %66, %68 : vector<8x768xf32>
    %cst_49 = arith.constant 0.000000e+00 : f32
    %70 = vector.broadcast %cst_49 : f32 to vector<8x768xf32>
    %71 = arith.maximumf %69, %70 : vector<8x768xf32>
    %c0_50 = arith.constant 0 : index
    %c0_51 = arith.constant 0 : index
    %72 = vector.load %arg5[%c0_50, %c0_51] : memref<8x768xf32, #tpu.memory_space<vmem>>, vector<8x768xf32>
    tpu.vector_store %arg5[%c0_50, %c0_51], %71 {strides = array<i32>} : memref<8x768xf32, #tpu.memory_space<vmem>>, vector<8x768xf32>,
    return
  }
}

module attributes {stable_mosaic.version = 11 : i64} {
  func.func @_conv_bn_relu_kernel(%arg0: memref<8x384xf32, #tpu.memory_space<vmem>>, %arg1: memref<9x8x8xf32, #tpu.memory_space<vmem>>, %arg2: memref<8x1xf32, #tpu.memory_space<vmem>>, %arg3: memref<8x1xf32, #tpu.memory_space<vmem>>, %arg4: memref<1x256xf32, #tpu.memory_space<vmem>>, %arg5: memref<8x256xf32, #tpu.memory_space<vmem>>) attributes {dimension_semantics = [], scalar_prefetch = 0 : i64, scratch_operands = 0 : i64, tpu.core_type = #tpu.core_type<tc>} {
    %c0 = arith.constant 0 : index
    %c0_0 = arith.constant 0 : index
    %c0_1 = arith.constant 0 : index
    %0 = vector.load %arg1[%c0, %c0_0, %c0_1] : memref<9x8x8xf32, #tpu.memory_space<vmem>>, vector<1x8x8xf32>
    %1 = vector.shape_cast %0 : vector<1x8x8xf32> to vector<8x8xf32>
    %c0_2 = arith.constant 0 : index
    %c0_3 = arith.constant 0 : index
    %2 = vector.load %arg0[%c0_2, %c0_3] : memref<8x384xf32, #tpu.memory_space<vmem>>, vector<8x256xf32>
    %cst = arith.constant dense<0.000000e+00> : vector<8x256xf32>
    %3 = tpu.matmul %1, %2, %cst {dimension_numbers = #tpu.dot_dimension_numbers<[1], [0], [0], [1], [0, 0, 1, 1], [], []>} : vector<8x8xf32>, vector<8x256xf32>, vector<8x256xf32> -> vector<8x256xf32>
    %c1 = arith.constant 1 : index
    %c0_4 = arith.constant 0 : index
    %c0_5 = arith.constant 0 : index
    %4 = vector.load %arg1[%c1, %c0_4, %c0_5] : memref<9x8x8xf32, #tpu.memory_space<vmem>>, vector<1x8x8xf32>
    %5 = vector.shape_cast %4 : vector<1x8x8xf32> to vector<8x8xf32>
    %c0_6 = arith.constant 0 : index
    %c1_7 = arith.constant 1 : index
    %6 = vector.load %arg0[%c0_6, %c1_7] : memref<8x384xf32, #tpu.memory_space<vmem>>, vector<8x256xf32>
    %cst_8 = arith.constant dense<0.000000e+00> : vector<8x256xf32>
    %7 = tpu.matmul %5, %6, %cst_8 {dimension_numbers = #tpu.dot_dimension_numbers<[1], [0], [0], [1], [0, 0, 1, 1], [], []>} : vector<8x8xf32>, vector<8x256xf32>, vector<8x256xf32> -> vector<8x256xf32>
    %8 = arith.addf %3, %7 : vector<8x256xf32>
    %c2 = arith.constant 2 : index
    %c0_9 = arith.constant 0 : index
    %c0_10 = arith.constant 0 : index
    %9 = vector.load %arg1[%c2, %c0_9, %c0_10] : memref<9x8x8xf32, #tpu.memory_space<vmem>>, vector<1x8x8xf32>
    %10 = vector.shape_cast %9 : vector<1x8x8xf32> to vector<8x8xf32>
    %c0_11 = arith.constant 0 : index
    %c2_12 = arith.constant 2 : index
    %11 = vector.load %arg0[%c0_11, %c2_12] : memref<8x384xf32, #tpu.memory_space<vmem>>, vector<8x256xf32>
    %cst_13 = arith.constant dense<0.000000e+00> : vector<8x256xf32>
    %12 = tpu.matmul %10, %11, %cst_13 {dimension_numbers = #tpu.dot_dimension_numbers<[1], [0], [0], [1], [0, 0, 1, 1], [], []>} : vector<8x8xf32>, vector<8x256xf32>, vector<8x256xf32> -> vector<8x256xf32>
    %13 = arith.addf %8, %12 : vector<8x256xf32>
    %c3 = arith.constant 3 : index
    %c0_14 = arith.constant 0 : index
    %c0_15 = arith.constant 0 : index
    %14 = vector.load %arg1[%c3, %c0_14, %c0_15] : memref<9x8x8xf32, #tpu.memory_space<vmem>>, vector<1x8x8xf32>
    %15 = vector.shape_cast %14 : vector<1x8x8xf32> to vector<8x8xf32>
    %c0_16 = arith.constant 0 : index
    %c10 = arith.constant 10 : index
    %16 = vector.load %arg0[%c0_16, %c10] : memref<8x384xf32, #tpu.memory_space<vmem>>, vector<8x256xf32>
    %cst_17 = arith.constant dense<0.000000e+00> : vector<8x256xf32>
    %17 = tpu.matmul %15, %16, %cst_17 {dimension_numbers = #tpu.dot_dimension_numbers<[1], [0], [0], [1], [0, 0, 1, 1], [], []>} : vector<8x8xf32>, vector<8x256xf32>, vector<8x256xf32> -> vector<8x256xf32>
    %18 = arith.addf %13, %17 : vector<8x256xf32>
    %c4 = arith.constant 4 : index
    %c0_18 = arith.constant 0 : index
    %c0_19 = arith.constant 0 : index
    %19 = vector.load %arg1[%c4, %c0_18, %c0_19] : memref<9x8x8xf32, #tpu.memory_space<vmem>>, vector<1x8x8xf32>
    %20 = vector.shape_cast %19 : vector<1x8x8xf32> to vector<8x8xf32>
    %c0_20 = arith.constant 0 : index
    %c11 = arith.constant 11 : index
    %21 = vector.load %arg0[%c0_20, %c11] : memref<8x384xf32, #tpu.memory_space<vmem>>, vector<8x256xf32>
    %cst_21 = arith.constant dense<0.000000e+00> : vector<8x256xf32>
    %22 = tpu.matmul %20, %21, %cst_21 {dimension_numbers = #tpu.dot_dimension_numbers<[1], [0], [0], [1], [0, 0, 1, 1], [], []>} : vector<8x8xf32>, vector<8x256xf32>, vector<8x256xf32> -> vector<8x256xf32>
    %23 = arith.addf %18, %22 : vector<8x256xf32>
    %c5 = arith.constant 5 : index
    %c0_22 = arith.constant 0 : index
    %c0_23 = arith.constant 0 : index
    %24 = vector.load %arg1[%c5, %c0_22, %c0_23] : memref<9x8x8xf32, #tpu.memory_space<vmem>>, vector<1x8x8xf32>
    %25 = vector.shape_cast %24 : vector<1x8x8xf32> to vector<8x8xf32>
    %c0_24 = arith.constant 0 : index
    %c12 = arith.constant 12 : index
    %26 = vector.load %arg0[%c0_24, %c12] : memref<8x384xf32, #tpu.memory_space<vmem>>, vector<8x256xf32>
    %cst_25 = arith.constant dense<0.000000e+00> : vector<8x256xf32>
    %27 = tpu.matmul %25, %26, %cst_25 {dimension_numbers = #tpu.dot_dimension_numbers<[1], [0], [0], [1], [0, 0, 1, 1], [], []>} : vector<8x8xf32>, vector<8x256xf32>, vector<8x256xf32> -> vector<8x256xf32>
    %28 = arith.addf %23, %27 : vector<8x256xf32>
    %c6 = arith.constant 6 : index
    %c0_26 = arith.constant 0 : index
    %c0_27 = arith.constant 0 : index
    %29 = vector.load %arg1[%c6, %c0_26, %c0_27] : memref<9x8x8xf32, #tpu.memory_space<vmem>>, vector<1x8x8xf32>
    %30 = vector.shape_cast %29 : vector<1x8x8xf32> to vector<8x8xf32>
    %c0_28 = arith.constant 0 : index
    %c20 = arith.constant 20 : index
    %31 = vector.load %arg0[%c0_28, %c20] : memref<8x384xf32, #tpu.memory_space<vmem>>, vector<8x256xf32>
    %cst_29 = arith.constant dense<0.000000e+00> : vector<8x256xf32>
    %32 = tpu.matmul %30, %31, %cst_29 {dimension_numbers = #tpu.dot_dimension_numbers<[1], [0], [0], [1], [0, 0, 1, 1], [], []>} : vector<8x8xf32>, vector<8x256xf32>, vector<8x256xf32> -> vector<8x256xf32>
    %33 = arith.addf %28, %32 : vector<8x256xf32>
    %c7 = arith.constant 7 : index
    %c0_30 = arith.constant 0 : index
    %c0_31 = arith.constant 0 : index
    %34 = vector.load %arg1[%c7, %c0_30, %c0_31] : memref<9x8x8xf32, #tpu.memory_space<vmem>>, vector<1x8x8xf32>
    %35 = vector.shape_cast %34 : vector<1x8x8xf32> to vector<8x8xf32>
    %c0_32 = arith.constant 0 : index
    %c21 = arith.constant 21 : index
    %36 = vector.load %arg0[%c0_32, %c21] : memref<8x384xf32, #tpu.memory_space<vmem>>, vector<8x256xf32>
    %cst_33 = arith.constant dense<0.000000e+00> : vector<8x256xf32>
    %37 = tpu.matmul %35, %36, %cst_33 {dimension_numbers = #tpu.dot_dimension_numbers<[1], [0], [0], [1], [0, 0, 1, 1], [], []>} : vector<8x8xf32>, vector<8x256xf32>, vector<8x256xf32> -> vector<8x256xf32>
    %38 = arith.addf %33, %37 : vector<8x256xf32>
    %c8 = arith.constant 8 : index
    %c0_34 = arith.constant 0 : index
    %c0_35 = arith.constant 0 : index
    %39 = vector.load %arg1[%c8, %c0_34, %c0_35] : memref<9x8x8xf32, #tpu.memory_space<vmem>>, vector<1x8x8xf32>
    %40 = vector.shape_cast %39 : vector<1x8x8xf32> to vector<8x8xf32>
    %c0_36 = arith.constant 0 : index
    %c22 = arith.constant 22 : index
    %41 = vector.load %arg0[%c0_36, %c22] : memref<8x384xf32, #tpu.memory_space<vmem>>, vector<8x256xf32>
    %cst_37 = arith.constant dense<0.000000e+00> : vector<8x256xf32>
    %42 = tpu.matmul %40, %41, %cst_37 {dimension_numbers = #tpu.dot_dimension_numbers<[1], [0], [0], [1], [0, 0, 1, 1], [], []>} : vector<8x8xf32>, vector<8x256xf32>, vector<8x256xf32> -> vector<8x256xf32>
    %43 = arith.addf %38, %42 : vector<8x256xf32>
    %c0_38 = arith.constant 0 : index
    %c0_39 = arith.constant 0 : index
    %44 = vector.load %arg4[%c0_38, %c0_39] : memref<1x256xf32, #tpu.memory_space<vmem>>, vector<1x256xf32>
    %45 = vector.broadcast %44 : vector<1x256xf32> to vector<8x256xf32>
    %46 = arith.mulf %43, %45 : vector<8x256xf32>
    %cst_40 = arith.constant dense<0.000000e+00> : vector<8xf32>
    %47 = vector.multi_reduction <add>, %46, %cst_40 [1] : vector<8x256xf32> to vector<8xf32>
    %48 = vector.shape_cast %47 : vector<8xf32> to vector<8x1xf32>
    %cst_41 = arith.constant 3.125000e-02 : f32
    %49 = vector.broadcast %cst_41 : f32 to vector<8x1xf32>
    %50 = arith.mulf %48, %49 : vector<8x1xf32>
    %51 = vector.broadcast %50 : vector<8x1xf32> to vector<8x256xf32>
    %52 = arith.subf %43, %51 : vector<8x256xf32>
    %53 = arith.mulf %52, %52 : vector<8x256xf32>
    %54 = vector.broadcast %44 : vector<1x256xf32> to vector<8x256xf32>
    %55 = arith.mulf %53, %54 : vector<8x256xf32>
    %cst_42 = arith.constant dense<0.000000e+00> : vector<8xf32>
    %56 = vector.multi_reduction <add>, %55, %cst_42 [1] : vector<8x256xf32> to vector<8xf32>
    %57 = vector.shape_cast %56 : vector<8xf32> to vector<8x1xf32>
    %cst_43 = arith.constant 3.125000e-02 : f32
    %58 = vector.broadcast %cst_43 : f32 to vector<8x1xf32>
    %59 = arith.mulf %57, %58 : vector<8x1xf32>
    %cst_44 = arith.constant 9.99999974E-6 : f32
    %60 = vector.broadcast %cst_44 : f32 to vector<8x1xf32>
    %61 = arith.addf %59, %60 : vector<8x1xf32>
    %62 = math.rsqrt %61 : vector<8x1xf32>
    %c0_45 = arith.constant 0 : index
    %c0_46 = arith.constant 0 : index
    %63 = vector.load %arg2[%c0_45, %c0_46] : memref<8x1xf32, #tpu.memory_space<vmem>>, vector<8x1xf32>
    %64 = arith.mulf %62, %63 : vector<8x1xf32>
    %65 = vector.broadcast %64 : vector<8x1xf32> to vector<8x256xf32>
    %66 = arith.mulf %52, %65 : vector<8x256xf32>
    %c0_47 = arith.constant 0 : index
    %c0_48 = arith.constant 0 : index
    %67 = vector.load %arg3[%c0_47, %c0_48] : memref<8x1xf32, #tpu.memory_space<vmem>>, vector<8x1xf32>
    %68 = vector.broadcast %67 : vector<8x1xf32> to vector<8x256xf32>
    %69 = arith.addf %66, %68 : vector<8x256xf32>
    %cst_49 = arith.constant 0.000000e+00 : f32
    %70 = vector.broadcast %cst_49 : f32 to vector<8x256xf32>
    %71 = arith.maximumf %69, %70 : vector<8x256xf32>
    %c0_50 = arith.constant 0 : index
    %c0_51 = arith.constant 0 : index
    %72 = vector.load %arg5[%c0_50, %c0_51] : memref<8x256xf32, #tpu.memory_space<vmem>>, vector<8x256xf32>
    tpu.vector_store %arg5[%c0_50, %c0_51], %71 {strides = array<i32>} : memref<8x256xf32, #tpu.memory_space<vmem>>, vector<8x256xf32>,
    return
  }
}

module attributes {stable_mosaic.version = 11 : i64} {
  func.func @_conv_bn_relu_kernel(%arg0: memref<8x256xf32, #tpu.memory_space<vmem>>, %arg1: memref<9x16x8xf32, #tpu.memory_space<vmem>>, %arg2: memref<16x1xf32, #tpu.memory_space<vmem>>, %arg3: memref<16x1xf32, #tpu.memory_space<vmem>>, %arg4: memref<1x128xf32, #tpu.memory_space<vmem>>, %arg5: memref<16x128xf32, #tpu.memory_space<vmem>>) attributes {dimension_semantics = [], scalar_prefetch = 0 : i64, scratch_operands = 0 : i64, tpu.core_type = #tpu.core_type<tc>} {
    %c0 = arith.constant 0 : index
    %c0_0 = arith.constant 0 : index
    %c0_1 = arith.constant 0 : index
    %0 = vector.load %arg1[%c0, %c0_0, %c0_1] : memref<9x16x8xf32, #tpu.memory_space<vmem>>, vector<1x16x8xf32>
    %1 = vector.shape_cast %0 : vector<1x16x8xf32> to vector<16x8xf32>
    %c0_2 = arith.constant 0 : index
    %c0_3 = arith.constant 0 : index
    %2 = vector.load %arg0[%c0_2, %c0_3] : memref<8x256xf32, #tpu.memory_space<vmem>>, vector<8x128xf32>
    %cst = arith.constant dense<0.000000e+00> : vector<16x128xf32>
    %3 = tpu.matmul %1, %2, %cst {dimension_numbers = #tpu.dot_dimension_numbers<[1], [0], [0], [1], [0, 0, 1, 1], [], []>} : vector<16x8xf32>, vector<8x128xf32>, vector<16x128xf32> -> vector<16x128xf32>
    %c1 = arith.constant 1 : index
    %c0_4 = arith.constant 0 : index
    %c0_5 = arith.constant 0 : index
    %4 = vector.load %arg1[%c1, %c0_4, %c0_5] : memref<9x16x8xf32, #tpu.memory_space<vmem>>, vector<1x16x8xf32>
    %5 = vector.shape_cast %4 : vector<1x16x8xf32> to vector<16x8xf32>
    %c0_6 = arith.constant 0 : index
    %c1_7 = arith.constant 1 : index
    %6 = vector.load %arg0[%c0_6, %c1_7] : memref<8x256xf32, #tpu.memory_space<vmem>>, vector<8x128xf32>
    %cst_8 = arith.constant dense<0.000000e+00> : vector<16x128xf32>
    %7 = tpu.matmul %5, %6, %cst_8 {dimension_numbers = #tpu.dot_dimension_numbers<[1], [0], [0], [1], [0, 0, 1, 1], [], []>} : vector<16x8xf32>, vector<8x128xf32>, vector<16x128xf32> -> vector<16x128xf32>
    %8 = arith.addf %3, %7 : vector<16x128xf32>
    %c2 = arith.constant 2 : index
    %c0_9 = arith.constant 0 : index
    %c0_10 = arith.constant 0 : index
    %9 = vector.load %arg1[%c2, %c0_9, %c0_10] : memref<9x16x8xf32, #tpu.memory_space<vmem>>, vector<1x16x8xf32>
    %10 = vector.shape_cast %9 : vector<1x16x8xf32> to vector<16x8xf32>
    %c0_11 = arith.constant 0 : index
    %c2_12 = arith.constant 2 : index
    %11 = vector.load %arg0[%c0_11, %c2_12] : memref<8x256xf32, #tpu.memory_space<vmem>>, vector<8x128xf32>
    %cst_13 = arith.constant dense<0.000000e+00> : vector<16x128xf32>
    %12 = tpu.matmul %10, %11, %cst_13 {dimension_numbers = #tpu.dot_dimension_numbers<[1], [0], [0], [1], [0, 0, 1, 1], [], []>} : vector<16x8xf32>, vector<8x128xf32>, vector<16x128xf32> -> vector<16x128xf32>
    %13 = arith.addf %8, %12 : vector<16x128xf32>
    %c3 = arith.constant 3 : index
    %c0_14 = arith.constant 0 : index
    %c0_15 = arith.constant 0 : index
    %14 = vector.load %arg1[%c3, %c0_14, %c0_15] : memref<9x16x8xf32, #tpu.memory_space<vmem>>, vector<1x16x8xf32>
    %15 = vector.shape_cast %14 : vector<1x16x8xf32> to vector<16x8xf32>
    %c0_16 = arith.constant 0 : index
    %c6 = arith.constant 6 : index
    %16 = vector.load %arg0[%c0_16, %c6] : memref<8x256xf32, #tpu.memory_space<vmem>>, vector<8x128xf32>
    %cst_17 = arith.constant dense<0.000000e+00> : vector<16x128xf32>
    %17 = tpu.matmul %15, %16, %cst_17 {dimension_numbers = #tpu.dot_dimension_numbers<[1], [0], [0], [1], [0, 0, 1, 1], [], []>} : vector<16x8xf32>, vector<8x128xf32>, vector<16x128xf32> -> vector<16x128xf32>
    %18 = arith.addf %13, %17 : vector<16x128xf32>
    %c4 = arith.constant 4 : index
    %c0_18 = arith.constant 0 : index
    %c0_19 = arith.constant 0 : index
    %19 = vector.load %arg1[%c4, %c0_18, %c0_19] : memref<9x16x8xf32, #tpu.memory_space<vmem>>, vector<1x16x8xf32>
    %20 = vector.shape_cast %19 : vector<1x16x8xf32> to vector<16x8xf32>
    %c0_20 = arith.constant 0 : index
    %c7 = arith.constant 7 : index
    %21 = vector.load %arg0[%c0_20, %c7] : memref<8x256xf32, #tpu.memory_space<vmem>>, vector<8x128xf32>
    %cst_21 = arith.constant dense<0.000000e+00> : vector<16x128xf32>
    %22 = tpu.matmul %20, %21, %cst_21 {dimension_numbers = #tpu.dot_dimension_numbers<[1], [0], [0], [1], [0, 0, 1, 1], [], []>} : vector<16x8xf32>, vector<8x128xf32>, vector<16x128xf32> -> vector<16x128xf32>
    %23 = arith.addf %18, %22 : vector<16x128xf32>
    %c5 = arith.constant 5 : index
    %c0_22 = arith.constant 0 : index
    %c0_23 = arith.constant 0 : index
    %24 = vector.load %arg1[%c5, %c0_22, %c0_23] : memref<9x16x8xf32, #tpu.memory_space<vmem>>, vector<1x16x8xf32>
    %25 = vector.shape_cast %24 : vector<1x16x8xf32> to vector<16x8xf32>
    %c0_24 = arith.constant 0 : index
    %c8 = arith.constant 8 : index
    %26 = vector.load %arg0[%c0_24, %c8] : memref<8x256xf32, #tpu.memory_space<vmem>>, vector<8x128xf32>
    %cst_25 = arith.constant dense<0.000000e+00> : vector<16x128xf32>
    %27 = tpu.matmul %25, %26, %cst_25 {dimension_numbers = #tpu.dot_dimension_numbers<[1], [0], [0], [1], [0, 0, 1, 1], [], []>} : vector<16x8xf32>, vector<8x128xf32>, vector<16x128xf32> -> vector<16x128xf32>
    %28 = arith.addf %23, %27 : vector<16x128xf32>
    %c6_26 = arith.constant 6 : index
    %c0_27 = arith.constant 0 : index
    %c0_28 = arith.constant 0 : index
    %29 = vector.load %arg1[%c6_26, %c0_27, %c0_28] : memref<9x16x8xf32, #tpu.memory_space<vmem>>, vector<1x16x8xf32>
    %30 = vector.shape_cast %29 : vector<1x16x8xf32> to vector<16x8xf32>
    %c0_29 = arith.constant 0 : index
    %c12 = arith.constant 12 : index
    %31 = vector.load %arg0[%c0_29, %c12] : memref<8x256xf32, #tpu.memory_space<vmem>>, vector<8x128xf32>
    %cst_30 = arith.constant dense<0.000000e+00> : vector<16x128xf32>
    %32 = tpu.matmul %30, %31, %cst_30 {dimension_numbers = #tpu.dot_dimension_numbers<[1], [0], [0], [1], [0, 0, 1, 1], [], []>} : vector<16x8xf32>, vector<8x128xf32>, vector<16x128xf32> -> vector<16x128xf32>
    %33 = arith.addf %28, %32 : vector<16x128xf32>
    %c7_31 = arith.constant 7 : index
    %c0_32 = arith.constant 0 : index
    %c0_33 = arith.constant 0 : index
    %34 = vector.load %arg1[%c7_31, %c0_32, %c0_33] : memref<9x16x8xf32, #tpu.memory_space<vmem>>, vector<1x16x8xf32>
    %35 = vector.shape_cast %34 : vector<1x16x8xf32> to vector<16x8xf32>
    %c0_34 = arith.constant 0 : index
    %c13 = arith.constant 13 : index
    %36 = vector.load %arg0[%c0_34, %c13] : memref<8x256xf32, #tpu.memory_space<vmem>>, vector<8x128xf32>
    %cst_35 = arith.constant dense<0.000000e+00> : vector<16x128xf32>
    %37 = tpu.matmul %35, %36, %cst_35 {dimension_numbers = #tpu.dot_dimension_numbers<[1], [0], [0], [1], [0, 0, 1, 1], [], []>} : vector<16x8xf32>, vector<8x128xf32>, vector<16x128xf32> -> vector<16x128xf32>
    %38 = arith.addf %33, %37 : vector<16x128xf32>
    %c8_36 = arith.constant 8 : index
    %c0_37 = arith.constant 0 : index
    %c0_38 = arith.constant 0 : index
    %39 = vector.load %arg1[%c8_36, %c0_37, %c0_38] : memref<9x16x8xf32, #tpu.memory_space<vmem>>, vector<1x16x8xf32>
    %40 = vector.shape_cast %39 : vector<1x16x8xf32> to vector<16x8xf32>
    %c0_39 = arith.constant 0 : index
    %c14 = arith.constant 14 : index
    %41 = vector.load %arg0[%c0_39, %c14] : memref<8x256xf32, #tpu.memory_space<vmem>>, vector<8x128xf32>
    %cst_40 = arith.constant dense<0.000000e+00> : vector<16x128xf32>
    %42 = tpu.matmul %40, %41, %cst_40 {dimension_numbers = #tpu.dot_dimension_numbers<[1], [0], [0], [1], [0, 0, 1, 1], [], []>} : vector<16x8xf32>, vector<8x128xf32>, vector<16x128xf32> -> vector<16x128xf32>
    %43 = arith.addf %38, %42 : vector<16x128xf32>
    %c0_41 = arith.constant 0 : index
    %c0_42 = arith.constant 0 : index
    %44 = vector.load %arg4[%c0_41, %c0_42] : memref<1x128xf32, #tpu.memory_space<vmem>>, vector<1x128xf32>
    %45 = vector.broadcast %44 : vector<1x128xf32> to vector<16x128xf32>
    %46 = arith.mulf %43, %45 : vector<16x128xf32>
    %cst_43 = arith.constant dense<0.000000e+00> : vector<16xf32>
    %47 = vector.multi_reduction <add>, %46, %cst_43 [1] : vector<16x128xf32> to vector<16xf32>
    %48 = vector.shape_cast %47 : vector<16xf32> to vector<16x1xf32>
    %cst_44 = arith.constant 1.250000e-01 : f32
    %49 = vector.broadcast %cst_44 : f32 to vector<16x1xf32>
    %50 = arith.mulf %48, %49 : vector<16x1xf32>
    %51 = vector.broadcast %50 : vector<16x1xf32> to vector<16x128xf32>
    %52 = arith.subf %43, %51 : vector<16x128xf32>
    %53 = arith.mulf %52, %52 : vector<16x128xf32>
    %54 = vector.broadcast %44 : vector<1x128xf32> to vector<16x128xf32>
    %55 = arith.mulf %53, %54 : vector<16x128xf32>
    %cst_45 = arith.constant dense<0.000000e+00> : vector<16xf32>
    %56 = vector.multi_reduction <add>, %55, %cst_45 [1] : vector<16x128xf32> to vector<16xf32>
    %57 = vector.shape_cast %56 : vector<16xf32> to vector<16x1xf32>
    %cst_46 = arith.constant 1.250000e-01 : f32
    %58 = vector.broadcast %cst_46 : f32 to vector<16x1xf32>
    %59 = arith.mulf %57, %58 : vector<16x1xf32>
    %cst_47 = arith.constant 9.99999974E-6 : f32
    %60 = vector.broadcast %cst_47 : f32 to vector<16x1xf32>
    %61 = arith.addf %59, %60 : vector<16x1xf32>
    %62 = math.rsqrt %61 : vector<16x1xf32>
    %c0_48 = arith.constant 0 : index
    %c0_49 = arith.constant 0 : index
    %63 = vector.load %arg2[%c0_48, %c0_49] : memref<16x1xf32, #tpu.memory_space<vmem>>, vector<16x1xf32>
    %64 = arith.mulf %62, %63 : vector<16x1xf32>
    %65 = vector.broadcast %64 : vector<16x1xf32> to vector<16x128xf32>
    %66 = arith.mulf %52, %65 : vector<16x128xf32>
    %c0_50 = arith.constant 0 : index
    %c0_51 = arith.constant 0 : index
    %67 = vector.load %arg3[%c0_50, %c0_51] : memref<16x1xf32, #tpu.memory_space<vmem>>, vector<16x1xf32>
    %68 = vector.broadcast %67 : vector<16x1xf32> to vector<16x128xf32>
    %69 = arith.addf %66, %68 : vector<16x128xf32>
    %cst_52 = arith.constant 0.000000e+00 : f32
    %70 = vector.broadcast %cst_52 : f32 to vector<16x128xf32>
    %71 = arith.maximumf %69, %70 : vector<16x128xf32>
    %c0_53 = arith.constant 0 : index
    %c0_54 = arith.constant 0 : index
    %72 = vector.load %arg5[%c0_53, %c0_54] : memref<16x128xf32, #tpu.memory_space<vmem>>, vector<16x128xf32>
    tpu.vector_store %arg5[%c0_53, %c0_54], %71 {strides = array<i32>} : memref<16x128xf32, #tpu.memory_space<vmem>>, vector<16x128xf32>,
    return
  }
}

module attributes {stable_mosaic.version = 11 : i64} {
  func.func @_latent_kernel(%arg0: memref<2x64xf32, #tpu.memory_space<vmem>>, %arg1: memref<64x16xf32, #tpu.memory_space<vmem>>, %arg2: memref<1x16xf32, #tpu.memory_space<vmem>>, %arg3: memref<64x16xf32, #tpu.memory_space<vmem>>, %arg4: memref<1x16xf32, #tpu.memory_space<vmem>>, %arg5: memref<2x16xf32, #tpu.memory_space<vmem>>, %arg6: memref<16x64xf32, #tpu.memory_space<vmem>>, %arg7: memref<1x64xf32, #tpu.memory_space<vmem>>, %arg8: memref<2x112xf32, #tpu.memory_space<vmem>>) attributes {dimension_semantics = [], scalar_prefetch = 0 : i64, scratch_operands = 0 : i64, tpu.core_type = #tpu.core_type<tc>} {
    %c0 = arith.constant 0 : index
    %c0_0 = arith.constant 0 : index
    %0 = vector.load %arg0[%c0, %c0_0] : memref<2x64xf32, #tpu.memory_space<vmem>>, vector<2x64xf32>
    %c0_1 = arith.constant 0 : index
    %c0_2 = arith.constant 0 : index
    %1 = vector.load %arg1[%c0_1, %c0_2] : memref<64x16xf32, #tpu.memory_space<vmem>>, vector<64x16xf32>
    %cst = arith.constant dense<0.000000e+00> : vector<2x16xf32>
    %2 = tpu.matmul %0, %1, %cst {dimension_numbers = #tpu.dot_dimension_numbers<[1], [0], [0], [1], [0, 0, 1, 1], [], []>} : vector<2x64xf32>, vector<64x16xf32>, vector<2x16xf32> -> vector<2x16xf32>
    %c0_3 = arith.constant 0 : index
    %c0_4 = arith.constant 0 : index
    %3 = vector.load %arg2[%c0_3, %c0_4] : memref<1x16xf32, #tpu.memory_space<vmem>>, vector<1x16xf32>
    %4 = vector.broadcast %3 : vector<1x16xf32> to vector<2x16xf32>
    %5 = arith.addf %2, %4 : vector<2x16xf32>
    %c0_5 = arith.constant 0 : index
    %c0_6 = arith.constant 0 : index
    %6 = vector.load %arg3[%c0_5, %c0_6] : memref<64x16xf32, #tpu.memory_space<vmem>>, vector<64x16xf32>
    %cst_7 = arith.constant dense<0.000000e+00> : vector<2x16xf32>
    %7 = tpu.matmul %0, %6, %cst_7 {dimension_numbers = #tpu.dot_dimension_numbers<[1], [0], [0], [1], [0, 0, 1, 1], [], []>} : vector<2x64xf32>, vector<64x16xf32>, vector<2x16xf32> -> vector<2x16xf32>
    %c0_8 = arith.constant 0 : index
    %c0_9 = arith.constant 0 : index
    %8 = vector.load %arg4[%c0_8, %c0_9] : memref<1x16xf32, #tpu.memory_space<vmem>>, vector<1x16xf32>
    %9 = vector.broadcast %8 : vector<1x16xf32> to vector<2x16xf32>
    %10 = arith.addf %7, %9 : vector<2x16xf32>
    %c0_10 = arith.constant 0 : index
    %c0_11 = arith.constant 0 : index
    %11 = vector.load %arg5[%c0_10, %c0_11] : memref<2x16xf32, #tpu.memory_space<vmem>>, vector<2x16xf32>
    %cst_12 = arith.constant 5.000000e-01 : f32
    %12 = vector.broadcast %cst_12 : f32 to vector<2x16xf32>
    %13 = arith.mulf %12, %10 : vector<2x16xf32>
    %14 = math.exp %13 : vector<2x16xf32>
    %15 = arith.mulf %11, %14 : vector<2x16xf32>
    %16 = arith.addf %15, %5 : vector<2x16xf32>
    %c0_13 = arith.constant 0 : index
    %c0_14 = arith.constant 0 : index
    %17 = vector.load %arg6[%c0_13, %c0_14] : memref<16x64xf32, #tpu.memory_space<vmem>>, vector<16x64xf32>
    %cst_15 = arith.constant dense<0.000000e+00> : vector<2x64xf32>
    %18 = tpu.matmul %16, %17, %cst_15 {dimension_numbers = #tpu.dot_dimension_numbers<[1], [0], [0], [1], [0, 0, 1, 1], [], []>} : vector<2x16xf32>, vector<16x64xf32>, vector<2x64xf32> -> vector<2x64xf32>
    %c0_16 = arith.constant 0 : index
    %c0_17 = arith.constant 0 : index
    %19 = vector.load %arg7[%c0_16, %c0_17] : memref<1x64xf32, #tpu.memory_space<vmem>>, vector<1x64xf32>
    %20 = vector.broadcast %19 : vector<1x64xf32> to vector<2x64xf32>
    %21 = arith.addf %18, %20 : vector<2x64xf32>
    %22 = tpu.concatenate %5, %10, %16, %21 in 1 : vector<2x16xf32>, vector<2x16xf32>, vector<2x16xf32>, vector<2x64xf32> -> vector<2x112xf32>
    %c0_18 = arith.constant 0 : index
    %c0_19 = arith.constant 0 : index
    %23 = vector.load %arg8[%c0_18, %c0_19] : memref<2x112xf32, #tpu.memory_space<vmem>>, vector<2x112xf32>
    tpu.vector_store %arg8[%c0_18, %c0_19], %22 {strides = array<i32>} : memref<2x112xf32, #tpu.memory_space<vmem>>, vector<2x112xf32>,
    return
  }
}

module attributes {stable_mosaic.version = 11 : i64} {
  func.func @_deconv_bn_relu_kernel(%arg0: memref<16x256xf32, #tpu.memory_space<vmem>>, %arg1: memref<9x8x16xf32, #tpu.memory_space<vmem>>, %arg2: memref<8x1xf32, #tpu.memory_space<vmem>>, %arg3: memref<8x1xf32, #tpu.memory_space<vmem>>, %arg4: memref<1x128xf32, #tpu.memory_space<vmem>>, %arg5: memref<32x128xf32, #tpu.memory_space<vmem>>) attributes {dimension_semantics = [], scalar_prefetch = 0 : i64, scratch_operands = 0 : i64, tpu.core_type = #tpu.core_type<tc>} {
    %c0 = arith.constant 0 : index
    %c0_0 = arith.constant 0 : index
    %c0_1 = arith.constant 0 : index
    %0 = vector.load %arg1[%c0, %c0_0, %c0_1] : memref<9x8x16xf32, #tpu.memory_space<vmem>>, vector<1x8x16xf32>
    %1 = vector.shape_cast %0 : vector<1x8x16xf32> to vector<8x16xf32>
    %c0_2 = arith.constant 0 : index
    %c0_3 = arith.constant 0 : index
    %2 = vector.load %arg0[%c0_2, %c0_3] : memref<16x256xf32, #tpu.memory_space<vmem>>, vector<16x128xf32>
    %cst = arith.constant dense<0.000000e+00> : vector<8x128xf32>
    %3 = tpu.matmul %1, %2, %cst {dimension_numbers = #tpu.dot_dimension_numbers<[1], [0], [0], [1], [0, 0, 1, 1], [], []>} : vector<8x16xf32>, vector<16x128xf32>, vector<8x128xf32> -> vector<8x128xf32>
    %c1 = arith.constant 1 : index
    %c0_4 = arith.constant 0 : index
    %c0_5 = arith.constant 0 : index
    %4 = vector.load %arg1[%c1, %c0_4, %c0_5] : memref<9x8x16xf32, #tpu.memory_space<vmem>>, vector<1x8x16xf32>
    %5 = vector.shape_cast %4 : vector<1x8x16xf32> to vector<8x16xf32>
    %c0_6 = arith.constant 0 : index
    %c1_7 = arith.constant 1 : index
    %6 = vector.load %arg0[%c0_6, %c1_7] : memref<16x256xf32, #tpu.memory_space<vmem>>, vector<16x128xf32>
    %cst_8 = arith.constant dense<0.000000e+00> : vector<8x128xf32>
    %7 = tpu.matmul %5, %6, %cst_8 {dimension_numbers = #tpu.dot_dimension_numbers<[1], [0], [0], [1], [0, 0, 1, 1], [], []>} : vector<8x16xf32>, vector<16x128xf32>, vector<8x128xf32> -> vector<8x128xf32>
    %c2 = arith.constant 2 : index
    %c0_9 = arith.constant 0 : index
    %c0_10 = arith.constant 0 : index
    %8 = vector.load %arg1[%c2, %c0_9, %c0_10] : memref<9x8x16xf32, #tpu.memory_space<vmem>>, vector<1x8x16xf32>
    %9 = vector.shape_cast %8 : vector<1x8x16xf32> to vector<8x16xf32>
    %c0_11 = arith.constant 0 : index
    %c0_12 = arith.constant 0 : index
    %10 = vector.load %arg0[%c0_11, %c0_12] : memref<16x256xf32, #tpu.memory_space<vmem>>, vector<16x128xf32>
    %cst_13 = arith.constant dense<0.000000e+00> : vector<8x128xf32>
    %11 = tpu.matmul %9, %10, %cst_13 {dimension_numbers = #tpu.dot_dimension_numbers<[1], [0], [0], [1], [0, 0, 1, 1], [], []>} : vector<8x16xf32>, vector<16x128xf32>, vector<8x128xf32> -> vector<8x128xf32>
    %12 = arith.addf %7, %11 : vector<8x128xf32>
    %c3 = arith.constant 3 : index
    %c0_14 = arith.constant 0 : index
    %c0_15 = arith.constant 0 : index
    %13 = vector.load %arg1[%c3, %c0_14, %c0_15] : memref<9x8x16xf32, #tpu.memory_space<vmem>>, vector<1x8x16xf32>
    %14 = vector.shape_cast %13 : vector<1x8x16xf32> to vector<8x16xf32>
    %c0_16 = arith.constant 0 : index
    %c3_17 = arith.constant 3 : index
    %15 = vector.load %arg0[%c0_16, %c3_17] : memref<16x256xf32, #tpu.memory_space<vmem>>, vector<16x128xf32>
    %cst_18 = arith.constant dense<0.000000e+00> : vector<8x128xf32>
    %16 = tpu.matmul %14, %15, %cst_18 {dimension_numbers = #tpu.dot_dimension_numbers<[1], [0], [0], [1], [0, 0, 1, 1], [], []>} : vector<8x16xf32>, vector<16x128xf32>, vector<8x128xf32> -> vector<8x128xf32>
    %c4 = arith.constant 4 : index
    %c0_19 = arith.constant 0 : index
    %c0_20 = arith.constant 0 : index
    %17 = vector.load %arg1[%c4, %c0_19, %c0_20] : memref<9x8x16xf32, #tpu.memory_space<vmem>>, vector<1x8x16xf32>
    %18 = vector.shape_cast %17 : vector<1x8x16xf32> to vector<8x16xf32>
    %c0_21 = arith.constant 0 : index
    %c0_22 = arith.constant 0 : index
    %19 = vector.load %arg0[%c0_21, %c0_22] : memref<16x256xf32, #tpu.memory_space<vmem>>, vector<16x128xf32>
    %cst_23 = arith.constant dense<0.000000e+00> : vector<8x128xf32>
    %20 = tpu.matmul %18, %19, %cst_23 {dimension_numbers = #tpu.dot_dimension_numbers<[1], [0], [0], [1], [0, 0, 1, 1], [], []>} : vector<8x16xf32>, vector<16x128xf32>, vector<8x128xf32> -> vector<8x128xf32>
    %21 = arith.addf %16, %20 : vector<8x128xf32>
    %c5 = arith.constant 5 : index
    %c0_24 = arith.constant 0 : index
    %c0_25 = arith.constant 0 : index
    %22 = vector.load %arg1[%c5, %c0_24, %c0_25] : memref<9x8x16xf32, #tpu.memory_space<vmem>>, vector<1x8x16xf32>
    %23 = vector.shape_cast %22 : vector<1x8x16xf32> to vector<8x16xf32>
    %c0_26 = arith.constant 0 : index
    %c4_27 = arith.constant 4 : index
    %24 = vector.load %arg0[%c0_26, %c4_27] : memref<16x256xf32, #tpu.memory_space<vmem>>, vector<16x128xf32>
    %cst_28 = arith.constant dense<0.000000e+00> : vector<8x128xf32>
    %25 = tpu.matmul %23, %24, %cst_28 {dimension_numbers = #tpu.dot_dimension_numbers<[1], [0], [0], [1], [0, 0, 1, 1], [], []>} : vector<8x16xf32>, vector<16x128xf32>, vector<8x128xf32> -> vector<8x128xf32>
    %c6 = arith.constant 6 : index
    %c0_29 = arith.constant 0 : index
    %c0_30 = arith.constant 0 : index
    %26 = vector.load %arg1[%c6, %c0_29, %c0_30] : memref<9x8x16xf32, #tpu.memory_space<vmem>>, vector<1x8x16xf32>
    %27 = vector.shape_cast %26 : vector<1x8x16xf32> to vector<8x16xf32>
    %c0_31 = arith.constant 0 : index
    %c3_32 = arith.constant 3 : index
    %28 = vector.load %arg0[%c0_31, %c3_32] : memref<16x256xf32, #tpu.memory_space<vmem>>, vector<16x128xf32>
    %cst_33 = arith.constant dense<0.000000e+00> : vector<8x128xf32>
    %29 = tpu.matmul %27, %28, %cst_33 {dimension_numbers = #tpu.dot_dimension_numbers<[1], [0], [0], [1], [0, 0, 1, 1], [], []>} : vector<8x16xf32>, vector<16x128xf32>, vector<8x128xf32> -> vector<8x128xf32>
    %30 = arith.addf %25, %29 : vector<8x128xf32>
    %c7 = arith.constant 7 : index
    %c0_34 = arith.constant 0 : index
    %c0_35 = arith.constant 0 : index
    %31 = vector.load %arg1[%c7, %c0_34, %c0_35] : memref<9x8x16xf32, #tpu.memory_space<vmem>>, vector<1x8x16xf32>
    %32 = vector.shape_cast %31 : vector<1x8x16xf32> to vector<8x16xf32>
    %c0_36 = arith.constant 0 : index
    %c1_37 = arith.constant 1 : index
    %33 = vector.load %arg0[%c0_36, %c1_37] : memref<16x256xf32, #tpu.memory_space<vmem>>, vector<16x128xf32>
    %cst_38 = arith.constant dense<0.000000e+00> : vector<8x128xf32>
    %34 = tpu.matmul %32, %33, %cst_38 {dimension_numbers = #tpu.dot_dimension_numbers<[1], [0], [0], [1], [0, 0, 1, 1], [], []>} : vector<8x16xf32>, vector<16x128xf32>, vector<8x128xf32> -> vector<8x128xf32>
    %35 = arith.addf %30, %34 : vector<8x128xf32>
    %c8 = arith.constant 8 : index
    %c0_39 = arith.constant 0 : index
    %c0_40 = arith.constant 0 : index
    %36 = vector.load %arg1[%c8, %c0_39, %c0_40] : memref<9x8x16xf32, #tpu.memory_space<vmem>>, vector<1x8x16xf32>
    %37 = vector.shape_cast %36 : vector<1x8x16xf32> to vector<8x16xf32>
    %c0_41 = arith.constant 0 : index
    %c0_42 = arith.constant 0 : index
    %38 = vector.load %arg0[%c0_41, %c0_42] : memref<16x256xf32, #tpu.memory_space<vmem>>, vector<16x128xf32>
    %cst_43 = arith.constant dense<0.000000e+00> : vector<8x128xf32>
    %39 = tpu.matmul %37, %38, %cst_43 {dimension_numbers = #tpu.dot_dimension_numbers<[1], [0], [0], [1], [0, 0, 1, 1], [], []>} : vector<8x16xf32>, vector<16x128xf32>, vector<8x128xf32> -> vector<8x128xf32>
    %40 = arith.addf %35, %39 : vector<8x128xf32>
    %c0_44 = arith.constant 0 : index
    %c0_45 = arith.constant 0 : index
    %41 = vector.load %arg4[%c0_44, %c0_45] : memref<1x128xf32, #tpu.memory_space<vmem>>, vector<1x128xf32>
    %42 = vector.broadcast %41 : vector<1x128xf32> to vector<8x128xf32>
    %43 = arith.mulf %3, %42 : vector<8x128xf32>
    %cst_46 = arith.constant dense<0.000000e+00> : vector<8xf32>
    %44 = vector.multi_reduction <add>, %43, %cst_46 [1] : vector<8x128xf32> to vector<8xf32>
    %45 = vector.shape_cast %44 : vector<8xf32> to vector<8x1xf32>
    %cst_47 = arith.constant 0.000000e+00 : f32
    %46 = vector.broadcast %cst_47 : f32 to vector<8x1xf32>
    %47 = arith.addf %46, %45 : vector<8x1xf32>
    %48 = vector.broadcast %41 : vector<1x128xf32> to vector<8x128xf32>
    %49 = arith.mulf %12, %48 : vector<8x128xf32>
    %cst_48 = arith.constant dense<0.000000e+00> : vector<8xf32>
    %50 = vector.multi_reduction <add>, %49, %cst_48 [1] : vector<8x128xf32> to vector<8xf32>
    %51 = vector.shape_cast %50 : vector<8xf32> to vector<8x1xf32>
    %52 = arith.addf %47, %51 : vector<8x1xf32>
    %53 = vector.broadcast %41 : vector<1x128xf32> to vector<8x128xf32>
    %54 = arith.mulf %21, %53 : vector<8x128xf32>
    %cst_49 = arith.constant dense<0.000000e+00> : vector<8xf32>
    %55 = vector.multi_reduction <add>, %54, %cst_49 [1] : vector<8x128xf32> to vector<8xf32>
    %56 = vector.shape_cast %55 : vector<8xf32> to vector<8x1xf32>
    %57 = arith.addf %52, %56 : vector<8x1xf32>
    %58 = vector.broadcast %41 : vector<1x128xf32> to vector<8x128xf32>
    %59 = arith.mulf %40, %58 : vector<8x128xf32>
    %cst_50 = arith.constant dense<0.000000e+00> : vector<8xf32>
    %60 = vector.multi_reduction <add>, %59, %cst_50 [1] : vector<8x128xf32> to vector<8xf32>
    %61 = vector.shape_cast %60 : vector<8xf32> to vector<8x1xf32>
    %62 = arith.addf %57, %61 : vector<8x1xf32>
    %cst_51 = arith.constant 3.125000e-02 : f32
    %63 = vector.broadcast %cst_51 : f32 to vector<8x1xf32>
    %64 = arith.mulf %62, %63 : vector<8x1xf32>
    %65 = vector.broadcast %64 : vector<8x1xf32> to vector<8x128xf32>
    %66 = arith.subf %3, %65 : vector<8x128xf32>
    %67 = arith.mulf %66, %66 : vector<8x128xf32>
    %68 = vector.broadcast %41 : vector<1x128xf32> to vector<8x128xf32>
    %69 = arith.mulf %67, %68 : vector<8x128xf32>
    %cst_52 = arith.constant dense<0.000000e+00> : vector<8xf32>
    %70 = vector.multi_reduction <add>, %69, %cst_52 [1] : vector<8x128xf32> to vector<8xf32>
    %71 = vector.shape_cast %70 : vector<8xf32> to vector<8x1xf32>
    %cst_53 = arith.constant 0.000000e+00 : f32
    %72 = vector.broadcast %cst_53 : f32 to vector<8x1xf32>
    %73 = arith.addf %72, %71 : vector<8x1xf32>
    %74 = vector.broadcast %64 : vector<8x1xf32> to vector<8x128xf32>
    %75 = arith.subf %12, %74 : vector<8x128xf32>
    %76 = arith.mulf %75, %75 : vector<8x128xf32>
    %77 = vector.broadcast %41 : vector<1x128xf32> to vector<8x128xf32>
    %78 = arith.mulf %76, %77 : vector<8x128xf32>
    %cst_54 = arith.constant dense<0.000000e+00> : vector<8xf32>
    %79 = vector.multi_reduction <add>, %78, %cst_54 [1] : vector<8x128xf32> to vector<8xf32>
    %80 = vector.shape_cast %79 : vector<8xf32> to vector<8x1xf32>
    %81 = arith.addf %73, %80 : vector<8x1xf32>
    %82 = vector.broadcast %64 : vector<8x1xf32> to vector<8x128xf32>
    %83 = arith.subf %21, %82 : vector<8x128xf32>
    %84 = arith.mulf %83, %83 : vector<8x128xf32>
    %85 = vector.broadcast %41 : vector<1x128xf32> to vector<8x128xf32>
    %86 = arith.mulf %84, %85 : vector<8x128xf32>
    %cst_55 = arith.constant dense<0.000000e+00> : vector<8xf32>
    %87 = vector.multi_reduction <add>, %86, %cst_55 [1] : vector<8x128xf32> to vector<8xf32>
    %88 = vector.shape_cast %87 : vector<8xf32> to vector<8x1xf32>
    %89 = arith.addf %81, %88 : vector<8x1xf32>
    %90 = vector.broadcast %64 : vector<8x1xf32> to vector<8x128xf32>
    %91 = arith.subf %40, %90 : vector<8x128xf32>
    %92 = arith.mulf %91, %91 : vector<8x128xf32>
    %93 = vector.broadcast %41 : vector<1x128xf32> to vector<8x128xf32>
    %94 = arith.mulf %92, %93 : vector<8x128xf32>
    %cst_56 = arith.constant dense<0.000000e+00> : vector<8xf32>
    %95 = vector.multi_reduction <add>, %94, %cst_56 [1] : vector<8x128xf32> to vector<8xf32>
    %96 = vector.shape_cast %95 : vector<8xf32> to vector<8x1xf32>
    %97 = arith.addf %89, %96 : vector<8x1xf32>
    %cst_57 = arith.constant 3.125000e-02 : f32
    %98 = vector.broadcast %cst_57 : f32 to vector<8x1xf32>
    %99 = arith.mulf %97, %98 : vector<8x1xf32>
    %cst_58 = arith.constant 9.99999974E-6 : f32
    %100 = vector.broadcast %cst_58 : f32 to vector<8x1xf32>
    %101 = arith.addf %99, %100 : vector<8x1xf32>
    %102 = math.rsqrt %101 : vector<8x1xf32>
    %c0_59 = arith.constant 0 : index
    %c0_60 = arith.constant 0 : index
    %103 = vector.load %arg2[%c0_59, %c0_60] : memref<8x1xf32, #tpu.memory_space<vmem>>, vector<8x1xf32>
    %104 = arith.mulf %102, %103 : vector<8x1xf32>
    %c0_61 = arith.constant 0 : index
    %c0_62 = arith.constant 0 : index
    %105 = vector.load %arg3[%c0_61, %c0_62] : memref<8x1xf32, #tpu.memory_space<vmem>>, vector<8x1xf32>
    %106 = arith.mulf %64, %104 : vector<8x1xf32>
    %107 = arith.subf %105, %106 : vector<8x1xf32>
    %108 = vector.broadcast %104 : vector<8x1xf32> to vector<8x128xf32>
    %109 = arith.mulf %3, %108 : vector<8x128xf32>
    %110 = vector.broadcast %107 : vector<8x1xf32> to vector<8x128xf32>
    %111 = arith.addf %109, %110 : vector<8x128xf32>
    %cst_63 = arith.constant 0.000000e+00 : f32
    %112 = vector.broadcast %cst_63 : f32 to vector<8x128xf32>
    %113 = arith.maximumf %111, %112 : vector<8x128xf32>
    %c0_64 = arith.constant 0 : index
    %c0_65 = arith.constant 0 : index
    %114 = vector.load %arg5[%c0_64, %c0_65] : memref<32x128xf32, #tpu.memory_space<vmem>>, vector<8x128xf32>
    tpu.vector_store %arg5[%c0_64, %c0_65], %113 {strides = array<i32>} : memref<32x128xf32, #tpu.memory_space<vmem>>, vector<8x128xf32>,
    %115 = vector.broadcast %104 : vector<8x1xf32> to vector<8x128xf32>
    %116 = arith.mulf %12, %115 : vector<8x128xf32>
    %117 = vector.broadcast %107 : vector<8x1xf32> to vector<8x128xf32>
    %118 = arith.addf %116, %117 : vector<8x128xf32>
    %cst_66 = arith.constant 0.000000e+00 : f32
    %119 = vector.broadcast %cst_66 : f32 to vector<8x128xf32>
    %120 = arith.maximumf %118, %119 : vector<8x128xf32>
    %c8_67 = arith.constant 8 : index
    %c0_68 = arith.constant 0 : index
    %121 = vector.load %arg5[%c8_67, %c0_68] : memref<32x128xf32, #tpu.memory_space<vmem>>, vector<8x128xf32>
    tpu.vector_store %arg5[%c8_67, %c0_68], %120 {strides = array<i32>} : memref<32x128xf32, #tpu.memory_space<vmem>>, vector<8x128xf32>,
    %122 = vector.broadcast %104 : vector<8x1xf32> to vector<8x128xf32>
    %123 = arith.mulf %21, %122 : vector<8x128xf32>
    %124 = vector.broadcast %107 : vector<8x1xf32> to vector<8x128xf32>
    %125 = arith.addf %123, %124 : vector<8x128xf32>
    %cst_69 = arith.constant 0.000000e+00 : f32
    %126 = vector.broadcast %cst_69 : f32 to vector<8x128xf32>
    %127 = arith.maximumf %125, %126 : vector<8x128xf32>
    %c16 = arith.constant 16 : index
    %c0_70 = arith.constant 0 : index
    %128 = vector.load %arg5[%c16, %c0_70] : memref<32x128xf32, #tpu.memory_space<vmem>>, vector<8x128xf32>
    tpu.vector_store %arg5[%c16, %c0_70], %127 {strides = array<i32>} : memref<32x128xf32, #tpu.memory_space<vmem>>, vector<8x128xf32>,
    %129 = vector.broadcast %104 : vector<8x1xf32> to vector<8x128xf32>
    %130 = arith.mulf %40, %129 : vector<8x128xf32>
    %131 = vector.broadcast %107 : vector<8x1xf32> to vector<8x128xf32>
    %132 = arith.addf %130, %131 : vector<8x128xf32>
    %cst_71 = arith.constant 0.000000e+00 : f32
    %133 = vector.broadcast %cst_71 : f32 to vector<8x128xf32>
    %134 = arith.maximumf %132, %133 : vector<8x128xf32>
    %c24 = arith.constant 24 : index
    %c0_72 = arith.constant 0 : index
    %135 = vector.load %arg5[%c24, %c0_72] : memref<32x128xf32, #tpu.memory_space<vmem>>, vector<8x128xf32>
    tpu.vector_store %arg5[%c24, %c0_72], %134 {strides = array<i32>} : memref<32x128xf32, #tpu.memory_space<vmem>>, vector<8x128xf32>,
    return
  }
}

module attributes {stable_mosaic.version = 11 : i64} {
  func.func @_deconv_bn_relu_kernel(%arg0: memref<8x256xf32, #tpu.memory_space<vmem>>, %arg1: memref<9x8x8xf32, #tpu.memory_space<vmem>>, %arg2: memref<8x1xf32, #tpu.memory_space<vmem>>, %arg3: memref<8x1xf32, #tpu.memory_space<vmem>>, %arg4: memref<1x128xf32, #tpu.memory_space<vmem>>, %arg5: memref<32x128xf32, #tpu.memory_space<vmem>>) attributes {dimension_semantics = [], scalar_prefetch = 0 : i64, scratch_operands = 0 : i64, tpu.core_type = #tpu.core_type<tc>} {
    %c0 = arith.constant 0 : index
    %c0_0 = arith.constant 0 : index
    %c0_1 = arith.constant 0 : index
    %0 = vector.load %arg1[%c0, %c0_0, %c0_1] : memref<9x8x8xf32, #tpu.memory_space<vmem>>, vector<1x8x8xf32>
    %1 = vector.shape_cast %0 : vector<1x8x8xf32> to vector<8x8xf32>
    %c0_2 = arith.constant 0 : index
    %c0_3 = arith.constant 0 : index
    %2 = vector.load %arg0[%c0_2, %c0_3] : memref<8x256xf32, #tpu.memory_space<vmem>>, vector<8x128xf32>
    %cst = arith.constant dense<0.000000e+00> : vector<8x128xf32>
    %3 = tpu.matmul %1, %2, %cst {dimension_numbers = #tpu.dot_dimension_numbers<[1], [0], [0], [1], [0, 0, 1, 1], [], []>} : vector<8x8xf32>, vector<8x128xf32>, vector<8x128xf32> -> vector<8x128xf32>
    %c1 = arith.constant 1 : index
    %c0_4 = arith.constant 0 : index
    %c0_5 = arith.constant 0 : index
    %4 = vector.load %arg1[%c1, %c0_4, %c0_5] : memref<9x8x8xf32, #tpu.memory_space<vmem>>, vector<1x8x8xf32>
    %5 = vector.shape_cast %4 : vector<1x8x8xf32> to vector<8x8xf32>
    %c0_6 = arith.constant 0 : index
    %c1_7 = arith.constant 1 : index
    %6 = vector.load %arg0[%c0_6, %c1_7] : memref<8x256xf32, #tpu.memory_space<vmem>>, vector<8x128xf32>
    %cst_8 = arith.constant dense<0.000000e+00> : vector<8x128xf32>
    %7 = tpu.matmul %5, %6, %cst_8 {dimension_numbers = #tpu.dot_dimension_numbers<[1], [0], [0], [1], [0, 0, 1, 1], [], []>} : vector<8x8xf32>, vector<8x128xf32>, vector<8x128xf32> -> vector<8x128xf32>
    %c2 = arith.constant 2 : index
    %c0_9 = arith.constant 0 : index
    %c0_10 = arith.constant 0 : index
    %8 = vector.load %arg1[%c2, %c0_9, %c0_10] : memref<9x8x8xf32, #tpu.memory_space<vmem>>, vector<1x8x8xf32>
    %9 = vector.shape_cast %8 : vector<1x8x8xf32> to vector<8x8xf32>
    %c0_11 = arith.constant 0 : index
    %c0_12 = arith.constant 0 : index
    %10 = vector.load %arg0[%c0_11, %c0_12] : memref<8x256xf32, #tpu.memory_space<vmem>>, vector<8x128xf32>
    %cst_13 = arith.constant dense<0.000000e+00> : vector<8x128xf32>
    %11 = tpu.matmul %9, %10, %cst_13 {dimension_numbers = #tpu.dot_dimension_numbers<[1], [0], [0], [1], [0, 0, 1, 1], [], []>} : vector<8x8xf32>, vector<8x128xf32>, vector<8x128xf32> -> vector<8x128xf32>
    %12 = arith.addf %7, %11 : vector<8x128xf32>
    %c3 = arith.constant 3 : index
    %c0_14 = arith.constant 0 : index
    %c0_15 = arith.constant 0 : index
    %13 = vector.load %arg1[%c3, %c0_14, %c0_15] : memref<9x8x8xf32, #tpu.memory_space<vmem>>, vector<1x8x8xf32>
    %14 = vector.shape_cast %13 : vector<1x8x8xf32> to vector<8x8xf32>
    %c0_16 = arith.constant 0 : index
    %c5 = arith.constant 5 : index
    %15 = vector.load %arg0[%c0_16, %c5] : memref<8x256xf32, #tpu.memory_space<vmem>>, vector<8x128xf32>
    %cst_17 = arith.constant dense<0.000000e+00> : vector<8x128xf32>
    %16 = tpu.matmul %14, %15, %cst_17 {dimension_numbers = #tpu.dot_dimension_numbers<[1], [0], [0], [1], [0, 0, 1, 1], [], []>} : vector<8x8xf32>, vector<8x128xf32>, vector<8x128xf32> -> vector<8x128xf32>
    %c4 = arith.constant 4 : index
    %c0_18 = arith.constant 0 : index
    %c0_19 = arith.constant 0 : index
    %17 = vector.load %arg1[%c4, %c0_18, %c0_19] : memref<9x8x8xf32, #tpu.memory_space<vmem>>, vector<1x8x8xf32>
    %18 = vector.shape_cast %17 : vector<1x8x8xf32> to vector<8x8xf32>
    %c0_20 = arith.constant 0 : index
    %c0_21 = arith.constant 0 : index
    %19 = vector.load %arg0[%c0_20, %c0_21] : memref<8x256xf32, #tpu.memory_space<vmem>>, vector<8x128xf32>
    %cst_22 = arith.constant dense<0.000000e+00> : vector<8x128xf32>
    %20 = tpu.matmul %18, %19, %cst_22 {dimension_numbers = #tpu.dot_dimension_numbers<[1], [0], [0], [1], [0, 0, 1, 1], [], []>} : vector<8x8xf32>, vector<8x128xf32>, vector<8x128xf32> -> vector<8x128xf32>
    %21 = arith.addf %16, %20 : vector<8x128xf32>
    %c5_23 = arith.constant 5 : index
    %c0_24 = arith.constant 0 : index
    %c0_25 = arith.constant 0 : index
    %22 = vector.load %arg1[%c5_23, %c0_24, %c0_25] : memref<9x8x8xf32, #tpu.memory_space<vmem>>, vector<1x8x8xf32>
    %23 = vector.shape_cast %22 : vector<1x8x8xf32> to vector<8x8xf32>
    %c0_26 = arith.constant 0 : index
    %c6 = arith.constant 6 : index
    %24 = vector.load %arg0[%c0_26, %c6] : memref<8x256xf32, #tpu.memory_space<vmem>>, vector<8x128xf32>
    %cst_27 = arith.constant dense<0.000000e+00> : vector<8x128xf32>
    %25 = tpu.matmul %23, %24, %cst_27 {dimension_numbers = #tpu.dot_dimension_numbers<[1], [0], [0], [1], [0, 0, 1, 1], [], []>} : vector<8x8xf32>, vector<8x128xf32>, vector<8x128xf32> -> vector<8x128xf32>
    %c6_28 = arith.constant 6 : index
    %c0_29 = arith.constant 0 : index
    %c0_30 = arith.constant 0 : index
    %26 = vector.load %arg1[%c6_28, %c0_29, %c0_30] : memref<9x8x8xf32, #tpu.memory_space<vmem>>, vector<1x8x8xf32>
    %27 = vector.shape_cast %26 : vector<1x8x8xf32> to vector<8x8xf32>
    %c0_31 = arith.constant 0 : index
    %c5_32 = arith.constant 5 : index
    %28 = vector.load %arg0[%c0_31, %c5_32] : memref<8x256xf32, #tpu.memory_space<vmem>>, vector<8x128xf32>
    %cst_33 = arith.constant dense<0.000000e+00> : vector<8x128xf32>
    %29 = tpu.matmul %27, %28, %cst_33 {dimension_numbers = #tpu.dot_dimension_numbers<[1], [0], [0], [1], [0, 0, 1, 1], [], []>} : vector<8x8xf32>, vector<8x128xf32>, vector<8x128xf32> -> vector<8x128xf32>
    %30 = arith.addf %25, %29 : vector<8x128xf32>
    %c7 = arith.constant 7 : index
    %c0_34 = arith.constant 0 : index
    %c0_35 = arith.constant 0 : index
    %31 = vector.load %arg1[%c7, %c0_34, %c0_35] : memref<9x8x8xf32, #tpu.memory_space<vmem>>, vector<1x8x8xf32>
    %32 = vector.shape_cast %31 : vector<1x8x8xf32> to vector<8x8xf32>
    %c0_36 = arith.constant 0 : index
    %c1_37 = arith.constant 1 : index
    %33 = vector.load %arg0[%c0_36, %c1_37] : memref<8x256xf32, #tpu.memory_space<vmem>>, vector<8x128xf32>
    %cst_38 = arith.constant dense<0.000000e+00> : vector<8x128xf32>
    %34 = tpu.matmul %32, %33, %cst_38 {dimension_numbers = #tpu.dot_dimension_numbers<[1], [0], [0], [1], [0, 0, 1, 1], [], []>} : vector<8x8xf32>, vector<8x128xf32>, vector<8x128xf32> -> vector<8x128xf32>
    %35 = arith.addf %30, %34 : vector<8x128xf32>
    %c8 = arith.constant 8 : index
    %c0_39 = arith.constant 0 : index
    %c0_40 = arith.constant 0 : index
    %36 = vector.load %arg1[%c8, %c0_39, %c0_40] : memref<9x8x8xf32, #tpu.memory_space<vmem>>, vector<1x8x8xf32>
    %37 = vector.shape_cast %36 : vector<1x8x8xf32> to vector<8x8xf32>
    %c0_41 = arith.constant 0 : index
    %c0_42 = arith.constant 0 : index
    %38 = vector.load %arg0[%c0_41, %c0_42] : memref<8x256xf32, #tpu.memory_space<vmem>>, vector<8x128xf32>
    %cst_43 = arith.constant dense<0.000000e+00> : vector<8x128xf32>
    %39 = tpu.matmul %37, %38, %cst_43 {dimension_numbers = #tpu.dot_dimension_numbers<[1], [0], [0], [1], [0, 0, 1, 1], [], []>} : vector<8x8xf32>, vector<8x128xf32>, vector<8x128xf32> -> vector<8x128xf32>
    %40 = arith.addf %35, %39 : vector<8x128xf32>
    %c0_44 = arith.constant 0 : index
    %c0_45 = arith.constant 0 : index
    %41 = vector.load %arg4[%c0_44, %c0_45] : memref<1x128xf32, #tpu.memory_space<vmem>>, vector<1x128xf32>
    %42 = vector.broadcast %41 : vector<1x128xf32> to vector<8x128xf32>
    %43 = arith.mulf %3, %42 : vector<8x128xf32>
    %cst_46 = arith.constant dense<0.000000e+00> : vector<8xf32>
    %44 = vector.multi_reduction <add>, %43, %cst_46 [1] : vector<8x128xf32> to vector<8xf32>
    %45 = vector.shape_cast %44 : vector<8xf32> to vector<8x1xf32>
    %cst_47 = arith.constant 0.000000e+00 : f32
    %46 = vector.broadcast %cst_47 : f32 to vector<8x1xf32>
    %47 = arith.addf %46, %45 : vector<8x1xf32>
    %48 = vector.broadcast %41 : vector<1x128xf32> to vector<8x128xf32>
    %49 = arith.mulf %12, %48 : vector<8x128xf32>
    %cst_48 = arith.constant dense<0.000000e+00> : vector<8xf32>
    %50 = vector.multi_reduction <add>, %49, %cst_48 [1] : vector<8x128xf32> to vector<8xf32>
    %51 = vector.shape_cast %50 : vector<8xf32> to vector<8x1xf32>
    %52 = arith.addf %47, %51 : vector<8x1xf32>
    %53 = vector.broadcast %41 : vector<1x128xf32> to vector<8x128xf32>
    %54 = arith.mulf %21, %53 : vector<8x128xf32>
    %cst_49 = arith.constant dense<0.000000e+00> : vector<8xf32>
    %55 = vector.multi_reduction <add>, %54, %cst_49 [1] : vector<8x128xf32> to vector<8xf32>
    %56 = vector.shape_cast %55 : vector<8xf32> to vector<8x1xf32>
    %57 = arith.addf %52, %56 : vector<8x1xf32>
    %58 = vector.broadcast %41 : vector<1x128xf32> to vector<8x128xf32>
    %59 = arith.mulf %40, %58 : vector<8x128xf32>
    %cst_50 = arith.constant dense<0.000000e+00> : vector<8xf32>
    %60 = vector.multi_reduction <add>, %59, %cst_50 [1] : vector<8x128xf32> to vector<8xf32>
    %61 = vector.shape_cast %60 : vector<8xf32> to vector<8x1xf32>
    %62 = arith.addf %57, %61 : vector<8x1xf32>
    %cst_51 = arith.constant 7.812500e-03 : f32
    %63 = vector.broadcast %cst_51 : f32 to vector<8x1xf32>
    %64 = arith.mulf %62, %63 : vector<8x1xf32>
    %65 = vector.broadcast %64 : vector<8x1xf32> to vector<8x128xf32>
    %66 = arith.subf %3, %65 : vector<8x128xf32>
    %67 = arith.mulf %66, %66 : vector<8x128xf32>
    %68 = vector.broadcast %41 : vector<1x128xf32> to vector<8x128xf32>
    %69 = arith.mulf %67, %68 : vector<8x128xf32>
    %cst_52 = arith.constant dense<0.000000e+00> : vector<8xf32>
    %70 = vector.multi_reduction <add>, %69, %cst_52 [1] : vector<8x128xf32> to vector<8xf32>
    %71 = vector.shape_cast %70 : vector<8xf32> to vector<8x1xf32>
    %cst_53 = arith.constant 0.000000e+00 : f32
    %72 = vector.broadcast %cst_53 : f32 to vector<8x1xf32>
    %73 = arith.addf %72, %71 : vector<8x1xf32>
    %74 = vector.broadcast %64 : vector<8x1xf32> to vector<8x128xf32>
    %75 = arith.subf %12, %74 : vector<8x128xf32>
    %76 = arith.mulf %75, %75 : vector<8x128xf32>
    %77 = vector.broadcast %41 : vector<1x128xf32> to vector<8x128xf32>
    %78 = arith.mulf %76, %77 : vector<8x128xf32>
    %cst_54 = arith.constant dense<0.000000e+00> : vector<8xf32>
    %79 = vector.multi_reduction <add>, %78, %cst_54 [1] : vector<8x128xf32> to vector<8xf32>
    %80 = vector.shape_cast %79 : vector<8xf32> to vector<8x1xf32>
    %81 = arith.addf %73, %80 : vector<8x1xf32>
    %82 = vector.broadcast %64 : vector<8x1xf32> to vector<8x128xf32>
    %83 = arith.subf %21, %82 : vector<8x128xf32>
    %84 = arith.mulf %83, %83 : vector<8x128xf32>
    %85 = vector.broadcast %41 : vector<1x128xf32> to vector<8x128xf32>
    %86 = arith.mulf %84, %85 : vector<8x128xf32>
    %cst_55 = arith.constant dense<0.000000e+00> : vector<8xf32>
    %87 = vector.multi_reduction <add>, %86, %cst_55 [1] : vector<8x128xf32> to vector<8xf32>
    %88 = vector.shape_cast %87 : vector<8xf32> to vector<8x1xf32>
    %89 = arith.addf %81, %88 : vector<8x1xf32>
    %90 = vector.broadcast %64 : vector<8x1xf32> to vector<8x128xf32>
    %91 = arith.subf %40, %90 : vector<8x128xf32>
    %92 = arith.mulf %91, %91 : vector<8x128xf32>
    %93 = vector.broadcast %41 : vector<1x128xf32> to vector<8x128xf32>
    %94 = arith.mulf %92, %93 : vector<8x128xf32>
    %cst_56 = arith.constant dense<0.000000e+00> : vector<8xf32>
    %95 = vector.multi_reduction <add>, %94, %cst_56 [1] : vector<8x128xf32> to vector<8xf32>
    %96 = vector.shape_cast %95 : vector<8xf32> to vector<8x1xf32>
    %97 = arith.addf %89, %96 : vector<8x1xf32>
    %cst_57 = arith.constant 7.812500e-03 : f32
    %98 = vector.broadcast %cst_57 : f32 to vector<8x1xf32>
    %99 = arith.mulf %97, %98 : vector<8x1xf32>
    %cst_58 = arith.constant 9.99999974E-6 : f32
    %100 = vector.broadcast %cst_58 : f32 to vector<8x1xf32>
    %101 = arith.addf %99, %100 : vector<8x1xf32>
    %102 = math.rsqrt %101 : vector<8x1xf32>
    %c0_59 = arith.constant 0 : index
    %c0_60 = arith.constant 0 : index
    %103 = vector.load %arg2[%c0_59, %c0_60] : memref<8x1xf32, #tpu.memory_space<vmem>>, vector<8x1xf32>
    %104 = arith.mulf %102, %103 : vector<8x1xf32>
    %c0_61 = arith.constant 0 : index
    %c0_62 = arith.constant 0 : index
    %105 = vector.load %arg3[%c0_61, %c0_62] : memref<8x1xf32, #tpu.memory_space<vmem>>, vector<8x1xf32>
    %106 = arith.mulf %64, %104 : vector<8x1xf32>
    %107 = arith.subf %105, %106 : vector<8x1xf32>
    %108 = vector.broadcast %104 : vector<8x1xf32> to vector<8x128xf32>
    %109 = arith.mulf %3, %108 : vector<8x128xf32>
    %110 = vector.broadcast %107 : vector<8x1xf32> to vector<8x128xf32>
    %111 = arith.addf %109, %110 : vector<8x128xf32>
    %cst_63 = arith.constant 0.000000e+00 : f32
    %112 = vector.broadcast %cst_63 : f32 to vector<8x128xf32>
    %113 = arith.maximumf %111, %112 : vector<8x128xf32>
    %c0_64 = arith.constant 0 : index
    %c0_65 = arith.constant 0 : index
    %114 = vector.load %arg5[%c0_64, %c0_65] : memref<32x128xf32, #tpu.memory_space<vmem>>, vector<8x128xf32>
    tpu.vector_store %arg5[%c0_64, %c0_65], %113 {strides = array<i32>} : memref<32x128xf32, #tpu.memory_space<vmem>>, vector<8x128xf32>,
    %115 = vector.broadcast %104 : vector<8x1xf32> to vector<8x128xf32>
    %116 = arith.mulf %12, %115 : vector<8x128xf32>
    %117 = vector.broadcast %107 : vector<8x1xf32> to vector<8x128xf32>
    %118 = arith.addf %116, %117 : vector<8x128xf32>
    %cst_66 = arith.constant 0.000000e+00 : f32
    %119 = vector.broadcast %cst_66 : f32 to vector<8x128xf32>
    %120 = arith.maximumf %118, %119 : vector<8x128xf32>
    %c8_67 = arith.constant 8 : index
    %c0_68 = arith.constant 0 : index
    %121 = vector.load %arg5[%c8_67, %c0_68] : memref<32x128xf32, #tpu.memory_space<vmem>>, vector<8x128xf32>
    tpu.vector_store %arg5[%c8_67, %c0_68], %120 {strides = array<i32>} : memref<32x128xf32, #tpu.memory_space<vmem>>, vector<8x128xf32>,
    %122 = vector.broadcast %104 : vector<8x1xf32> to vector<8x128xf32>
    %123 = arith.mulf %21, %122 : vector<8x128xf32>
    %124 = vector.broadcast %107 : vector<8x1xf32> to vector<8x128xf32>
    %125 = arith.addf %123, %124 : vector<8x128xf32>
    %cst_69 = arith.constant 0.000000e+00 : f32
    %126 = vector.broadcast %cst_69 : f32 to vector<8x128xf32>
    %127 = arith.maximumf %125, %126 : vector<8x128xf32>
    %c16 = arith.constant 16 : index
    %c0_70 = arith.constant 0 : index
    %128 = vector.load %arg5[%c16, %c0_70] : memref<32x128xf32, #tpu.memory_space<vmem>>, vector<8x128xf32>
    tpu.vector_store %arg5[%c16, %c0_70], %127 {strides = array<i32>} : memref<32x128xf32, #tpu.memory_space<vmem>>, vector<8x128xf32>,
    %129 = vector.broadcast %104 : vector<8x1xf32> to vector<8x128xf32>
    %130 = arith.mulf %40, %129 : vector<8x128xf32>
    %131 = vector.broadcast %107 : vector<8x1xf32> to vector<8x128xf32>
    %132 = arith.addf %130, %131 : vector<8x128xf32>
    %cst_71 = arith.constant 0.000000e+00 : f32
    %133 = vector.broadcast %cst_71 : f32 to vector<8x128xf32>
    %134 = arith.maximumf %132, %133 : vector<8x128xf32>
    %c24 = arith.constant 24 : index
    %c0_72 = arith.constant 0 : index
    %135 = vector.load %arg5[%c24, %c0_72] : memref<32x128xf32, #tpu.memory_space<vmem>>, vector<8x128xf32>
    tpu.vector_store %arg5[%c24, %c0_72], %134 {strides = array<i32>} : memref<32x128xf32, #tpu.memory_space<vmem>>, vector<8x128xf32>,
    return
  }
}

module attributes {stable_mosaic.version = 11 : i64} {
  func.func @_deconv_bn_relu_kernel(%arg0: memref<8x384xf32, #tpu.memory_space<vmem>>, %arg1: memref<9x8x8xf32, #tpu.memory_space<vmem>>, %arg2: memref<8x1xf32, #tpu.memory_space<vmem>>, %arg3: memref<8x1xf32, #tpu.memory_space<vmem>>, %arg4: memref<1x256xf32, #tpu.memory_space<vmem>>, %arg5: memref<32x256xf32, #tpu.memory_space<vmem>>) attributes {dimension_semantics = [], scalar_prefetch = 0 : i64, scratch_operands = 0 : i64, tpu.core_type = #tpu.core_type<tc>} {
    %c0 = arith.constant 0 : index
    %c0_0 = arith.constant 0 : index
    %c0_1 = arith.constant 0 : index
    %0 = vector.load %arg1[%c0, %c0_0, %c0_1] : memref<9x8x8xf32, #tpu.memory_space<vmem>>, vector<1x8x8xf32>
    %1 = vector.shape_cast %0 : vector<1x8x8xf32> to vector<8x8xf32>
    %c0_2 = arith.constant 0 : index
    %c0_3 = arith.constant 0 : index
    %2 = vector.load %arg0[%c0_2, %c0_3] : memref<8x384xf32, #tpu.memory_space<vmem>>, vector<8x256xf32>
    %cst = arith.constant dense<0.000000e+00> : vector<8x256xf32>
    %3 = tpu.matmul %1, %2, %cst {dimension_numbers = #tpu.dot_dimension_numbers<[1], [0], [0], [1], [0, 0, 1, 1], [], []>} : vector<8x8xf32>, vector<8x256xf32>, vector<8x256xf32> -> vector<8x256xf32>
    %c1 = arith.constant 1 : index
    %c0_4 = arith.constant 0 : index
    %c0_5 = arith.constant 0 : index
    %4 = vector.load %arg1[%c1, %c0_4, %c0_5] : memref<9x8x8xf32, #tpu.memory_space<vmem>>, vector<1x8x8xf32>
    %5 = vector.shape_cast %4 : vector<1x8x8xf32> to vector<8x8xf32>
    %c0_6 = arith.constant 0 : index
    %c1_7 = arith.constant 1 : index
    %6 = vector.load %arg0[%c0_6, %c1_7] : memref<8x384xf32, #tpu.memory_space<vmem>>, vector<8x256xf32>
    %cst_8 = arith.constant dense<0.000000e+00> : vector<8x256xf32>
    %7 = tpu.matmul %5, %6, %cst_8 {dimension_numbers = #tpu.dot_dimension_numbers<[1], [0], [0], [1], [0, 0, 1, 1], [], []>} : vector<8x8xf32>, vector<8x256xf32>, vector<8x256xf32> -> vector<8x256xf32>
    %c2 = arith.constant 2 : index
    %c0_9 = arith.constant 0 : index
    %c0_10 = arith.constant 0 : index
    %8 = vector.load %arg1[%c2, %c0_9, %c0_10] : memref<9x8x8xf32, #tpu.memory_space<vmem>>, vector<1x8x8xf32>
    %9 = vector.shape_cast %8 : vector<1x8x8xf32> to vector<8x8xf32>
    %c0_11 = arith.constant 0 : index
    %c0_12 = arith.constant 0 : index
    %10 = vector.load %arg0[%c0_11, %c0_12] : memref<8x384xf32, #tpu.memory_space<vmem>>, vector<8x256xf32>
    %cst_13 = arith.constant dense<0.000000e+00> : vector<8x256xf32>
    %11 = tpu.matmul %9, %10, %cst_13 {dimension_numbers = #tpu.dot_dimension_numbers<[1], [0], [0], [1], [0, 0, 1, 1], [], []>} : vector<8x8xf32>, vector<8x256xf32>, vector<8x256xf32> -> vector<8x256xf32>
    %12 = arith.addf %7, %11 : vector<8x256xf32>
    %c3 = arith.constant 3 : index
    %c0_14 = arith.constant 0 : index
    %c0_15 = arith.constant 0 : index
    %13 = vector.load %arg1[%c3, %c0_14, %c0_15] : memref<9x8x8xf32, #tpu.memory_space<vmem>>, vector<1x8x8xf32>
    %14 = vector.shape_cast %13 : vector<1x8x8xf32> to vector<8x8xf32>
    %c0_16 = arith.constant 0 : index
    %c9 = arith.constant 9 : index
    %15 = vector.load %arg0[%c0_16, %c9] : memref<8x384xf32, #tpu.memory_space<vmem>>, vector<8x256xf32>
    %cst_17 = arith.constant dense<0.000000e+00> : vector<8x256xf32>
    %16 = tpu.matmul %14, %15, %cst_17 {dimension_numbers = #tpu.dot_dimension_numbers<[1], [0], [0], [1], [0, 0, 1, 1], [], []>} : vector<8x8xf32>, vector<8x256xf32>, vector<8x256xf32> -> vector<8x256xf32>
    %c4 = arith.constant 4 : index
    %c0_18 = arith.constant 0 : index
    %c0_19 = arith.constant 0 : index
    %17 = vector.load %arg1[%c4, %c0_18, %c0_19] : memref<9x8x8xf32, #tpu.memory_space<vmem>>, vector<1x8x8xf32>
    %18 = vector.shape_cast %17 : vector<1x8x8xf32> to vector<8x8xf32>
    %c0_20 = arith.constant 0 : index
    %c0_21 = arith.constant 0 : index
    %19 = vector.load %arg0[%c0_20, %c0_21] : memref<8x384xf32, #tpu.memory_space<vmem>>, vector<8x256xf32>
    %cst_22 = arith.constant dense<0.000000e+00> : vector<8x256xf32>
    %20 = tpu.matmul %18, %19, %cst_22 {dimension_numbers = #tpu.dot_dimension_numbers<[1], [0], [0], [1], [0, 0, 1, 1], [], []>} : vector<8x8xf32>, vector<8x256xf32>, vector<8x256xf32> -> vector<8x256xf32>
    %21 = arith.addf %16, %20 : vector<8x256xf32>
    %c5 = arith.constant 5 : index
    %c0_23 = arith.constant 0 : index
    %c0_24 = arith.constant 0 : index
    %22 = vector.load %arg1[%c5, %c0_23, %c0_24] : memref<9x8x8xf32, #tpu.memory_space<vmem>>, vector<1x8x8xf32>
    %23 = vector.shape_cast %22 : vector<1x8x8xf32> to vector<8x8xf32>
    %c0_25 = arith.constant 0 : index
    %c10 = arith.constant 10 : index
    %24 = vector.load %arg0[%c0_25, %c10] : memref<8x384xf32, #tpu.memory_space<vmem>>, vector<8x256xf32>
    %cst_26 = arith.constant dense<0.000000e+00> : vector<8x256xf32>
    %25 = tpu.matmul %23, %24, %cst_26 {dimension_numbers = #tpu.dot_dimension_numbers<[1], [0], [0], [1], [0, 0, 1, 1], [], []>} : vector<8x8xf32>, vector<8x256xf32>, vector<8x256xf32> -> vector<8x256xf32>
    %c6 = arith.constant 6 : index
    %c0_27 = arith.constant 0 : index
    %c0_28 = arith.constant 0 : index
    %26 = vector.load %arg1[%c6, %c0_27, %c0_28] : memref<9x8x8xf32, #tpu.memory_space<vmem>>, vector<1x8x8xf32>
    %27 = vector.shape_cast %26 : vector<1x8x8xf32> to vector<8x8xf32>
    %c0_29 = arith.constant 0 : index
    %c9_30 = arith.constant 9 : index
    %28 = vector.load %arg0[%c0_29, %c9_30] : memref<8x384xf32, #tpu.memory_space<vmem>>, vector<8x256xf32>
    %cst_31 = arith.constant dense<0.000000e+00> : vector<8x256xf32>
    %29 = tpu.matmul %27, %28, %cst_31 {dimension_numbers = #tpu.dot_dimension_numbers<[1], [0], [0], [1], [0, 0, 1, 1], [], []>} : vector<8x8xf32>, vector<8x256xf32>, vector<8x256xf32> -> vector<8x256xf32>
    %30 = arith.addf %25, %29 : vector<8x256xf32>
    %c7 = arith.constant 7 : index
    %c0_32 = arith.constant 0 : index
    %c0_33 = arith.constant 0 : index
    %31 = vector.load %arg1[%c7, %c0_32, %c0_33] : memref<9x8x8xf32, #tpu.memory_space<vmem>>, vector<1x8x8xf32>
    %32 = vector.shape_cast %31 : vector<1x8x8xf32> to vector<8x8xf32>
    %c0_34 = arith.constant 0 : index
    %c1_35 = arith.constant 1 : index
    %33 = vector.load %arg0[%c0_34, %c1_35] : memref<8x384xf32, #tpu.memory_space<vmem>>, vector<8x256xf32>
    %cst_36 = arith.constant dense<0.000000e+00> : vector<8x256xf32>
    %34 = tpu.matmul %32, %33, %cst_36 {dimension_numbers = #tpu.dot_dimension_numbers<[1], [0], [0], [1], [0, 0, 1, 1], [], []>} : vector<8x8xf32>, vector<8x256xf32>, vector<8x256xf32> -> vector<8x256xf32>
    %35 = arith.addf %30, %34 : vector<8x256xf32>
    %c8 = arith.constant 8 : index
    %c0_37 = arith.constant 0 : index
    %c0_38 = arith.constant 0 : index
    %36 = vector.load %arg1[%c8, %c0_37, %c0_38] : memref<9x8x8xf32, #tpu.memory_space<vmem>>, vector<1x8x8xf32>
    %37 = vector.shape_cast %36 : vector<1x8x8xf32> to vector<8x8xf32>
    %c0_39 = arith.constant 0 : index
    %c0_40 = arith.constant 0 : index
    %38 = vector.load %arg0[%c0_39, %c0_40] : memref<8x384xf32, #tpu.memory_space<vmem>>, vector<8x256xf32>
    %cst_41 = arith.constant dense<0.000000e+00> : vector<8x256xf32>
    %39 = tpu.matmul %37, %38, %cst_41 {dimension_numbers = #tpu.dot_dimension_numbers<[1], [0], [0], [1], [0, 0, 1, 1], [], []>} : vector<8x8xf32>, vector<8x256xf32>, vector<8x256xf32> -> vector<8x256xf32>
    %40 = arith.addf %35, %39 : vector<8x256xf32>
    %c0_42 = arith.constant 0 : index
    %c0_43 = arith.constant 0 : index
    %41 = vector.load %arg4[%c0_42, %c0_43] : memref<1x256xf32, #tpu.memory_space<vmem>>, vector<1x256xf32>
    %42 = vector.broadcast %41 : vector<1x256xf32> to vector<8x256xf32>
    %43 = arith.mulf %3, %42 : vector<8x256xf32>
    %cst_44 = arith.constant dense<0.000000e+00> : vector<8xf32>
    %44 = vector.multi_reduction <add>, %43, %cst_44 [1] : vector<8x256xf32> to vector<8xf32>
    %45 = vector.shape_cast %44 : vector<8xf32> to vector<8x1xf32>
    %cst_45 = arith.constant 0.000000e+00 : f32
    %46 = vector.broadcast %cst_45 : f32 to vector<8x1xf32>
    %47 = arith.addf %46, %45 : vector<8x1xf32>
    %48 = vector.broadcast %41 : vector<1x256xf32> to vector<8x256xf32>
    %49 = arith.mulf %12, %48 : vector<8x256xf32>
    %cst_46 = arith.constant dense<0.000000e+00> : vector<8xf32>
    %50 = vector.multi_reduction <add>, %49, %cst_46 [1] : vector<8x256xf32> to vector<8xf32>
    %51 = vector.shape_cast %50 : vector<8xf32> to vector<8x1xf32>
    %52 = arith.addf %47, %51 : vector<8x1xf32>
    %53 = vector.broadcast %41 : vector<1x256xf32> to vector<8x256xf32>
    %54 = arith.mulf %21, %53 : vector<8x256xf32>
    %cst_47 = arith.constant dense<0.000000e+00> : vector<8xf32>
    %55 = vector.multi_reduction <add>, %54, %cst_47 [1] : vector<8x256xf32> to vector<8xf32>
    %56 = vector.shape_cast %55 : vector<8xf32> to vector<8x1xf32>
    %57 = arith.addf %52, %56 : vector<8x1xf32>
    %58 = vector.broadcast %41 : vector<1x256xf32> to vector<8x256xf32>
    %59 = arith.mulf %40, %58 : vector<8x256xf32>
    %cst_48 = arith.constant dense<0.000000e+00> : vector<8xf32>
    %60 = vector.multi_reduction <add>, %59, %cst_48 [1] : vector<8x256xf32> to vector<8xf32>
    %61 = vector.shape_cast %60 : vector<8xf32> to vector<8x1xf32>
    %62 = arith.addf %57, %61 : vector<8x1xf32>
    %cst_49 = arith.constant 0.001953125 : f32
    %63 = vector.broadcast %cst_49 : f32 to vector<8x1xf32>
    %64 = arith.mulf %62, %63 : vector<8x1xf32>
    %65 = vector.broadcast %64 : vector<8x1xf32> to vector<8x256xf32>
    %66 = arith.subf %3, %65 : vector<8x256xf32>
    %67 = arith.mulf %66, %66 : vector<8x256xf32>
    %68 = vector.broadcast %41 : vector<1x256xf32> to vector<8x256xf32>
    %69 = arith.mulf %67, %68 : vector<8x256xf32>
    %cst_50 = arith.constant dense<0.000000e+00> : vector<8xf32>
    %70 = vector.multi_reduction <add>, %69, %cst_50 [1] : vector<8x256xf32> to vector<8xf32>
    %71 = vector.shape_cast %70 : vector<8xf32> to vector<8x1xf32>
    %cst_51 = arith.constant 0.000000e+00 : f32
    %72 = vector.broadcast %cst_51 : f32 to vector<8x1xf32>
    %73 = arith.addf %72, %71 : vector<8x1xf32>
    %74 = vector.broadcast %64 : vector<8x1xf32> to vector<8x256xf32>
    %75 = arith.subf %12, %74 : vector<8x256xf32>
    %76 = arith.mulf %75, %75 : vector<8x256xf32>
    %77 = vector.broadcast %41 : vector<1x256xf32> to vector<8x256xf32>
    %78 = arith.mulf %76, %77 : vector<8x256xf32>
    %cst_52 = arith.constant dense<0.000000e+00> : vector<8xf32>
    %79 = vector.multi_reduction <add>, %78, %cst_52 [1] : vector<8x256xf32> to vector<8xf32>
    %80 = vector.shape_cast %79 : vector<8xf32> to vector<8x1xf32>
    %81 = arith.addf %73, %80 : vector<8x1xf32>
    %82 = vector.broadcast %64 : vector<8x1xf32> to vector<8x256xf32>
    %83 = arith.subf %21, %82 : vector<8x256xf32>
    %84 = arith.mulf %83, %83 : vector<8x256xf32>
    %85 = vector.broadcast %41 : vector<1x256xf32> to vector<8x256xf32>
    %86 = arith.mulf %84, %85 : vector<8x256xf32>
    %cst_53 = arith.constant dense<0.000000e+00> : vector<8xf32>
    %87 = vector.multi_reduction <add>, %86, %cst_53 [1] : vector<8x256xf32> to vector<8xf32>
    %88 = vector.shape_cast %87 : vector<8xf32> to vector<8x1xf32>
    %89 = arith.addf %81, %88 : vector<8x1xf32>
    %90 = vector.broadcast %64 : vector<8x1xf32> to vector<8x256xf32>
    %91 = arith.subf %40, %90 : vector<8x256xf32>
    %92 = arith.mulf %91, %91 : vector<8x256xf32>
    %93 = vector.broadcast %41 : vector<1x256xf32> to vector<8x256xf32>
    %94 = arith.mulf %92, %93 : vector<8x256xf32>
    %cst_54 = arith.constant dense<0.000000e+00> : vector<8xf32>
    %95 = vector.multi_reduction <add>, %94, %cst_54 [1] : vector<8x256xf32> to vector<8xf32>
    %96 = vector.shape_cast %95 : vector<8xf32> to vector<8x1xf32>
    %97 = arith.addf %89, %96 : vector<8x1xf32>
    %cst_55 = arith.constant 0.001953125 : f32
    %98 = vector.broadcast %cst_55 : f32 to vector<8x1xf32>
    %99 = arith.mulf %97, %98 : vector<8x1xf32>
    %cst_56 = arith.constant 9.99999974E-6 : f32
    %100 = vector.broadcast %cst_56 : f32 to vector<8x1xf32>
    %101 = arith.addf %99, %100 : vector<8x1xf32>
    %102 = math.rsqrt %101 : vector<8x1xf32>
    %c0_57 = arith.constant 0 : index
    %c0_58 = arith.constant 0 : index
    %103 = vector.load %arg2[%c0_57, %c0_58] : memref<8x1xf32, #tpu.memory_space<vmem>>, vector<8x1xf32>
    %104 = arith.mulf %102, %103 : vector<8x1xf32>
    %c0_59 = arith.constant 0 : index
    %c0_60 = arith.constant 0 : index
    %105 = vector.load %arg3[%c0_59, %c0_60] : memref<8x1xf32, #tpu.memory_space<vmem>>, vector<8x1xf32>
    %106 = arith.mulf %64, %104 : vector<8x1xf32>
    %107 = arith.subf %105, %106 : vector<8x1xf32>
    %108 = vector.broadcast %104 : vector<8x1xf32> to vector<8x256xf32>
    %109 = arith.mulf %3, %108 : vector<8x256xf32>
    %110 = vector.broadcast %107 : vector<8x1xf32> to vector<8x256xf32>
    %111 = arith.addf %109, %110 : vector<8x256xf32>
    %cst_61 = arith.constant 0.000000e+00 : f32
    %112 = vector.broadcast %cst_61 : f32 to vector<8x256xf32>
    %113 = arith.maximumf %111, %112 : vector<8x256xf32>
    %c0_62 = arith.constant 0 : index
    %c0_63 = arith.constant 0 : index
    %114 = vector.load %arg5[%c0_62, %c0_63] : memref<32x256xf32, #tpu.memory_space<vmem>>, vector<8x256xf32>
    tpu.vector_store %arg5[%c0_62, %c0_63], %113 {strides = array<i32>} : memref<32x256xf32, #tpu.memory_space<vmem>>, vector<8x256xf32>,
    %115 = vector.broadcast %104 : vector<8x1xf32> to vector<8x256xf32>
    %116 = arith.mulf %12, %115 : vector<8x256xf32>
    %117 = vector.broadcast %107 : vector<8x1xf32> to vector<8x256xf32>
    %118 = arith.addf %116, %117 : vector<8x256xf32>
    %cst_64 = arith.constant 0.000000e+00 : f32
    %119 = vector.broadcast %cst_64 : f32 to vector<8x256xf32>
    %120 = arith.maximumf %118, %119 : vector<8x256xf32>
    %c8_65 = arith.constant 8 : index
    %c0_66 = arith.constant 0 : index
    %121 = vector.load %arg5[%c8_65, %c0_66] : memref<32x256xf32, #tpu.memory_space<vmem>>, vector<8x256xf32>
    tpu.vector_store %arg5[%c8_65, %c0_66], %120 {strides = array<i32>} : memref<32x256xf32, #tpu.memory_space<vmem>>, vector<8x256xf32>,
    %122 = vector.broadcast %104 : vector<8x1xf32> to vector<8x256xf32>
    %123 = arith.mulf %21, %122 : vector<8x256xf32>
    %124 = vector.broadcast %107 : vector<8x1xf32> to vector<8x256xf32>
    %125 = arith.addf %123, %124 : vector<8x256xf32>
    %cst_67 = arith.constant 0.000000e+00 : f32
    %126 = vector.broadcast %cst_67 : f32 to vector<8x256xf32>
    %127 = arith.maximumf %125, %126 : vector<8x256xf32>
    %c16 = arith.constant 16 : index
    %c0_68 = arith.constant 0 : index
    %128 = vector.load %arg5[%c16, %c0_68] : memref<32x256xf32, #tpu.memory_space<vmem>>, vector<8x256xf32>
    tpu.vector_store %arg5[%c16, %c0_68], %127 {strides = array<i32>} : memref<32x256xf32, #tpu.memory_space<vmem>>, vector<8x256xf32>,
    %129 = vector.broadcast %104 : vector<8x1xf32> to vector<8x256xf32>
    %130 = arith.mulf %40, %129 : vector<8x256xf32>
    %131 = vector.broadcast %107 : vector<8x1xf32> to vector<8x256xf32>
    %132 = arith.addf %130, %131 : vector<8x256xf32>
    %cst_69 = arith.constant 0.000000e+00 : f32
    %133 = vector.broadcast %cst_69 : f32 to vector<8x256xf32>
    %134 = arith.maximumf %132, %133 : vector<8x256xf32>
    %c24 = arith.constant 24 : index
    %c0_70 = arith.constant 0 : index
    %135 = vector.load %arg5[%c24, %c0_70] : memref<32x256xf32, #tpu.memory_space<vmem>>, vector<8x256xf32>
    tpu.vector_store %arg5[%c24, %c0_70], %134 {strides = array<i32>} : memref<32x256xf32, #tpu.memory_space<vmem>>, vector<8x256xf32>,
    return
  }
}

module attributes {stable_mosaic.version = 11 : i64} {
  func.func @_conv_bias_relu_kernel(%arg0: memref<8x896xf32, #tpu.memory_space<vmem>>, %arg1: memref<9x8x8xf32, #tpu.memory_space<vmem>>, %arg2: memref<8x1xf32, #tpu.memory_space<vmem>>, %arg3: memref<8x768xf32, #tpu.memory_space<vmem>>) attributes {dimension_semantics = [], scalar_prefetch = 0 : i64, scratch_operands = 0 : i64, tpu.core_type = #tpu.core_type<tc>} {
    %c0 = arith.constant 0 : index
    %c0_0 = arith.constant 0 : index
    %c0_1 = arith.constant 0 : index
    %0 = vector.load %arg1[%c0, %c0_0, %c0_1] : memref<9x8x8xf32, #tpu.memory_space<vmem>>, vector<1x8x8xf32>
    %1 = vector.shape_cast %0 : vector<1x8x8xf32> to vector<8x8xf32>
    %c0_2 = arith.constant 0 : index
    %c0_3 = arith.constant 0 : index
    %2 = vector.load %arg0[%c0_2, %c0_3] : memref<8x896xf32, #tpu.memory_space<vmem>>, vector<8x768xf32>
    %cst = arith.constant dense<0.000000e+00> : vector<8x768xf32>
    %3 = tpu.matmul %1, %2, %cst {dimension_numbers = #tpu.dot_dimension_numbers<[1], [0], [0], [1], [0, 0, 1, 1], [], []>} : vector<8x8xf32>, vector<8x768xf32>, vector<8x768xf32> -> vector<8x768xf32>
    %c1 = arith.constant 1 : index
    %c0_4 = arith.constant 0 : index
    %c0_5 = arith.constant 0 : index
    %4 = vector.load %arg1[%c1, %c0_4, %c0_5] : memref<9x8x8xf32, #tpu.memory_space<vmem>>, vector<1x8x8xf32>
    %5 = vector.shape_cast %4 : vector<1x8x8xf32> to vector<8x8xf32>
    %c0_6 = arith.constant 0 : index
    %c1_7 = arith.constant 1 : index
    %6 = vector.load %arg0[%c0_6, %c1_7] : memref<8x896xf32, #tpu.memory_space<vmem>>, vector<8x768xf32>
    %cst_8 = arith.constant dense<0.000000e+00> : vector<8x768xf32>
    %7 = tpu.matmul %5, %6, %cst_8 {dimension_numbers = #tpu.dot_dimension_numbers<[1], [0], [0], [1], [0, 0, 1, 1], [], []>} : vector<8x8xf32>, vector<8x768xf32>, vector<8x768xf32> -> vector<8x768xf32>
    %8 = arith.addf %3, %7 : vector<8x768xf32>
    %c2 = arith.constant 2 : index
    %c0_9 = arith.constant 0 : index
    %c0_10 = arith.constant 0 : index
    %9 = vector.load %arg1[%c2, %c0_9, %c0_10] : memref<9x8x8xf32, #tpu.memory_space<vmem>>, vector<1x8x8xf32>
    %10 = vector.shape_cast %9 : vector<1x8x8xf32> to vector<8x8xf32>
    %c0_11 = arith.constant 0 : index
    %c2_12 = arith.constant 2 : index
    %11 = vector.load %arg0[%c0_11, %c2_12] : memref<8x896xf32, #tpu.memory_space<vmem>>, vector<8x768xf32>
    %cst_13 = arith.constant dense<0.000000e+00> : vector<8x768xf32>
    %12 = tpu.matmul %10, %11, %cst_13 {dimension_numbers = #tpu.dot_dimension_numbers<[1], [0], [0], [1], [0, 0, 1, 1], [], []>} : vector<8x8xf32>, vector<8x768xf32>, vector<8x768xf32> -> vector<8x768xf32>
    %13 = arith.addf %8, %12 : vector<8x768xf32>
    %c3 = arith.constant 3 : index
    %c0_14 = arith.constant 0 : index
    %c0_15 = arith.constant 0 : index
    %14 = vector.load %arg1[%c3, %c0_14, %c0_15] : memref<9x8x8xf32, #tpu.memory_space<vmem>>, vector<1x8x8xf32>
    %15 = vector.shape_cast %14 : vector<1x8x8xf32> to vector<8x8xf32>
    %c0_16 = arith.constant 0 : index
    %c18 = arith.constant 18 : index
    %16 = vector.load %arg0[%c0_16, %c18] : memref<8x896xf32, #tpu.memory_space<vmem>>, vector<8x768xf32>
    %cst_17 = arith.constant dense<0.000000e+00> : vector<8x768xf32>
    %17 = tpu.matmul %15, %16, %cst_17 {dimension_numbers = #tpu.dot_dimension_numbers<[1], [0], [0], [1], [0, 0, 1, 1], [], []>} : vector<8x8xf32>, vector<8x768xf32>, vector<8x768xf32> -> vector<8x768xf32>
    %18 = arith.addf %13, %17 : vector<8x768xf32>
    %c4 = arith.constant 4 : index
    %c0_18 = arith.constant 0 : index
    %c0_19 = arith.constant 0 : index
    %19 = vector.load %arg1[%c4, %c0_18, %c0_19] : memref<9x8x8xf32, #tpu.memory_space<vmem>>, vector<1x8x8xf32>
    %20 = vector.shape_cast %19 : vector<1x8x8xf32> to vector<8x8xf32>
    %c0_20 = arith.constant 0 : index
    %c19 = arith.constant 19 : index
    %21 = vector.load %arg0[%c0_20, %c19] : memref<8x896xf32, #tpu.memory_space<vmem>>, vector<8x768xf32>
    %cst_21 = arith.constant dense<0.000000e+00> : vector<8x768xf32>
    %22 = tpu.matmul %20, %21, %cst_21 {dimension_numbers = #tpu.dot_dimension_numbers<[1], [0], [0], [1], [0, 0, 1, 1], [], []>} : vector<8x8xf32>, vector<8x768xf32>, vector<8x768xf32> -> vector<8x768xf32>
    %23 = arith.addf %18, %22 : vector<8x768xf32>
    %c5 = arith.constant 5 : index
    %c0_22 = arith.constant 0 : index
    %c0_23 = arith.constant 0 : index
    %24 = vector.load %arg1[%c5, %c0_22, %c0_23] : memref<9x8x8xf32, #tpu.memory_space<vmem>>, vector<1x8x8xf32>
    %25 = vector.shape_cast %24 : vector<1x8x8xf32> to vector<8x8xf32>
    %c0_24 = arith.constant 0 : index
    %c20 = arith.constant 20 : index
    %26 = vector.load %arg0[%c0_24, %c20] : memref<8x896xf32, #tpu.memory_space<vmem>>, vector<8x768xf32>
    %cst_25 = arith.constant dense<0.000000e+00> : vector<8x768xf32>
    %27 = tpu.matmul %25, %26, %cst_25 {dimension_numbers = #tpu.dot_dimension_numbers<[1], [0], [0], [1], [0, 0, 1, 1], [], []>} : vector<8x8xf32>, vector<8x768xf32>, vector<8x768xf32> -> vector<8x768xf32>
    %28 = arith.addf %23, %27 : vector<8x768xf32>
    %c6 = arith.constant 6 : index
    %c0_26 = arith.constant 0 : index
    %c0_27 = arith.constant 0 : index
    %29 = vector.load %arg1[%c6, %c0_26, %c0_27] : memref<9x8x8xf32, #tpu.memory_space<vmem>>, vector<1x8x8xf32>
    %30 = vector.shape_cast %29 : vector<1x8x8xf32> to vector<8x8xf32>
    %c0_28 = arith.constant 0 : index
    %c36 = arith.constant 36 : index
    %31 = vector.load %arg0[%c0_28, %c36] : memref<8x896xf32, #tpu.memory_space<vmem>>, vector<8x768xf32>
    %cst_29 = arith.constant dense<0.000000e+00> : vector<8x768xf32>
    %32 = tpu.matmul %30, %31, %cst_29 {dimension_numbers = #tpu.dot_dimension_numbers<[1], [0], [0], [1], [0, 0, 1, 1], [], []>} : vector<8x8xf32>, vector<8x768xf32>, vector<8x768xf32> -> vector<8x768xf32>
    %33 = arith.addf %28, %32 : vector<8x768xf32>
    %c7 = arith.constant 7 : index
    %c0_30 = arith.constant 0 : index
    %c0_31 = arith.constant 0 : index
    %34 = vector.load %arg1[%c7, %c0_30, %c0_31] : memref<9x8x8xf32, #tpu.memory_space<vmem>>, vector<1x8x8xf32>
    %35 = vector.shape_cast %34 : vector<1x8x8xf32> to vector<8x8xf32>
    %c0_32 = arith.constant 0 : index
    %c37 = arith.constant 37 : index
    %36 = vector.load %arg0[%c0_32, %c37] : memref<8x896xf32, #tpu.memory_space<vmem>>, vector<8x768xf32>
    %cst_33 = arith.constant dense<0.000000e+00> : vector<8x768xf32>
    %37 = tpu.matmul %35, %36, %cst_33 {dimension_numbers = #tpu.dot_dimension_numbers<[1], [0], [0], [1], [0, 0, 1, 1], [], []>} : vector<8x8xf32>, vector<8x768xf32>, vector<8x768xf32> -> vector<8x768xf32>
    %38 = arith.addf %33, %37 : vector<8x768xf32>
    %c8 = arith.constant 8 : index
    %c0_34 = arith.constant 0 : index
    %c0_35 = arith.constant 0 : index
    %39 = vector.load %arg1[%c8, %c0_34, %c0_35] : memref<9x8x8xf32, #tpu.memory_space<vmem>>, vector<1x8x8xf32>
    %40 = vector.shape_cast %39 : vector<1x8x8xf32> to vector<8x8xf32>
    %c0_36 = arith.constant 0 : index
    %c38 = arith.constant 38 : index
    %41 = vector.load %arg0[%c0_36, %c38] : memref<8x896xf32, #tpu.memory_space<vmem>>, vector<8x768xf32>
    %cst_37 = arith.constant dense<0.000000e+00> : vector<8x768xf32>
    %42 = tpu.matmul %40, %41, %cst_37 {dimension_numbers = #tpu.dot_dimension_numbers<[1], [0], [0], [1], [0, 0, 1, 1], [], []>} : vector<8x8xf32>, vector<8x768xf32>, vector<8x768xf32> -> vector<8x768xf32>
    %43 = arith.addf %38, %42 : vector<8x768xf32>
    %c0_38 = arith.constant 0 : index
    %c0_39 = arith.constant 0 : index
    %44 = vector.load %arg2[%c0_38, %c0_39] : memref<8x1xf32, #tpu.memory_space<vmem>>, vector<8x1xf32>
    %45 = vector.broadcast %44 : vector<8x1xf32> to vector<8x768xf32>
    %46 = arith.addf %43, %45 : vector<8x768xf32>
    %cst_40 = arith.constant 0.000000e+00 : f32
    %47 = vector.broadcast %cst_40 : f32 to vector<8x768xf32>
    %48 = arith.maximumf %46, %47 : vector<8x768xf32>
    %c0_41 = arith.constant 0 : index
    %c0_42 = arith.constant 0 : index
    %49 = vector.load %arg3[%c0_41, %c0_42] : memref<8x768xf32, #tpu.memory_space<vmem>>, vector<8x768xf32>
    tpu.vector_store %arg3[%c0_41, %c0_42], %48 {strides = array<i32>} : memref<8x768xf32, #tpu.memory_space<vmem>>, vector<8x768xf32>,
    return
  }
}

</mosaic_0001>

<llo_original>
// kernel: vae_forward.9
$region0: #{vae_forward.9}
  #allocation0 [shape = 'u32[]', space=smem, size = 0x4, offset = 0x4, fixed_abs, tag = 'smem constant byte address 0x4 - core index']
  #allocation1 [shape = 'u32[72,128]{1,0:T(1,128)}', space=vmem, size = 0x9000, scoped, tag = 'internal scratch']
  %s0 = inlined_call_operand.vmem [shape: f32[8,384], index: 0, kind: input, shape index: {}]
  %s1 = inlined_call_operand.vmem [shape: f32[9,8,8], index: 1, kind: input, shape index: {}]
  %s2 = inlined_call_operand.vmem [shape: f32[8,1], index: 2, kind: input, shape index: {}]
  %s3 = inlined_call_operand.vmem [shape: f32[8,1], index: 3, kind: input, shape index: {}]
  %s4 = inlined_call_operand.vmem [shape: f32[1,256], index: 4, kind: input, shape index: {}]
  %s5 = inlined_call_operand.vmem [shape: f32[8,256], index: 5, kind: output, shape index: {}]
  %s6 = sld [smem:[#allocation0]]
  $region30: #{vae_forward.9} parent=0
    _
  %s8 = ssub.s32 1, %s6
  %s9 = scalar_select 0, %s8, %s6
  // Predicated region
  $region2: #{vae_forward.9} parent=0 // pred_check
    _
  $region3: #{vae_forward.9} parent=0 // pred_check_branch
    %11 = sbr.rel (0) target = $region5
  $region4: #{vae_forward.9} parent=0 // pred_region
    _
  $region5: #{vae_forward.9} parent=0 // pred_fallthru
    _
  // Predicated region
  $region6: #{vae_forward.9} parent=0 // pred_check
    _
  $region7: #{vae_forward.9} parent=0 // pred_check_branch
    %13 = sbr.rel (0) target = $region9
  $region8: #{vae_forward.9} parent=0 // pred_region
    _
  $region9: #{vae_forward.9} parent=0 // pred_fallthru
    _
  // Predicated region
  $region10: #{vae_forward.9} parent=0 // pred_check
    _
  $region11: #{vae_forward.9} parent=0 // pred_check_branch
    %15 = sbr.rel (0) target = $region13
  $region12: #{vae_forward.9} parent=0 // pred_region
    _
  $region13: #{vae_forward.9} parent=0 // pred_fallthru
    _
  // Predicated region
  $region14: #{vae_forward.9} parent=0 // pred_check
    _
  $region15: #{vae_forward.9} parent=0 // pred_check_branch
    %17 = sbr.rel (0) target = $region17
  $region16: #{vae_forward.9} parent=0 // pred_region
    _
  $region17: #{vae_forward.9} parent=0 // pred_fallthru
    _
  // Predicated region
  $region18: #{vae_forward.9} parent=0 // pred_check
    _
  $region19: #{vae_forward.9} parent=0 // pred_check_branch
    %19 = sbr.rel (0) target = $region21
  $region20: #{vae_forward.9} parent=0 // pred_region
    _
  $region21: #{vae_forward.9} parent=0 // pred_fallthru
    _
  %v20 = vld [vmem:[%s1] sm:$0xff]
  %v21 = vld [vmem:[%s0] sm:$0xff]
  %v22 = vld [vmem:[%s0 + $0x8] sm:$0xff]
  %s23 = scalar_lea.vmem %s1, 8
  %v24 = vld [vmem:[%s23] sm:$0xff]
  %v25 = vld [vmem:[%s0] sm:$0xff]
  %v26 = vld [vmem:[%s0 + $0x8] sm:$0xff]
  %v27 = vld [vmem:[%s0 + $0x10] sm:$0xff]
  %31 = vrot.lane.b32.xlu0 %v25, 127
  %v32 = vpop.permute.xlu0 %31
  %33 = vrot.lane.b32.xlu0 %v26, 127
  %v34 = vpop.permute.xlu0 %33
  %35 = vrot.lane.b32.xlu0 %v27, 127
  %v36 = vpop.permute.xlu0 %35
  %vm37 = vcmask 1039360
  %v38 = vsel %vm37, %v32, %v34
  %v39 = vsel %vm37, %v34, %v36
  %vm42 = vcmask 64512
  %v44 = vsel %vm42, %v24, 0
  %46 = vmatpush.msra.mxu0 0.0
  %47 = vmatpush.msra.mxu0 0.0
  %48 = vmatpush.msra.mxu0 0.0
  %49 = vmatpush.msra.mxu0 0.0
  %50 = vmatpush.msra.mxu0 0.0
  %51 = vmatpush.msra.mxu0 0.0
  %52 = vmatpush.msra.mxu0 0.0
  %53 = vmatpush.msra.mxu0 0.0
  %54 = vmatpush.msra.mxu0 0.0
  %55 = vmatpush.msra.mxu0 0.0
  %56 = vmatpush.msra.mxu0 0.0
  %57 = vmatpush.msra.mxu0 0.0
  %58 = vmatpush.msra.mxu0 0.0
  %59 = vmatpush.msra.mxu0 0.0
  %60 = vmatpush.msra.mxu0 0.0
  %61 = vmatpush.msra.mxu0 %v38
  %62 = vmatmul.f32.gmra.mxu0 %v44
  %v63 = vpop.f32.mrf.mxu0
  %v64 = vadd.f32 0.0, %v63
  %65 = vdwg.mxu0
  %66 = vmatpush.msra.mxu0 0.0
  %67 = vmatpush.msra.mxu0 0.0
  %68 = vmatpush.msra.mxu0 0.0
  %69 = vmatpush.msra.mxu0 0.0
  %70 = vmatpush.msra.mxu0 0.0
  %71 = vmatpush.msra.mxu0 0.0
  %72 = vmatpush.msra.mxu0 0.0
  %73 = vmatpush.msra.mxu0 0.0
  %74 = vmatpush.msra.mxu0 0.0
  %75 = vmatpush.msra.mxu0 0.0
  %76 = vmatpush.msra.mxu0 0.0
  %77 = vmatpush.msra.mxu0 0.0
  %78 = vmatpush.msra.mxu0 0.0
  %79 = vmatpush.msra.mxu0 0.0
  %80 = vmatpush.msra.mxu0 0.0
  %81 = vmatpush.msra.mxu0 %v39
  %82 = vmatmul.f32.gmra.mxu0 %v44
  %v83 = vpop.f32.mrf.mxu0
  %v84 = vadd.f32 0.0, %v83
  %85 = vdwg.mxu0
  %v87 = vsel %vm42, %v20, 0
  %89 = vmatpush.msra.mxu0 0.0
  %90 = vmatpush.msra.mxu0 0.0
  %91 = vmatpush.msra.mxu0 0.0
  %92 = vmatpush.msra.mxu0 0.0
  %93 = vmatpush.msra.mxu0 0.0
  %94 = vmatpush.msra.mxu0 0.0
  %95 = vmatpush.msra.mxu0 0.0
  %96 = vmatpush.msra.mxu0 0.0
  %97 = vmatpush.msra.mxu0 0.0
  %98 = vmatpush.msra.mxu0 0.0
  %99 = vmatpush.msra.mxu0 0.0
  %100 = vmatpush.msra.mxu0 0.0
  %101 = vmatpush.msra.mxu0 0.0
  %102 = vmatpush.msra.mxu0 0.0
  %103 = vmatpush.msra.mxu0 0.0
  %104 = vmatpush.msra.mxu0 %v21
  %105 = vmatmul.f32.gmra.mxu0 %v87
  %v106 = vpop.f32.mrf.mxu0
  %v107 = vadd.f32 %v64, %v106
  %108 = vdwg.mxu0
  %109 = vmatpush.msra.mxu0 0.0
  %110 = vmatpush.msra.mxu0 0.0
  %111 = vmatpush.msra.mxu0 0.0
  %112 = vmatpush.msra.mxu0 0.0
  %113 = vmatpush.msra.mxu0 0.0
  %114 = vmatpush.msra.mxu0 0.0
  %115 = vmatpush.msra.mxu0 0.0
  %116 = vmatpush.msra.mxu0 0.0
  %117 = vmatpush.msra.mxu0 0.0
  %118 = vmatpush.msra.mxu0 0.0
  %119 = vmatpush.msra.mxu0 0.0
  %120 = vmatpush.msra.mxu0 0.0
  %121 = vmatpush.msra.mxu0 0.0
  %122 = vmatpush.msra.mxu0 0.0
  %123 = vmatpush.msra.mxu0 0.0
  %124 = vmatpush.msra.mxu0 %v22
  %125 = vmatmul.f32.gmra.mxu0 %v87
  %v126 = vpop.f32.mrf.mxu0
  %v127 = vadd.f32 %v84, %v126
  %128 = vdwg.mxu0
  %s129 = scalar_lea.vmem %s1, 16
  %v130 = vld [vmem:[%s129] sm:$0xff]
  %131 = vrot.lane.b32.xlu0 %v25, 126
  %v132 = vpop.permute.xlu0 %131
  %133 = vrot.lane.b32.xlu0 %v26, 126
  %v134 = vpop.permute.xlu0 %133
  %135 = vrot.lane.b32.xlu0 %v27, 126
  %v136 = vpop.permute.xlu0 %135
  %vm137 = vcmask 1031168
  %v138 = vsel %vm137, %v132, %v134
  %v139 = vsel %vm137, %v134, %v136
  %v143 = vsel %vm42, %v130, 0
  %145 = vmatpush.msra.mxu0 0.0
  %146 = vmatpush.msra.mxu0 0.0
  %147 = vmatpush.msra.mxu0 0.0
  %148 = vmatpush.msra.mxu0 0.0
  %149 = vmatpush.msra.mxu0 0.0
  %150 = vmatpush.msra.mxu0 0.0
  %151 = vmatpush.msra.mxu0 0.0
  %152 = vmatpush.msra.mxu0 0.0
  %153 = vmatpush.msra.mxu0 0.0
  %154 = vmatpush.msra.mxu0 0.0
  %155 = vmatpush.msra.mxu0 0.0
  %156 = vmatpush.msra.mxu0 0.0
  %157 = vmatpush.msra.mxu0 0.0
  %158 = vmatpush.msra.mxu0 0.0
  %159 = vmatpush.msra.mxu0 0.0
  %160 = vmatpush.msra.mxu0 %v138
  %161 = vmatmul.f32.gmra.mxu0 %v143
  %v162 = vpop.f32.mrf.mxu0
  %v163 = vadd.f32 0.0, %v162
  %164 = vdwg.mxu0
  %165 = vmatpush.msra.mxu0 0.0
  %166 = vmatpush.msra.mxu0 0.0
  %167 = vmatpush.msra.mxu0 0.0
  %168 = vmatpush.msra.mxu0 0.0
  %169 = vmatpush.msra.mxu0 0.0
  %170 = vmatpush.msra.mxu0 0.0
  %171 = vmatpush.msra.mxu0 0.0
  %172 = vmatpush.msra.mxu0 0.0
  %173 = vmatpush.msra.mxu0 0.0
  %174 = vmatpush.msra.mxu0 0.0
  %175 = vmatpush.msra.mxu0 0.0
  %176 = vmatpush.msra.mxu0 0.0
  %177 = vmatpush.msra.mxu0 0.0
  %178 = vmatpush.msra.mxu0 0.0
  %179 = vmatpush.msra.mxu0 0.0
  %180 = vmatpush.msra.mxu0 %v139
  %181 = vmatmul.f32.gmra.mxu0 %v143
  %v182 = vpop.f32.mrf.mxu0
  %v183 = vadd.f32 0.0, %v182
  %184 = vdwg.mxu0
  %v185 = vadd.f32 %v107, %v163
  %v186 = vadd.f32 %v127, %v183
  %s187 = scalar_lea.vmem %s1, 24
  %v188 = vld [vmem:[%s187] sm:$0xff]
  %189 = vrot.lane.b32.xlu0 %v25, 118
  %v190 = vpop.permute.xlu0 %189
  %191 = vrot.lane.b32.xlu0 %v26, 118
  %v192 = vpop.permute.xlu0 %191
  %193 = vrot.lane.b32.xlu0 %v27, 118
  %v194 = vpop.permute.xlu0 %193
  %vm195 = vcmask 965632
  %v196 = vsel %vm195, %v190, %v192
  %v197 = vsel %vm195, %v192, %v194
  %v201 = vsel %vm42, %v188, 0
  %203 = vmatpush.msra.mxu0 0.0
  %204 = vmatpush.msra.mxu0 0.0
  %205 = vmatpush.msra.mxu0 0.0
  %206 = vmatpush.msra.mxu0 0.0
  %207 = vmatpush.msra.mxu0 0.0
  %208 = vmatpush.msra.mxu0 0.0
  %209 = vmatpush.msra.mxu0 0.0
  %210 = vmatpush.msra.mxu0 0.0
  %211 = vmatpush.msra.mxu0 0.0
  %212 = vmatpush.msra.mxu0 0.0
  %213 = vmatpush.msra.mxu0 0.0
  %214 = vmatpush.msra.mxu0 0.0
  %215 = vmatpush.msra.mxu0 0.0
  %216 = vmatpush.msra.mxu0 0.0
  %217 = vmatpush.msra.mxu0 0.0
  %218 = vmatpush.msra.mxu0 %v196
  %219 = vmatmul.f32.gmra.mxu0 %v201
  %v220 = vpop.f32.mrf.mxu0
  %v221 = vadd.f32 0.0, %v220
  %222 = vdwg.mxu0
  %223 = vmatpush.msra.mxu0 0.0
  %224 = vmatpush.msra.mxu0 0.0
  %225 = vmatpush.msra.mxu0 0.0
  %226 = vmatpush.msra.mxu0 0.0
  %227 = vmatpush.msra.mxu0 0.0
  %228 = vmatpush.msra.mxu0 0.0
  %229 = vmatpush.msra.mxu0 0.0
  %230 = vmatpush.msra.mxu0 0.0
  %231 = vmatpush.msra.mxu0 0.0
  %232 = vmatpush.msra.mxu0 0.0
  %233 = vmatpush.msra.mxu0 0.0
  %234 = vmatpush.msra.mxu0 0.0
  %235 = vmatpush.msra.mxu0 0.0
  %236 = vmatpush.msra.mxu0 0.0
  %237 = vmatpush.msra.mxu0 0.0
  %238 = vmatpush.msra.mxu0 %v197
  %239 = vmatmul.f32.gmra.mxu0 %v201
  %v240 = vpop.f32.mrf.mxu0
  %v241 = vadd.f32 0.0, %v240
  %242 = vdwg.mxu0
  %v243 = vadd.f32 %v185, %v221
  %v244 = vadd.f32 %v186, %v241
  %s245 = scalar_lea.vmem %s1, 32
  %v246 = vld [vmem:[%s245] sm:$0xff]
  %247 = vrot.lane.b32.xlu0 %v25, 117
  %v248 = vpop.permute.xlu0 %247
  %249 = vrot.lane.b32.xlu0 %v26, 117
  %v250 = vpop.permute.xlu0 %249
  %251 = vrot.lane.b32.xlu0 %v27, 117
  %v252 = vpop.permute.xlu0 %251
  %vm253 = vcmask 957440
  %v254 = vsel %vm253, %v248, %v250
  %v255 = vsel %vm253, %v250, %v252
  %v259 = vsel %vm42, %v246, 0
  %261 = vmatpush.msra.mxu0 0.0
  %262 = vmatpush.msra.mxu0 0.0
  %263 = vmatpush.msra.mxu0 0.0
  %264 = vmatpush.msra.mxu0 0.0
  %265 = vmatpush.msra.mxu0 0.0
  %266 = vmatpush.msra.mxu0 0.0
  %267 = vmatpush.msra.mxu0 0.0
  %268 = vmatpush.msra.mxu0 0.0
  %269 = vmatpush.msra.mxu0 0.0
  %270 = vmatpush.msra.mxu0 0.0
  %271 = vmatpush.msra.mxu0 0.0
  %272 = vmatpush.msra.mxu0 0.0
  %273 = vmatpush.msra.mxu0 0.0
  %274 = vmatpush.msra.mxu0 0.0
  %275 = vmatpush.msra.mxu0 0.0
  %276 = vmatpush.msra.mxu0 %v254
  %277 = vmatmul.f32.gmra.mxu0 %v259
  %v278 = vpop.f32.mrf.mxu0
  %v279 = vadd.f32 0.0, %v278
  %280 = vdwg.mxu0
  %281 = vmatpush.msra.mxu0 0.0
  %282 = vmatpush.msra.mxu0 0.0
  %283 = vmatpush.msra.mxu0 0.0
  %284 = vmatpush.msra.mxu0 0.0
  %285 = vmatpush.msra.mxu0 0.0
  %286 = vmatpush.msra.mxu0 0.0
  %287 = vmatpush.msra.mxu0 0.0
  %288 = vmatpush.msra.mxu0 0.0
  %289 = vmatpush.msra.mxu0 0.0
  %290 = vmatpush.msra.mxu0 0.0
  %291 = vmatpush.msra.mxu0 0.0
  %292 = vmatpush.msra.mxu0 0.0
  %293 = vmatpush.msra.mxu0 0.0
  %294 = vmatpush.msra.mxu0 0.0
  %295 = vmatpush.msra.mxu0 0.0
  %296 = vmatpush.msra.mxu0 %v255
  %297 = vmatmul.f32.gmra.mxu0 %v259
  %v298 = vpop.f32.mrf.mxu0
  %v299 = vadd.f32 0.0, %v298
  %300 = vdwg.mxu0
  %v301 = vadd.f32 %v243, %v279
  %v302 = vadd.f32 %v244, %v299
  %s303 = scalar_lea.vmem %s1, 40
  %v304 = vld [vmem:[%s303] sm:$0xff]
  %305 = vrot.lane.b32.xlu0 %v25, 116
  %v306 = vpop.permute.xlu0 %305
  %307 = vrot.lane.b32.xlu0 %v26, 116
  %v308 = vpop.permute.xlu0 %307
  %309 = vrot.lane.b32.xlu0 %v27, 116
  %v310 = vpop.permute.xlu0 %309
  %vm311 = vcmask 949248
  %v312 = vsel %vm311, %v306, %v308
  %v313 = vsel %vm311, %v308, %v310
  %v317 = vsel %vm42, %v304, 0
  %319 = vmatpush.msra.mxu0 0.0
  %320 = vmatpush.msra.mxu0 0.0
  %321 = vmatpush.msra.mxu0 0.0
  %322 = vmatpush.msra.mxu0 0.0
  %323 = vmatpush.msra.mxu0 0.0
  %324 = vmatpush.msra.mxu0 0.0
  %325 = vmatpush.msra.mxu0 0.0
  %326 = vmatpush.msra.mxu0 0.0
  %327 = vmatpush.msra.mxu0 0.0
  %328 = vmatpush.msra.mxu0 0.0
  %329 = vmatpush.msra.mxu0 0.0
  %330 = vmatpush.msra.mxu0 0.0
  %331 = vmatpush.msra.mxu0 0.0
  %332 = vmatpush.msra.mxu0 0.0
  %333 = vmatpush.msra.mxu0 0.0
  %334 = vmatpush.msra.mxu0 %v312
  %335 = vmatmul.f32.gmra.mxu0 %v317
  %v336 = vpop.f32.mrf.mxu0
  %v337 = vadd.f32 0.0, %v336
  %338 = vdwg.mxu0
  %339 = vmatpush.msra.mxu0 0.0
  %340 = vmatpush.msra.mxu0 0.0
  %341 = vmatpush.msra.mxu0 0.0
  %342 = vmatpush.msra.mxu0 0.0
  %343 = vmatpush.msra.mxu0 0.0
  %344 = vmatpush.msra.mxu0 0.0
  %345 = vmatpush.msra.mxu0 0.0
  %346 = vmatpush.msra.mxu0 0.0
  %347 = vmatpush.msra.mxu0 0.0
  %348 = vmatpush.msra.mxu0 0.0
  %349 = vmatpush.msra.mxu0 0.0
  %350 = vmatpush.msra.mxu0 0.0
  %351 = vmatpush.msra.mxu0 0.0
  %352 = vmatpush.msra.mxu0 0.0
  %353 = vmatpush.msra.mxu0 0.0
  %354 = vmatpush.msra.mxu0 %v313
  %355 = vmatmul.f32.gmra.mxu0 %v317
  %v356 = vpop.f32.mrf.mxu0
  %v357 = vadd.f32 0.0, %v356
  %358 = vdwg.mxu0
  %v359 = vadd.f32 %v301, %v337
  %v360 = vadd.f32 %v302, %v357
  %s361 = scalar_lea.vmem %s1, 48
  %v362 = vld [vmem:[%s361] sm:$0xff]
  %363 = vrot.lane.b32.xlu0 %v25, 108
  %v364 = vpop.permute.xlu0 %363
  %365 = vrot.lane.b32.xlu0 %v26, 108
  %v366 = vpop.permute.xlu0 %365
  %367 = vrot.lane.b32.xlu0 %v27, 108
  %v368 = vpop.permute.xlu0 %367
  %vm369 = vcmask 883712
  %v370 = vsel %vm369, %v364, %v366
  %v371 = vsel %vm369, %v366, %v368
  %v375 = vsel %vm42, %v362, 0
  %377 = vmatpush.msra.mxu0 0.0
  %378 = vmatpush.msra.mxu0 0.0
  %379 = vmatpush.msra.mxu0 0.0
  %380 = vmatpush.msra.mxu0 0.0
  %381 = vmatpush.msra.mxu0 0.0
  %382 = vmatpush.msra.mxu0 0.0
  %383 = vmatpush.msra.mxu0 0.0
  %384 = vmatpush.msra.mxu0 0.0
  %385 = vmatpush.msra.mxu0 0.0
  %386 = vmatpush.msra.mxu0 0.0
  %387 = vmatpush.msra.mxu0 0.0
  %388 = vmatpush.msra.mxu0 0.0
  %389 = vmatpush.msra.mxu0 0.0
  %390 = vmatpush.msra.mxu0 0.0
  %391 = vmatpush.msra.mxu0 0.0
  %392 = vmatpush.msra.mxu0 %v370
  %393 = vmatmul.f32.gmra.mxu0 %v375
  %v394 = vpop.f32.mrf.mxu0
  %v395 = vadd.f32 0.0, %v394
  %396 = vdwg.mxu0
  %397 = vmatpush.msra.mxu0 0.0
  %398 = vmatpush.msra.mxu0 0.0
  %399 = vmatpush.msra.mxu0 0.0
  %400 = vmatpush.msra.mxu0 0.0
  %401 = vmatpush.msra.mxu0 0.0
  %402 = vmatpush.msra.mxu0 0.0
  %403 = vmatpush.msra.mxu0 0.0
  %404 = vmatpush.msra.mxu0 0.0
  %405 = vmatpush.msra.mxu0 0.0
  %406 = vmatpush.msra.mxu0 0.0
  %407 = vmatpush.msra.mxu0 0.0
  %408 = vmatpush.msra.mxu0 0.0
  %409 = vmatpush.msra.mxu0 0.0
  %410 = vmatpush.msra.mxu0 0.0
  %411 = vmatpush.msra.mxu0 0.0
  %412 = vmatpush.msra.mxu0 %v371
  %413 = vmatmul.f32.gmra.mxu0 %v375
  %v414 = vpop.f32.mrf.mxu0
  %v415 = vadd.f32 0.0, %v414
  %416 = vdwg.mxu0
  %v417 = vadd.f32 %v359, %v395
  %v418 = vadd.f32 %v360, %v415
  %s419 = scalar_lea.vmem %s1, 56
  %v420 = vld [vmem:[%s419] sm:$0xff]
  %421 = vrot.lane.b32.xlu0 %v25, 107
  %v422 = vpop.permute.xlu0 %421
  %423 = vrot.lane.b32.xlu0 %v26, 107
  %v424 = vpop.permute.xlu0 %423
  %425 = vrot.lane.b32.xlu0 %v27, 107
  %v426 = vpop.permute.xlu0 %425
  %vm427 = vcmask 875520
  %v428 = vsel %vm427, %v422, %v424
  %v429 = vsel %vm427, %v424, %v426
  %v433 = vsel %vm42, %v420, 0
  %435 = vmatpush.msra.mxu0 0.0
  %436 = vmatpush.msra.mxu0 0.0
  %437 = vmatpush.msra.mxu0 0.0
  %438 = vmatpush.msra.mxu0 0.0
  %439 = vmatpush.msra.mxu0 0.0
  %440 = vmatpush.msra.mxu0 0.0
  %441 = vmatpush.msra.mxu0 0.0
  %442 = vmatpush.msra.mxu0 0.0
  %443 = vmatpush.msra.mxu0 0.0
  %444 = vmatpush.msra.mxu0 0.0
  %445 = vmatpush.msra.mxu0 0.0
  %446 = vmatpush.msra.mxu0 0.0
  %447 = vmatpush.msra.mxu0 0.0
  %448 = vmatpush.msra.mxu0 0.0
  %449 = vmatpush.msra.mxu0 0.0
  %450 = vmatpush.msra.mxu0 %v428
  %451 = vmatmul.f32.gmra.mxu0 %v433
  %v452 = vpop.f32.mrf.mxu0
  %v453 = vadd.f32 0.0, %v452
  %454 = vdwg.mxu0
  %455 = vmatpush.msra.mxu0 0.0
  %456 = vmatpush.msra.mxu0 0.0
  %457 = vmatpush.msra.mxu0 0.0
  %458 = vmatpush.msra.mxu0 0.0
  %459 = vmatpush.msra.mxu0 0.0
  %460 = vmatpush.msra.mxu0 0.0
  %461 = vmatpush.msra.mxu0 0.0
  %462 = vmatpush.msra.mxu0 0.0
  %463 = vmatpush.msra.mxu0 0.0
  %464 = vmatpush.msra.mxu0 0.0
  %465 = vmatpush.msra.mxu0 0.0
  %466 = vmatpush.msra.mxu0 0.0
  %467 = vmatpush.msra.mxu0 0.0
  %468 = vmatpush.msra.mxu0 0.0
  %469 = vmatpush.msra.mxu0 0.0
  %470 = vmatpush.msra.mxu0 %v429
  %471 = vmatmul.f32.gmra.mxu0 %v433
  %v472 = vpop.f32.mrf.mxu0
  %v473 = vadd.f32 0.0, %v472
  %474 = vdwg.mxu0
  %v475 = vadd.f32 %v417, %v453
  %v476 = vadd.f32 %v418, %v473
  %s477 = scalar_lea.vmem %s1, 64
  %v478 = vld [vmem:[%s477] sm:$0xff]
  %479 = vrot.lane.b32.xlu0 %v25, 106
  %v480 = vpop.permute.xlu0 %479
  %481 = vrot.lane.b32.xlu0 %v26, 106
  %v482 = vpop.permute.xlu0 %481
  %483 = vrot.lane.b32.xlu0 %v27, 106
  %v484 = vpop.permute.xlu0 %483
  %vm485 = vcmask 867328
  %v486 = vsel %vm485, %v480, %v482
  %v487 = vsel %vm485, %v482, %v484
  %v491 = vsel %vm42, %v478, 0
  %493 = vmatpush.msra.mxu0 0.0
  %494 = vmatpush.msra.mxu0 0.0
  %495 = vmatpush.msra.mxu0 0.0
  %496 = vmatpush.msra.mxu0 0.0
  %497 = vmatpush.msra.mxu0 0.0
  %498 = vmatpush.msra.mxu0 0.0
  %499 = vmatpush.msra.mxu0 0.0
  %500 = vmatpush.msra.mxu0 0.0
  %501 = vmatpush.msra.mxu0 0.0
  %502 = vmatpush.msra.mxu0 0.0
  %503 = vmatpush.msra.mxu0 0.0
  %504 = vmatpush.msra.mxu0 0.0
  %505 = vmatpush.msra.mxu0 0.0
  %506 = vmatpush.msra.mxu0 0.0
  %507 = vmatpush.msra.mxu0 0.0
  %508 = vmatpush.msra.mxu0 %v486
  %509 = vmatmul.f32.gmra.mxu0 %v491
  %v510 = vpop.f32.mrf.mxu0
  %v511 = vadd.f32 0.0, %v510
  %512 = vdwg.mxu0
  %513 = vmatpush.msra.mxu0 0.0
  %514 = vmatpush.msra.mxu0 0.0
  %515 = vmatpush.msra.mxu0 0.0
  %516 = vmatpush.msra.mxu0 0.0
  %517 = vmatpush.msra.mxu0 0.0
  %518 = vmatpush.msra.mxu0 0.0
  %519 = vmatpush.msra.mxu0 0.0
  %520 = vmatpush.msra.mxu0 0.0
  %521 = vmatpush.msra.mxu0 0.0
  %522 = vmatpush.msra.mxu0 0.0
  %523 = vmatpush.msra.mxu0 0.0
  %524 = vmatpush.msra.mxu0 0.0
  %525 = vmatpush.msra.mxu0 0.0
  %526 = vmatpush.msra.mxu0 0.0
  %527 = vmatpush.msra.mxu0 0.0
  %528 = vmatpush.msra.mxu0 %v487
  %529 = vmatmul.f32.gmra.mxu0 %v491
  %v530 = vpop.f32.mrf.mxu0
  %v531 = vadd.f32 0.0, %v530
  %532 = vdwg.mxu0
  %v533 = vadd.f32 %v475, %v511
  %v534 = vadd.f32 %v476, %v531
  %v535 = vld [vmem:[%s4] sm:$0x3]
  %v537 = vperm.slane %v535, 0
  %v538 = vperm.slane %v535, 1
  %v541 = vmul.f32 %v533, %v537
  %v542 = vmul.f32 %v534, %v538
  %v543 = vadd.f32 %v541, %v542
  %544 = vadd.xlane.f32.xlu0 %v543
  %v545 = vpop.xlane.xlu0 %544
  %v546 = vmul.f32 %v545, 0.03125
  %v547 = vsub.f32 %v533, %v546
  %v548 = vsub.f32 %v534, %v546
  %v549 = vmul.f32 %v547, %v547
  %v550 = vmul.f32 %v548, %v548
  %v551 = vmul.f32 %v549, %v537
  %v552 = vmul.f32 %v550, %v538
  %v553 = vadd.f32 %v551, %v552
  %554 = vadd.xlane.f32.xlu0 %v553
  %v555 = vpop.xlane.xlu0 %554
  %v556 = vmul.f32 %v555, 0.03125
  %v557 = vadd.f32 %v556, 1e-05
  %v558 = vrsqrt.pop %v557
  %v559 = vmul.f32 %v558, %v557
  %v560 = vmul.f32 %v559, %v558
  %v561 = vmul.f32 0.5, %v560
  %v562 = vsub.f32 1.5, %v561
  %v563 = vmul.f32 %v558, %v562
  %vm564 = vweird.f32 %v557
  %vm565 = vweird.f32 %v558
  %vm566 = vmor %vm564, %vm565
  %v567 = vsel %vm566, %v558, %v563
  %v568 = vld [vmem:[%s2] sm:$0xff]
  %v569 = vmul.f32 %v567, %v568
  %571 = vset.pattern.permute.xlu0 0
  %572 = vperm.xlu0 %571, %v569
  %v573 = vpop.permute.xlu0 %572
  %v575 = vmul.f32 %v547, %v573
  %v576 = vmul.f32 %v548, %v573
  %v577 = vld [vmem:[%s3] sm:$0xff]
  %579 = vset.pattern.permute.xlu0 0
  %580 = vperm.xlu0 %579, %v577
  %v581 = vpop.permute.xlu0 %580
  %v583 = vadd.f32 %v575, %v581
  %v584 = vadd.f32 %v576, %v581
  %v585 = vmax.f32 %v583, 0.0
  %v586 = vmax.f32 %v584, 0.0
  %587 = vst [vmem:[%s5] sm:$0xff] %v585
  %588 = vst [vmem:[%s5 + $0x8] sm:$0xff] %v586
  // Predicated region
  $region22: #{vae_forward.9} parent=0 // pred_check
    _
  $region23: #{vae_forward.9} parent=0 // pred_check_branch
    %590 = sbr.rel (0) target = $region25
  $region24: #{vae_forward.9} parent=0 // pred_region
    _
  $region25: #{vae_forward.9} parent=0 // pred_fallthru
    _
  // Predicated region
  $region26: #{vae_forward.9} parent=0 // pred_check
    _
  $region27: #{vae_forward.9} parent=0 // pred_check_branch
    %592 = sbr.rel (0) target = $region29
  $region28: #{vae_forward.9} parent=0 // pred_region
    _
  $region29: #{vae_forward.9} parent=0 // pred_fallthru
    _

// kernel: vae_forward.8
$region0: #{vae_forward.8}
  #allocation0 [shape = 'u32[]', space=smem, size = 0x4, offset = 0x4, fixed_abs, tag = 'smem constant byte address 0x4 - core index']
  #allocation1 [shape = 'u32[72,128]{1,0:T(1,128)}', space=vmem, size = 0x9000, scoped, tag = 'internal scratch']
  %s0 = inlined_call_operand.vmem [shape: f32[8,896], index: 0, kind: input, shape index: {}]
  %s1 = inlined_call_operand.vmem [shape: f32[9,8,8], index: 1, kind: input, shape index: {}]
  %s2 = inlined_call_operand.vmem [shape: f32[8,1], index: 2, kind: input, shape index: {}]
  %s3 = inlined_call_operand.vmem [shape: f32[8,1], index: 3, kind: input, shape index: {}]
  %s4 = inlined_call_operand.vmem [shape: f32[1,768], index: 4, kind: input, shape index: {}]
  %s5 = inlined_call_operand.vmem [shape: f32[8,768], index: 5, kind: output, shape index: {}]
  %s6 = sld [smem:[#allocation0]]
  $region30: #{vae_forward.8} parent=0
    _
  %s8 = ssub.s32 1, %s6
  %s9 = scalar_select 0, %s8, %s6
  // Predicated region
  $region2: #{vae_forward.8} parent=0 // pred_check
    _
  $region3: #{vae_forward.8} parent=0 // pred_check_branch
    %11 = sbr.rel (0) target = $region5
  $region4: #{vae_forward.8} parent=0 // pred_region
    _
  $region5: #{vae_forward.8} parent=0 // pred_fallthru
    _
  // Predicated region
  $region6: #{vae_forward.8} parent=0 // pred_check
    _
  $region7: #{vae_forward.8} parent=0 // pred_check_branch
    %13 = sbr.rel (0) target = $region9
  $region8: #{vae_forward.8} parent=0 // pred_region
    _
  $region9: #{vae_forward.8} parent=0 // pred_fallthru
    _
  // Predicated region
  $region10: #{vae_forward.8} parent=0 // pred_check
    _
  $region11: #{vae_forward.8} parent=0 // pred_check_branch
    %15 = sbr.rel (0) target = $region13
  $region12: #{vae_forward.8} parent=0 // pred_region
    _
  $region13: #{vae_forward.8} parent=0 // pred_fallthru
    _
  // Predicated region
  $region14: #{vae_forward.8} parent=0 // pred_check
    _
  $region15: #{vae_forward.8} parent=0 // pred_check_branch
    %17 = sbr.rel (0) target = $region17
  $region16: #{vae_forward.8} parent=0 // pred_region
    _
  $region17: #{vae_forward.8} parent=0 // pred_fallthru
    _
  // Predicated region
  $region18: #{vae_forward.8} parent=0 // pred_check
    _
  $region19: #{vae_forward.8} parent=0 // pred_check_branch
    %19 = sbr.rel (0) target = $region21
  $region20: #{vae_forward.8} parent=0 // pred_region
    _
  $region21: #{vae_forward.8} parent=0 // pred_fallthru
    _
  %v20 = vld [vmem:[%s1] sm:$0xff]
  %v21 = vld [vmem:[%s0] sm:$0xff]
  %v22 = vld [vmem:[%s0 + $0x8] sm:$0xff]
  %v23 = vld [vmem:[%s0 + $0x10] sm:$0xff]
  %v24 = vld [vmem:[%s0 + $0x18] sm:$0xff]
  %v25 = vld [vmem:[%s0 + $0x20] sm:$0xff]
  %v26 = vld [vmem:[%s0 + $0x28] sm:$0xff]
  %s27 = scalar_lea.vmem %s1, 8
  %v28 = vld [vmem:[%s27] sm:$0xff]
  %v29 = vld [vmem:[%s0] sm:$0xff]
  %v30 = vld [vmem:[%s0 + $0x8] sm:$0xff]
  %v31 = vld [vmem:[%s0 + $0x10] sm:$0xff]
  %v32 = vld [vmem:[%s0 + $0x18] sm:$0xff]
  %v33 = vld [vmem:[%s0 + $0x20] sm:$0xff]
  %v34 = vld [vmem:[%s0 + $0x28] sm:$0xff]
  %v35 = vld [vmem:[%s0 + $0x30] sm:$0xff]
  %43 = vrot.lane.b32.xlu0 %v29, 127
  %v44 = vpop.permute.xlu0 %43
  %45 = vrot.lane.b32.xlu0 %v30, 127
  %v46 = vpop.permute.xlu0 %45
  %47 = vrot.lane.b32.xlu0 %v31, 127
  %v48 = vpop.permute.xlu0 %47
  %49 = vrot.lane.b32.xlu0 %v32, 127
  %v50 = vpop.permute.xlu0 %49
  %51 = vrot.lane.b32.xlu0 %v33, 127
  %v52 = vpop.permute.xlu0 %51
  %53 = vrot.lane.b32.xlu0 %v34, 127
  %v54 = vpop.permute.xlu0 %53
  %55 = vrot.lane.b32.xlu0 %v35, 127
  %v56 = vpop.permute.xlu0 %55
  %vm57 = vcmask 1039360
  %v58 = vsel %vm57, %v44, %v46
  %v59 = vsel %vm57, %v46, %v48
  %v60 = vsel %vm57, %v48, %v50
  %v61 = vsel %vm57, %v50, %v52
  %v62 = vsel %vm57, %v52, %v54
  %v63 = vsel %vm57, %v54, %v56
  %vm70 = vcmask 64512
  %v72 = vsel %vm70, %v28, 0
  %74 = vmatpush.msra.mxu0 0.0
  %75 = vmatpush.msra.mxu0 0.0
  %76 = vmatpush.msra.mxu0 0.0
  %77 = vmatpush.msra.mxu0 0.0
  %78 = vmatpush.msra.mxu0 0.0
  %79 = vmatpush.msra.mxu0 0.0
  %80 = vmatpush.msra.mxu0 0.0
  %81 = vmatpush.msra.mxu0 0.0
  %82 = vmatpush.msra.mxu0 0.0
  %83 = vmatpush.msra.mxu0 0.0
  %84 = vmatpush.msra.mxu0 0.0
  %85 = vmatpush.msra.mxu0 0.0
  %86 = vmatpush.msra.mxu0 0.0
  %87 = vmatpush.msra.mxu0 0.0
  %88 = vmatpush.msra.mxu0 0.0
  %89 = vmatpush.msra.mxu0 %v58
  %90 = vmatmul.f32.gmra.mxu0 %v72
  %v91 = vpop.f32.mrf.mxu0
  %v92 = vadd.f32 0.0, %v91
  %93 = vdwg.mxu0
  %94 = vmatpush.msra.mxu0 0.0
  %95 = vmatpush.msra.mxu0 0.0
  %96 = vmatpush.msra.mxu0 0.0
  %97 = vmatpush.msra.mxu0 0.0
  %98 = vmatpush.msra.mxu0 0.0
  %99 = vmatpush.msra.mxu0 0.0
  %100 = vmatpush.msra.mxu0 0.0
  %101 = vmatpush.msra.mxu0 0.0
  %102 = vmatpush.msra.mxu0 0.0
  %103 = vmatpush.msra.mxu0 0.0
  %104 = vmatpush.msra.mxu0 0.0
  %105 = vmatpush.msra.mxu0 0.0
  %106 = vmatpush.msra.mxu0 0.0
  %107 = vmatpush.msra.mxu0 0.0
  %108 = vmatpush.msra.mxu0 0.0
  %109 = vmatpush.msra.mxu0 %v59
  %110 = vmatmul.f32.gmra.mxu0 %v72
  %v111 = vpop.f32.mrf.mxu0
  %v112 = vadd.f32 0.0, %v111
  %113 = vdwg.mxu0
  %114 = vmatpush.msra.mxu0 0.0
  %115 = vmatpush.msra.mxu0 0.0
  %116 = vmatpush.msra.mxu0 0.0
  %117 = vmatpush.msra.mxu0 0.0
  %118 = vmatpush.msra.mxu0 0.0
  %119 = vmatpush.msra.mxu0 0.0
  %120 = vmatpush.msra.mxu0 0.0
  %121 = vmatpush.msra.mxu0 0.0
  %122 = vmatpush.msra.mxu0 0.0
  %123 = vmatpush.msra.mxu0 0.0
  %124 = vmatpush.msra.mxu0 0.0
  %125 = vmatpush.msra.mxu0 0.0
  %126 = vmatpush.msra.mxu0 0.0
  %127 = vmatpush.msra.mxu0 0.0
  %128 = vmatpush.msra.mxu0 0.0
  %129 = vmatpush.msra.mxu0 %v60
  %130 = vmatmul.f32.gmra.mxu0 %v72
  %v131 = vpop.f32.mrf.mxu0
  %v132 = vadd.f32 0.0, %v131
  %133 = vdwg.mxu0
  %134 = vmatpush.msra.mxu0 0.0
  %135 = vmatpush.msra.mxu0 0.0
  %136 = vmatpush.msra.mxu0 0.0
  %137 = vmatpush.msra.mxu0 0.0
  %138 = vmatpush.msra.mxu0 0.0
  %139 = vmatpush.msra.mxu0 0.0
  %140 = vmatpush.msra.mxu0 0.0
  %141 = vmatpush.msra.mxu0 0.0
  %142 = vmatpush.msra.mxu0 0.0
  %143 = vmatpush.msra.mxu0 0.0
  %144 = vmatpush.msra.mxu0 0.0
  %145 = vmatpush.msra.mxu0 0.0
  %146 = vmatpush.msra.mxu0 0.0
  %147 = vmatpush.msra.mxu0 0.0
  %148 = vmatpush.msra.mxu0 0.0
  %149 = vmatpush.msra.mxu0 %v61
  %150 = vmatmul.f32.gmra.mxu0 %v72
  %v151 = vpop.f32.mrf.mxu0
  %v152 = vadd.f32 0.0, %v151
  %153 = vdwg.mxu0
  %154 = vmatpush.msra.mxu0 0.0
  %155 = vmatpush.msra.mxu0 0.0
  %156 = vmatpush.msra.mxu0 0.0
  %157 = vmatpush.msra.mxu0 0.0
  %158 = vmatpush.msra.mxu0 0.0
  %159 = vmatpush.msra.mxu0 0.0
  %160 = vmatpush.msra.mxu0 0.0
  %161 = vmatpush.msra.mxu0 0.0
  %162 = vmatpush.msra.mxu0 0.0
  %163 = vmatpush.msra.mxu0 0.0
  %164 = vmatpush.msra.mxu0 0.0
  %165 = vmatpush.msra.mxu0 0.0
  %166 = vmatpush.msra.mxu0 0.0
  %167 = vmatpush.msra.mxu0 0.0
  %168 = vmatpush.msra.mxu0 0.0
  %169 = vmatpush.msra.mxu0 %v62
  %170 = vmatmul.f32.gmra.mxu0 %v72
  %v171 = vpop.f32.mrf.mxu0
  %v172 = vadd.f32 0.0, %v171
  %173 = vdwg.mxu0
  %174 = vmatpush.msra.mxu0 0.0
  %175 = vmatpush.msra.mxu0 0.0
  %176 = vmatpush.msra.mxu0 0.0
  %177 = vmatpush.msra.mxu0 0.0
  %178 = vmatpush.msra.mxu0 0.0
  %179 = vmatpush.msra.mxu0 0.0
  %180 = vmatpush.msra.mxu0 0.0
  %181 = vmatpush.msra.mxu0 0.0
  %182 = vmatpush.msra.mxu0 0.0
  %183 = vmatpush.msra.mxu0 0.0
  %184 = vmatpush.msra.mxu0 0.0
  %185 = vmatpush.msra.mxu0 0.0
  %186 = vmatpush.msra.mxu0 0.0
  %187 = vmatpush.msra.mxu0 0.0
  %188 = vmatpush.msra.mxu0 0.0
  %189 = vmatpush.msra.mxu0 %v63
  %190 = vmatmul.f32.gmra.mxu0 %v72
  %v191 = vpop.f32.mrf.mxu0
  %v192 = vadd.f32 0.0, %v191
  %193 = vdwg.mxu0
  %v195 = vsel %vm70, %v20, 0
  %197 = vmatpush.msra.mxu0 0.0
  %198 = vmatpush.msra.mxu0 0.0
  %199 = vmatpush.msra.mxu0 0.0
  %200 = vmatpush.msra.mxu0 0.0
  %201 = vmatpush.msra.mxu0 0.0
  %202 = vmatpush.msra.mxu0 0.0
  %203 = vmatpush.msra.mxu0 0.0
  %204 = vmatpush.msra.mxu0 0.0
  %205 = vmatpush.msra.mxu0 0.0
  %206 = vmatpush.msra.mxu0 0.0
  %207 = vmatpush.msra.mxu0 0.0
  %208 = vmatpush.msra.mxu0 0.0
  %209 = vmatpush.msra.mxu0 0.0
  %210 = vmatpush.msra.mxu0 0.0
  %211 = vmatpush.msra.mxu0 0.0
  %212 = vmatpush.msra.mxu0 %v21
  %213 = vmatmul.f32.gmra.mxu0 %v195
  %v214 = vpop.f32.mrf.mxu0
  %v215 = vadd.f32 %v92, %v214
  %216 = vdwg.mxu0
  %217 = vmatpush.msra.mxu0 0.0
  %218 = vmatpush.msra.mxu0 0.0
  %219 = vmatpush.msra.mxu0 0.0
  %220 = vmatpush.msra.mxu0 0.0
  %221 = vmatpush.msra.mxu0 0.0
  %222 = vmatpush.msra.mxu0 0.0
  %223 = vmatpush.msra.mxu0 0.0
  %224 = vmatpush.msra.mxu0 0.0
  %225 = vmatpush.msra.mxu0 0.0
  %226 = vmatpush.msra.mxu0 0.0
  %227 = vmatpush.msra.mxu0 0.0
  %228 = vmatpush.msra.mxu0 0.0
  %229 = vmatpush.msra.mxu0 0.0
  %230 = vmatpush.msra.mxu0 0.0
  %231 = vmatpush.msra.mxu0 0.0
  %232 = vmatpush.msra.mxu0 %v22
  %233 = vmatmul.f32.gmra.mxu0 %v195
  %v234 = vpop.f32.mrf.mxu0
  %v235 = vadd.f32 %v112, %v234
  %236 = vdwg.mxu0
  %237 = vmatpush.msra.mxu0 0.0
  %238 = vmatpush.msra.mxu0 0.0
  %239 = vmatpush.msra.mxu0 0.0
  %240 = vmatpush.msra.mxu0 0.0
  %241 = vmatpush.msra.mxu0 0.0
  %242 = vmatpush.msra.mxu0 0.0
  %243 = vmatpush.msra.mxu0 0.0
  %244 = vmatpush.msra.mxu0 0.0
  %245 = vmatpush.msra.mxu0 0.0
  %246 = vmatpush.msra.mxu0 0.0
  %247 = vmatpush.msra.mxu0 0.0
  %248 = vmatpush.msra.mxu0 0.0
  %249 = vmatpush.msra.mxu0 0.0
  %250 = vmatpush.msra.mxu0 0.0
  %251 = vmatpush.msra.mxu0 0.0
  %252 = vmatpush.msra.mxu0 %v23
  %253 = vmatmul.f32.gmra.mxu0 %v195
  %v254 = vpop.f32.mrf.mxu0
  %v255 = vadd.f32 %v132, %v254
  %256 = vdwg.mxu0
  %257 = vmatpush.msra.mxu0 0.0
  %258 = vmatpush.msra.mxu0 0.0
  %259 = vmatpush.msra.mxu0 0.0
  %260 = vmatpush.msra.mxu0 0.0
  %261 = vmatpush.msra.mxu0 0.0
  %262 = vmatpush.msra.mxu0 0.0
  %263 = vmatpush.msra.mxu0 0.0
  %264 = vmatpush.msra.mxu0 0.0
  %265 = vmatpush.msra.mxu0 0.0
  %266 = vmatpush.msra.mxu0 0.0
  %267 = vmatpush.msra.mxu0 0.0
  %268 = vmatpush.msra.mxu0 0.0
  %269 = vmatpush.msra.mxu0 0.0
  %270 = vmatpush.msra.mxu0 0.0
  %271 = vmatpush.msra.mxu0 0.0
  %272 = vmatpush.msra.mxu0 %v24
  %273 = vmatmul.f32.gmra.mxu0 %v195
  %v274 = vpop.f32.mrf.mxu0
  %v275 = vadd.f32 %v152, %v274
  %276 = vdwg.mxu0
  %277 = vmatpush.msra.mxu0 0.0
  %278 = vmatpush.msra.mxu0 0.0
  %279 = vmatpush.msra.mxu0 0.0
  %280 = vmatpush.msra.mxu0 0.0
  %281 = vmatpush.msra.mxu0 0.0
  %282 = vmatpush.msra.mxu0 0.0
  %283 = vmatpush.msra.mxu0 0.0
  %284 = vmatpush.msra.mxu0 0.0
  %285 = vmatpush.msra.mxu0 0.0
  %286 = vmatpush.msra.mxu0 0.0
  %287 = vmatpush.msra.mxu0 0.0
  %288 = vmatpush.msra.mxu0 0.0
  %289 = vmatpush.msra.mxu0 0.0
  %290 = vmatpush.msra.mxu0 0.0
  %291 = vmatpush.msra.mxu0 0.0
  %292 = vmatpush.msra.mxu0 %v25
  %293 = vmatmul.f32.gmra.mxu0 %v195
  %v294 = vpop.f32.mrf.mxu0
  %v295 = vadd.f32 %v172, %v294
  %296 = vdwg.mxu0
  %297 = vmatpush.msra.mxu0 0.0
  %298 = vmatpush.msra.mxu0 0.0
  %299 = vmatpush.msra.mxu0 0.0
  %300 = vmatpush.msra.mxu0 0.0
  %301 = vmatpush.msra.mxu0 0.0
  %302 = vmatpush.msra.mxu0 0.0
  %303 = vmatpush.msra.mxu0 0.0
  %304 = vmatpush.msra.mxu0 0.0
  %305 = vmatpush.msra.mxu0 0.0
  %306 = vmatpush.msra.mxu0 0.0
  %307 = vmatpush.msra.mxu0 0.0
  %308 = vmatpush.msra.mxu0 0.0
  %309 = vmatpush.msra.mxu0 0.0
  %310 = vmatpush.msra.mxu0 0.0
  %311 = vmatpush.msra.mxu0 0.0
  %312 = vmatpush.msra.mxu0 %v26
  %313 = vmatmul.f32.gmra.mxu0 %v195
  %v314 = vpop.f32.mrf.mxu0
  %v315 = vadd.f32 %v192, %v314
  %316 = vdwg.mxu0
  %s317 = scalar_lea.vmem %s1, 16
  %v318 = vld [vmem:[%s317] sm:$0xff]
  %319 = vrot.lane.b32.xlu0 %v29, 126
  %v320 = vpop.permute.xlu0 %319
  %321 = vrot.lane.b32.xlu0 %v30, 126
  %v322 = vpop.permute.xlu0 %321
  %323 = vrot.lane.b32.xlu0 %v31, 126
  %v324 = vpop.permute.xlu0 %323
  %325 = vrot.lane.b32.xlu0 %v32, 126
  %v326 = vpop.permute.xlu0 %325
  %327 = vrot.lane.b32.xlu0 %v33, 126
  %v328 = vpop.permute.xlu0 %327
  %329 = vrot.lane.b32.xlu0 %v34, 126
  %v330 = vpop.permute.xlu0 %329
  %331 = vrot.lane.b32.xlu0 %v35, 126
  %v332 = vpop.permute.xlu0 %331
  %vm333 = vcmask 1031168
  %v334 = vsel %vm333, %v320, %v322
  %v335 = vsel %vm333, %v322, %v324
  %v336 = vsel %vm333, %v324, %v326
  %v337 = vsel %vm333, %v326, %v328
  %v338 = vsel %vm333, %v328, %v330
  %v339 = vsel %vm333, %v330, %v332
  %v347 = vsel %vm70, %v318, 0
  %349 = vmatpush.msra.mxu0 0.0
  %350 = vmatpush.msra.mxu0 0.0
  %351 = vmatpush.msra.mxu0 0.0
  %352 = vmatpush.msra.mxu0 0.0
  %353 = vmatpush.msra.mxu0 0.0
  %354 = vmatpush.msra.mxu0 0.0
  %355 = vmatpush.msra.mxu0 0.0
  %356 = vmatpush.msra.mxu0 0.0
  %357 = vmatpush.msra.mxu0 0.0
  %358 = vmatpush.msra.mxu0 0.0
  %359 = vmatpush.msra.mxu0 0.0
  %360 = vmatpush.msra.mxu0 0.0
  %361 = vmatpush.msra.mxu0 0.0
  %362 = vmatpush.msra.mxu0 0.0
  %363 = vmatpush.msra.mxu0 0.0
  %364 = vmatpush.msra.mxu0 %v334
  %365 = vmatmul.f32.gmra.mxu0 %v347
  %v366 = vpop.f32.mrf.mxu0
  %v367 = vadd.f32 0.0, %v366
  %368 = vdwg.mxu0
  %369 = vmatpush.msra.mxu0 0.0
  %370 = vmatpush.msra.mxu0 0.0
  %371 = vmatpush.msra.mxu0 0.0
  %372 = vmatpush.msra.mxu0 0.0
  %373 = vmatpush.msra.mxu0 0.0
  %374 = vmatpush.msra.mxu0 0.0
  %375 = vmatpush.msra.mxu0 0.0
  %376 = vmatpush.msra.mxu0 0.0
  %377 = vmatpush.msra.mxu0 0.0
  %378 = vmatpush.msra.mxu0 0.0
  %379 = vmatpush.msra.mxu0 0.0
  %380 = vmatpush.msra.mxu0 0.0
  %381 = vmatpush.msra.mxu0 0.0
  %382 = vmatpush.msra.mxu0 0.0
  %383 = vmatpush.msra.mxu0 0.0
  %384 = vmatpush.msra.mxu0 %v335
  %385 = vmatmul.f32.gmra.mxu0 %v347
  %v386 = vpop.f32.mrf.mxu0
  %v387 = vadd.f32 0.0, %v386
  %388 = vdwg.mxu0
  %389 = vmatpush.msra.mxu0 0.0
  %390 = vmatpush.msra.mxu0 0.0
  %391 = vmatpush.msra.mxu0 0.0
  %392 = vmatpush.msra.mxu0 0.0
  %393 = vmatpush.msra.mxu0 0.0
  %394 = vmatpush.msra.mxu0 0.0
  %395 = vmatpush.msra.mxu0 0.0
  %396 = vmatpush.msra.mxu0 0.0
  %397 = vmatpush.msra.mxu0 0.0
  %398 = vmatpush.msra.mxu0 0.0
  %399 = vmatpush.msra.mxu0 0.0
  %400 = vmatpush.msra.mxu0 0.0
  %401 = vmatpush.msra.mxu0 0.0
  %402 = vmatpush.msra.mxu0 0.0
  %403 = vmatpush.msra.mxu0 0.0
  %404 = vmatpush.msra.mxu0 %v336
  %405 = vmatmul.f32.gmra.mxu0 %v347
  %v406 = vpop.f32.mrf.mxu0
  %v407 = vadd.f32 0.0, %v406
  %408 = vdwg.mxu0
  %409 = vmatpush.msra.mxu0 0.0
  %410 = vmatpush.msra.mxu0 0.0
  %411 = vmatpush.msra.mxu0 0.0
  %412 = vmatpush.msra.mxu0 0.0
  %413 = vmatpush.msra.mxu0 0.0
  %414 = vmatpush.msra.mxu0 0.0
  %415 = vmatpush.msra.mxu0 0.0
  %416 = vmatpush.msra.mxu0 0.0
  %417 = vmatpush.msra.mxu0 0.0
  %418 = vmatpush.msra.mxu0 0.0
  %419 = vmatpush.msra.mxu0 0.0
  %420 = vmatpush.msra.mxu0 0.0
  %421 = vmatpush.msra.mxu0 0.0
  %422 = vmatpush.msra.mxu0 0.0
  %423 = vmatpush.msra.mxu0 0.0
  %424 = vmatpush.msra.mxu0 %v337
  %425 = vmatmul.f32.gmra.mxu0 %v347
  %v426 = vpop.f32.mrf.mxu0
  %v427 = vadd.f32 0.0, %v426
  %428 = vdwg.mxu0
  %429 = vmatpush.msra.mxu0 0.0
  %430 = vmatpush.msra.mxu0 0.0
  %431 = vmatpush.msra.mxu0 0.0
  %432 = vmatpush.msra.mxu0 0.0
  %433 = vmatpush.msra.mxu0 0.0
  %434 = vmatpush.msra.mxu0 0.0
  %435 = vmatpush.msra.mxu0 0.0
  %436 = vmatpush.msra.mxu0 0.0
  %437 = vmatpush.msra.mxu0 0.0
  %438 = vmatpush.msra.mxu0 0.0
  %439 = vmatpush.msra.mxu0 0.0
  %440 = vmatpush.msra.mxu0 0.0
  %441 = vmatpush.msra.mxu0 0.0
  %442 = vmatpush.msra.mxu0 0.0
  %443 = vmatpush.msra.mxu0 0.0
  %444 = vmatpush.msra.mxu0 %v338
  %445 = vmatmul.f32.gmra.mxu0 %v347
  %v446 = vpop.f32.mrf.mxu0
  %v447 = vadd.f32 0.0, %v446
  %448 = vdwg.mxu0
  %449 = vmatpush.msra.mxu0 0.0
  %450 = vmatpush.msra.mxu0 0.0
  %451 = vmatpush.msra.mxu0 0.0
  %452 = vmatpush.msra.mxu0 0.0
  %453 = vmatpush.msra.mxu0 0.0
  %454 = vmatpush.msra.mxu0 0.0
  %455 = vmatpush.msra.mxu0 0.0
  %456 = vmatpush.msra.mxu0 0.0
  %457 = vmatpush.msra.mxu0 0.0
  %458 = vmatpush.msra.mxu0 0.0
  %459 = vmatpush.msra.mxu0 0.0
  %460 = vmatpush.msra.mxu0 0.0
  %461 = vmatpush.msra.mxu0 0.0
  %462 = vmatpush.msra.mxu0 0.0
  %463 = vmatpush.msra.mxu0 0.0
  %464 = vmatpush.msra.mxu0 %v339
  %465 = vmatmul.f32.gmra.mxu0 %v347
  %v466 = vpop.f32.mrf.mxu0
  %v467 = vadd.f32 0.0, %v466
  %468 = vdwg.mxu0
  %v469 = vadd.f32 %v215, %v367
  %v470 = vadd.f32 %v235, %v387
  %v471 = vadd.f32 %v255, %v407
  %v472 = vadd.f32 %v275, %v427
  %v473 = vadd.f32 %v295, %v447
  %v474 = vadd.f32 %v315, %v467
  %s475 = scalar_lea.vmem %s1, 24
  %v476 = vld [vmem:[%s475] sm:$0xff]
  %477 = vrot.lane.b32.xlu0 %v29, 110
  %v478 = vpop.permute.xlu0 %477
  %479 = vrot.lane.b32.xlu0 %v30, 110
  %v480 = vpop.permute.xlu0 %479
  %481 = vrot.lane.b32.xlu0 %v31, 110
  %v482 = vpop.permute.xlu0 %481
  %483 = vrot.lane.b32.xlu0 %v32, 110
  %v484 = vpop.permute.xlu0 %483
  %485 = vrot.lane.b32.xlu0 %v33, 110
  %v486 = vpop.permute.xlu0 %485
  %487 = vrot.lane.b32.xlu0 %v34, 110
  %v488 = vpop.permute.xlu0 %487
  %489 = vrot.lane.b32.xlu0 %v35, 110
  %v490 = vpop.permute.xlu0 %489
  %vm491 = vcmask 900096
  %v492 = vsel %vm491, %v478, %v480
  %v493 = vsel %vm491, %v480, %v482
  %v494 = vsel %vm491, %v482, %v484
  %v495 = vsel %vm491, %v484, %v486
  %v496 = vsel %vm491, %v486, %v488
  %v497 = vsel %vm491, %v488, %v490
  %v505 = vsel %vm70, %v476, 0
  %507 = vmatpush.msra.mxu0 0.0
  %508 = vmatpush.msra.mxu0 0.0
  %509 = vmatpush.msra.mxu0 0.0
  %510 = vmatpush.msra.mxu0 0.0
  %511 = vmatpush.msra.mxu0 0.0
  %512 = vmatpush.msra.mxu0 0.0
  %513 = vmatpush.msra.mxu0 0.0
  %514 = vmatpush.msra.mxu0 0.0
  %515 = vmatpush.msra.mxu0 0.0
  %516 = vmatpush.msra.mxu0 0.0
  %517 = vmatpush.msra.mxu0 0.0
  %518 = vmatpush.msra.mxu0 0.0
  %519 = vmatpush.msra.mxu0 0.0
  %520 = vmatpush.msra.mxu0 0.0
  %521 = vmatpush.msra.mxu0 0.0
  %522 = vmatpush.msra.mxu0 %v492
  %523 = vmatmul.f32.gmra.mxu0 %v505
  %v524 = vpop.f32.mrf.mxu0
  %v525 = vadd.f32 0.0, %v524
  %526 = vdwg.mxu0
  %527 = vmatpush.msra.mxu0 0.0
  %528 = vmatpush.msra.mxu0 0.0
  %529 = vmatpush.msra.mxu0 0.0
  %530 = vmatpush.msra.mxu0 0.0
  %531 = vmatpush.msra.mxu0 0.0
  %532 = vmatpush.msra.mxu0 0.0
  %533 = vmatpush.msra.mxu0 0.0
  %534 = vmatpush.msra.mxu0 0.0
  %535 = vmatpush.msra.mxu0 0.0
  %536 = vmatpush.msra.mxu0 0.0
  %537 = vmatpush.msra.mxu0 0.0
  %538 = vmatpush.msra.mxu0 0.0
  %539 = vmatpush.msra.mxu0 0.0
  %540 = vmatpush.msra.mxu0 0.0
  %541 = vmatpush.msra.mxu0 0.0
  %542 = vmatpush.msra.mxu0 %v493
  %543 = vmatmul.f32.gmra.mxu0 %v505
  %v544 = vpop.f32.mrf.mxu0
  %v545 = vadd.f32 0.0, %v544
  %546 = vdwg.mxu0
  %547 = vmatpush.msra.mxu0 0.0
  %548 = vmatpush.msra.mxu0 0.0
  %549 = vmatpush.msra.mxu0 0.0
  %550 = vmatpush.msra.mxu0 0.0
  %551 = vmatpush.msra.mxu0 0.0
  %552 = vmatpush.msra.mxu0 0.0
  %553 = vmatpush.msra.mxu0 0.0
  %554 = vmatpush.msra.mxu0 0.0
  %555 = vmatpush.msra.mxu0 0.0
  %556 = vmatpush.msra.mxu0 0.0
  %557 = vmatpush.msra.mxu0 0.0
  %558 = vmatpush.msra.mxu0 0.0
  %559 = vmatpush.msra.mxu0 0.0
  %560 = vmatpush.msra.mxu0 0.0
  %561 = vmatpush.msra.mxu0 0.0
  %562 = vmatpush.msra.mxu0 %v494
  %563 = vmatmul.f32.gmra.mxu0 %v505
  %v564 = vpop.f32.mrf.mxu0
  %v565 = vadd.f32 0.0, %v564
  %566 = vdwg.mxu0
  %567 = vmatpush.msra.mxu0 0.0
  %568 = vmatpush.msra.mxu0 0.0
  %569 = vmatpush.msra.mxu0 0.0
  %570 = vmatpush.msra.mxu0 0.0
  %571 = vmatpush.msra.mxu0 0.0
  %572 = vmatpush.msra.mxu0 0.0
  %573 = vmatpush.msra.mxu0 0.0
  %574 = vmatpush.msra.mxu0 0.0
  %575 = vmatpush.msra.mxu0 0.0
  %576 = vmatpush.msra.mxu0 0.0
  %577 = vmatpush.msra.mxu0 0.0
  %578 = vmatpush.msra.mxu0 0.0
  %579 = vmatpush.msra.mxu0 0.0
  %580 = vmatpush.msra.mxu0 0.0
  %581 = vmatpush.msra.mxu0 0.0
  %582 = vmatpush.msra.mxu0 %v495
  %583 = vmatmul.f32.gmra.mxu0 %v505
  %v584 = vpop.f32.mrf.mxu0
  %v585 = vadd.f32 0.0, %v584
  %586 = vdwg.mxu0
  %587 = vmatpush.msra.mxu0 0.0
  %588 = vmatpush.msra.mxu0 0.0
  %589 = vmatpush.msra.mxu0 0.0
  %590 = vmatpush.msra.mxu0 0.0
  %591 = vmatpush.msra.mxu0 0.0
  %592 = vmatpush.msra.mxu0 0.0
  %593 = vmatpush.msra.mxu0 0.0
  %594 = vmatpush.msra.mxu0 0.0
  %595 = vmatpush.msra.mxu0 0.0
  %596 = vmatpush.msra.mxu0 0.0
  %597 = vmatpush.msra.mxu0 0.0
  %598 = vmatpush.msra.mxu0 0.0
  %599 = vmatpush.msra.mxu0 0.0
  %600 = vmatpush.msra.mxu0 0.0
  %601 = vmatpush.msra.mxu0 0.0
  %602 = vmatpush.msra.mxu0 %v496
  %603 = vmatmul.f32.gmra.mxu0 %v505
  %v604 = vpop.f32.mrf.mxu0
  %v605 = vadd.f32 0.0, %v604
  %606 = vdwg.mxu0
  %607 = vmatpush.msra.mxu0 0.0
  %608 = vmatpush.msra.mxu0 0.0
  %609 = vmatpush.msra.mxu0 0.0
  %610 = vmatpush.msra.mxu0 0.0
  %611 = vmatpush.msra.mxu0 0.0
  %612 = vmatpush.msra.mxu0 0.0
  %613 = vmatpush.msra.mxu0 0.0
  %614 = vmatpush.msra.mxu0 0.0
  %615 = vmatpush.msra.mxu0 0.0
  %616 = vmatpush.msra.mxu0 0.0
  %617 = vmatpush.msra.mxu0 0.0
  %618 = vmatpush.msra.mxu0 0.0
  %619 = vmatpush.msra.mxu0 0.0
  %620 = vmatpush.msra.mxu0 0.0
  %621 = vmatpush.msra.mxu0 0.0
  %622 = vmatpush.msra.mxu0 %v497
  %623 = vmatmul.f32.gmra.mxu0 %v505
  %v624 = vpop.f32.mrf.mxu0
  %v625 = vadd.f32 0.0, %v624
  %626 = vdwg.mxu0
  %v627 = vadd.f32 %v469, %v525
  %v628 = vadd.f32 %v470, %v545
  %v629 = vadd.f32 %v471, %v565
  %v630 = vadd.f32 %v472, %v585
  %v631 = vadd.f32 %v473, %v605
  %v632 = vadd.f32 %v474, %v625
  %s633 = scalar_lea.vmem %s1, 32
  %v634 = vld [vmem:[%s633] sm:$0xff]
  %635 = vrot.lane.b32.xlu0 %v29, 109
  %v636 = vpop.permute.xlu0 %635
  %637 = vrot.lane.b32.xlu0 %v30, 109
  %v638 = vpop.permute.xlu0 %637
  %639 = vrot.lane.b32.xlu0 %v31, 109
  %v640 = vpop.permute.xlu0 %639
  %641 = vrot.lane.b32.xlu0 %v32, 109
  %v642 = vpop.permute.xlu0 %641
  %643 = vrot.lane.b32.xlu0 %v33, 109
  %v644 = vpop.permute.xlu0 %643
  %645 = vrot.lane.b32.xlu0 %v34, 109
  %v646 = vpop.permute.xlu0 %645
  %647 = vrot.lane.b32.xlu0 %v35, 109
  %v648 = vpop.permute.xlu0 %647
  %vm649 = vcmask 891904
  %v650 = vsel %vm649, %v636, %v638
  %v651 = vsel %vm649, %v638, %v640
  %v652 = vsel %vm649, %v640, %v642
  %v653 = vsel %vm649, %v642, %v644
  %v654 = vsel %vm649, %v644, %v646
  %v655 = vsel %vm649, %v646, %v648
  %v663 = vsel %vm70, %v634, 0
  %665 = vmatpush.msra.mxu0 0.0
  %666 = vmatpush.msra.mxu0 0.0
  %667 = vmatpush.msra.mxu0 0.0
  %668 = vmatpush.msra.mxu0 0.0
  %669 = vmatpush.msra.mxu0 0.0
  %670 = vmatpush.msra.mxu0 0.0
  %671 = vmatpush.msra.mxu0 0.0
  %672 = vmatpush.msra.mxu0 0.0
  %673 = vmatpush.msra.mxu0 0.0
  %674 = vmatpush.msra.mxu0 0.0
  %675 = vmatpush.msra.mxu0 0.0
  %676 = vmatpush.msra.mxu0 0.0
  %677 = vmatpush.msra.mxu0 0.0
  %678 = vmatpush.msra.mxu0 0.0
  %679 = vmatpush.msra.mxu0 0.0
  %680 = vmatpush.msra.mxu0 %v650
  %681 = vmatmul.f32.gmra.mxu0 %v663
  %v682 = vpop.f32.mrf.mxu0
  %v683 = vadd.f32 0.0, %v682
  %684 = vdwg.mxu0
  %685 = vmatpush.msra.mxu0 0.0
  %686 = vmatpush.msra.mxu0 0.0
  %687 = vmatpush.msra.mxu0 0.0
  %688 = vmatpush.msra.mxu0 0.0
  %689 = vmatpush.msra.mxu0 0.0
  %690 = vmatpush.msra.mxu0 0.0
  %691 = vmatpush.msra.mxu0 0.0
  %692 = vmatpush.msra.mxu0 0.0
  %693 = vmatpush.msra.mxu0 0.0
  %694 = vmatpush.msra.mxu0 0.0
  %695 = vmatpush.msra.mxu0 0.0
  %696 = vmatpush.msra.mxu0 0.0
  %697 = vmatpush.msra.mxu0 0.0
  %698 = vmatpush.msra.mxu0 0.0
  %699 = vmatpush.msra.mxu0 0.0
  %700 = vmatpush.msra.mxu0 %v651
  %701 = vmatmul.f32.gmra.mxu0 %v663
  %v702 = vpop.f32.mrf.mxu0
  %v703 = vadd.f32 0.0, %v702
  %704 = vdwg.mxu0
  %705 = vmatpush.msra.mxu0 0.0
  %706 = vmatpush.msra.mxu0 0.0
  %707 = vmatpush.msra.mxu0 0.0
  %708 = vmatpush.msra.mxu0 0.0
  %709 = vmatpush.msra.mxu0 0.0
  %710 = vmatpush.msra.mxu0 0.0
  %711 = vmatpush.msra.mxu0 0.0
  %712 = vmatpush.msra.mxu0 0.0
  %713 = vmatpush.msra.mxu0 0.0
  %714 = vmatpush.msra.mxu0 0.0
  %715 = vmatpush.msra.mxu0 0.0
  %716 = vmatpush.msra.mxu0 0.0
  %717 = vmatpush.msra.mxu0 0.0
  %718 = vmatpush.msra.mxu0 0.0
  %719 = vmatpush.msra.mxu0 0.0
  %720 = vmatpush.msra.mxu0 %v652
  %721 = vmatmul.f32.gmra.mxu0 %v663
  %v722 = vpop.f32.mrf.mxu0
  %v723 = vadd.f32 0.0, %v722
  %724 = vdwg.mxu0
  %725 = vmatpush.msra.mxu0 0.0
  %726 = vmatpush.msra.mxu0 0.0
  %727 = vmatpush.msra.mxu0 0.0
  %728 = vmatpush.msra.mxu0 0.0
  %729 = vmatpush.msra.mxu0 0.0
  %730 = vmatpush.msra.mxu0 0.0
  %731 = vmatpush.msra.mxu0 0.0
  %732 = vmatpush.msra.mxu0 0.0
  %733 = vmatpush.msra.mxu0 0.0
  %734 = vmatpush.msra.mxu0 0.0
  %735 = vmatpush.msra.mxu0 0.0
  %736 = vmatpush.msra.mxu0 0.0
  %737 = vmatpush.msra.mxu0 0.0
  %738 = vmatpush.msra.mxu0 0.0
  %739 = vmatpush.msra.mxu0 0.0
  %740 = vmatpush.msra.mxu0 %v653
  %741 = vmatmul.f32.gmra.mxu0 %v663
  %v742 = vpop.f32.mrf.mxu0
  %v743 = vadd.f32 0.0, %v742
  %744 = vdwg.mxu0
  %745 = vmatpush.msra.mxu0 0.0
  %746 = vmatpush.msra.mxu0 0.0
  %747 = vmatpush.msra.mxu0 0.0
  %748 = vmatpush.msra.mxu0 0.0
  %749 = vmatpush.msra.mxu0 0.0
  %750 = vmatpush.msra.mxu0 0.0
  %751 = vmatpush.msra.mxu0 0.0
  %752 = vmatpush.msra.mxu0 0.0
  %753 = vmatpush.msra.mxu0 0.0
  %754 = vmatpush.msra.mxu0 0.0
  %755 = vmatpush.msra.mxu0 0.0
  %756 = vmatpush.msra.mxu0 0.0
  %757 = vmatpush.msra.mxu0 0.0
  %758 = vmatpush.msra.mxu0 0.0
  %759 = vmatpush.msra.mxu0 0.0
  %760 = vmatpush.msra.mxu0 %v654
  %761 = vmatmul.f32.gmra.mxu0 %v663
  %v762 = vpop.f32.mrf.mxu0
  %v763 = vadd.f32 0.0, %v762
  %764 = vdwg.mxu0
  %765 = vmatpush.msra.mxu0 0.0
  %766 = vmatpush.msra.mxu0 0.0
  %767 = vmatpush.msra.mxu0 0.0
  %768 = vmatpush.msra.mxu0 0.0
  %769 = vmatpush.msra.mxu0 0.0
  %770 = vmatpush.msra.mxu0 0.0
  %771 = vmatpush.msra.mxu0 0.0
  %772 = vmatpush.msra.mxu0 0.0
  %773 = vmatpush.msra.mxu0 0.0
  %774 = vmatpush.msra.mxu0 0.0
  %775 = vmatpush.msra.mxu0 0.0
  %776 = vmatpush.msra.mxu0 0.0
  %777 = vmatpush.msra.mxu0 0.0
  %778 = vmatpush.msra.mxu0 0.0
  %779 = vmatpush.msra.mxu0 0.0
  %780 = vmatpush.msra.mxu0 %v655
  %781 = vmatmul.f32.gmra.mxu0 %v663
  %v782 = vpop.f32.mrf.mxu0
  %v783 = vadd.f32 0.0, %v782
  %784 = vdwg.mxu0
  %v785 = vadd.f32 %v627, %v683
  %v786 = vadd.f32 %v628, %v703
  %v787 = vadd.f32 %v629, %v723
  %v788 = vadd.f32 %v630, %v743
  %v789 = vadd.f32 %v631, %v763
  %v790 = vadd.f32 %v632, %v783
  %s791 = scalar_lea.vmem %s1, 40
  %v792 = vld [vmem:[%s791] sm:$0xff]
  %793 = vrot.lane.b32.xlu0 %v29, 108
  %v794 = vpop.permute.xlu0 %793
  %795 = vrot.lane.b32.xlu0 %v30, 108
  %v796 = vpop.permute.xlu0 %795
  %797 = vrot.lane.b32.xlu0 %v31, 108
  %v798 = vpop.permute.xlu0 %797
  %799 = vrot.lane.b32.xlu0 %v32, 108
  %v800 = vpop.permute.xlu0 %799
  %801 = vrot.lane.b32.xlu0 %v33, 108
  %v802 = vpop.permute.xlu0 %801
  %803 = vrot.lane.b32.xlu0 %v34, 108
  %v804 = vpop.permute.xlu0 %803
  %805 = vrot.lane.b32.xlu0 %v35, 108
  %v806 = vpop.permute.xlu0 %805
  %vm807 = vcmask 883712
  %v808 = vsel %vm807, %v794, %v796
  %v809 = vsel %vm807, %v796, %v798
  %v810 = vsel %vm807, %v798, %v800
  %v811 = vsel %vm807, %v800, %v802
  %v812 = vsel %vm807, %v802, %v804
  %v813 = vsel %vm807, %v804, %v806
  %v821 = vsel %vm70, %v792, 0
  %823 = vmatpush.msra.mxu0 0.0
  %824 = vmatpush.msra.mxu0 0.0
  %825 = vmatpush.msra.mxu0 0.0
  %826 = vmatpush.msra.mxu0 0.0
  %827 = vmatpush.msra.mxu0 0.0
  %828 = vmatpush.msra.mxu0 0.0
  %829 = vmatpush.msra.mxu0 0.0
  %830 = vmatpush.msra.mxu0 0.0
  %831 = vmatpush.msra.mxu0 0.0
  %832 = vmatpush.msra.mxu0 0.0
  %833 = vmatpush.msra.mxu0 0.0
  %834 = vmatpush.msra.mxu0 0.0
  %835 = vmatpush.msra.mxu0 0.0
  %836 = vmatpush.msra.mxu0 0.0
  %837 = vmatpush.msra.mxu0 0.0
  %838 = vmatpush.msra.mxu0 %v808
  %839 = vmatmul.f32.gmra.mxu0 %v821
  %v840 = vpop.f32.mrf.mxu0
  %v841 = vadd.f32 0.0, %v840
  %842 = vdwg.mxu0
  %843 = vmatpush.msra.mxu0 0.0
  %844 = vmatpush.msra.mxu0 0.0
  %845 = vmatpush.msra.mxu0 0.0
  %846 = vmatpush.msra.mxu0 0.0
  %847 = vmatpush.msra.mxu0 0.0
  %848 = vmatpush.msra.mxu0 0.0
  %849 = vmatpush.msra.mxu0 0.0
  %850 = vmatpush.msra.mxu0 0.0
  %851 = vmatpush.msra.mxu0 0.0
  %852 = vmatpush.msra.mxu0 0.0
  %853 = vmatpush.msra.mxu0 0.0
  %854 = vmatpush.msra.mxu0 0.0
  %855 = vmatpush.msra.mxu0 0.0
  %856 = vmatpush.msra.mxu0 0.0
  %857 = vmatpush.msra.mxu0 0.0
  %858 = vmatpush.msra.mxu0 %v809
  %859 = vmatmul.f32.gmra.mxu0 %v821
  %v860 = vpop.f32.mrf.mxu0
  %v861 = vadd.f32 0.0, %v860
  %862 = vdwg.mxu0
  %863 = vmatpush.msra.mxu0 0.0
  %864 = vmatpush.msra.mxu0 0.0
  %865 = vmatpush.msra.mxu0 0.0
  %866 = vmatpush.msra.mxu0 0.0
  %867 = vmatpush.msra.mxu0 0.0
  %868 = vmatpush.msra.mxu0 0.0
  %869 = vmatpush.msra.mxu0 0.0
  %870 = vmatpush.msra.mxu0 0.0
  %871 = vmatpush.msra.mxu0 0.0
  %872 = vmatpush.msra.mxu0 0.0
  %873 = vmatpush.msra.mxu0 0.0
  %874 = vmatpush.msra.mxu0 0.0
  %875 = vmatpush.msra.mxu0 0.0
  %876 = vmatpush.msra.mxu0 0.0
  %877 = vmatpush.msra.mxu0 0.0
  %878 = vmatpush.msra.mxu0 %v810
  %879 = vmatmul.f32.gmra.mxu0 %v821
  %v880 = vpop.f32.mrf.mxu0
  %v881 = vadd.f32 0.0, %v880
  %882 = vdwg.mxu0
  %883 = vmatpush.msra.mxu0 0.0
  %884 = vmatpush.msra.mxu0 0.0
  %885 = vmatpush.msra.mxu0 0.0
  %886 = vmatpush.msra.mxu0 0.0
  %887 = vmatpush.msra.mxu0 0.0
  %888 = vmatpush.msra.mxu0 0.0
  %889 = vmatpush.msra.mxu0 0.0
  %890 = vmatpush.msra.mxu0 0.0
  %891 = vmatpush.msra.mxu0 0.0
  %892 = vmatpush.msra.mxu0 0.0
  %893 = vmatpush.msra.mxu0 0.0
  %894 = vmatpush.msra.mxu0 0.0
  %895 = vmatpush.msra.mxu0 0.0
  %896 = vmatpush.msra.mxu0 0.0
  %897 = vmatpush.msra.mxu0 0.0
  %898 = vmatpush.msra.mxu0 %v811
  %899 = vmatmul.f32.gmra.mxu0 %v821
  %v900 = vpop.f32.mrf.mxu0
  %v901 = vadd.f32 0.0, %v900
  %902 = vdwg.mxu0
  %903 = vmatpush.msra.mxu0 0.0
  %904 = vmatpush.msra.mxu0 0.0
  %905 = vmatpush.msra.mxu0 0.0
  %906 = vmatpush.msra.mxu0 0.0
  %907 = vmatpush.msra.mxu0 0.0
  %908 = vmatpush.msra.mxu0 0.0
  %909 = vmatpush.msra.mxu0 0.0
  %910 = vmatpush.msra.mxu0 0.0
  %911 = vmatpush.msra.mxu0 0.0
  %912 = vmatpush.msra.mxu0 0.0
  %913 = vmatpush.msra.mxu0 0.0
  %914 = vmatpush.msra.mxu0 0.0
  %915 = vmatpush.msra.mxu0 0.0
  %916 = vmatpush.msra.mxu0 0.0
  %917 = vmatpush.msra.mxu0 0.0
  %918 = vmatpush.msra.mxu0 %v812
  %919 = vmatmul.f32.gmra.mxu0 %v821
  %v920 = vpop.f32.mrf.mxu0
  %v921 = vadd.f32 0.0, %v920
  %922 = vdwg.mxu0
  %923 = vmatpush.msra.mxu0 0.0
  %924 = vmatpush.msra.mxu0 0.0
  %925 = vmatpush.msra.mxu0 0.0
  %926 = vmatpush.msra.mxu0 0.0
  %927 = vmatpush.msra.mxu0 0.0
  %928 = vmatpush.msra.mxu0 0.0
  %929 = vmatpush.msra.mxu0 0.0
  %930 = vmatpush.msra.mxu0 0.0
  %931 = vmatpush.msra.mxu0 0.0
  %932 = vmatpush.msra.mxu0 0.0
  %933 = vmatpush.msra.mxu0 0.0
  %934 = vmatpush.msra.mxu0 0.0
  %935 = vmatpush.msra.mxu0 0.0
  %936 = vmatpush.msra.mxu0 0.0
  %937 = vmatpush.msra.mxu0 0.0
  %938 = vmatpush.msra.mxu0 %v813
  %939 = vmatmul.f32.gmra.mxu0 %v821
  %v940 = vpop.f32.mrf.mxu0
  %v941 = vadd.f32 0.0, %v940
  %942 = vdwg.mxu0
  %v943 = vadd.f32 %v785, %v841
  %v944 = vadd.f32 %v786, %v861
  %v945 = vadd.f32 %v787, %v881
  %v946 = vadd.f32 %v788, %v901
  %v947 = vadd.f32 %v789, %v921
  %v948 = vadd.f32 %v790, %v941
  %s949 = scalar_lea.vmem %s1, 48
  %v950 = vld [vmem:[%s949] sm:$0xff]
  %951 = vrot.lane.b32.xlu0 %v29, 92
  %v952 = vpop.permute.xlu0 %951
  %953 = vrot.lane.b32.xlu0 %v30, 92
  %v954 = vpop.permute.xlu0 %953
  %955 = vrot.lane.b32.xlu0 %v31, 92
  %v956 = vpop.permute.xlu0 %955
  %957 = vrot.lane.b32.xlu0 %v32, 92
  %v958 = vpop.permute.xlu0 %957
  %959 = vrot.lane.b32.xlu0 %v33, 92
  %v960 = vpop.permute.xlu0 %959
  %961 = vrot.lane.b32.xlu0 %v34, 92
  %v962 = vpop.permute.xlu0 %961
  %963 = vrot.lane.b32.xlu0 %v35, 92
  %v964 = vpop.permute.xlu0 %963
  %vm965 = vcmask 752640
  %v966 = vsel %vm965, %v952, %v954
  %v967 = vsel %vm965, %v954, %v956
  %v968 = vsel %vm965, %v956, %v958
  %v969 = vsel %vm965, %v958, %v960
  %v970 = vsel %vm965, %v960, %v962
  %v971 = vsel %vm965, %v962, %v964
  %v979 = vsel %vm70, %v950, 0
  %981 = vmatpush.msra.mxu0 0.0
  %982 = vmatpush.msra.mxu0 0.0
  %983 = vmatpush.msra.mxu0 0.0
  %984 = vmatpush.msra.mxu0 0.0
  %985 = vmatpush.msra.mxu0 0.0
  %986 = vmatpush.msra.mxu0 0.0
  %987 = vmatpush.msra.mxu0 0.0
  %988 = vmatpush.msra.mxu0 0.0
  %989 = vmatpush.msra.mxu0 0.0
  %990 = vmatpush.msra.mxu0 0.0
  %991 = vmatpush.msra.mxu0 0.0
  %992 = vmatpush.msra.mxu0 0.0
  %993 = vmatpush.msra.mxu0 0.0
  %994 = vmatpush.msra.mxu0 0.0
  %995 = vmatpush.msra.mxu0 0.0
  %996 = vmatpush.msra.mxu0 %v966
  %997 = vmatmul.f32.gmra.mxu0 %v979
  %v998 = vpop.f32.mrf.mxu0
  %v999 = vadd.f32 0.0, %v998
  %1000 = vdwg.mxu0
  %1001 = vmatpush.msra.mxu0 0.0
  %1002 = vmatpush.msra.mxu0 0.0
  %1003 = vmatpush.msra.mxu0 0.0
  %1004 = vmatpush.msra.mxu0 0.0
  %1005 = vmatpush.msra.mxu0 0.0
  %1006 = vmatpush.msra.mxu0 0.0
  %1007 = vmatpush.msra.mxu0 0.0
  %1008 = vmatpush.msra.mxu0 0.0
  %1009 = vmatpush.msra.mxu0 0.0
  %1010 = vmatpush.msra.mxu0 0.0
  %1011 = vmatpush.msra.mxu0 0.0
  %1012 = vmatpush.msra.mxu0 0.0
  %1013 = vmatpush.msra.mxu0 0.0
  %1014 = vmatpush.msra.mxu0 0.0
  %1015 = vmatpush.msra.mxu0 0.0
  %1016 = vmatpush.msra.mxu0 %v967
  %1017 = vmatmul.f32.gmra.mxu0 %v979
  %v1018 = vpop.f32.mrf.mxu0
  %v1019 = vadd.f32 0.0, %v1018
  %1020 = vdwg.mxu0
  %1021 = vmatpush.msra.mxu0 0.0
  %1022 = vmatpush.msra.mxu0 0.0
  %1023 = vmatpush.msra.mxu0 0.0
  %1024 = vmatpush.msra.mxu0 0.0
  %1025 = vmatpush.msra.mxu0 0.0
  %1026 = vmatpush.msra.mxu0 0.0
  %1027 = vmatpush.msra.mxu0 0.0
  %1028 = vmatpush.msra.mxu0 0.0
  %1029 = vmatpush.msra.mxu0 0.0
  %1030 = vmatpush.msra.mxu0 0.0
  %1031 = vmatpush.msra.mxu0 0.0
  %1032 = vmatpush.msra.mxu0 0.0
  %1033 = vmatpush.msra.mxu0 0.0
  %1034 = vmatpush.msra.mxu0 0.0
  %1035 = vmatpush.msra.mxu0 0.0
  %1036 = vmatpush.msra.mxu0 %v968
  %1037 = vmatmul.f32.gmra.mxu0 %v979
  %v1038 = vpop.f32.mrf.mxu0
  %v1039 = vadd.f32 0.0, %v1038
  %1040 = vdwg.mxu0
  %1041 = vmatpush.msra.mxu0 0.0
  %1042 = vmatpush.msra.mxu0 0.0
  %1043 = vmatpush.msra.mxu0 0.0
  %1044 = vmatpush.msra.mxu0 0.0
  %1045 = vmatpush.msra.mxu0 0.0
  %1046 = vmatpush.msra.mxu0 0.0
  %1047 = vmatpush.msra.mxu0 0.0
  %1048 = vmatpush.msra.mxu0 0.0
  %1049 = vmatpush.msra.mxu0 0.0
  %1050 = vmatpush.msra.mxu0 0.0
  %1051 = vmatpush.msra.mxu0 0.0
  %1052 = vmatpush.msra.mxu0 0.0
  %1053 = vmatpush.msra.mxu0 0.0
  %1054 = vmatpush.msra.mxu0 0.0
  %1055 = vmatpush.msra.mxu0 0.0
  %1056 = vmatpush.msra.mxu0 %v969
  %1057 = vmatmul.f32.gmra.mxu0 %v979
  %v1058 = vpop.f32.mrf.mxu0
  %v1059 = vadd.f32 0.0, %v1058
  %1060 = vdwg.mxu0
  %1061 = vmatpush.msra.mxu0 0.0
  %1062 = vmatpush.msra.mxu0 0.0
  %1063 = vmatpush.msra.mxu0 0.0
  %1064 = vmatpush.msra.mxu0 0.0
  %1065 = vmatpush.msra.mxu0 0.0
  %1066 = vmatpush.msra.mxu0 0.0
  %1067 = vmatpush.msra.mxu0 0.0
  %1068 = vmatpush.msra.mxu0 0.0
  %1069 = vmatpush.msra.mxu0 0.0
  %1070 = vmatpush.msra.mxu0 0.0
  %1071 = vmatpush.msra.mxu0 0.0
  %1072 = vmatpush.msra.mxu0 0.0
  %1073 = vmatpush.msra.mxu0 0.0
  %1074 = vmatpush.msra.mxu0 0.0
  %1075 = vmatpush.msra.mxu0 0.0
  %1076 = vmatpush.msra.mxu0 %v970
  %1077 = vmatmul.f32.gmra.mxu0 %v979
  %v1078 = vpop.f32.mrf.mxu0
  %v1079 = vadd.f32 0.0, %v1078
  %1080 = vdwg.mxu0
  %1081 = vmatpush.msra.mxu0 0.0
  %1082 = vmatpush.msra.mxu0 0.0
  %1083 = vmatpush.msra.mxu0 0.0
  %1084 = vmatpush.msra.mxu0 0.0
  %1085 = vmatpush.msra.mxu0 0.0
  %1086 = vmatpush.msra.mxu0 0.0
  %1087 = vmatpush.msra.mxu0 0.0
  %1088 = vmatpush.msra.mxu0 0.0
  %1089 = vmatpush.msra.mxu0 0.0
  %1090 = vmatpush.msra.mxu0 0.0
  %1091 = vmatpush.msra.mxu0 0.0
  %1092 = vmatpush.msra.mxu0 0.0
  %1093 = vmatpush.msra.mxu0 0.0
  %1094 = vmatpush.msra.mxu0 0.0
  %1095 = vmatpush.msra.mxu0 0.0
  %1096 = vmatpush.msra.mxu0 %v971
  %1097 = vmatmul.f32.gmra.mxu0 %v979
  %v1098 = vpop.f32.mrf.mxu0
  %v1099 = vadd.f32 0.0, %v1098
  %1100 = vdwg.mxu0
  %v1101 = vadd.f32 %v943, %v999
  %v1102 = vadd.f32 %v944, %v1019
  %v1103 = vadd.f32 %v945, %v1039
  %v1104 = vadd.f32 %v946, %v1059
  %v1105 = vadd.f32 %v947, %v1079
  %v1106 = vadd.f32 %v948, %v1099
  %s1107 = scalar_lea.vmem %s1, 56
  %v1108 = vld [vmem:[%s1107] sm:$0xff]
  %1109 = vrot.lane.b32.xlu0 %v29, 91
  %v1110 = vpop.permute.xlu0 %1109
  %1111 = vrot.lane.b32.xlu0 %v30, 91
  %v1112 = vpop.permute.xlu0 %1111
  %1113 = vrot.lane.b32.xlu0 %v31, 91
  %v1114 = vpop.permute.xlu0 %1113
  %1115 = vrot.lane.b32.xlu0 %v32, 91
  %v1116 = vpop.permute.xlu0 %1115
  %1117 = vrot.lane.b32.xlu0 %v33, 91
  %v1118 = vpop.permute.xlu0 %1117
  %1119 = vrot.lane.b32.xlu0 %v34, 91
  %v1120 = vpop.permute.xlu0 %1119
  %1121 = vrot.lane.b32.xlu0 %v35, 91
  %v1122 = vpop.permute.xlu0 %1121
  %vm1123 = vcmask 744448
  %v1124 = vsel %vm1123, %v1110, %v1112
  %v1125 = vsel %vm1123, %v1112, %v1114
  %v1126 = vsel %vm1123, %v1114, %v1116
  %v1127 = vsel %vm1123, %v1116, %v1118
  %v1128 = vsel %vm1123, %v1118, %v1120
  %v1129 = vsel %vm1123, %v1120, %v1122
  %v1137 = vsel %vm70, %v1108, 0
  %1139 = vmatpush.msra.mxu0 0.0
  %1140 = vmatpush.msra.mxu0 0.0
  %1141 = vmatpush.msra.mxu0 0.0
  %1142 = vmatpush.msra.mxu0 0.0
  %1143 = vmatpush.msra.mxu0 0.0
  %1144 = vmatpush.msra.mxu0 0.0
  %1145 = vmatpush.msra.mxu0 0.0
  %1146 = vmatpush.msra.mxu0 0.0
  %1147 = vmatpush.msra.mxu0 0.0
  %1148 = vmatpush.msra.mxu0 0.0
  %1149 = vmatpush.msra.mxu0 0.0
  %1150 = vmatpush.msra.mxu0 0.0
  %1151 = vmatpush.msra.mxu0 0.0
  %1152 = vmatpush.msra.mxu0 0.0
  %1153 = vmatpush.msra.mxu0 0.0
  %1154 = vmatpush.msra.mxu0 %v1124
  %1155 = vmatmul.f32.gmra.mxu0 %v1137
  %v1156 = vpop.f32.mrf.mxu0
  %v1157 = vadd.f32 0.0, %v1156
  %1158 = vdwg.mxu0
  %1159 = vmatpush.msra.mxu0 0.0
  %1160 = vmatpush.msra.mxu0 0.0
  %1161 = vmatpush.msra.mxu0 0.0
  %1162 = vmatpush.msra.mxu0 0.0
  %1163 = vmatpush.msra.mxu0 0.0
  %1164 = vmatpush.msra.mxu0 0.0
  %1165 = vmatpush.msra.mxu0 0.0
  %1166 = vmatpush.msra.mxu0 0.0
  %1167 = vmatpush.msra.mxu0 0.0
  %1168 = vmatpush.msra.mxu0 0.0
  %1169 = vmatpush.msra.mxu0 0.0
  %1170 = vmatpush.msra.mxu0 0.0
  %1171 = vmatpush.msra.mxu0 0.0
  %1172 = vmatpush.msra.mxu0 0.0
  %1173 = vmatpush.msra.mxu0 0.0
  %1174 = vmatpush.msra.mxu0 %v1125
  %1175 = vmatmul.f32.gmra.mxu0 %v1137
  %v1176 = vpop.f32.mrf.mxu0
  %v1177 = vadd.f32 0.0, %v1176
  %1178 = vdwg.mxu0
  %1179 = vmatpush.msra.mxu0 0.0
  %1180 = vmatpush.msra.mxu0 0.0
  %1181 = vmatpush.msra.mxu0 0.0
  %1182 = vmatpush.msra.mxu0 0.0
  %1183 = vmatpush.msra.mxu0 0.0
  %1184 = vmatpush.msra.mxu0 0.0
  %1185 = vmatpush.msra.mxu0 0.0
  %1186 = vmatpush.msra.mxu0 0.0
  %1187 = vmatpush.msra.mxu0 0.0
  %1188 = vmatpush.msra.mxu0 0.0
  %1189 = vmatpush.msra.mxu0 0.0
  %1190 = vmatpush.msra.mxu0 0.0
  %1191 = vmatpush.msra.mxu0 0.0
  %1192 = vmatpush.msra.mxu0 0.0
  %1193 = vmatpush.msra.mxu0 0.0
  %1194 = vmatpush.msra.mxu0 %v1126
  %1195 = vmatmul.f32.gmra.mxu0 %v1137
  %v1196 = vpop.f32.mrf.mxu0
  %v1197 = vadd.f32 0.0, %v1196
  %1198 = vdwg.mxu0
  %1199 = vmatpush.msra.mxu0 0.0
  %1200 = vmatpush.msra.mxu0 0.0
  %1201 = vmatpush.msra.mxu0 0.0
  %1202 = vmatpush.msra.mxu0 0.0
  %1203 = vmatpush.msra.mxu0 0.0
  %1204 = vmatpush.msra.mxu0 0.0
  %1205 = vmatpush.msra.mxu0 0.0
  %1206 = vmatpush.msra.mxu0 0.0
  %1207 = vmatpush.msra.mxu0 0.0
  %1208 = vmatpush.msra.mxu0 0.0
  %1209 = vmatpush.msra.mxu0 0.0
  %1210 = vmatpush.msra.mxu0 0.0
  %1211 = vmatpush.msra.mxu0 0.0
  %1212 = vmatpush.msra.mxu0 0.0
  %1213 = vmatpush.msra.mxu0 0.0
  %1214 = vmatpush.msra.mxu0 %v1127
  %1215 = vmatmul.f32.gmra.mxu0 %v1137
  %v1216 = vpop.f32.mrf.mxu0
  %v1217 = vadd.f32 0.0, %v1216
  %1218 = vdwg.mxu0
  %1219 = vmatpush.msra.mxu0 0.0
  %1220 = vmatpush.msra.mxu0 0.0
  %1221 = vmatpush.msra.mxu0 0.0
  %1222 = vmatpush.msra.mxu0 0.0
  %1223 = vmatpush.msra.mxu0 0.0
  %1224 = vmatpush.msra.mxu0 0.0
  %1225 = vmatpush.msra.mxu0 0.0
  %1226 = vmatpush.msra.mxu0 0.0
  %1227 = vmatpush.msra.mxu0 0.0
  %1228 = vmatpush.msra.mxu0 0.0
  %1229 = vmatpush.msra.mxu0 0.0
  %1230 = vmatpush.msra.mxu0 0.0
  %1231 = vmatpush.msra.mxu0 0.0
  %1232 = vmatpush.msra.mxu0 0.0
  %1233 = vmatpush.msra.mxu0 0.0
  %1234 = vmatpush.msra.mxu0 %v1128
  %1235 = vmatmul.f32.gmra.mxu0 %v1137
  %v1236 = vpop.f32.mrf.mxu0
  %v1237 = vadd.f32 0.0, %v1236
  %1238 = vdwg.mxu0
  %1239 = vmatpush.msra.mxu0 0.0
  %1240 = vmatpush.msra.mxu0 0.0
  %1241 = vmatpush.msra.mxu0 0.0
  %1242 = vmatpush.msra.mxu0 0.0
  %1243 = vmatpush.msra.mxu0 0.0
  %1244 = vmatpush.msra.mxu0 0.0
  %1245 = vmatpush.msra.mxu0 0.0
  %1246 = vmatpush.msra.mxu0 0.0
  %1247 = vmatpush.msra.mxu0 0.0
  %1248 = vmatpush.msra.mxu0 0.0
  %1249 = vmatpush.msra.mxu0 0.0
  %1250 = vmatpush.msra.mxu0 0.0
  %1251 = vmatpush.msra.mxu0 0.0
  %1252 = vmatpush.msra.mxu0 0.0
  %1253 = vmatpush.msra.mxu0 0.0
  %1254 = vmatpush.msra.mxu0 %v1129
  %1255 = vmatmul.f32.gmra.mxu0 %v1137
  %v1256 = vpop.f32.mrf.mxu0
  %v1257 = vadd.f32 0.0, %v1256
  %1258 = vdwg.mxu0
  %v1259 = vadd.f32 %v1101, %v1157
  %v1260 = vadd.f32 %v1102, %v1177
  %v1261 = vadd.f32 %v1103, %v1197
  %v1262 = vadd.f32 %v1104, %v1217
  %v1263 = vadd.f32 %v1105, %v1237
  %v1264 = vadd.f32 %v1106, %v1257
  %s1265 = scalar_lea.vmem %s1, 64
  %v1266 = vld [vmem:[%s1265] sm:$0xff]
  %1267 = vrot.lane.b32.xlu0 %v29, 90
  %v1268 = vpop.permute.xlu0 %1267
  %1269 = vrot.lane.b32.xlu0 %v30, 90
  %v1270 = vpop.permute.xlu0 %1269
  %1271 = vrot.lane.b32.xlu0 %v31, 90
  %v1272 = vpop.permute.xlu0 %1271
  %1273 = vrot.lane.b32.xlu0 %v32, 90
  %v1274 = vpop.permute.xlu0 %1273
  %1275 = vrot.lane.b32.xlu0 %v33, 90
  %v1276 = vpop.permute.xlu0 %1275
  %1277 = vrot.lane.b32.xlu0 %v34, 90
  %v1278 = vpop.permute.xlu0 %1277
  %1279 = vrot.lane.b32.xlu0 %v35, 90
  %v1280 = vpop.permute.xlu0 %1279
  %vm1281 = vcmask 736256
  %v1282 = vsel %vm1281, %v1268, %v1270
  %v1283 = vsel %vm1281, %v1270, %v1272
  %v1284 = vsel %vm1281, %v1272, %v1274
  %v1285 = vsel %vm1281, %v1274, %v1276
  %v1286 = vsel %vm1281, %v1276, %v1278
  %v1287 = vsel %vm1281, %v1278, %v1280
  %v1295 = vsel %vm70, %v1266, 0
  %1297 = vmatpush.msra.mxu0 0.0
  %1298 = vmatpush.msra.mxu0 0.0
  %1299 = vmatpush.msra.mxu0 0.0
  %1300 = vmatpush.msra.mxu0 0.0
  %1301 = vmatpush.msra.mxu0 0.0
  %1302 = vmatpush.msra.mxu0 0.0
  %1303 = vmatpush.msra.mxu0 0.0
  %1304 = vmatpush.msra.mxu0 0.0
  %1305 = vmatpush.msra.mxu0 0.0
  %1306 = vmatpush.msra.mxu0 0.0
  %1307 = vmatpush.msra.mxu0 0.0
  %1308 = vmatpush.msra.mxu0 0.0
  %1309 = vmatpush.msra.mxu0 0.0
  %1310 = vmatpush.msra.mxu0 0.0
  %1311 = vmatpush.msra.mxu0 0.0
  %1312 = vmatpush.msra.mxu0 %v1282
  %1313 = vmatmul.f32.gmra.mxu0 %v1295
  %v1314 = vpop.f32.mrf.mxu0
  %v1315 = vadd.f32 0.0, %v1314
  %1316 = vdwg.mxu0
  %1317 = vmatpush.msra.mxu0 0.0
  %1318 = vmatpush.msra.mxu0 0.0
  %1319 = vmatpush.msra.mxu0 0.0
  %1320 = vmatpush.msra.mxu0 0.0
  %1321 = vmatpush.msra.mxu0 0.0
  %1322 = vmatpush.msra.mxu0 0.0
  %1323 = vmatpush.msra.mxu0 0.0
  %1324 = vmatpush.msra.mxu0 0.0
  %1325 = vmatpush.msra.mxu0 0.0
  %1326 = vmatpush.msra.mxu0 0.0
  %1327 = vmatpush.msra.mxu0 0.0
  %1328 = vmatpush.msra.mxu0 0.0
  %1329 = vmatpush.msra.mxu0 0.0
  %1330 = vmatpush.msra.mxu0 0.0
  %1331 = vmatpush.msra.mxu0 0.0
  %1332 = vmatpush.msra.mxu0 %v1283
  %1333 = vmatmul.f32.gmra.mxu0 %v1295
  %v1334 = vpop.f32.mrf.mxu0
  %v1335 = vadd.f32 0.0, %v1334
  %1336 = vdwg.mxu0
  %1337 = vmatpush.msra.mxu0 0.0
  %1338 = vmatpush.msra.mxu0 0.0
  %1339 = vmatpush.msra.mxu0 0.0
  %1340 = vmatpush.msra.mxu0 0.0
  %1341 = vmatpush.msra.mxu0 0.0
  %1342 = vmatpush.msra.mxu0 0.0
  %1343 = vmatpush.msra.mxu0 0.0
  %1344 = vmatpush.msra.mxu0 0.0
  %1345 = vmatpush.msra.mxu0 0.0
  %1346 = vmatpush.msra.mxu0 0.0
  %1347 = vmatpush.msra.mxu0 0.0
  %1348 = vmatpush.msra.mxu0 0.0
  %1349 = vmatpush.msra.mxu0 0.0
  %1350 = vmatpush.msra.mxu0 0.0
  %1351 = vmatpush.msra.mxu0 0.0
  %1352 = vmatpush.msra.mxu0 %v1284
  %1353 = vmatmul.f32.gmra.mxu0 %v1295
  %v1354 = vpop.f32.mrf.mxu0
  %v1355 = vadd.f32 0.0, %v1354
  %1356 = vdwg.mxu0
  %1357 = vmatpush.msra.mxu0 0.0
  %1358 = vmatpush.msra.mxu0 0.0
  %1359 = vmatpush.msra.mxu0 0.0
  %1360 = vmatpush.msra.mxu0 0.0
  %1361 = vmatpush.msra.mxu0 0.0
  %1362 = vmatpush.msra.mxu0 0.0
  %1363 = vmatpush.msra.mxu0 0.0
  %1364 = vmatpush.msra.mxu0 0.0
  %1365 = vmatpush.msra.mxu0 0.0
  %1366 = vmatpush.msra.mxu0 0.0
  %1367 = vmatpush.msra.mxu0 0.0
  %1368 = vmatpush.msra.mxu0 0.0
  %1369 = vmatpush.msra.mxu0 0.0
  %1370 = vmatpush.msra.mxu0 0.0
  %1371 = vmatpush.msra.mxu0 0.0
  %1372 = vmatpush.msra.mxu0 %v1285
  %1373 = vmatmul.f32.gmra.mxu0 %v1295
  %v1374 = vpop.f32.mrf.mxu0
  %v1375 = vadd.f32 0.0, %v1374
  %1376 = vdwg.mxu0
  %1377 = vmatpush.msra.mxu0 0.0
  %1378 = vmatpush.msra.mxu0 0.0
  %1379 = vmatpush.msra.mxu0 0.0
  %1380 = vmatpush.msra.mxu0 0.0
  %1381 = vmatpush.msra.mxu0 0.0
  %1382 = vmatpush.msra.mxu0 0.0
  %1383 = vmatpush.msra.mxu0 0.0
  %1384 = vmatpush.msra.mxu0 0.0
  %1385 = vmatpush.msra.mxu0 0.0
  %1386 = vmatpush.msra.mxu0 0.0
  %1387 = vmatpush.msra.mxu0 0.0
  %1388 = vmatpush.msra.mxu0 0.0
  %1389 = vmatpush.msra.mxu0 0.0
  %1390 = vmatpush.msra.mxu0 0.0
  %1391 = vmatpush.msra.mxu0 0.0
  %1392 = vmatpush.msra.mxu0 %v1286
  %1393 = vmatmul.f32.gmra.mxu0 %v1295
  %v1394 = vpop.f32.mrf.mxu0
  %v1395 = vadd.f32 0.0, %v1394
  %1396 = vdwg.mxu0
  %1397 = vmatpush.msra.mxu0 0.0
  %1398 = vmatpush.msra.mxu0 0.0
  %1399 = vmatpush.msra.mxu0 0.0
  %1400 = vmatpush.msra.mxu0 0.0
  %1401 = vmatpush.msra.mxu0 0.0
  %1402 = vmatpush.msra.mxu0 0.0
  %1403 = vmatpush.msra.mxu0 0.0
  %1404 = vmatpush.msra.mxu0 0.0
  %1405 = vmatpush.msra.mxu0 0.0
  %1406 = vmatpush.msra.mxu0 0.0
  %1407 = vmatpush.msra.mxu0 0.0
  %1408 = vmatpush.msra.mxu0 0.0
  %1409 = vmatpush.msra.mxu0 0.0
  %1410 = vmatpush.msra.mxu0 0.0
  %1411 = vmatpush.msra.mxu0 0.0
  %1412 = vmatpush.msra.mxu0 %v1287
  %1413 = vmatmul.f32.gmra.mxu0 %v1295
  %v1414 = vpop.f32.mrf.mxu0
  %v1415 = vadd.f32 0.0, %v1414
  %1416 = vdwg.mxu0
  %v1417 = vadd.f32 %v1259, %v1315
  %v1418 = vadd.f32 %v1260, %v1335
  %v1419 = vadd.f32 %v1261, %v1355
  %v1420 = vadd.f32 %v1262, %v1375
  %v1421 = vadd.f32 %v1263, %v1395
  %v1422 = vadd.f32 %v1264, %v1415
  %v1423 = vld [vmem:[%s4] sm:$0x3f]
  %v1425 = vperm.slane %v1423, 0
  %v1426 = vperm.slane %v1423, 1
  %v1427 = vperm.slane %v1423, 2
  %v1428 = vperm.slane %v1423, 3
  %v1429 = vperm.slane %v1423, 4
  %v1430 = vperm.slane %v1423, 5
  %v1437 = vmul.f32 %v1417, %v1425
  %v1438 = vmul.f32 %v1418, %v1426
  %v1439 = vmul.f32 %v1419, %v1427
  %v1440 = vmul.f32 %v1420, %v1428
  %v1441 = vmul.f32 %v1421, %v1429
  %v1442 = vmul.f32 %v1422, %v1430
  %v1443 = vadd.f32 %v1437, %v1438
  %v1444 = vadd.f32 %v1443, %v1439
  %v1445 = vadd.f32 %v1444, %v1440
  %v1446 = vadd.f32 %v1445, %v1441
  %v1447 = vadd.f32 %v1446, %v1442
  %1448 = vadd.xlane.f32.xlu0 %v1447
  %v1449 = vpop.xlane.xlu0 %1448
  %v1450 = vmul.f32 %v1449, 0.0078125
  %v1451 = vsub.f32 %v1417, %v1450
  %v1452 = vsub.f32 %v1418, %v1450
  %v1453 = vsub.f32 %v1419, %v1450
  %v1454 = vsub.f32 %v1420, %v1450
  %v1455 = vsub.f32 %v1421, %v1450
  %v1456 = vsub.f32 %v1422, %v1450
  %v1457 = vmul.f32 %v1451, %v1451
  %v1458 = vmul.f32 %v1452, %v1452
  %v1459 = vmul.f32 %v1453, %v1453
  %v1460 = vmul.f32 %v1454, %v1454
  %v1461 = vmul.f32 %v1455, %v1455
  %v1462 = vmul.f32 %v1456, %v1456
  %v1463 = vmul.f32 %v1457, %v1425
  %v1464 = vmul.f32 %v1458, %v1426
  %v1465 = vmul.f32 %v1459, %v1427
  %v1466 = vmul.f32 %v1460, %v1428
  %v1467 = vmul.f32 %v1461, %v1429
  %v1468 = vmul.f32 %v1462, %v1430
  %v1469 = vadd.f32 %v1463, %v1464
  %v1470 = vadd.f32 %v1469, %v1465
  %v1471 = vadd.f32 %v1470, %v1466
  %v1472 = vadd.f32 %v1471, %v1467
  %v1473 = vadd.f32 %v1472, %v1468
  %1474 = vadd.xlane.f32.xlu0 %v1473
  %v1475 = vpop.xlane.xlu0 %1474
  %v1476 = vmul.f32 %v1475, 0.0078125
  %v1477 = vadd.f32 %v1476, 1e-05
  %v1478 = vrsqrt.pop %v1477
  %v1479 = vmul.f32 %v1478, %v1477
  %v1480 = vmul.f32 %v1479, %v1478
  %v1481 = vmul.f32 0.5, %v1480
  %v1482 = vsub.f32 1.5, %v1481
  %v1483 = vmul.f32 %v1478, %v1482
  %vm1484 = vweird.f32 %v1477
  %vm1485 = vweird.f32 %v1478
  %vm1486 = vmor %vm1484, %vm1485
  %v1487 = vsel %vm1486, %v1478, %v1483
  %v1488 = vld [vmem:[%s2] sm:$0xff]
  %v1489 = vmul.f32 %v1487, %v1488
  %1491 = vset.pattern.permute.xlu0 0
  %1492 = vperm.xlu0 %1491, %v1489
  %v1493 = vpop.permute.xlu0 %1492
  %v1495 = vmul.f32 %v1451, %v1493
  %v1496 = vmul.f32 %v1452, %v1493
  %v1497 = vmul.f32 %v1453, %v1493
  %v1498 = vmul.f32 %v1454, %v1493
  %v1499 = vmul.f32 %v1455, %v1493
  %v1500 = vmul.f32 %v1456, %v1493
  %v1501 = vld [vmem:[%s3] sm:$0xff]
  %1503 = vset.pattern.permute.xlu0 0
  %1504 = vperm.xlu0 %1503, %v1501
  %v1505 = vpop.permute.xlu0 %1504
  %v1507 = vadd.f32 %v1495, %v1505
  %v1508 = vadd.f32 %v1496, %v1505
  %v1509 = vadd.f32 %v1497, %v1505
  %v1510 = vadd.f32 %v1498, %v1505
  %v1511 = vadd.f32 %v1499, %v1505
  %v1512 = vadd.f32 %v1500, %v1505
  %v1513 = vmax.f32 %v1507, 0.0
  %v1514 = vmax.f32 %v1508, 0.0
  %v1515 = vmax.f32 %v1509, 0.0
  %v1516 = vmax.f32 %v1510, 0.0
  %v1517 = vmax.f32 %v1511, 0.0
  %v1518 = vmax.f32 %v1512, 0.0
  %1519 = vst [vmem:[%s5] sm:$0xff] %v1513
  %1520 = vst [vmem:[%s5 + $0x8] sm:$0xff] %v1514
  %1521 = vst [vmem:[%s5 + $0x10] sm:$0xff] %v1515
  %1522 = vst [vmem:[%s5 + $0x18] sm:$0xff] %v1516
  %1523 = vst [vmem:[%s5 + $0x20] sm:$0xff] %v1517
  %1524 = vst [vmem:[%s5 + $0x28] sm:$0xff] %v1518
  // Predicated region
  $region22: #{vae_forward.8} parent=0 // pred_check
    _
  $region23: #{vae_forward.8} parent=0 // pred_check_branch
    %1526 = sbr.rel (0) target = $region25
  $region24: #{vae_forward.8} parent=0 // pred_region
    _
  $region25: #{vae_forward.8} parent=0 // pred_fallthru
    _
  // Predicated region
  $region26: #{vae_forward.8} parent=0 // pred_check
    _
  $region27: #{vae_forward.8} parent=0 // pred_check_branch
    %1528 = sbr.rel (0) target = $region29
  $region28: #{vae_forward.8} parent=0 // pred_region
    _
  $region29: #{vae_forward.8} parent=0 // pred_fallthru
    _

// kernel: vae_forward.10
$region0: #{vae_forward.10}
  #allocation0 [shape = 'u32[]', space=smem, size = 0x4, offset = 0x4, fixed_abs, tag = 'smem constant byte address 0x4 - core index']
  #allocation1 [shape = 'u32[72,128]{1,0:T(1,128)}', space=vmem, size = 0x9000, scoped, tag = 'internal scratch']
  %s0 = inlined_call_operand.vmem [shape: f32[8,256], index: 0, kind: input, shape index: {}]
  %s1 = inlined_call_operand.vmem [shape: f32[9,16,8], index: 1, kind: input, shape index: {}]
  %s2 = inlined_call_operand.vmem [shape: f32[16,1], index: 2, kind: input, shape index: {}]
  %s3 = inlined_call_operand.vmem [shape: f32[16,1], index: 3, kind: input, shape index: {}]
  %s4 = inlined_call_operand.vmem [shape: f32[1,128], index: 4, kind: input, shape index: {}]
  %s5 = inlined_call_operand.vmem [shape: f32[16,128], index: 5, kind: output, shape index: {}]
  %s6 = sld [smem:[#allocation0]]
  $region30: #{vae_forward.10} parent=0
    _
  %s8 = ssub.s32 1, %s6
  %s9 = scalar_select 0, %s8, %s6
  // Predicated region
  $region2: #{vae_forward.10} parent=0 // pred_check
    _
  $region3: #{vae_forward.10} parent=0 // pred_check_branch
    %11 = sbr.rel (0) target = $region5
  $region4: #{vae_forward.10} parent=0 // pred_region
    _
  $region5: #{vae_forward.10} parent=0 // pred_fallthru
    _
  // Predicated region
  $region6: #{vae_forward.10} parent=0 // pred_check
    _
  $region7: #{vae_forward.10} parent=0 // pred_check_branch
    %13 = sbr.rel (0) target = $region9
  $region8: #{vae_forward.10} parent=0 // pred_region
    _
  $region9: #{vae_forward.10} parent=0 // pred_fallthru
    _
  // Predicated region
  $region10: #{vae_forward.10} parent=0 // pred_check
    _
  $region11: #{vae_forward.10} parent=0 // pred_check_branch
    %15 = sbr.rel (0) target = $region13
  $region12: #{vae_forward.10} parent=0 // pred_region
    _
  $region13: #{vae_forward.10} parent=0 // pred_fallthru
    _
  // Predicated region
  $region14: #{vae_forward.10} parent=0 // pred_check
    _
  $region15: #{vae_forward.10} parent=0 // pred_check_branch
    %17 = sbr.rel (0) target = $region17
  $region16: #{vae_forward.10} parent=0 // pred_region
    _
  $region17: #{vae_forward.10} parent=0 // pred_fallthru
    _
  // Predicated region
  $region18: #{vae_forward.10} parent=0 // pred_check
    _
  $region19: #{vae_forward.10} parent=0 // pred_check_branch
    %19 = sbr.rel (0) target = $region21
  $region20: #{vae_forward.10} parent=0 // pred_region
    _
  $region21: #{vae_forward.10} parent=0 // pred_fallthru
    _
  %v20 = vld [vmem:[%s1] sm:$0xff]
  %v21 = vld [vmem:[%s1 + $0x8] sm:$0xff]
  %v22 = vld [vmem:[%s0] sm:$0xff]
  %s23 = scalar_lea.vmem %s1, 16
  %v24 = vld [vmem:[%s23] sm:$0xff]
  %v25 = vld [vmem:[%s23 + $0x8] sm:$0xff]
  %v26 = vld [vmem:[%s0] sm:$0xff]
  %v27 = vld [vmem:[%s0 + $0x8] sm:$0xff]
  %30 = vrot.lane.b32.xlu0 %v26, 127
  %v31 = vpop.permute.xlu0 %30
  %32 = vrot.lane.b32.xlu0 %v27, 127
  %v33 = vpop.permute.xlu0 %32
  %vm34 = vcmask 1039360
  %v35 = vsel %vm34, %v31, %v33
  %vm37 = vcmask 64512
  %v39 = vsel %vm37, %v24, 0
  %v42 = vsel %vm37, %v25, 0
  %44 = vmatpush.msra.mxu0 0.0
  %45 = vmatpush.msra.mxu0 0.0
  %46 = vmatpush.msra.mxu0 0.0
  %47 = vmatpush.msra.mxu0 0.0
  %48 = vmatpush.msra.mxu0 0.0
  %49 = vmatpush.msra.mxu0 0.0
  %50 = vmatpush.msra.mxu0 0.0
  %51 = vmatpush.msra.mxu0 0.0
  %52 = vmatpush.msra.mxu0 0.0
  %53 = vmatpush.msra.mxu0 0.0
  %54 = vmatpush.msra.mxu0 0.0
  %55 = vmatpush.msra.mxu0 0.0
  %56 = vmatpush.msra.mxu0 0.0
  %57 = vmatpush.msra.mxu0 0.0
  %58 = vmatpush.msra.mxu0 0.0
  %59 = vmatpush.msra.mxu0 %v35
  %60 = vmatmul.f32.gmra.mxu0 %v39
  %v61 = vpop.f32.mrf.mxu0
  %v62 = vadd.f32 0.0, %v61
  %63 = vmatmul.f32.gmra.mxu0 %v42
  %v64 = vpop.f32.mrf.mxu0
  %v65 = vadd.f32 0.0, %v64
  %66 = vdwg.mxu0
  %v68 = vsel %vm37, %v20, 0
  %v71 = vsel %vm37, %v21, 0
  %73 = vmatpush.msra.mxu0 0.0
  %74 = vmatpush.msra.mxu0 0.0
  %75 = vmatpush.msra.mxu0 0.0
  %76 = vmatpush.msra.mxu0 0.0
  %77 = vmatpush.msra.mxu0 0.0
  %78 = vmatpush.msra.mxu0 0.0
  %79 = vmatpush.msra.mxu0 0.0
  %80 = vmatpush.msra.mxu0 0.0
  %81 = vmatpush.msra.mxu0 0.0
  %82 = vmatpush.msra.mxu0 0.0
  %83 = vmatpush.msra.mxu0 0.0
  %84 = vmatpush.msra.mxu0 0.0
  %85 = vmatpush.msra.mxu0 0.0
  %86 = vmatpush.msra.mxu0 0.0
  %87 = vmatpush.msra.mxu0 0.0
  %88 = vmatpush.msra.mxu0 %v22
  %89 = vmatmul.f32.gmra.mxu0 %v68
  %v90 = vpop.f32.mrf.mxu0
  %v91 = vadd.f32 %v62, %v90
  %92 = vmatmul.f32.gmra.mxu0 %v71
  %v93 = vpop.f32.mrf.mxu0
  %v94 = vadd.f32 %v65, %v93
  %95 = vdwg.mxu0
  %s96 = scalar_lea.vmem %s1, 32
  %v97 = vld [vmem:[%s96] sm:$0xff]
  %v98 = vld [vmem:[%s96 + $0x8] sm:$0xff]
  %99 = vrot.lane.b32.xlu0 %v26, 126
  %v100 = vpop.permute.xlu0 %99
  %101 = vrot.lane.b32.xlu0 %v27, 126
  %v102 = vpop.permute.xlu0 %101
  %vm103 = vcmask 1031168
  %v104 = vsel %vm103, %v100, %v102
  %v107 = vsel %vm37, %v97, 0
  %v110 = vsel %vm37, %v98, 0
  %112 = vmatpush.msra.mxu0 0.0
  %113 = vmatpush.msra.mxu0 0.0
  %114 = vmatpush.msra.mxu0 0.0
  %115 = vmatpush.msra.mxu0 0.0
  %116 = vmatpush.msra.mxu0 0.0
  %117 = vmatpush.msra.mxu0 0.0
  %118 = vmatpush.msra.mxu0 0.0
  %119 = vmatpush.msra.mxu0 0.0
  %120 = vmatpush.msra.mxu0 0.0
  %121 = vmatpush.msra.mxu0 0.0
  %122 = vmatpush.msra.mxu0 0.0
  %123 = vmatpush.msra.mxu0 0.0
  %124 = vmatpush.msra.mxu0 0.0
  %125 = vmatpush.msra.mxu0 0.0
  %126 = vmatpush.msra.mxu0 0.0
  %127 = vmatpush.msra.mxu0 %v104
  %128 = vmatmul.f32.gmra.mxu0 %v107
  %v129 = vpop.f32.mrf.mxu0
  %v130 = vadd.f32 0.0, %v129
  %131 = vmatmul.f32.gmra.mxu0 %v110
  %v132 = vpop.f32.mrf.mxu0
  %v133 = vadd.f32 0.0, %v132
  %134 = vdwg.mxu0
  %v135 = vadd.f32 %v91, %v130
  %v136 = vadd.f32 %v94, %v133
  %s137 = scalar_lea.vmem %s1, 48
  %v138 = vld [vmem:[%s137] sm:$0xff]
  %v139 = vld [vmem:[%s137 + $0x8] sm:$0xff]
  %140 = vrot.lane.b32.xlu0 %v26, 122
  %v141 = vpop.permute.xlu0 %140
  %142 = vrot.lane.b32.xlu0 %v27, 122
  %v143 = vpop.permute.xlu0 %142
  %vm144 = vcmask 998400
  %v145 = vsel %vm144, %v141, %v143
  %v148 = vsel %vm37, %v138, 0
  %v151 = vsel %vm37, %v139, 0
  %153 = vmatpush.msra.mxu0 0.0
  %154 = vmatpush.msra.mxu0 0.0
  %155 = vmatpush.msra.mxu0 0.0
  %156 = vmatpush.msra.mxu0 0.0
  %157 = vmatpush.msra.mxu0 0.0
  %158 = vmatpush.msra.mxu0 0.0
  %159 = vmatpush.msra.mxu0 0.0
  %160 = vmatpush.msra.mxu0 0.0
  %161 = vmatpush.msra.mxu0 0.0
  %162 = vmatpush.msra.mxu0 0.0
  %163 = vmatpush.msra.mxu0 0.0
  %164 = vmatpush.msra.mxu0 0.0
  %165 = vmatpush.msra.mxu0 0.0
  %166 = vmatpush.msra.mxu0 0.0
  %167 = vmatpush.msra.mxu0 0.0
  %168 = vmatpush.msra.mxu0 %v145
  %169 = vmatmul.f32.gmra.mxu0 %v148
  %v170 = vpop.f32.mrf.mxu0
  %v171 = vadd.f32 0.0, %v170
  %172 = vmatmul.f32.gmra.mxu0 %v151
  %v173 = vpop.f32.mrf.mxu0
  %v174 = vadd.f32 0.0, %v173
  %175 = vdwg.mxu0
  %v176 = vadd.f32 %v135, %v171
  %v177 = vadd.f32 %v136, %v174
  %s178 = scalar_lea.vmem %s1, 64
  %v179 = vld [vmem:[%s178] sm:$0xff]
  %v180 = vld [vmem:[%s178 + $0x8] sm:$0xff]
  %181 = vrot.lane.b32.xlu0 %v26, 121
  %v182 = vpop.permute.xlu0 %181
  %183 = vrot.lane.b32.xlu0 %v27, 121
  %v184 = vpop.permute.xlu0 %183
  %vm185 = vcmask 990208
  %v186 = vsel %vm185, %v182, %v184
  %v189 = vsel %vm37, %v179, 0
  %v192 = vsel %vm37, %v180, 0
  %194 = vmatpush.msra.mxu0 0.0
  %195 = vmatpush.msra.mxu0 0.0
  %196 = vmatpush.msra.mxu0 0.0
  %197 = vmatpush.msra.mxu0 0.0
  %198 = vmatpush.msra.mxu0 0.0
  %199 = vmatpush.msra.mxu0 0.0
  %200 = vmatpush.msra.mxu0 0.0
  %201 = vmatpush.msra.mxu0 0.0
  %202 = vmatpush.msra.mxu0 0.0
  %203 = vmatpush.msra.mxu0 0.0
  %204 = vmatpush.msra.mxu0 0.0
  %205 = vmatpush.msra.mxu0 0.0
  %206 = vmatpush.msra.mxu0 0.0
  %207 = vmatpush.msra.mxu0 0.0
  %208 = vmatpush.msra.mxu0 0.0
  %209 = vmatpush.msra.mxu0 %v186
  %210 = vmatmul.f32.gmra.mxu0 %v189
  %v211 = vpop.f32.mrf.mxu0
  %v212 = vadd.f32 0.0, %v211
  %213 = vmatmul.f32.gmra.mxu0 %v192
  %v214 = vpop.f32.mrf.mxu0
  %v215 = vadd.f32 0.0, %v214
  %216 = vdwg.mxu0
  %v217 = vadd.f32 %v176, %v212
  %v218 = vadd.f32 %v177, %v215
  %s219 = scalar_lea.vmem %s1, 80
  %v220 = vld [vmem:[%s219] sm:$0xff]
  %v221 = vld [vmem:[%s219 + $0x8] sm:$0xff]
  %222 = vrot.lane.b32.xlu0 %v26, 120
  %v223 = vpop.permute.xlu0 %222
  %224 = vrot.lane.b32.xlu0 %v27, 120
  %v225 = vpop.permute.xlu0 %224
  %vm226 = vcmask 982016
  %v227 = vsel %vm226, %v223, %v225
  %v230 = vsel %vm37, %v220, 0
  %v233 = vsel %vm37, %v221, 0
  %235 = vmatpush.msra.mxu0 0.0
  %236 = vmatpush.msra.mxu0 0.0
  %237 = vmatpush.msra.mxu0 0.0
  %238 = vmatpush.msra.mxu0 0.0
  %239 = vmatpush.msra.mxu0 0.0
  %240 = vmatpush.msra.mxu0 0.0
  %241 = vmatpush.msra.mxu0 0.0
  %242 = vmatpush.msra.mxu0 0.0
  %243 = vmatpush.msra.mxu0 0.0
  %244 = vmatpush.msra.mxu0 0.0
  %245 = vmatpush.msra.mxu0 0.0
  %246 = vmatpush.msra.mxu0 0.0
  %247 = vmatpush.msra.mxu0 0.0
  %248 = vmatpush.msra.mxu0 0.0
  %249 = vmatpush.msra.mxu0 0.0
  %250 = vmatpush.msra.mxu0 %v227
  %251 = vmatmul.f32.gmra.mxu0 %v230
  %v252 = vpop.f32.mrf.mxu0
  %v253 = vadd.f32 0.0, %v252
  %254 = vmatmul.f32.gmra.mxu0 %v233
  %v255 = vpop.f32.mrf.mxu0
  %v256 = vadd.f32 0.0, %v255
  %257 = vdwg.mxu0
  %v258 = vadd.f32 %v217, %v253
  %v259 = vadd.f32 %v218, %v256
  %s260 = scalar_lea.vmem %s1, 96
  %v261 = vld [vmem:[%s260] sm:$0xff]
  %v262 = vld [vmem:[%s260 + $0x8] sm:$0xff]
  %263 = vrot.lane.b32.xlu0 %v26, 116
  %v264 = vpop.permute.xlu0 %263
  %265 = vrot.lane.b32.xlu0 %v27, 116
  %v266 = vpop.permute.xlu0 %265
  %vm267 = vcmask 949248
  %v268 = vsel %vm267, %v264, %v266
  %v271 = vsel %vm37, %v261, 0
  %v274 = vsel %vm37, %v262, 0
  %276 = vmatpush.msra.mxu0 0.0
  %277 = vmatpush.msra.mxu0 0.0
  %278 = vmatpush.msra.mxu0 0.0
  %279 = vmatpush.msra.mxu0 0.0
  %280 = vmatpush.msra.mxu0 0.0
  %281 = vmatpush.msra.mxu0 0.0
  %282 = vmatpush.msra.mxu0 0.0
  %283 = vmatpush.msra.mxu0 0.0
  %284 = vmatpush.msra.mxu0 0.0
  %285 = vmatpush.msra.mxu0 0.0
  %286 = vmatpush.msra.mxu0 0.0
  %287 = vmatpush.msra.mxu0 0.0
  %288 = vmatpush.msra.mxu0 0.0
  %289 = vmatpush.msra.mxu0 0.0
  %290 = vmatpush.msra.mxu0 0.0
  %291 = vmatpush.msra.mxu0 %v268
  %292 = vmatmul.f32.gmra.mxu0 %v271
  %v293 = vpop.f32.mrf.mxu0
  %v294 = vadd.f32 0.0, %v293
  %295 = vmatmul.f32.gmra.mxu0 %v274
  %v296 = vpop.f32.mrf.mxu0
  %v297 = vadd.f32 0.0, %v296
  %298 = vdwg.mxu0
  %v299 = vadd.f32 %v258, %v294
  %v300 = vadd.f32 %v259, %v297
  %s301 = scalar_lea.vmem %s1, 112
  %v302 = vld [vmem:[%s301] sm:$0xff]
  %v303 = vld [vmem:[%s301 + $0x8] sm:$0xff]
  %304 = vrot.lane.b32.xlu0 %v26, 115
  %v305 = vpop.permute.xlu0 %304
  %306 = vrot.lane.b32.xlu0 %v27, 115
  %v307 = vpop.permute.xlu0 %306
  %vm308 = vcmask 941056
  %v309 = vsel %vm308, %v305, %v307
  %v312 = vsel %vm37, %v302, 0
  %v315 = vsel %vm37, %v303, 0
  %317 = vmatpush.msra.mxu0 0.0
  %318 = vmatpush.msra.mxu0 0.0
  %319 = vmatpush.msra.mxu0 0.0
  %320 = vmatpush.msra.mxu0 0.0
  %321 = vmatpush.msra.mxu0 0.0
  %322 = vmatpush.msra.mxu0 0.0
  %323 = vmatpush.msra.mxu0 0.0
  %324 = vmatpush.msra.mxu0 0.0
  %325 = vmatpush.msra.mxu0 0.0
  %326 = vmatpush.msra.mxu0 0.0
  %327 = vmatpush.msra.mxu0 0.0
  %328 = vmatpush.msra.mxu0 0.0
  %329 = vmatpush.msra.mxu0 0.0
  %330 = vmatpush.msra.mxu0 0.0
  %331 = vmatpush.msra.mxu0 0.0
  %332 = vmatpush.msra.mxu0 %v309
  %333 = vmatmul.f32.gmra.mxu0 %v312
  %v334 = vpop.f32.mrf.mxu0
  %v335 = vadd.f32 0.0, %v334
  %336 = vmatmul.f32.gmra.mxu0 %v315
  %v337 = vpop.f32.mrf.mxu0
  %v338 = vadd.f32 0.0, %v337
  %339 = vdwg.mxu0
  %v340 = vadd.f32 %v299, %v335
  %v341 = vadd.f32 %v300, %v338
  %s342 = scalar_lea.vmem %s1, 128
  %v343 = vld [vmem:[%s342] sm:$0xff]
  %v344 = vld [vmem:[%s342 + $0x8] sm:$0xff]
  %345 = vrot.lane.b32.xlu0 %v26, 114
  %v346 = vpop.permute.xlu0 %345
  %347 = vrot.lane.b32.xlu0 %v27, 114
  %v348 = vpop.permute.xlu0 %347
  %vm349 = vcmask 932864
  %v350 = vsel %vm349, %v346, %v348
  %v353 = vsel %vm37, %v343, 0
  %v356 = vsel %vm37, %v344, 0
  %358 = vmatpush.msra.mxu0 0.0
  %359 = vmatpush.msra.mxu0 0.0
  %360 = vmatpush.msra.mxu0 0.0
  %361 = vmatpush.msra.mxu0 0.0
  %362 = vmatpush.msra.mxu0 0.0
  %363 = vmatpush.msra.mxu0 0.0
  %364 = vmatpush.msra.mxu0 0.0
  %365 = vmatpush.msra.mxu0 0.0
  %366 = vmatpush.msra.mxu0 0.0
  %367 = vmatpush.msra.mxu0 0.0
  %368 = vmatpush.msra.mxu0 0.0
  %369 = vmatpush.msra.mxu0 0.0
  %370 = vmatpush.msra.mxu0 0.0
  %371 = vmatpush.msra.mxu0 0.0
  %372 = vmatpush.msra.mxu0 0.0
  %373 = vmatpush.msra.mxu0 %v350
  %374 = vmatmul.f32.gmra.mxu0 %v353
  %v375 = vpop.f32.mrf.mxu0
  %v376 = vadd.f32 0.0, %v375
  %377 = vmatmul.f32.gmra.mxu0 %v356
  %v378 = vpop.f32.mrf.mxu0
  %v379 = vadd.f32 0.0, %v378
  %380 = vdwg.mxu0
  %v381 = vadd.f32 %v340, %v376
  %v382 = vadd.f32 %v341, %v379
  %v383 = vld [vmem:[%s4] sm:$0x1]
  %v385 = vperm.slane %v383, 0
  %v387 = vmul.f32 %v381, %v385
  %v388 = vmul.f32 %v382, %v385
  %389 = vadd.xlane.f32.xlu0 %v387
  %v390 = vpop.xlane.xlu0 %389
  %391 = vadd.xlane.f32.xlu0 %v388
  %v392 = vpop.xlane.xlu0 %391
  %v393 = vmul.f32 %v390, 0.125
  %v394 = vmul.f32 %v392, 0.125
  %v395 = vsub.f32 %v381, %v393
  %v396 = vsub.f32 %v382, %v394
  %v397 = vmul.f32 %v395, %v395
  %v398 = vmul.f32 %v396, %v396
  %v399 = vmul.f32 %v397, %v385
  %v400 = vmul.f32 %v398, %v385
  %401 = vadd.xlane.f32.xlu0 %v399
  %v402 = vpop.xlane.xlu0 %401
  %403 = vadd.xlane.f32.xlu0 %v400
  %v404 = vpop.xlane.xlu0 %403
  %v405 = vmul.f32 %v402, 0.125
  %v406 = vmul.f32 %v404, 0.125
  %v407 = vadd.f32 %v405, 1e-05
  %v408 = vadd.f32 %v406, 1e-05
  %v409 = vrsqrt.pop %v407
  %v410 = vmul.f32 %v409, %v407
  %v411 = vmul.f32 %v410, %v409
  %v412 = vmul.f32 0.5, %v411
  %v413 = vsub.f32 1.5, %v412
  %v414 = vmul.f32 %v409, %v413
  %vm415 = vweird.f32 %v407
  %vm416 = vweird.f32 %v409
  %vm417 = vmor %vm415, %vm416
  %v418 = vsel %vm417, %v409, %v414
  %v419 = vrsqrt.pop %v408
  %v420 = vmul.f32 %v419, %v408
  %v421 = vmul.f32 %v420, %v419
  %v422 = vmul.f32 0.5, %v421
  %v423 = vsub.f32 1.5, %v422
  %v424 = vmul.f32 %v419, %v423
  %vm425 = vweird.f32 %v408
  %vm426 = vweird.f32 %v419
  %vm427 = vmor %vm425, %vm426
  %v428 = vsel %vm427, %v419, %v424
  %v429 = vld [vmem:[%s2] sm:$0xff]
  %v430 = vld [vmem:[%s2 + $0x8] sm:$0xff]
  %v431 = vmul.f32 %v418, %v429
  %v432 = vmul.f32 %v428, %v430
  %434 = vset.pattern.permute.xlu0 0
  %435 = vperm.xlu0 %434, %v431
  %v436 = vpop.permute.xlu0 %435
  %439 = vset.pattern.permute.xlu0 0
  %440 = vperm.xlu0 %439, %v432
  %v441 = vpop.permute.xlu0 %440
  %v443 = vmul.f32 %v395, %v436
  %v444 = vmul.f32 %v396, %v441
  %v445 = vld [vmem:[%s3] sm:$0xff]
  %v446 = vld [vmem:[%s3 + $0x8] sm:$0xff]
  %448 = vset.pattern.permute.xlu0 0
  %449 = vperm.xlu0 %448, %v445
  %v450 = vpop.permute.xlu0 %449
  %453 = vset.pattern.permute.xlu0 0
  %454 = vperm.xlu0 %453, %v446
  %v455 = vpop.permute.xlu0 %454
  %v457 = vadd.f32 %v443, %v450
  %v458 = vadd.f32 %v444, %v455
  %v459 = vmax.f32 %v457, 0.0
  %v460 = vmax.f32 %v458, 0.0
  %461 = vst [vmem:[%s5] sm:$0xff] %v459
  %462 = vst [vmem:[%s5 + $0x8] sm:$0xff] %v460
  // Predicated region
  $region22: #{vae_forward.10} parent=0 // pred_check
    _
  $region23: #{vae_forward.10} parent=0 // pred_check_branch
    %464 = sbr.rel (0) target = $region25
  $region24: #{vae_forward.10} parent=0 // pred_region
    _
  $region25: #{vae_forward.10} parent=0 // pred_fallthru
    _
  // Predicated region
  $region26: #{vae_forward.10} parent=0 // pred_check
    _
  $region27: #{vae_forward.10} parent=0 // pred_check_branch
    %466 = sbr.rel (0) target = $region29
  $region28: #{vae_forward.10} parent=0 // pred_region
    _
  $region29: #{vae_forward.10} parent=0 // pred_fallthru
    _

// kernel: vae_forward.11
$region0: #{vae_forward.11}
  #allocation0 [shape = 'u32[]', space=smem, size = 0x4, offset = 0x4, fixed_abs, tag = 'smem constant byte address 0x4 - core index']
  #allocation1 [shape = 'u32[72,128]{1,0:T(1,128)}', space=vmem, size = 0x9000, scoped, tag = 'internal scratch']
  %s0 = inlined_call_operand.vmem [shape: f32[2,64], index: 0, kind: input, shape index: {}]
  %s1 = inlined_call_operand.vmem [shape: f32[64,16], index: 1, kind: input, shape index: {}]
  %s2 = inlined_call_operand.vmem [shape: f32[1,16], index: 2, kind: input, shape index: {}, may-alias: {2,4}]
  %s3 = inlined_call_operand.vmem [shape: f32[64,16], index: 3, kind: input, shape index: {}]
  %s4 = inlined_call_operand.vmem [shape: f32[1,16], index: 4, kind: input, shape index: {}, may-alias: {2,4}]
  %s5 = inlined_call_operand.vmem [shape: f32[2,16], index: 5, kind: input, shape index: {}]
  %s6 = inlined_call_operand.vmem [shape: f32[16,64], index: 6, kind: input, shape index: {}]
  %s7 = inlined_call_operand.vmem [shape: f32[1,64], index: 7, kind: input, shape index: {}]
  %s8 = inlined_call_operand.vmem [shape: f32[2,112], index: 8, kind: output, shape index: {}]
  %s9 = sld [smem:[#allocation0]]
  $region42: #{vae_forward.11} parent=0
    _
  %s11 = ssub.s32 1, %s9
  %s12 = scalar_select 0, %s11, %s9
  // Predicated region
  $region2: #{vae_forward.11} parent=0 // pred_check
    _
  $region3: #{vae_forward.11} parent=0 // pred_check_branch
    %14 = sbr.rel (0) target = $region5
  $region4: #{vae_forward.11} parent=0 // pred_region
    _
  $region5: #{vae_forward.11} parent=0 // pred_fallthru
    _
  // Predicated region
  $region6: #{vae_forward.11} parent=0 // pred_check
    _
  $region7: #{vae_forward.11} parent=0 // pred_check_branch
    %16 = sbr.rel (0) target = $region9
  $region8: #{vae_forward.11} parent=0 // pred_region
    _
  $region9: #{vae_forward.11} parent=0 // pred_fallthru
    _
  // Predicated region
  $region10: #{vae_forward.11} parent=0 // pred_check
    _
  $region11: #{vae_forward.11} parent=0 // pred_check_branch
    %18 = sbr.rel (0) target = $region13
  $region12: #{vae_forward.11} parent=0 // pred_region
    _
  $region13: #{vae_forward.11} parent=0 // pred_fallthru
    _
  // Predicated region
  $region14: #{vae_forward.11} parent=0 // pred_check
    _
  $region15: #{vae_forward.11} parent=0 // pred_check_branch
    %20 = sbr.rel (0) target = $region17
  $region16: #{vae_forward.11} parent=0 // pred_region
    _
  $region17: #{vae_forward.11} parent=0 // pred_fallthru
    _
  // Predicated region
  $region18: #{vae_forward.11} parent=0 // pred_check
    _
  $region19: #{vae_forward.11} parent=0 // pred_check_branch
    %22 = sbr.rel (0) target = $region21
  $region20: #{vae_forward.11} parent=0 // pred_region
    _
  $region21: #{vae_forward.11} parent=0 // pred_fallthru
    _
  // Predicated region
  $region22: #{vae_forward.11} parent=0 // pred_check
    _
  $region23: #{vae_forward.11} parent=0 // pred_check_branch
    %24 = sbr.rel (0) target = $region25
  $region24: #{vae_forward.11} parent=0 // pred_region
    _
  $region25: #{vae_forward.11} parent=0 // pred_fallthru
    _
  // Predicated region
  $region26: #{vae_forward.11} parent=0 // pred_check
    _
  $region27: #{vae_forward.11} parent=0 // pred_check_branch
    %26 = sbr.rel (0) target = $region29
  $region28: #{vae_forward.11} parent=0 // pred_region
    _
  $region29: #{vae_forward.11} parent=0 // pred_fallthru
    _
  // Predicated region
  $region30: #{vae_forward.11} parent=0 // pred_check
    _
  $region31: #{vae_forward.11} parent=0 // pred_check_branch
    %28 = sbr.rel (0) target = $region33
  $region32: #{vae_forward.11} parent=0 // pred_region
    _
  $region33: #{vae_forward.11} parent=0 // pred_fallthru
    _
  %v29 = vld [vmem:[%s0] sm:$0x3]
  %v30 = vld [vmem:[%s1] sm:$0xff]
  %v31 = vld [vmem:[%s1 + $0x8] sm:$0xff]
  %v32 = vld [vmem:[%s1 + $0x10] sm:$0xff]
  %v33 = vld [vmem:[%s1 + $0x18] sm:$0xff]
  %v34 = vld [vmem:[%s1 + $0x20] sm:$0xff]
  %v35 = vld [vmem:[%s1 + $0x28] sm:$0xff]
  %v36 = vld [vmem:[%s1 + $0x30] sm:$0xff]
  %v37 = vld [vmem:[%s1 + $0x38] sm:$0xff]
  %v38 = vld [vmem:[%s2] sm:$0x1]
  %v40 = vperm.slane %v38, 0
  %vm42 = vcmask 523264
  %v44 = vsel %vm42, %v29, 0
  %46 = vmatpush.msra.mxu0 0.0
  %47 = vmatpush.msra.mxu0 0.0
  %48 = vmatpush.msra.mxu0 0.0
  %49 = vmatpush.msra.mxu0 0.0
  %50 = vmatpush.msra.mxu0 0.0
  %51 = vmatpush.msra.mxu0 0.0
  %52 = vmatpush.msra.mxu0 0.0
  %53 = vmatpush.msra.mxu0 0.0
  %54 = vmatpush.msra.mxu0 %v37
  %55 = vmatpush.msra.mxu0 %v36
  %56 = vmatpush.msra.mxu0 %v35
  %57 = vmatpush.msra.mxu0 %v34
  %58 = vmatpush.msra.mxu0 %v33
  %59 = vmatpush.msra.mxu0 %v32
  %60 = vmatpush.msra.mxu0 %v31
  %61 = vmatpush.msra.mxu0 %v30
  %62 = vmatmul.f32.gmra.mxu0 %v44
  %v63 = vpop.f32.mrf.mxu0
  %v64 = vadd.f32 %v40, %v63
  %65 = vdwg.mxu0
  %v66 = vld [vmem:[%s3] sm:$0xff]
  %v67 = vld [vmem:[%s3 + $0x8] sm:$0xff]
  %v68 = vld [vmem:[%s3 + $0x10] sm:$0xff]
  %v69 = vld [vmem:[%s3 + $0x18] sm:$0xff]
  %v70 = vld [vmem:[%s3 + $0x20] sm:$0xff]
  %v71 = vld [vmem:[%s3 + $0x28] sm:$0xff]
  %v72 = vld [vmem:[%s3 + $0x30] sm:$0xff]
  %v73 = vld [vmem:[%s3 + $0x38] sm:$0xff]
  %v74 = vld [vmem:[%s4] sm:$0x1]
  %v76 = vperm.slane %v74, 0
  %78 = vmatpush.msra.mxu0 0.0
  %79 = vmatpush.msra.mxu0 0.0
  %80 = vmatpush.msra.mxu0 0.0
  %81 = vmatpush.msra.mxu0 0.0
  %82 = vmatpush.msra.mxu0 0.0
  %83 = vmatpush.msra.mxu0 0.0
  %84 = vmatpush.msra.mxu0 0.0
  %85 = vmatpush.msra.mxu0 0.0
  %86 = vmatpush.msra.mxu0 %v73
  %87 = vmatpush.msra.mxu0 %v72
  %88 = vmatpush.msra.mxu0 %v71
  %89 = vmatpush.msra.mxu0 %v70
  %90 = vmatpush.msra.mxu0 %v69
  %91 = vmatpush.msra.mxu0 %v68
  %92 = vmatpush.msra.mxu0 %v67
  %93 = vmatpush.msra.mxu0 %v66
  %94 = vmatmul.f32.gmra.mxu0 %v44
  %v95 = vpop.f32.mrf.mxu0
  %v96 = vadd.f32 %v76, %v95
  %97 = vdwg.mxu0
  %v98 = vld [vmem:[%s5] sm:$0x3]
  %v99 = vmul.f32 %v96, 0.5
  %v100 = vmul.f32 %v99, 1.442695
  %v101 = vpow.pop %v100
  %v102 = vmul.f32 %v98, %v101
  %v103 = vadd.f32 %v102, %v64
  %v104 = vld [vmem:[%s6] sm:$0xff]
  %v105 = vld [vmem:[%s6 + $0x8] sm:$0xff]
  %v106 = vld [vmem:[%s7] sm:$0x1]
  %v108 = vperm.slane %v106, 0
  %vm110 = vcmask 130048
  %v112 = vsel %vm110, %v103, 0
  %114 = vmatpush.msra.mxu0 0.0
  %115 = vmatpush.msra.mxu0 0.0
  %116 = vmatpush.msra.mxu0 0.0
  %117 = vmatpush.msra.mxu0 0.0
  %118 = vmatpush.msra.mxu0 0.0
  %119 = vmatpush.msra.mxu0 0.0
  %120 = vmatpush.msra.mxu0 0.0
  %121 = vmatpush.msra.mxu0 0.0
  %122 = vmatpush.msra.mxu0 0.0
  %123 = vmatpush.msra.mxu0 0.0
  %124 = vmatpush.msra.mxu0 0.0
  %125 = vmatpush.msra.mxu0 0.0
  %126 = vmatpush.msra.mxu0 0.0
  %127 = vmatpush.msra.mxu0 0.0
  %128 = vmatpush.msra.mxu0 %v105
  %129 = vmatpush.msra.mxu0 %v104
  %130 = vmatmul.f32.gmra.mxu0 %v112
  %v131 = vpop.f32.mrf.mxu0
  %v132 = vadd.f32 %v108, %v131
  %133 = vdwg.mxu0
  %135 = vrot.lane.b32.xlu0 %v96, 16
  %v136 = vpop.permute.xlu0 %135
  %138 = vrot.lane.b32.xlu0 %v103, 32
  %v139 = vpop.permute.xlu0 %138
  %142 = vrot.lane.b32.xlu0 %v132, 48
  %v143 = vpop.permute.xlu0 %142
  %v145 = vsel %vm110, %v64, %v136
  %vm146 = vcmask 261120
  %v147 = vsel %vm146, %v145, %v139
  %vm148 = vcmask 392192
  %v149 = vsel %vm148, %v147, %v143
  %vm150 = vcmask 910336
  %151 = vst.msk [vmem:[%s8] sm:$0x3] %vm150, %v149
  // Predicated region
  $region34: #{vae_forward.11} parent=0 // pred_check
    _
  $region35: #{vae_forward.11} parent=0 // pred_check_branch
    %153 = sbr.rel (0) target = $region37
  $region36: #{vae_forward.11} parent=0 // pred_region
    _
  $region37: #{vae_forward.11} parent=0 // pred_fallthru
    _
  // Predicated region
  $region38: #{vae_forward.11} parent=0 // pred_check
    _
  $region39: #{vae_forward.11} parent=0 // pred_check_branch
    %155 = sbr.rel (0) target = $region41
  $region40: #{vae_forward.11} parent=0 // pred_region
    _
  $region41: #{vae_forward.11} parent=0 // pred_fallthru
    _

// kernel: vae_forward.12
$region0: #{vae_forward.12}
  #allocation0 [shape = 'u32[]', space=smem, size = 0x4, offset = 0x4, fixed_abs, tag = 'smem constant byte address 0x4 - core index']
  #allocation1 [shape = 'u32[72,128]{1,0:T(1,128)}', space=vmem, size = 0x9000, scoped, tag = 'internal scratch']
  %s0 = inlined_call_operand.vmem [shape: f32[16,256], index: 0, kind: input, shape index: {}]
  %s1 = inlined_call_operand.vmem [shape: f32[9,8,16], index: 1, kind: input, shape index: {}]
  %s2 = inlined_call_operand.vmem [shape: f32[8,1], index: 2, kind: input, shape index: {}]
  %s3 = inlined_call_operand.vmem [shape: f32[8,1], index: 3, kind: input, shape index: {}]
  %s4 = inlined_call_operand.vmem [shape: f32[1,128], index: 4, kind: input, shape index: {}]
  %s5 = inlined_call_operand.vmem [shape: f32[32,128], index: 5, kind: output, shape index: {}]
  %s6 = sld [smem:[#allocation0]]
  $region30: #{vae_forward.12} parent=0
    _
  %s8 = ssub.s32 1, %s6
  %s9 = scalar_select 0, %s8, %s6
  // Predicated region
  $region2: #{vae_forward.12} parent=0 // pred_check
    _
  $region3: #{vae_forward.12} parent=0 // pred_check_branch
    %11 = sbr.rel (0) target = $region5
  $region4: #{vae_forward.12} parent=0 // pred_region
    _
  $region5: #{vae_forward.12} parent=0 // pred_fallthru
    _
  // Predicated region
  $region6: #{vae_forward.12} parent=0 // pred_check
    _
  $region7: #{vae_forward.12} parent=0 // pred_check_branch
    %13 = sbr.rel (0) target = $region9
  $region8: #{vae_forward.12} parent=0 // pred_region
    _
  $region9: #{vae_forward.12} parent=0 // pred_fallthru
    _
  // Predicated region
  $region10: #{vae_forward.12} parent=0 // pred_check
    _
  $region11: #{vae_forward.12} parent=0 // pred_check_branch
    %15 = sbr.rel (0) target = $region13
  $region12: #{vae_forward.12} parent=0 // pred_region
    _
  $region13: #{vae_forward.12} parent=0 // pred_fallthru
    _
  // Predicated region
  $region14: #{vae_forward.12} parent=0 // pred_check
    _
  $region15: #{vae_forward.12} parent=0 // pred_check_branch
    %17 = sbr.rel (0) target = $region17
  $region16: #{vae_forward.12} parent=0 // pred_region
    _
  $region17: #{vae_forward.12} parent=0 // pred_fallthru
    _
  // Predicated region
  $region18: #{vae_forward.12} parent=0 // pred_check
    _
  $region19: #{vae_forward.12} parent=0 // pred_check_branch
    %19 = sbr.rel (0) target = $region21
  $region20: #{vae_forward.12} parent=0 // pred_region
    _
  $region21: #{vae_forward.12} parent=0 // pred_fallthru
    _
  %v20 = vld [vmem:[%s1] sm:$0xff]
  %v21 = vld [vmem:[%s0] sm:$0xff]
  %v22 = vld [vmem:[%s0 + $0x10] sm:$0xff]
  %vm23 = vcmask 130048
  %v25 = vsel %vm23, %v20, 0
  %27 = vmatpush.msra.mxu0 0.0
  %28 = vmatpush.msra.mxu0 0.0
  %29 = vmatpush.msra.mxu0 0.0
  %30 = vmatpush.msra.mxu0 0.0
  %31 = vmatpush.msra.mxu0 0.0
  %32 = vmatpush.msra.mxu0 0.0
  %33 = vmatpush.msra.mxu0 0.0
  %34 = vmatpush.msra.mxu0 0.0
  %35 = vmatpush.msra.mxu0 0.0
  %36 = vmatpush.msra.mxu0 0.0
  %37 = vmatpush.msra.mxu0 0.0
  %38 = vmatpush.msra.mxu0 0.0
  %39 = vmatpush.msra.mxu0 0.0
  %40 = vmatpush.msra.mxu0 0.0
  %41 = vmatpush.msra.mxu0 %v22
  %42 = vmatpush.msra.mxu0 %v21
  %43 = vmatmul.f32.gmra.mxu0 %v25
  %v44 = vpop.f32.mrf.mxu0
  %v45 = vadd.f32 0.0, %v44
  %46 = vdwg.mxu0
  %s47 = scalar_lea.vmem %s1, 8
  %v48 = vld [vmem:[%s47] sm:$0xff]
  %v49 = vld [vmem:[%s0] sm:$0xff]
  %v50 = vld [vmem:[%s0 + $0x8] sm:$0xff]
  %v51 = vld [vmem:[%s0 + $0x10] sm:$0xff]
  %v52 = vld [vmem:[%s0 + $0x18] sm:$0xff]
  %s53 = scalar_lea.vmem %s1, 16
  %v54 = vld [vmem:[%s53] sm:$0xff]
  %v56 = vsel %vm23, %v54, 0
  %58 = vmatpush.msra.mxu0 0.0
  %59 = vmatpush.msra.mxu0 0.0
  %60 = vmatpush.msra.mxu0 0.0
  %61 = vmatpush.msra.mxu0 0.0
  %62 = vmatpush.msra.mxu0 0.0
  %63 = vmatpush.msra.mxu0 0.0
  %64 = vmatpush.msra.mxu0 0.0
  %65 = vmatpush.msra.mxu0 0.0
  %66 = vmatpush.msra.mxu0 0.0
  %67 = vmatpush.msra.mxu0 0.0
  %68 = vmatpush.msra.mxu0 0.0
  %69 = vmatpush.msra.mxu0 0.0
  %70 = vmatpush.msra.mxu0 0.0
  %71 = vmatpush.msra.mxu0 0.0
  %72 = vmatpush.msra.mxu0 %v22
  %73 = vmatpush.msra.mxu0 %v21
  %74 = vmatmul.f32.gmra.mxu0 %v56
  %v75 = vpop.f32.mrf.mxu0
  %v76 = vadd.f32 0.0, %v75
  %77 = vdwg.mxu0
  %82 = vrot.lane.b32.xlu0 %v49, 127
  %v83 = vpop.permute.xlu0 %82
  %84 = vrot.lane.b32.xlu0 %v50, 127
  %v85 = vpop.permute.xlu0 %84
  %86 = vrot.lane.b32.xlu0 %v51, 127
  %v87 = vpop.permute.xlu0 %86
  %88 = vrot.lane.b32.xlu0 %v52, 127
  %v89 = vpop.permute.xlu0 %88
  %vm90 = vcmask 1039360
  %v91 = vsel %vm90, %v83, %v85
  %v92 = vsel %vm90, %v87, %v89
  %v96 = vsel %vm23, %v48, 0
  %98 = vmatpush.msra.mxu0 0.0
  %99 = vmatpush.msra.mxu0 0.0
  %100 = vmatpush.msra.mxu0 0.0
  %101 = vmatpush.msra.mxu0 0.0
  %102 = vmatpush.msra.mxu0 0.0
  %103 = vmatpush.msra.mxu0 0.0
  %104 = vmatpush.msra.mxu0 0.0
  %105 = vmatpush.msra.mxu0 0.0
  %106 = vmatpush.msra.mxu0 0.0
  %107 = vmatpush.msra.mxu0 0.0
  %108 = vmatpush.msra.mxu0 0.0
  %109 = vmatpush.msra.mxu0 0.0
  %110 = vmatpush.msra.mxu0 0.0
  %111 = vmatpush.msra.mxu0 0.0
  %112 = vmatpush.msra.mxu0 %v92
  %113 = vmatpush.msra.mxu0 %v91
  %114 = vmatmul.f32.gmra.mxu0 %v96
  %v115 = vpop.f32.mrf.mxu0
  %v116 = vadd.f32 %v76, %v115
  %117 = vdwg.mxu0
  %s118 = scalar_lea.vmem %s1, 24
  %v119 = vld [vmem:[%s118] sm:$0xff]
  %s120 = scalar_lea.vmem %s1, 32
  %v121 = vld [vmem:[%s120] sm:$0xff]
  %v123 = vsel %vm23, %v121, 0
  %125 = vmatpush.msra.mxu0 0.0
  %126 = vmatpush.msra.mxu0 0.0
  %127 = vmatpush.msra.mxu0 0.0
  %128 = vmatpush.msra.mxu0 0.0
  %129 = vmatpush.msra.mxu0 0.0
  %130 = vmatpush.msra.mxu0 0.0
  %131 = vmatpush.msra.mxu0 0.0
  %132 = vmatpush.msra.mxu0 0.0
  %133 = vmatpush.msra.mxu0 0.0
  %134 = vmatpush.msra.mxu0 0.0
  %135 = vmatpush.msra.mxu0 0.0
  %136 = vmatpush.msra.mxu0 0.0
  %137 = vmatpush.msra.mxu0 0.0
  %138 = vmatpush.msra.mxu0 0.0
  %139 = vmatpush.msra.mxu0 %v22
  %140 = vmatpush.msra.mxu0 %v21
  %141 = vmatmul.f32.gmra.mxu0 %v123
  %v142 = vpop.f32.mrf.mxu0
  %v143 = vadd.f32 0.0, %v142
  %144 = vdwg.mxu0
  %145 = vrot.lane.b32.xlu0 %v49, 125
  %v146 = vpop.permute.xlu0 %145
  %147 = vrot.lane.b32.xlu0 %v50, 125
  %v148 = vpop.permute.xlu0 %147
  %149 = vrot.lane.b32.xlu0 %v51, 125
  %v150 = vpop.permute.xlu0 %149
  %151 = vrot.lane.b32.xlu0 %v52, 125
  %v152 = vpop.permute.xlu0 %151
  %vm153 = vcmask 1022976
  %v154 = vsel %vm153, %v146, %v148
  %v155 = vsel %vm153, %v150, %v152
  %v159 = vsel %vm23, %v119, 0
  %161 = vmatpush.msra.mxu0 0.0
  %162 = vmatpush.msra.mxu0 0.0
  %163 = vmatpush.msra.mxu0 0.0
  %164 = vmatpush.msra.mxu0 0.0
  %165 = vmatpush.msra.mxu0 0.0
  %166 = vmatpush.msra.mxu0 0.0
  %167 = vmatpush.msra.mxu0 0.0
  %168 = vmatpush.msra.mxu0 0.0
  %169 = vmatpush.msra.mxu0 0.0
  %170 = vmatpush.msra.mxu0 0.0
  %171 = vmatpush.msra.mxu0 0.0
  %172 = vmatpush.msra.mxu0 0.0
  %173 = vmatpush.msra.mxu0 0.0
  %174 = vmatpush.msra.mxu0 0.0
  %175 = vmatpush.msra.mxu0 %v155
  %176 = vmatpush.msra.mxu0 %v154
  %177 = vmatmul.f32.gmra.mxu0 %v159
  %v178 = vpop.f32.mrf.mxu0
  %v179 = vadd.f32 %v143, %v178
  %180 = vdwg.mxu0
  %s181 = scalar_lea.vmem %s1, 40
  %v182 = vld [vmem:[%s181] sm:$0xff]
  %s183 = scalar_lea.vmem %s1, 48
  %v184 = vld [vmem:[%s183] sm:$0xff]
  %v186 = vsel %vm23, %v184, 0
  %188 = vmatpush.msra.mxu0 0.0
  %189 = vmatpush.msra.mxu0 0.0
  %190 = vmatpush.msra.mxu0 0.0
  %191 = vmatpush.msra.mxu0 0.0
  %192 = vmatpush.msra.mxu0 0.0
  %193 = vmatpush.msra.mxu0 0.0
  %194 = vmatpush.msra.mxu0 0.0
  %195 = vmatpush.msra.mxu0 0.0
  %196 = vmatpush.msra.mxu0 0.0
  %197 = vmatpush.msra.mxu0 0.0
  %198 = vmatpush.msra.mxu0 0.0
  %199 = vmatpush.msra.mxu0 0.0
  %200 = vmatpush.msra.mxu0 0.0
  %201 = vmatpush.msra.mxu0 0.0
  %202 = vmatpush.msra.mxu0 %v155
  %203 = vmatpush.msra.mxu0 %v154
  %204 = vmatmul.f32.gmra.mxu0 %v186
  %v205 = vpop.f32.mrf.mxu0
  %v206 = vadd.f32 0.0, %v205
  %207 = vdwg.mxu0
  %208 = vrot.lane.b32.xlu0 %v49, 124
  %v209 = vpop.permute.xlu0 %208
  %210 = vrot.lane.b32.xlu0 %v50, 124
  %v211 = vpop.permute.xlu0 %210
  %212 = vrot.lane.b32.xlu0 %v51, 124
  %v213 = vpop.permute.xlu0 %212
  %214 = vrot.lane.b32.xlu0 %v52, 124
  %v215 = vpop.permute.xlu0 %214
  %vm216 = vcmask 1014784
  %v217 = vsel %vm216, %v209, %v211
  %v218 = vsel %vm216, %v213, %v215
  %v222 = vsel %vm23, %v182, 0
  %224 = vmatpush.msra.mxu0 0.0
  %225 = vmatpush.msra.mxu0 0.0
  %226 = vmatpush.msra.mxu0 0.0
  %227 = vmatpush.msra.mxu0 0.0
  %228 = vmatpush.msra.mxu0 0.0
  %229 = vmatpush.msra.mxu0 0.0
  %230 = vmatpush.msra.mxu0 0.0
  %231 = vmatpush.msra.mxu0 0.0
  %232 = vmatpush.msra.mxu0 0.0
  %233 = vmatpush.msra.mxu0 0.0
  %234 = vmatpush.msra.mxu0 0.0
  %235 = vmatpush.msra.mxu0 0.0
  %236 = vmatpush.msra.mxu0 0.0
  %237 = vmatpush.msra.mxu0 0.0
  %238 = vmatpush.msra.mxu0 %v218
  %239 = vmatpush.msra.mxu0 %v217
  %240 = vmatmul.f32.gmra.mxu0 %v222
  %v241 = vpop.f32.mrf.mxu0
  %v242 = vadd.f32 %v206, %v241
  %243 = vdwg.mxu0
  %s244 = scalar_lea.vmem %s1, 56
  %v245 = vld [vmem:[%s244] sm:$0xff]
  %v247 = vsel %vm23, %v245, 0
  %249 = vmatpush.msra.mxu0 0.0
  %250 = vmatpush.msra.mxu0 0.0
  %251 = vmatpush.msra.mxu0 0.0
  %252 = vmatpush.msra.mxu0 0.0
  %253 = vmatpush.msra.mxu0 0.0
  %254 = vmatpush.msra.mxu0 0.0
  %255 = vmatpush.msra.mxu0 0.0
  %256 = vmatpush.msra.mxu0 0.0
  %257 = vmatpush.msra.mxu0 0.0
  %258 = vmatpush.msra.mxu0 0.0
  %259 = vmatpush.msra.mxu0 0.0
  %260 = vmatpush.msra.mxu0 0.0
  %261 = vmatpush.msra.mxu0 0.0
  %262 = vmatpush.msra.mxu0 0.0
  %263 = vmatpush.msra.mxu0 %v92
  %264 = vmatpush.msra.mxu0 %v91
  %265 = vmatmul.f32.gmra.mxu0 %v247
  %v266 = vpop.f32.mrf.mxu0
  %v267 = vadd.f32 0.0, %v266
  %268 = vdwg.mxu0
  %v269 = vadd.f32 %v242, %v267
  %s270 = scalar_lea.vmem %s1, 64
  %v271 = vld [vmem:[%s270] sm:$0xff]
  %v273 = vsel %vm23, %v271, 0
  %275 = vmatpush.msra.mxu0 0.0
  %276 = vmatpush.msra.mxu0 0.0
  %277 = vmatpush.msra.mxu0 0.0
  %278 = vmatpush.msra.mxu0 0.0
  %279 = vmatpush.msra.mxu0 0.0
  %280 = vmatpush.msra.mxu0 0.0
  %281 = vmatpush.msra.mxu0 0.0
  %282 = vmatpush.msra.mxu0 0.0
  %283 = vmatpush.msra.mxu0 0.0
  %284 = vmatpush.msra.mxu0 0.0
  %285 = vmatpush.msra.mxu0 0.0
  %286 = vmatpush.msra.mxu0 0.0
  %287 = vmatpush.msra.mxu0 0.0
  %288 = vmatpush.msra.mxu0 0.0
  %289 = vmatpush.msra.mxu0 %v22
  %290 = vmatpush.msra.mxu0 %v21
  %291 = vmatmul.f32.gmra.mxu0 %v273
  %v292 = vpop.f32.mrf.mxu0
  %v293 = vadd.f32 0.0, %v292
  %294 = vdwg.mxu0
  %v295 = vadd.f32 %v269, %v293
  %v296 = vld [vmem:[%s4] sm:$0x1]
  %v298 = vperm.slane %v296, 0
  %v300 = vmul.f32 %v45, %v298
  %301 = vadd.xlane.f32.xlu0 %v300
  %v302 = vpop.xlane.xlu0 %301
  %v303 = vadd.f32 %v302, 0.0
  %v304 = vmul.f32 %v116, %v298
  %305 = vadd.xlane.f32.xlu0 %v304
  %v306 = vpop.xlane.xlu0 %305
  %v307 = vadd.f32 %v303, %v306
  %v308 = vmul.f32 %v179, %v298
  %309 = vadd.xlane.f32.xlu0 %v308
  %v310 = vpop.xlane.xlu0 %309
  %v311 = vadd.f32 %v307, %v310
  %v312 = vmul.f32 %v295, %v298
  %313 = vadd.xlane.f32.xlu0 %v312
  %v314 = vpop.xlane.xlu0 %313
  %v315 = vadd.f32 %v311, %v314
  %v316 = vmul.f32 %v315, 0.03125
  %v317 = vsub.f32 %v45, %v316
  %v318 = vmul.f32 %v317, %v317
  %v319 = vmul.f32 %v318, %v298
  %320 = vadd.xlane.f32.xlu0 %v319
  %v321 = vpop.xlane.xlu0 %320
  %v322 = vadd.f32 %v321, 0.0
  %v323 = vsub.f32 %v116, %v316
  %v324 = vmul.f32 %v323, %v323
  %v325 = vmul.f32 %v324, %v298
  %326 = vadd.xlane.f32.xlu0 %v325
  %v327 = vpop.xlane.xlu0 %326
  %v328 = vadd.f32 %v322, %v327
  %v329 = vsub.f32 %v179, %v316
  %v330 = vmul.f32 %v329, %v329
  %v331 = vmul.f32 %v330, %v298
  %332 = vadd.xlane.f32.xlu0 %v331
  %v333 = vpop.xlane.xlu0 %332
  %v334 = vadd.f32 %v328, %v333
  %v335 = vsub.f32 %v295, %v316
  %v336 = vmul.f32 %v335, %v335
  %v337 = vmul.f32 %v336, %v298
  %338 = vadd.xlane.f32.xlu0 %v337
  %v339 = vpop.xlane.xlu0 %338
  %v340 = vadd.f32 %v334, %v339
  %v341 = vmul.f32 %v340, 0.03125
  %v342 = vadd.f32 %v341, 1e-05
  %v343 = vrsqrt.pop %v342
  %v344 = vmul.f32 %v343, %v342
  %v345 = vmul.f32 %v344, %v343
  %v346 = vmul.f32 0.5, %v345
  %v347 = vsub.f32 1.5, %v346
  %v348 = vmul.f32 %v343, %v347
  %vm349 = vweird.f32 %v342
  %vm350 = vweird.f32 %v343
  %vm351 = vmor %vm349, %vm350
  %v352 = vsel %vm351, %v343, %v348
  %v353 = vld [vmem:[%s2] sm:$0xff]
  %v354 = vmul.f32 %v352, %v353
  %v355 = vld [vmem:[%s3] sm:$0xff]
  %v356 = vmul.f32 %v316, %v354
  %v357 = vsub.f32 %v355, %v356
  %359 = vset.pattern.permute.xlu0 0
  %360 = vperm.xlu0 %359, %v354
  %v361 = vpop.permute.xlu0 %360
  %v363 = vmul.f32 %v45, %v361
  %365 = vset.pattern.permute.xlu0 0
  %366 = vperm.xlu0 %365, %v357
  %v367 = vpop.permute.xlu0 %366
  %v369 = vadd.f32 %v363, %v367
  %v370 = vmax.f32 %v369, 0.0
  %371 = vst [vmem:[%s5] sm:$0xff] %v370
  %v372 = vmul.f32 %v116, %v361
  %v373 = vadd.f32 %v372, %v367
  %v374 = vmax.f32 %v373, 0.0
  %375 = vst [vmem:[%s5 + $0x8] sm:$0xff] %v374
  %v376 = vmul.f32 %v179, %v361
  %v377 = vadd.f32 %v376, %v367
  %v378 = vmax.f32 %v377, 0.0
  %379 = vst [vmem:[%s5 + $0x10] sm:$0xff] %v378
  %v380 = vmul.f32 %v295, %v361
  %v381 = vadd.f32 %v380, %v367
  %v382 = vmax.f32 %v381, 0.0
  %383 = vst [vmem:[%s5 + $0x18] sm:$0xff] %v382
  // Predicated region
  $region22: #{vae_forward.12} parent=0 // pred_check
    _
  $region23: #{vae_forward.12} parent=0 // pred_check_branch
    %385 = sbr.rel (0) target = $region25
  $region24: #{vae_forward.12} parent=0 // pred_region
    _
  $region25: #{vae_forward.12} parent=0 // pred_fallthru
    _
  // Predicated region
  $region26: #{vae_forward.12} parent=0 // pred_check
    _
  $region27: #{vae_forward.12} parent=0 // pred_check_branch
    %387 = sbr.rel (0) target = $region29
  $region28: #{vae_forward.12} parent=0 // pred_region
    _
  $region29: #{vae_forward.12} parent=0 // pred_fallthru
    _

// kernel: vae_forward.13
$region0: #{vae_forward.13}
  #allocation0 [shape = 'u32[]', space=smem, size = 0x4, offset = 0x4, fixed_abs, tag = 'smem constant byte address 0x4 - core index']
  #allocation1 [shape = 'u32[72,128]{1,0:T(1,128)}', space=vmem, size = 0x9000, scoped, tag = 'internal scratch']
  %s0 = inlined_call_operand.vmem [shape: f32[8,256], index: 0, kind: input, shape index: {}]
  %s1 = inlined_call_operand.vmem [shape: f32[9,8,8], index: 1, kind: input, shape index: {}]
  %s2 = inlined_call_operand.vmem [shape: f32[8,1], index: 2, kind: input, shape index: {}]
  %s3 = inlined_call_operand.vmem [shape: f32[8,1], index: 3, kind: input, shape index: {}]
  %s4 = inlined_call_operand.vmem [shape: f32[1,128], index: 4, kind: input, shape index: {}]
  %s5 = inlined_call_operand.vmem [shape: f32[32,128], index: 5, kind: output, shape index: {}]
  %s6 = sld [smem:[#allocation0]]
  $region30: #{vae_forward.13} parent=0
    _
  %s8 = ssub.s32 1, %s6
  %s9 = scalar_select 0, %s8, %s6
  // Predicated region
  $region2: #{vae_forward.13} parent=0 // pred_check
    _
  $region3: #{vae_forward.13} parent=0 // pred_check_branch
    %11 = sbr.rel (0) target = $region5
  $region4: #{vae_forward.13} parent=0 // pred_region
    _
  $region5: #{vae_forward.13} parent=0 // pred_fallthru
    _
  // Predicated region
  $region6: #{vae_forward.13} parent=0 // pred_check
    _
  $region7: #{vae_forward.13} parent=0 // pred_check_branch
    %13 = sbr.rel (0) target = $region9
  $region8: #{vae_forward.13} parent=0 // pred_region
    _
  $region9: #{vae_forward.13} parent=0 // pred_fallthru
    _
  // Predicated region
  $region10: #{vae_forward.13} parent=0 // pred_check
    _
  $region11: #{vae_forward.13} parent=0 // pred_check_branch
    %15 = sbr.rel (0) target = $region13
  $region12: #{vae_forward.13} parent=0 // pred_region
    _
  $region13: #{vae_forward.13} parent=0 // pred_fallthru
    _
  // Predicated region
  $region14: #{vae_forward.13} parent=0 // pred_check
    _
  $region15: #{vae_forward.13} parent=0 // pred_check_branch
    %17 = sbr.rel (0) target = $region17
  $region16: #{vae_forward.13} parent=0 // pred_region
    _
  $region17: #{vae_forward.13} parent=0 // pred_fallthru
    _
  // Predicated region
  $region18: #{vae_forward.13} parent=0 // pred_check
    _
  $region19: #{vae_forward.13} parent=0 // pred_check_branch
    %19 = sbr.rel (0) target = $region21
  $region20: #{vae_forward.13} parent=0 // pred_region
    _
  $region21: #{vae_forward.13} parent=0 // pred_fallthru
    _
  %v20 = vld [vmem:[%s1] sm:$0xff]
  %v21 = vld [vmem:[%s0] sm:$0xff]
  %vm22 = vcmask 64512
  %v24 = vsel %vm22, %v20, 0
  %26 = vmatpush.msra.mxu0 0.0
  %27 = vmatpush.msra.mxu0 0.0
  %28 = vmatpush.msra.mxu0 0.0
  %29 = vmatpush.msra.mxu0 0.0
  %30 = vmatpush.msra.mxu0 0.0
  %31 = vmatpush.msra.mxu0 0.0
  %32 = vmatpush.msra.mxu0 0.0
  %33 = vmatpush.msra.mxu0 0.0
  %34 = vmatpush.msra.mxu0 0.0
  %35 = vmatpush.msra.mxu0 0.0
  %36 = vmatpush.msra.mxu0 0.0
  %37 = vmatpush.msra.mxu0 0.0
  %38 = vmatpush.msra.mxu0 0.0
  %39 = vmatpush.msra.mxu0 0.0
  %40 = vmatpush.msra.mxu0 0.0
  %41 = vmatpush.msra.mxu0 %v21
  %42 = vmatmul.f32.gmra.mxu0 %v24
  %v43 = vpop.f32.mrf.mxu0
  %v44 = vadd.f32 0.0, %v43
  %45 = vdwg.mxu0
  %s46 = scalar_lea.vmem %s1, 8
  %v47 = vld [vmem:[%s46] sm:$0xff]
  %v48 = vld [vmem:[%s0] sm:$0xff]
  %v49 = vld [vmem:[%s0 + $0x8] sm:$0xff]
  %s50 = scalar_lea.vmem %s1, 16
  %v51 = vld [vmem:[%s50] sm:$0xff]
  %v53 = vsel %vm22, %v51, 0
  %55 = vmatpush.msra.mxu0 0.0
  %56 = vmatpush.msra.mxu0 0.0
  %57 = vmatpush.msra.mxu0 0.0
  %58 = vmatpush.msra.mxu0 0.0
  %59 = vmatpush.msra.mxu0 0.0
  %60 = vmatpush.msra.mxu0 0.0
  %61 = vmatpush.msra.mxu0 0.0
  %62 = vmatpush.msra.mxu0 0.0
  %63 = vmatpush.msra.mxu0 0.0
  %64 = vmatpush.msra.mxu0 0.0
  %65 = vmatpush.msra.mxu0 0.0
  %66 = vmatpush.msra.mxu0 0.0
  %67 = vmatpush.msra.mxu0 0.0
  %68 = vmatpush.msra.mxu0 0.0
  %69 = vmatpush.msra.mxu0 0.0
  %70 = vmatpush.msra.mxu0 %v21
  %71 = vmatmul.f32.gmra.mxu0 %v53
  %v72 = vpop.f32.mrf.mxu0
  %v73 = vadd.f32 0.0, %v72
  %74 = vdwg.mxu0
  %77 = vrot.lane.b32.xlu0 %v48, 127
  %v78 = vpop.permute.xlu0 %77
  %79 = vrot.lane.b32.xlu0 %v49, 127
  %v80 = vpop.permute.xlu0 %79
  %vm81 = vcmask 1039360
  %v82 = vsel %vm81, %v78, %v80
  %v85 = vsel %vm22, %v47, 0
  %87 = vmatpush.msra.mxu0 0.0
  %88 = vmatpush.msra.mxu0 0.0
  %89 = vmatpush.msra.mxu0 0.0
  %90 = vmatpush.msra.mxu0 0.0
  %91 = vmatpush.msra.mxu0 0.0
  %92 = vmatpush.msra.mxu0 0.0
  %93 = vmatpush.msra.mxu0 0.0
  %94 = vmatpush.msra.mxu0 0.0
  %95 = vmatpush.msra.mxu0 0.0
  %96 = vmatpush.msra.mxu0 0.0
  %97 = vmatpush.msra.mxu0 0.0
  %98 = vmatpush.msra.mxu0 0.0
  %99 = vmatpush.msra.mxu0 0.0
  %100 = vmatpush.msra.mxu0 0.0
  %101 = vmatpush.msra.mxu0 0.0
  %102 = vmatpush.msra.mxu0 %v82
  %103 = vmatmul.f32.gmra.mxu0 %v85
  %v104 = vpop.f32.mrf.mxu0
  %v105 = vadd.f32 %v73, %v104
  %106 = vdwg.mxu0
  %s107 = scalar_lea.vmem %s1, 24
  %v108 = vld [vmem:[%s107] sm:$0xff]
  %s109 = scalar_lea.vmem %s1, 32
  %v110 = vld [vmem:[%s109] sm:$0xff]
  %v112 = vsel %vm22, %v110, 0
  %114 = vmatpush.msra.mxu0 0.0
  %115 = vmatpush.msra.mxu0 0.0
  %116 = vmatpush.msra.mxu0 0.0
  %117 = vmatpush.msra.mxu0 0.0
  %118 = vmatpush.msra.mxu0 0.0
  %119 = vmatpush.msra.mxu0 0.0
  %120 = vmatpush.msra.mxu0 0.0
  %121 = vmatpush.msra.mxu0 0.0
  %122 = vmatpush.msra.mxu0 0.0
  %123 = vmatpush.msra.mxu0 0.0
  %124 = vmatpush.msra.mxu0 0.0
  %125 = vmatpush.msra.mxu0 0.0
  %126 = vmatpush.msra.mxu0 0.0
  %127 = vmatpush.msra.mxu0 0.0
  %128 = vmatpush.msra.mxu0 0.0
  %129 = vmatpush.msra.mxu0 %v21
  %130 = vmatmul.f32.gmra.mxu0 %v112
  %v131 = vpop.f32.mrf.mxu0
  %v132 = vadd.f32 0.0, %v131
  %133 = vdwg.mxu0
  %134 = vrot.lane.b32.xlu0 %v48, 123
  %v135 = vpop.permute.xlu0 %134
  %136 = vrot.lane.b32.xlu0 %v49, 123
  %v137 = vpop.permute.xlu0 %136
  %vm138 = vcmask 1006592
  %v139 = vsel %vm138, %v135, %v137
  %v142 = vsel %vm22, %v108, 0
  %144 = vmatpush.msra.mxu0 0.0
  %145 = vmatpush.msra.mxu0 0.0
  %146 = vmatpush.msra.mxu0 0.0
  %147 = vmatpush.msra.mxu0 0.0
  %148 = vmatpush.msra.mxu0 0.0
  %149 = vmatpush.msra.mxu0 0.0
  %150 = vmatpush.msra.mxu0 0.0
  %151 = vmatpush.msra.mxu0 0.0
  %152 = vmatpush.msra.mxu0 0.0
  %153 = vmatpush.msra.mxu0 0.0
  %154 = vmatpush.msra.mxu0 0.0
  %155 = vmatpush.msra.mxu0 0.0
  %156 = vmatpush.msra.mxu0 0.0
  %157 = vmatpush.msra.mxu0 0.0
  %158 = vmatpush.msra.mxu0 0.0
  %159 = vmatpush.msra.mxu0 %v139
  %160 = vmatmul.f32.gmra.mxu0 %v142
  %v161 = vpop.f32.mrf.mxu0
  %v162 = vadd.f32 %v132, %v161
  %163 = vdwg.mxu0
  %s164 = scalar_lea.vmem %s1, 40
  %v165 = vld [vmem:[%s164] sm:$0xff]
  %s166 = scalar_lea.vmem %s1, 48
  %v167 = vld [vmem:[%s166] sm:$0xff]
  %v169 = vsel %vm22, %v167, 0
  %171 = vmatpush.msra.mxu0 0.0
  %172 = vmatpush.msra.mxu0 0.0
  %173 = vmatpush.msra.mxu0 0.0
  %174 = vmatpush.msra.mxu0 0.0
  %175 = vmatpush.msra.mxu0 0.0
  %176 = vmatpush.msra.mxu0 0.0
  %177 = vmatpush.msra.mxu0 0.0
  %178 = vmatpush.msra.mxu0 0.0
  %179 = vmatpush.msra.mxu0 0.0
  %180 = vmatpush.msra.mxu0 0.0
  %181 = vmatpush.msra.mxu0 0.0
  %182 = vmatpush.msra.mxu0 0.0
  %183 = vmatpush.msra.mxu0 0.0
  %184 = vmatpush.msra.mxu0 0.0
  %185 = vmatpush.msra.mxu0 0.0
  %186 = vmatpush.msra.mxu0 %v139
  %187 = vmatmul.f32.gmra.mxu0 %v169
  %v188 = vpop.f32.mrf.mxu0
  %v189 = vadd.f32 0.0, %v188
  %190 = vdwg.mxu0
  %191 = vrot.lane.b32.xlu0 %v48, 122
  %v192 = vpop.permute.xlu0 %191
  %193 = vrot.lane.b32.xlu0 %v49, 122
  %v194 = vpop.permute.xlu0 %193
  %vm195 = vcmask 998400
  %v196 = vsel %vm195, %v192, %v194
  %v199 = vsel %vm22, %v165, 0
  %201 = vmatpush.msra.mxu0 0.0
  %202 = vmatpush.msra.mxu0 0.0
  %203 = vmatpush.msra.mxu0 0.0
  %204 = vmatpush.msra.mxu0 0.0
  %205 = vmatpush.msra.mxu0 0.0
  %206 = vmatpush.msra.mxu0 0.0
  %207 = vmatpush.msra.mxu0 0.0
  %208 = vmatpush.msra.mxu0 0.0
  %209 = vmatpush.msra.mxu0 0.0
  %210 = vmatpush.msra.mxu0 0.0
  %211 = vmatpush.msra.mxu0 0.0
  %212 = vmatpush.msra.mxu0 0.0
  %213 = vmatpush.msra.mxu0 0.0
  %214 = vmatpush.msra.mxu0 0.0
  %215 = vmatpush.msra.mxu0 0.0
  %216 = vmatpush.msra.mxu0 %v196
  %217 = vmatmul.f32.gmra.mxu0 %v199
  %v218 = vpop.f32.mrf.mxu0
  %v219 = vadd.f32 %v189, %v218
  %220 = vdwg.mxu0
  %s221 = scalar_lea.vmem %s1, 56
  %v222 = vld [vmem:[%s221] sm:$0xff]
  %v224 = vsel %vm22, %v222, 0
  %226 = vmatpush.msra.mxu0 0.0
  %227 = vmatpush.msra.mxu0 0.0
  %228 = vmatpush.msra.mxu0 0.0
  %229 = vmatpush.msra.mxu0 0.0
  %230 = vmatpush.msra.mxu0 0.0
  %231 = vmatpush.msra.mxu0 0.0
  %232 = vmatpush.msra.mxu0 0.0
  %233 = vmatpush.msra.mxu0 0.0
  %234 = vmatpush.msra.mxu0 0.0
  %235 = vmatpush.msra.mxu0 0.0
  %236 = vmatpush.msra.mxu0 0.0
  %237 = vmatpush.msra.mxu0 0.0
  %238 = vmatpush.msra.mxu0 0.0
  %239 = vmatpush.msra.mxu0 0.0
  %240 = vmatpush.msra.mxu0 0.0
  %241 = vmatpush.msra.mxu0 %v82
  %242 = vmatmul.f32.gmra.mxu0 %v224
  %v243 = vpop.f32.mrf.mxu0
  %v244 = vadd.f32 0.0, %v243
  %245 = vdwg.mxu0
  %v246 = vadd.f32 %v219, %v244
  %s247 = scalar_lea.vmem %s1, 64
  %v248 = vld [vmem:[%s247] sm:$0xff]
  %v250 = vsel %vm22, %v248, 0
  %252 = vmatpush.msra.mxu0 0.0
  %253 = vmatpush.msra.mxu0 0.0
  %254 = vmatpush.msra.mxu0 0.0
  %255 = vmatpush.msra.mxu0 0.0
  %256 = vmatpush.msra.mxu0 0.0
  %257 = vmatpush.msra.mxu0 0.0
  %258 = vmatpush.msra.mxu0 0.0
  %259 = vmatpush.msra.mxu0 0.0
  %260 = vmatpush.msra.mxu0 0.0
  %261 = vmatpush.msra.mxu0 0.0
  %262 = vmatpush.msra.mxu0 0.0
  %263 = vmatpush.msra.mxu0 0.0
  %264 = vmatpush.msra.mxu0 0.0
  %265 = vmatpush.msra.mxu0 0.0
  %266 = vmatpush.msra.mxu0 0.0
  %267 = vmatpush.msra.mxu0 %v21
  %268 = vmatmul.f32.gmra.mxu0 %v250
  %v269 = vpop.f32.mrf.mxu0
  %v270 = vadd.f32 0.0, %v269
  %271 = vdwg.mxu0
  %v272 = vadd.f32 %v246, %v270
  %v273 = vld [vmem:[%s4] sm:$0x1]
  %v275 = vperm.slane %v273, 0
  %v277 = vmul.f32 %v44, %v275
  %278 = vadd.xlane.f32.xlu0 %v277
  %v279 = vpop.xlane.xlu0 %278
  %v280 = vadd.f32 %v279, 0.0
  %v281 = vmul.f32 %v105, %v275
  %282 = vadd.xlane.f32.xlu0 %v281
  %v283 = vpop.xlane.xlu0 %282
  %v284 = vadd.f32 %v280, %v283
  %v285 = vmul.f32 %v162, %v275
  %286 = vadd.xlane.f32.xlu0 %v285
  %v287 = vpop.xlane.xlu0 %286
  %v288 = vadd.f32 %v284, %v287
  %v289 = vmul.f32 %v272, %v275
  %290 = vadd.xlane.f32.xlu0 %v289
  %v291 = vpop.xlane.xlu0 %290
  %v292 = vadd.f32 %v288, %v291
  %v293 = vmul.f32 %v292, 0.0078125
  %v294 = vsub.f32 %v44, %v293
  %v295 = vmul.f32 %v294, %v294
  %v296 = vmul.f32 %v295, %v275
  %297 = vadd.xlane.f32.xlu0 %v296
  %v298 = vpop.xlane.xlu0 %297
  %v299 = vadd.f32 %v298, 0.0
  %v300 = vsub.f32 %v105, %v293
  %v301 = vmul.f32 %v300, %v300
  %v302 = vmul.f32 %v301, %v275
  %303 = vadd.xlane.f32.xlu0 %v302
  %v304 = vpop.xlane.xlu0 %303
  %v305 = vadd.f32 %v299, %v304
  %v306 = vsub.f32 %v162, %v293
  %v307 = vmul.f32 %v306, %v306
  %v308 = vmul.f32 %v307, %v275
  %309 = vadd.xlane.f32.xlu0 %v308
  %v310 = vpop.xlane.xlu0 %309
  %v311 = vadd.f32 %v305, %v310
  %v312 = vsub.f32 %v272, %v293
  %v313 = vmul.f32 %v312, %v312
  %v314 = vmul.f32 %v313, %v275
  %315 = vadd.xlane.f32.xlu0 %v314
  %v316 = vpop.xlane.xlu0 %315
  %v317 = vadd.f32 %v311, %v316
  %v318 = vmul.f32 %v317, 0.0078125
  %v319 = vadd.f32 %v318, 1e-05
  %v320 = vrsqrt.pop %v319
  %v321 = vmul.f32 %v320, %v319
  %v322 = vmul.f32 %v321, %v320
  %v323 = vmul.f32 0.5, %v322
  %v324 = vsub.f32 1.5, %v323
  %v325 = vmul.f32 %v320, %v324
  %vm326 = vweird.f32 %v319
  %vm327 = vweird.f32 %v320
  %vm328 = vmor %vm326, %vm327
  %v329 = vsel %vm328, %v320, %v325
  %v330 = vld [vmem:[%s2] sm:$0xff]
  %v331 = vmul.f32 %v329, %v330
  %v332 = vld [vmem:[%s3] sm:$0xff]
  %v333 = vmul.f32 %v293, %v331
  %v334 = vsub.f32 %v332, %v333
  %336 = vset.pattern.permute.xlu0 0
  %337 = vperm.xlu0 %336, %v331
  %v338 = vpop.permute.xlu0 %337
  %v340 = vmul.f32 %v44, %v338
  %342 = vset.pattern.permute.xlu0 0
  %343 = vperm.xlu0 %342, %v334
  %v344 = vpop.permute.xlu0 %343
  %v346 = vadd.f32 %v340, %v344
  %v347 = vmax.f32 %v346, 0.0
  %348 = vst [vmem:[%s5] sm:$0xff] %v347
  %v349 = vmul.f32 %v105, %v338
  %v350 = vadd.f32 %v349, %v344
  %v351 = vmax.f32 %v350, 0.0
  %352 = vst [vmem:[%s5 + $0x8] sm:$0xff] %v351
  %v353 = vmul.f32 %v162, %v338
  %v354 = vadd.f32 %v353, %v344
  %v355 = vmax.f32 %v354, 0.0
  %356 = vst [vmem:[%s5 + $0x10] sm:$0xff] %v355
  %v357 = vmul.f32 %v272, %v338
  %v358 = vadd.f32 %v357, %v344
  %v359 = vmax.f32 %v358, 0.0
  %360 = vst [vmem:[%s5 + $0x18] sm:$0xff] %v359
  // Predicated region
  $region22: #{vae_forward.13} parent=0 // pred_check
    _
  $region23: #{vae_forward.13} parent=0 // pred_check_branch
    %362 = sbr.rel (0) target = $region25
  $region24: #{vae_forward.13} parent=0 // pred_region
    _
  $region25: #{vae_forward.13} parent=0 // pred_fallthru
    _
  // Predicated region
  $region26: #{vae_forward.13} parent=0 // pred_check
    _
  $region27: #{vae_forward.13} parent=0 // pred_check_branch
    %364 = sbr.rel (0) target = $region29
  $region28: #{vae_forward.13} parent=0 // pred_region
    _
  $region29: #{vae_forward.13} parent=0 // pred_fallthru
    _

// kernel: vae_forward.14
$region0: #{vae_forward.14}
  #allocation0 [shape = 'u32[]', space=smem, size = 0x4, offset = 0x4, fixed_abs, tag = 'smem constant byte address 0x4 - core index']
  #allocation1 [shape = 'u32[72,128]{1,0:T(1,128)}', space=vmem, size = 0x9000, scoped, tag = 'internal scratch']
  %s0 = inlined_call_operand.vmem [shape: f32[8,384], index: 0, kind: input, shape index: {}]
  %s1 = inlined_call_operand.vmem [shape: f32[9,8,8], index: 1, kind: input, shape index: {}]
  %s2 = inlined_call_operand.vmem [shape: f32[8,1], index: 2, kind: input, shape index: {}]
  %s3 = inlined_call_operand.vmem [shape: f32[8,1], index: 3, kind: input, shape index: {}]
  %s4 = inlined_call_operand.vmem [shape: f32[1,256], index: 4, kind: input, shape index: {}]
  %s5 = inlined_call_operand.vmem [shape: f32[32,256], index: 5, kind: output, shape index: {}]
  %s6 = sld [smem:[#allocation0]]
  $region30: #{vae_forward.14} parent=0
    _
  %s8 = ssub.s32 1, %s6
  %s9 = scalar_select 0, %s8, %s6
  // Predicated region
  $region2: #{vae_forward.14} parent=0 // pred_check
    _
  $region3: #{vae_forward.14} parent=0 // pred_check_branch
    %11 = sbr.rel (0) target = $region5
  $region4: #{vae_forward.14} parent=0 // pred_region
    _
  $region5: #{vae_forward.14} parent=0 // pred_fallthru
    _
  // Predicated region
  $region6: #{vae_forward.14} parent=0 // pred_check
    _
  $region7: #{vae_forward.14} parent=0 // pred_check_branch
    %13 = sbr.rel (0) target = $region9
  $region8: #{vae_forward.14} parent=0 // pred_region
    _
  $region9: #{vae_forward.14} parent=0 // pred_fallthru
    _
  // Predicated region
  $region10: #{vae_forward.14} parent=0 // pred_check
    _
  $region11: #{vae_forward.14} parent=0 // pred_check_branch
    %15 = sbr.rel (0) target = $region13
  $region12: #{vae_forward.14} parent=0 // pred_region
    _
  $region13: #{vae_forward.14} parent=0 // pred_fallthru
    _
  // Predicated region
  $region14: #{vae_forward.14} parent=0 // pred_check
    _
  $region15: #{vae_forward.14} parent=0 // pred_check_branch
    %17 = sbr.rel (0) target = $region17
  $region16: #{vae_forward.14} parent=0 // pred_region
    _
  $region17: #{vae_forward.14} parent=0 // pred_fallthru
    _
  // Predicated region
  $region18: #{vae_forward.14} parent=0 // pred_check
    _
  $region19: #{vae_forward.14} parent=0 // pred_check_branch
    %19 = sbr.rel (0) target = $region21
  $region20: #{vae_forward.14} parent=0 // pred_region
    _
  $region21: #{vae_forward.14} parent=0 // pred_fallthru
    _
  %v20 = vld [vmem:[%s1] sm:$0xff]
  %v21 = vld [vmem:[%s0] sm:$0xff]
  %v22 = vld [vmem:[%s0 + $0x8] sm:$0xff]
  %vm23 = vcmask 64512
  %v25 = vsel %vm23, %v20, 0
  %27 = vmatpush.msra.mxu0 0.0
  %28 = vmatpush.msra.mxu0 0.0
  %29 = vmatpush.msra.mxu0 0.0
  %30 = vmatpush.msra.mxu0 0.0
  %31 = vmatpush.msra.mxu0 0.0
  %32 = vmatpush.msra.mxu0 0.0
  %33 = vmatpush.msra.mxu0 0.0
  %34 = vmatpush.msra.mxu0 0.0
  %35 = vmatpush.msra.mxu0 0.0
  %36 = vmatpush.msra.mxu0 0.0
  %37 = vmatpush.msra.mxu0 0.0
  %38 = vmatpush.msra.mxu0 0.0
  %39 = vmatpush.msra.mxu0 0.0
  %40 = vmatpush.msra.mxu0 0.0
  %41 = vmatpush.msra.mxu0 0.0
  %42 = vmatpush.msra.mxu0 %v21
  %43 = vmatmul.f32.gmra.mxu0 %v25
  %v44 = vpop.f32.mrf.mxu0
  %v45 = vadd.f32 0.0, %v44
  %46 = vdwg.mxu0
  %47 = vmatpush.msra.mxu0 0.0
  %48 = vmatpush.msra.mxu0 0.0
  %49 = vmatpush.msra.mxu0 0.0
  %50 = vmatpush.msra.mxu0 0.0
  %51 = vmatpush.msra.mxu0 0.0
  %52 = vmatpush.msra.mxu0 0.0
  %53 = vmatpush.msra.mxu0 0.0
  %54 = vmatpush.msra.mxu0 0.0
  %55 = vmatpush.msra.mxu0 0.0
  %56 = vmatpush.msra.mxu0 0.0
  %57 = vmatpush.msra.mxu0 0.0
  %58 = vmatpush.msra.mxu0 0.0
  %59 = vmatpush.msra.mxu0 0.0
  %60 = vmatpush.msra.mxu0 0.0
  %61 = vmatpush.msra.mxu0 0.0
  %62 = vmatpush.msra.mxu0 %v22
  %63 = vmatmul.f32.gmra.mxu0 %v25
  %v64 = vpop.f32.mrf.mxu0
  %v65 = vadd.f32 0.0, %v64
  %66 = vdwg.mxu0
  %s67 = scalar_lea.vmem %s1, 8
  %v68 = vld [vmem:[%s67] sm:$0xff]
  %v69 = vld [vmem:[%s0] sm:$0xff]
  %v70 = vld [vmem:[%s0 + $0x8] sm:$0xff]
  %v71 = vld [vmem:[%s0 + $0x10] sm:$0xff]
  %s72 = scalar_lea.vmem %s1, 16
  %v73 = vld [vmem:[%s72] sm:$0xff]
  %v75 = vsel %vm23, %v73, 0
  %77 = vmatpush.msra.mxu0 0.0
  %78 = vmatpush.msra.mxu0 0.0
  %79 = vmatpush.msra.mxu0 0.0
  %80 = vmatpush.msra.mxu0 0.0
  %81 = vmatpush.msra.mxu0 0.0
  %82 = vmatpush.msra.mxu0 0.0
  %83 = vmatpush.msra.mxu0 0.0
  %84 = vmatpush.msra.mxu0 0.0
  %85 = vmatpush.msra.mxu0 0.0
  %86 = vmatpush.msra.mxu0 0.0
  %87 = vmatpush.msra.mxu0 0.0
  %88 = vmatpush.msra.mxu0 0.0
  %89 = vmatpush.msra.mxu0 0.0
  %90 = vmatpush.msra.mxu0 0.0
  %91 = vmatpush.msra.mxu0 0.0
  %92 = vmatpush.msra.mxu0 %v21
  %93 = vmatmul.f32.gmra.mxu0 %v75
  %v94 = vpop.f32.mrf.mxu0
  %v95 = vadd.f32 0.0, %v94
  %96 = vdwg.mxu0
  %97 = vmatpush.msra.mxu0 0.0
  %98 = vmatpush.msra.mxu0 0.0
  %99 = vmatpush.msra.mxu0 0.0
  %100 = vmatpush.msra.mxu0 0.0
  %101 = vmatpush.msra.mxu0 0.0
  %102 = vmatpush.msra.mxu0 0.0
  %103 = vmatpush.msra.mxu0 0.0
  %104 = vmatpush.msra.mxu0 0.0
  %105 = vmatpush.msra.mxu0 0.0
  %106 = vmatpush.msra.mxu0 0.0
  %107 = vmatpush.msra.mxu0 0.0
  %108 = vmatpush.msra.mxu0 0.0
  %109 = vmatpush.msra.mxu0 0.0
  %110 = vmatpush.msra.mxu0 0.0
  %111 = vmatpush.msra.mxu0 0.0
  %112 = vmatpush.msra.mxu0 %v22
  %113 = vmatmul.f32.gmra.mxu0 %v75
  %v114 = vpop.f32.mrf.mxu0
  %v115 = vadd.f32 0.0, %v114
  %116 = vdwg.mxu0
  %120 = vrot.lane.b32.xlu0 %v69, 127
  %v121 = vpop.permute.xlu0 %120
  %122 = vrot.lane.b32.xlu0 %v70, 127
  %v123 = vpop.permute.xlu0 %122
  %124 = vrot.lane.b32.xlu0 %v71, 127
  %v125 = vpop.permute.xlu0 %124
  %vm126 = vcmask 1039360
  %v127 = vsel %vm126, %v121, %v123
  %v128 = vsel %vm126, %v123, %v125
  %v132 = vsel %vm23, %v68, 0
  %134 = vmatpush.msra.mxu0 0.0
  %135 = vmatpush.msra.mxu0 0.0
  %136 = vmatpush.msra.mxu0 0.0
  %137 = vmatpush.msra.mxu0 0.0
  %138 = vmatpush.msra.mxu0 0.0
  %139 = vmatpush.msra.mxu0 0.0
  %140 = vmatpush.msra.mxu0 0.0
  %141 = vmatpush.msra.mxu0 0.0
  %142 = vmatpush.msra.mxu0 0.0
  %143 = vmatpush.msra.mxu0 0.0
  %144 = vmatpush.msra.mxu0 0.0
  %145 = vmatpush.msra.mxu0 0.0
  %146 = vmatpush.msra.mxu0 0.0
  %147 = vmatpush.msra.mxu0 0.0
  %148 = vmatpush.msra.mxu0 0.0
  %149 = vmatpush.msra.mxu0 %v127
  %150 = vmatmul.f32.gmra.mxu0 %v132
  %v151 = vpop.f32.mrf.mxu0
  %v152 = vadd.f32 %v95, %v151
  %153 = vdwg.mxu0
  %154 = vmatpush.msra.mxu0 0.0
  %155 = vmatpush.msra.mxu0 0.0
  %156 = vmatpush.msra.mxu0 0.0
  %157 = vmatpush.msra.mxu0 0.0
  %158 = vmatpush.msra.mxu0 0.0
  %159 = vmatpush.msra.mxu0 0.0
  %160 = vmatpush.msra.mxu0 0.0
  %161 = vmatpush.msra.mxu0 0.0
  %162 = vmatpush.msra.mxu0 0.0
  %163 = vmatpush.msra.mxu0 0.0
  %164 = vmatpush.msra.mxu0 0.0
  %165 = vmatpush.msra.mxu0 0.0
  %166 = vmatpush.msra.mxu0 0.0
  %167 = vmatpush.msra.mxu0 0.0
  %168 = vmatpush.msra.mxu0 0.0
  %169 = vmatpush.msra.mxu0 %v128
  %170 = vmatmul.f32.gmra.mxu0 %v132
  %v171 = vpop.f32.mrf.mxu0
  %v172 = vadd.f32 %v115, %v171
  %173 = vdwg.mxu0
  %s174 = scalar_lea.vmem %s1, 24
  %v175 = vld [vmem:[%s174] sm:$0xff]
  %s176 = scalar_lea.vmem %s1, 32
  %v177 = vld [vmem:[%s176] sm:$0xff]
  %v179 = vsel %vm23, %v177, 0
  %181 = vmatpush.msra.mxu0 0.0
  %182 = vmatpush.msra.mxu0 0.0
  %183 = vmatpush.msra.mxu0 0.0
  %184 = vmatpush.msra.mxu0 0.0
  %185 = vmatpush.msra.mxu0 0.0
  %186 = vmatpush.msra.mxu0 0.0
  %187 = vmatpush.msra.mxu0 0.0
  %188 = vmatpush.msra.mxu0 0.0
  %189 = vmatpush.msra.mxu0 0.0
  %190 = vmatpush.msra.mxu0 0.0
  %191 = vmatpush.msra.mxu0 0.0
  %192 = vmatpush.msra.mxu0 0.0
  %193 = vmatpush.msra.mxu0 0.0
  %194 = vmatpush.msra.mxu0 0.0
  %195 = vmatpush.msra.mxu0 0.0
  %196 = vmatpush.msra.mxu0 %v21
  %197 = vmatmul.f32.gmra.mxu0 %v179
  %v198 = vpop.f32.mrf.mxu0
  %v199 = vadd.f32 0.0, %v198
  %200 = vdwg.mxu0
  %201 = vmatpush.msra.mxu0 0.0
  %202 = vmatpush.msra.mxu0 0.0
  %203 = vmatpush.msra.mxu0 0.0
  %204 = vmatpush.msra.mxu0 0.0
  %205 = vmatpush.msra.mxu0 0.0
  %206 = vmatpush.msra.mxu0 0.0
  %207 = vmatpush.msra.mxu0 0.0
  %208 = vmatpush.msra.mxu0 0.0
  %209 = vmatpush.msra.mxu0 0.0
  %210 = vmatpush.msra.mxu0 0.0
  %211 = vmatpush.msra.mxu0 0.0
  %212 = vmatpush.msra.mxu0 0.0
  %213 = vmatpush.msra.mxu0 0.0
  %214 = vmatpush.msra.mxu0 0.0
  %215 = vmatpush.msra.mxu0 0.0
  %216 = vmatpush.msra.mxu0 %v22
  %217 = vmatmul.f32.gmra.mxu0 %v179
  %v218 = vpop.f32.mrf.mxu0
  %v219 = vadd.f32 0.0, %v218
  %220 = vdwg.mxu0
  %221 = vrot.lane.b32.xlu0 %v69, 119
  %v222 = vpop.permute.xlu0 %221
  %223 = vrot.lane.b32.xlu0 %v70, 119
  %v224 = vpop.permute.xlu0 %223
  %225 = vrot.lane.b32.xlu0 %v71, 119
  %v226 = vpop.permute.xlu0 %225
  %vm227 = vcmask 973824
  %v228 = vsel %vm227, %v222, %v224
  %v229 = vsel %vm227, %v224, %v226
  %v233 = vsel %vm23, %v175, 0
  %235 = vmatpush.msra.mxu0 0.0
  %236 = vmatpush.msra.mxu0 0.0
  %237 = vmatpush.msra.mxu0 0.0
  %238 = vmatpush.msra.mxu0 0.0
  %239 = vmatpush.msra.mxu0 0.0
  %240 = vmatpush.msra.mxu0 0.0
  %241 = vmatpush.msra.mxu0 0.0
  %242 = vmatpush.msra.mxu0 0.0
  %243 = vmatpush.msra.mxu0 0.0
  %244 = vmatpush.msra.mxu0 0.0
  %245 = vmatpush.msra.mxu0 0.0
  %246 = vmatpush.msra.mxu0 0.0
  %247 = vmatpush.msra.mxu0 0.0
  %248 = vmatpush.msra.mxu0 0.0
  %249 = vmatpush.msra.mxu0 0.0
  %250 = vmatpush.msra.mxu0 %v228
  %251 = vmatmul.f32.gmra.mxu0 %v233
  %v252 = vpop.f32.mrf.mxu0
  %v253 = vadd.f32 %v199, %v252
  %254 = vdwg.mxu0
  %255 = vmatpush.msra.mxu0 0.0
  %256 = vmatpush.msra.mxu0 0.0
  %257 = vmatpush.msra.mxu0 0.0
  %258 = vmatpush.msra.mxu0 0.0
  %259 = vmatpush.msra.mxu0 0.0
  %260 = vmatpush.msra.mxu0 0.0
  %261 = vmatpush.msra.mxu0 0.0
  %262 = vmatpush.msra.mxu0 0.0
  %263 = vmatpush.msra.mxu0 0.0
  %264 = vmatpush.msra.mxu0 0.0
  %265 = vmatpush.msra.mxu0 0.0
  %266 = vmatpush.msra.mxu0 0.0
  %267 = vmatpush.msra.mxu0 0.0
  %268 = vmatpush.msra.mxu0 0.0
  %269 = vmatpush.msra.mxu0 0.0
  %270 = vmatpush.msra.mxu0 %v229
  %271 = vmatmul.f32.gmra.mxu0 %v233
  %v272 = vpop.f32.mrf.mxu0
  %v273 = vadd.f32 %v219, %v272
  %274 = vdwg.mxu0
  %s275 = scalar_lea.vmem %s1, 40
  %v276 = vld [vmem:[%s275] sm:$0xff]
  %s277 = scalar_lea.vmem %s1, 48
  %v278 = vld [vmem:[%s277] sm:$0xff]
  %v280 = vsel %vm23, %v278, 0
  %282 = vmatpush.msra.mxu0 0.0
  %283 = vmatpush.msra.mxu0 0.0
  %284 = vmatpush.msra.mxu0 0.0
  %285 = vmatpush.msra.mxu0 0.0
  %286 = vmatpush.msra.mxu0 0.0
  %287 = vmatpush.msra.mxu0 0.0
  %288 = vmatpush.msra.mxu0 0.0
  %289 = vmatpush.msra.mxu0 0.0
  %290 = vmatpush.msra.mxu0 0.0
  %291 = vmatpush.msra.mxu0 0.0
  %292 = vmatpush.msra.mxu0 0.0
  %293 = vmatpush.msra.mxu0 0.0
  %294 = vmatpush.msra.mxu0 0.0
  %295 = vmatpush.msra.mxu0 0.0
  %296 = vmatpush.msra.mxu0 0.0
  %297 = vmatpush.msra.mxu0 %v228
  %298 = vmatmul.f32.gmra.mxu0 %v280
  %v299 = vpop.f32.mrf.mxu0
  %v300 = vadd.f32 0.0, %v299
  %301 = vdwg.mxu0
  %302 = vmatpush.msra.mxu0 0.0
  %303 = vmatpush.msra.mxu0 0.0
  %304 = vmatpush.msra.mxu0 0.0
  %305 = vmatpush.msra.mxu0 0.0
  %306 = vmatpush.msra.mxu0 0.0
  %307 = vmatpush.msra.mxu0 0.0
  %308 = vmatpush.msra.mxu0 0.0
  %309 = vmatpush.msra.mxu0 0.0
  %310 = vmatpush.msra.mxu0 0.0
  %311 = vmatpush.msra.mxu0 0.0
  %312 = vmatpush.msra.mxu0 0.0
  %313 = vmatpush.msra.mxu0 0.0
  %314 = vmatpush.msra.mxu0 0.0
  %315 = vmatpush.msra.mxu0 0.0
  %316 = vmatpush.msra.mxu0 0.0
  %317 = vmatpush.msra.mxu0 %v229
  %318 = vmatmul.f32.gmra.mxu0 %v280
  %v319 = vpop.f32.mrf.mxu0
  %v320 = vadd.f32 0.0, %v319
  %321 = vdwg.mxu0
  %322 = vrot.lane.b32.xlu0 %v69, 118
  %v323 = vpop.permute.xlu0 %322
  %324 = vrot.lane.b32.xlu0 %v70, 118
  %v325 = vpop.permute.xlu0 %324
  %326 = vrot.lane.b32.xlu0 %v71, 118
  %v327 = vpop.permute.xlu0 %326
  %vm328 = vcmask 965632
  %v329 = vsel %vm328, %v323, %v325
  %v330 = vsel %vm328, %v325, %v327
  %v334 = vsel %vm23, %v276, 0
  %336 = vmatpush.msra.mxu0 0.0
  %337 = vmatpush.msra.mxu0 0.0
  %338 = vmatpush.msra.mxu0 0.0
  %339 = vmatpush.msra.mxu0 0.0
  %340 = vmatpush.msra.mxu0 0.0
  %341 = vmatpush.msra.mxu0 0.0
  %342 = vmatpush.msra.mxu0 0.0
  %343 = vmatpush.msra.mxu0 0.0
  %344 = vmatpush.msra.mxu0 0.0
  %345 = vmatpush.msra.mxu0 0.0
  %346 = vmatpush.msra.mxu0 0.0
  %347 = vmatpush.msra.mxu0 0.0
  %348 = vmatpush.msra.mxu0 0.0
  %349 = vmatpush.msra.mxu0 0.0
  %350 = vmatpush.msra.mxu0 0.0
  %351 = vmatpush.msra.mxu0 %v329
  %352 = vmatmul.f32.gmra.mxu0 %v334
  %v353 = vpop.f32.mrf.mxu0
  %v354 = vadd.f32 %v300, %v353
  %355 = vdwg.mxu0
  %356 = vmatpush.msra.mxu0 0.0
  %357 = vmatpush.msra.mxu0 0.0
  %358 = vmatpush.msra.mxu0 0.0
  %359 = vmatpush.msra.mxu0 0.0
  %360 = vmatpush.msra.mxu0 0.0
  %361 = vmatpush.msra.mxu0 0.0
  %362 = vmatpush.msra.mxu0 0.0
  %363 = vmatpush.msra.mxu0 0.0
  %364 = vmatpush.msra.mxu0 0.0
  %365 = vmatpush.msra.mxu0 0.0
  %366 = vmatpush.msra.mxu0 0.0
  %367 = vmatpush.msra.mxu0 0.0
  %368 = vmatpush.msra.mxu0 0.0
  %369 = vmatpush.msra.mxu0 0.0
  %370 = vmatpush.msra.mxu0 0.0
  %371 = vmatpush.msra.mxu0 %v330
  %372 = vmatmul.f32.gmra.mxu0 %v334
  %v373 = vpop.f32.mrf.mxu0
  %v374 = vadd.f32 %v320, %v373
  %375 = vdwg.mxu0
  %s376 = scalar_lea.vmem %s1, 56
  %v377 = vld [vmem:[%s376] sm:$0xff]
  %v379 = vsel %vm23, %v377, 0
  %381 = vmatpush.msra.mxu0 0.0
  %382 = vmatpush.msra.mxu0 0.0
  %383 = vmatpush.msra.mxu0 0.0
  %384 = vmatpush.msra.mxu0 0.0
  %385 = vmatpush.msra.mxu0 0.0
  %386 = vmatpush.msra.mxu0 0.0
  %387 = vmatpush.msra.mxu0 0.0
  %388 = vmatpush.msra.mxu0 0.0
  %389 = vmatpush.msra.mxu0 0.0
  %390 = vmatpush.msra.mxu0 0.0
  %391 = vmatpush.msra.mxu0 0.0
  %392 = vmatpush.msra.mxu0 0.0
  %393 = vmatpush.msra.mxu0 0.0
  %394 = vmatpush.msra.mxu0 0.0
  %395 = vmatpush.msra.mxu0 0.0
  %396 = vmatpush.msra.mxu0 %v127
  %397 = vmatmul.f32.gmra.mxu0 %v379
  %v398 = vpop.f32.mrf.mxu0
  %v399 = vadd.f32 0.0, %v398
  %400 = vdwg.mxu0
  %401 = vmatpush.msra.mxu0 0.0
  %402 = vmatpush.msra.mxu0 0.0
  %403 = vmatpush.msra.mxu0 0.0
  %404 = vmatpush.msra.mxu0 0.0
  %405 = vmatpush.msra.mxu0 0.0
  %406 = vmatpush.msra.mxu0 0.0
  %407 = vmatpush.msra.mxu0 0.0
  %408 = vmatpush.msra.mxu0 0.0
  %409 = vmatpush.msra.mxu0 0.0
  %410 = vmatpush.msra.mxu0 0.0
  %411 = vmatpush.msra.mxu0 0.0
  %412 = vmatpush.msra.mxu0 0.0
  %413 = vmatpush.msra.mxu0 0.0
  %414 = vmatpush.msra.mxu0 0.0
  %415 = vmatpush.msra.mxu0 0.0
  %416 = vmatpush.msra.mxu0 %v128
  %417 = vmatmul.f32.gmra.mxu0 %v379
  %v418 = vpop.f32.mrf.mxu0
  %v419 = vadd.f32 0.0, %v418
  %420 = vdwg.mxu0
  %v421 = vadd.f32 %v354, %v399
  %v422 = vadd.f32 %v374, %v419
  %s423 = scalar_lea.vmem %s1, 64
  %v424 = vld [vmem:[%s423] sm:$0xff]
  %v426 = vsel %vm23, %v424, 0
  %428 = vmatpush.msra.mxu0 0.0
  %429 = vmatpush.msra.mxu0 0.0
  %430 = vmatpush.msra.mxu0 0.0
  %431 = vmatpush.msra.mxu0 0.0
  %432 = vmatpush.msra.mxu0 0.0
  %433 = vmatpush.msra.mxu0 0.0
  %434 = vmatpush.msra.mxu0 0.0
  %435 = vmatpush.msra.mxu0 0.0
  %436 = vmatpush.msra.mxu0 0.0
  %437 = vmatpush.msra.mxu0 0.0
  %438 = vmatpush.msra.mxu0 0.0
  %439 = vmatpush.msra.mxu0 0.0
  %440 = vmatpush.msra.mxu0 0.0
  %441 = vmatpush.msra.mxu0 0.0
  %442 = vmatpush.msra.mxu0 0.0
  %443 = vmatpush.msra.mxu0 %v21
  %444 = vmatmul.f32.gmra.mxu0 %v426
  %v445 = vpop.f32.mrf.mxu0
  %v446 = vadd.f32 0.0, %v445
  %447 = vdwg.mxu0
  %448 = vmatpush.msra.mxu0 0.0
  %449 = vmatpush.msra.mxu0 0.0
  %450 = vmatpush.msra.mxu0 0.0
  %451 = vmatpush.msra.mxu0 0.0
  %452 = vmatpush.msra.mxu0 0.0
  %453 = vmatpush.msra.mxu0 0.0
  %454 = vmatpush.msra.mxu0 0.0
  %455 = vmatpush.msra.mxu0 0.0
  %456 = vmatpush.msra.mxu0 0.0
  %457 = vmatpush.msra.mxu0 0.0
  %458 = vmatpush.msra.mxu0 0.0
  %459 = vmatpush.msra.mxu0 0.0
  %460 = vmatpush.msra.mxu0 0.0
  %461 = vmatpush.msra.mxu0 0.0
  %462 = vmatpush.msra.mxu0 0.0
  %463 = vmatpush.msra.mxu0 %v22
  %464 = vmatmul.f32.gmra.mxu0 %v426
  %v465 = vpop.f32.mrf.mxu0
  %v466 = vadd.f32 0.0, %v465
  %467 = vdwg.mxu0
  %v468 = vadd.f32 %v421, %v446
  %v469 = vadd.f32 %v422, %v466
  %v470 = vld [vmem:[%s4] sm:$0x3]
  %v472 = vperm.slane %v470, 0
  %v473 = vperm.slane %v470, 1
  %v476 = vmul.f32 %v45, %v472
  %v477 = vmul.f32 %v65, %v473
  %v478 = vadd.f32 %v476, %v477
  %479 = vadd.xlane.f32.xlu0 %v478
  %v480 = vpop.xlane.xlu0 %479
  %v481 = vadd.f32 %v480, 0.0
  %v482 = vmul.f32 %v152, %v472
  %v483 = vmul.f32 %v172, %v473
  %v484 = vadd.f32 %v482, %v483
  %485 = vadd.xlane.f32.xlu0 %v484
  %v486 = vpop.xlane.xlu0 %485
  %v487 = vadd.f32 %v481, %v486
  %v488 = vmul.f32 %v253, %v472
  %v489 = vmul.f32 %v273, %v473
  %v490 = vadd.f32 %v488, %v489
  %491 = vadd.xlane.f32.xlu0 %v490
  %v492 = vpop.xlane.xlu0 %491
  %v493 = vadd.f32 %v487, %v492
  %v494 = vmul.f32 %v468, %v472
  %v495 = vmul.f32 %v469, %v473
  %v496 = vadd.f32 %v494, %v495
  %497 = vadd.xlane.f32.xlu0 %v496
  %v498 = vpop.xlane.xlu0 %497
  %v499 = vadd.f32 %v493, %v498
  %v500 = vmul.f32 %v499, 0.001953125
  %v501 = vsub.f32 %v45, %v500
  %v502 = vsub.f32 %v65, %v500
  %v503 = vmul.f32 %v501, %v501
  %v504 = vmul.f32 %v502, %v502
  %v505 = vmul.f32 %v503, %v472
  %v506 = vmul.f32 %v504, %v473
  %v507 = vadd.f32 %v505, %v506
  %508 = vadd.xlane.f32.xlu0 %v507
  %v509 = vpop.xlane.xlu0 %508
  %v510 = vadd.f32 %v509, 0.0
  %v511 = vsub.f32 %v152, %v500
  %v512 = vsub.f32 %v172, %v500
  %v513 = vmul.f32 %v511, %v511
  %v514 = vmul.f32 %v512, %v512
  %v515 = vmul.f32 %v513, %v472
  %v516 = vmul.f32 %v514, %v473
  %v517 = vadd.f32 %v515, %v516
  %518 = vadd.xlane.f32.xlu0 %v517
  %v519 = vpop.xlane.xlu0 %518
  %v520 = vadd.f32 %v510, %v519
  %v521 = vsub.f32 %v253, %v500
  %v522 = vsub.f32 %v273, %v500
  %v523 = vmul.f32 %v521, %v521
  %v524 = vmul.f32 %v522, %v522
  %v525 = vmul.f32 %v523, %v472
  %v526 = vmul.f32 %v524, %v473
  %v527 = vadd.f32 %v525, %v526
  %528 = vadd.xlane.f32.xlu0 %v527
  %v529 = vpop.xlane.xlu0 %528
  %v530 = vadd.f32 %v520, %v529
  %v531 = vsub.f32 %v468, %v500
  %v532 = vsub.f32 %v469, %v500
  %v533 = vmul.f32 %v531, %v531
  %v534 = vmul.f32 %v532, %v532
  %v535 = vmul.f32 %v533, %v472
  %v536 = vmul.f32 %v534, %v473
  %v537 = vadd.f32 %v535, %v536
  %538 = vadd.xlane.f32.xlu0 %v537
  %v539 = vpop.xlane.xlu0 %538
  %v540 = vadd.f32 %v530, %v539
  %v541 = vmul.f32 %v540, 0.001953125
  %v542 = vadd.f32 %v541, 1e-05
  %v543 = vrsqrt.pop %v542
  %v544 = vmul.f32 %v543, %v542
  %v545 = vmul.f32 %v544, %v543
  %v546 = vmul.f32 0.5, %v545
  %v547 = vsub.f32 1.5, %v546
  %v548 = vmul.f32 %v543, %v547
  %vm549 = vweird.f32 %v542
  %vm550 = vweird.f32 %v543
  %vm551 = vmor %vm549, %vm550
  %v552 = vsel %vm551, %v543, %v548
  %v553 = vld [vmem:[%s2] sm:$0xff]
  %v554 = vmul.f32 %v552, %v553
  %v555 = vld [vmem:[%s3] sm:$0xff]
  %v556 = vmul.f32 %v500, %v554
  %v557 = vsub.f32 %v555, %v556
  %559 = vset.pattern.permute.xlu0 0
  %560 = vperm.xlu0 %559, %v554
  %v561 = vpop.permute.xlu0 %560
  %v563 = vmul.f32 %v45, %v561
  %v564 = vmul.f32 %v65, %v561
  %566 = vset.pattern.permute.xlu0 0
  %567 = vperm.xlu0 %566, %v557
  %v568 = vpop.permute.xlu0 %567
  %v570 = vadd.f32 %v563, %v568
  %v571 = vadd.f32 %v564, %v568
  %v572 = vmax.f32 %v570, 0.0
  %v573 = vmax.f32 %v571, 0.0
  %574 = vst [vmem:[%s5] sm:$0xff] %v572
  %575 = vst [vmem:[%s5 + $0x8] sm:$0xff] %v573
  %v576 = vmul.f32 %v152, %v561
  %v577 = vmul.f32 %v172, %v561
  %v578 = vadd.f32 %v576, %v568
  %v579 = vadd.f32 %v577, %v568
  %v580 = vmax.f32 %v578, 0.0
  %v581 = vmax.f32 %v579, 0.0
  %582 = vst [vmem:[%s5 + $0x10] sm:$0xff] %v580
  %583 = vst [vmem:[%s5 + $0x18] sm:$0xff] %v581
  %v584 = vmul.f32 %v253, %v561
  %v585 = vmul.f32 %v273, %v561
  %v586 = vadd.f32 %v584, %v568
  %v587 = vadd.f32 %v585, %v568
  %v588 = vmax.f32 %v586, 0.0
  %v589 = vmax.f32 %v587, 0.0
  %590 = vst [vmem:[%s5 + $0x20] sm:$0xff] %v588
  %591 = vst [vmem:[%s5 + $0x28] sm:$0xff] %v589
  %v592 = vmul.f32 %v468, %v561
  %v593 = vmul.f32 %v469, %v561
  %v594 = vadd.f32 %v592, %v568
  %v595 = vadd.f32 %v593, %v568
  %v596 = vmax.f32 %v594, 0.0
  %v597 = vmax.f32 %v595, 0.0
  %598 = vst [vmem:[%s5 + $0x30] sm:$0xff] %v596
  %599 = vst [vmem:[%s5 + $0x38] sm:$0xff] %v597
  // Predicated region
  $region22: #{vae_forward.14} parent=0 // pred_check
    _
  $region23: #{vae_forward.14} parent=0 // pred_check_branch
    %601 = sbr.rel (0) target = $region25
  $region24: #{vae_forward.14} parent=0 // pred_region
    _
  $region25: #{vae_forward.14} parent=0 // pred_fallthru
    _
  // Predicated region
  $region26: #{vae_forward.14} parent=0 // pred_check
    _
  $region27: #{vae_forward.14} parent=0 // pred_check_branch
    %603 = sbr.rel (0) target = $region29
  $region28: #{vae_forward.14} parent=0 // pred_region
    _
  $region29: #{vae_forward.14} parent=0 // pred_fallthru
    _

// kernel: vae_forward.15
$region0: #{vae_forward.15}
  #allocation0 [shape = 'u32[]', space=smem, size = 0x4, offset = 0x4, fixed_abs, tag = 'smem constant byte address 0x4 - core index']
  #allocation1 [shape = 'u32[72,128]{1,0:T(1,128)}', space=vmem, size = 0x9000, scoped, tag = 'internal scratch']
  %s0 = inlined_call_operand.vmem [shape: f32[8,896], index: 0, kind: input, shape index: {}]
  %s1 = inlined_call_operand.vmem [shape: f32[9,8,8], index: 1, kind: input, shape index: {}]
  %s2 = inlined_call_operand.vmem [shape: f32[8,1], index: 2, kind: input, shape index: {}]
  %s3 = inlined_call_operand.vmem [shape: f32[8,768], index: 3, kind: output, shape index: {}]
  %s4 = sld [smem:[#allocation0]]
  $region22: #{vae_forward.15} parent=0
    _
  %s6 = ssub.s32 1, %s4
  %s7 = scalar_select 0, %s6, %s4
  // Predicated region
  $region2: #{vae_forward.15} parent=0 // pred_check
    _
  $region3: #{vae_forward.15} parent=0 // pred_check_branch
    %9 = sbr.rel (0) target = $region5
  $region4: #{vae_forward.15} parent=0 // pred_region
    _
  $region5: #{vae_forward.15} parent=0 // pred_fallthru
    _
  // Predicated region
  $region6: #{vae_forward.15} parent=0 // pred_check
    _
  $region7: #{vae_forward.15} parent=0 // pred_check_branch
    %11 = sbr.rel (0) target = $region9
  $region8: #{vae_forward.15} parent=0 // pred_region
    _
  $region9: #{vae_forward.15} parent=0 // pred_fallthru
    _
  // Predicated region
  $region10: #{vae_forward.15} parent=0 // pred_check
    _
  $region11: #{vae_forward.15} parent=0 // pred_check_branch
    %13 = sbr.rel (0) target = $region13
  $region12: #{vae_forward.15} parent=0 // pred_region
    _
  $region13: #{vae_forward.15} parent=0 // pred_fallthru
    _
  %v14 = vld [vmem:[%s1] sm:$0xff]
  %v15 = vld [vmem:[%s0] sm:$0xff]
  %v16 = vld [vmem:[%s0 + $0x8] sm:$0xff]
  %v17 = vld [vmem:[%s0 + $0x10] sm:$0xff]
  %v18 = vld [vmem:[%s0 + $0x18] sm:$0xff]
  %v19 = vld [vmem:[%s0 + $0x20] sm:$0xff]
  %v20 = vld [vmem:[%s0 + $0x28] sm:$0xff]
  %s21 = scalar_lea.vmem %s1, 8
  %v22 = vld [vmem:[%s21] sm:$0xff]
  %v23 = vld [vmem:[%s0] sm:$0xff]
  %v24 = vld [vmem:[%s0 + $0x8] sm:$0xff]
  %v25 = vld [vmem:[%s0 + $0x10] sm:$0xff]
  %v26 = vld [vmem:[%s0 + $0x18] sm:$0xff]
  %v27 = vld [vmem:[%s0 + $0x20] sm:$0xff]
  %v28 = vld [vmem:[%s0 + $0x28] sm:$0xff]
  %v29 = vld [vmem:[%s0 + $0x30] sm:$0xff]
  %37 = vrot.lane.b32.xlu0 %v23, 127
  %v38 = vpop.permute.xlu0 %37
  %39 = vrot.lane.b32.xlu0 %v24, 127
  %v40 = vpop.permute.xlu0 %39
  %41 = vrot.lane.b32.xlu0 %v25, 127
  %v42 = vpop.permute.xlu0 %41
  %43 = vrot.lane.b32.xlu0 %v26, 127
  %v44 = vpop.permute.xlu0 %43
  %45 = vrot.lane.b32.xlu0 %v27, 127
  %v46 = vpop.permute.xlu0 %45
  %47 = vrot.lane.b32.xlu0 %v28, 127
  %v48 = vpop.permute.xlu0 %47
  %49 = vrot.lane.b32.xlu0 %v29, 127
  %v50 = vpop.permute.xlu0 %49
  %vm51 = vcmask 1039360
  %v52 = vsel %vm51, %v38, %v40
  %v53 = vsel %vm51, %v40, %v42
  %v54 = vsel %vm51, %v42, %v44
  %v55 = vsel %vm51, %v44, %v46
  %v56 = vsel %vm51, %v46, %v48
  %v57 = vsel %vm51, %v48, %v50
  %vm64 = vcmask 64512
  %v66 = vsel %vm64, %v22, 0
  %68 = vmatpush.msra.mxu0 0.0
  %69 = vmatpush.msra.mxu0 0.0
  %70 = vmatpush.msra.mxu0 0.0
  %71 = vmatpush.msra.mxu0 0.0
  %72 = vmatpush.msra.mxu0 0.0
  %73 = vmatpush.msra.mxu0 0.0
  %74 = vmatpush.msra.mxu0 0.0
  %75 = vmatpush.msra.mxu0 0.0
  %76 = vmatpush.msra.mxu0 0.0
  %77 = vmatpush.msra.mxu0 0.0
  %78 = vmatpush.msra.mxu0 0.0
  %79 = vmatpush.msra.mxu0 0.0
  %80 = vmatpush.msra.mxu0 0.0
  %81 = vmatpush.msra.mxu0 0.0
  %82 = vmatpush.msra.mxu0 0.0
  %83 = vmatpush.msra.mxu0 %v52
  %84 = vmatmul.f32.gmra.mxu0 %v66
  %v85 = vpop.f32.mrf.mxu0
  %v86 = vadd.f32 0.0, %v85
  %87 = vdwg.mxu0
  %88 = vmatpush.msra.mxu0 0.0
  %89 = vmatpush.msra.mxu0 0.0
  %90 = vmatpush.msra.mxu0 0.0
  %91 = vmatpush.msra.mxu0 0.0
  %92 = vmatpush.msra.mxu0 0.0
  %93 = vmatpush.msra.mxu0 0.0
  %94 = vmatpush.msra.mxu0 0.0
  %95 = vmatpush.msra.mxu0 0.0
  %96 = vmatpush.msra.mxu0 0.0
  %97 = vmatpush.msra.mxu0 0.0
  %98 = vmatpush.msra.mxu0 0.0
  %99 = vmatpush.msra.mxu0 0.0
  %100 = vmatpush.msra.mxu0 0.0
  %101 = vmatpush.msra.mxu0 0.0
  %102 = vmatpush.msra.mxu0 0.0
  %103 = vmatpush.msra.mxu0 %v53
  %104 = vmatmul.f32.gmra.mxu0 %v66
  %v105 = vpop.f32.mrf.mxu0
  %v106 = vadd.f32 0.0, %v105
  %107 = vdwg.mxu0
  %108 = vmatpush.msra.mxu0 0.0
  %109 = vmatpush.msra.mxu0 0.0
  %110 = vmatpush.msra.mxu0 0.0
  %111 = vmatpush.msra.mxu0 0.0
  %112 = vmatpush.msra.mxu0 0.0
  %113 = vmatpush.msra.mxu0 0.0
  %114 = vmatpush.msra.mxu0 0.0
  %115 = vmatpush.msra.mxu0 0.0
  %116 = vmatpush.msra.mxu0 0.0
  %117 = vmatpush.msra.mxu0 0.0
  %118 = vmatpush.msra.mxu0 0.0
  %119 = vmatpush.msra.mxu0 0.0
  %120 = vmatpush.msra.mxu0 0.0
  %121 = vmatpush.msra.mxu0 0.0
  %122 = vmatpush.msra.mxu0 0.0
  %123 = vmatpush.msra.mxu0 %v54
  %124 = vmatmul.f32.gmra.mxu0 %v66
  %v125 = vpop.f32.mrf.mxu0
  %v126 = vadd.f32 0.0, %v125
  %127 = vdwg.mxu0
  %128 = vmatpush.msra.mxu0 0.0
  %129 = vmatpush.msra.mxu0 0.0
  %130 = vmatpush.msra.mxu0 0.0
  %131 = vmatpush.msra.mxu0 0.0
  %132 = vmatpush.msra.mxu0 0.0
  %133 = vmatpush.msra.mxu0 0.0
  %134 = vmatpush.msra.mxu0 0.0
  %135 = vmatpush.msra.mxu0 0.0
  %136 = vmatpush.msra.mxu0 0.0
  %137 = vmatpush.msra.mxu0 0.0
  %138 = vmatpush.msra.mxu0 0.0
  %139 = vmatpush.msra.mxu0 0.0
  %140 = vmatpush.msra.mxu0 0.0
  %141 = vmatpush.msra.mxu0 0.0
  %142 = vmatpush.msra.mxu0 0.0
  %143 = vmatpush.msra.mxu0 %v55
  %144 = vmatmul.f32.gmra.mxu0 %v66
  %v145 = vpop.f32.mrf.mxu0
  %v146 = vadd.f32 0.0, %v145
  %147 = vdwg.mxu0
  %148 = vmatpush.msra.mxu0 0.0
  %149 = vmatpush.msra.mxu0 0.0
  %150 = vmatpush.msra.mxu0 0.0
  %151 = vmatpush.msra.mxu0 0.0
  %152 = vmatpush.msra.mxu0 0.0
  %153 = vmatpush.msra.mxu0 0.0
  %154 = vmatpush.msra.mxu0 0.0
  %155 = vmatpush.msra.mxu0 0.0
  %156 = vmatpush.msra.mxu0 0.0
  %157 = vmatpush.msra.mxu0 0.0
  %158 = vmatpush.msra.mxu0 0.0
  %159 = vmatpush.msra.mxu0 0.0
  %160 = vmatpush.msra.mxu0 0.0
  %161 = vmatpush.msra.mxu0 0.0
  %162 = vmatpush.msra.mxu0 0.0
  %163 = vmatpush.msra.mxu0 %v56
  %164 = vmatmul.f32.gmra.mxu0 %v66
  %v165 = vpop.f32.mrf.mxu0
  %v166 = vadd.f32 0.0, %v165
  %167 = vdwg.mxu0
  %168 = vmatpush.msra.mxu0 0.0
  %169 = vmatpush.msra.mxu0 0.0
  %170 = vmatpush.msra.mxu0 0.0
  %171 = vmatpush.msra.mxu0 0.0
  %172 = vmatpush.msra.mxu0 0.0
  %173 = vmatpush.msra.mxu0 0.0
  %174 = vmatpush.msra.mxu0 0.0
  %175 = vmatpush.msra.mxu0 0.0
  %176 = vmatpush.msra.mxu0 0.0
  %177 = vmatpush.msra.mxu0 0.0
  %178 = vmatpush.msra.mxu0 0.0
  %179 = vmatpush.msra.mxu0 0.0
  %180 = vmatpush.msra.mxu0 0.0
  %181 = vmatpush.msra.mxu0 0.0
  %182 = vmatpush.msra.mxu0 0.0
  %183 = vmatpush.msra.mxu0 %v57
  %184 = vmatmul.f32.gmra.mxu0 %v66
  %v185 = vpop.f32.mrf.mxu0
  %v186 = vadd.f32 0.0, %v185
  %187 = vdwg.mxu0
  %v189 = vsel %vm64, %v14, 0
  %191 = vmatpush.msra.mxu0 0.0
  %192 = vmatpush.msra.mxu0 0.0
  %193 = vmatpush.msra.mxu0 0.0
  %194 = vmatpush.msra.mxu0 0.0
  %195 = vmatpush.msra.mxu0 0.0
  %196 = vmatpush.msra.mxu0 0.0
  %197 = vmatpush.msra.mxu0 0.0
  %198 = vmatpush.msra.mxu0 0.0
  %199 = vmatpush.msra.mxu0 0.0
  %200 = vmatpush.msra.mxu0 0.0
  %201 = vmatpush.msra.mxu0 0.0
  %202 = vmatpush.msra.mxu0 0.0
  %203 = vmatpush.msra.mxu0 0.0
  %204 = vmatpush.msra.mxu0 0.0
  %205 = vmatpush.msra.mxu0 0.0
  %206 = vmatpush.msra.mxu0 %v15
  %207 = vmatmul.f32.gmra.mxu0 %v189
  %v208 = vpop.f32.mrf.mxu0
  %v209 = vadd.f32 %v86, %v208
  %210 = vdwg.mxu0
  %211 = vmatpush.msra.mxu0 0.0
  %212 = vmatpush.msra.mxu0 0.0
  %213 = vmatpush.msra.mxu0 0.0
  %214 = vmatpush.msra.mxu0 0.0
  %215 = vmatpush.msra.mxu0 0.0
  %216 = vmatpush.msra.mxu0 0.0
  %217 = vmatpush.msra.mxu0 0.0
  %218 = vmatpush.msra.mxu0 0.0
  %219 = vmatpush.msra.mxu0 0.0
  %220 = vmatpush.msra.mxu0 0.0
  %221 = vmatpush.msra.mxu0 0.0
  %222 = vmatpush.msra.mxu0 0.0
  %223 = vmatpush.msra.mxu0 0.0
  %224 = vmatpush.msra.mxu0 0.0
  %225 = vmatpush.msra.mxu0 0.0
  %226 = vmatpush.msra.mxu0 %v16
  %227 = vmatmul.f32.gmra.mxu0 %v189
  %v228 = vpop.f32.mrf.mxu0
  %v229 = vadd.f32 %v106, %v228
  %230 = vdwg.mxu0
  %231 = vmatpush.msra.mxu0 0.0
  %232 = vmatpush.msra.mxu0 0.0
  %233 = vmatpush.msra.mxu0 0.0
  %234 = vmatpush.msra.mxu0 0.0
  %235 = vmatpush.msra.mxu0 0.0
  %236 = vmatpush.msra.mxu0 0.0
  %237 = vmatpush.msra.mxu0 0.0
  %238 = vmatpush.msra.mxu0 0.0
  %239 = vmatpush.msra.mxu0 0.0
  %240 = vmatpush.msra.mxu0 0.0
  %241 = vmatpush.msra.mxu0 0.0
  %242 = vmatpush.msra.mxu0 0.0
  %243 = vmatpush.msra.mxu0 0.0
  %244 = vmatpush.msra.mxu0 0.0
  %245 = vmatpush.msra.mxu0 0.0
  %246 = vmatpush.msra.mxu0 %v17
  %247 = vmatmul.f32.gmra.mxu0 %v189
  %v248 = vpop.f32.mrf.mxu0
  %v249 = vadd.f32 %v126, %v248
  %250 = vdwg.mxu0
  %251 = vmatpush.msra.mxu0 0.0
  %252 = vmatpush.msra.mxu0 0.0
  %253 = vmatpush.msra.mxu0 0.0
  %254 = vmatpush.msra.mxu0 0.0
  %255 = vmatpush.msra.mxu0 0.0
  %256 = vmatpush.msra.mxu0 0.0
  %257 = vmatpush.msra.mxu0 0.0
  %258 = vmatpush.msra.mxu0 0.0
  %259 = vmatpush.msra.mxu0 0.0
  %260 = vmatpush.msra.mxu0 0.0
  %261 = vmatpush.msra.mxu0 0.0
  %262 = vmatpush.msra.mxu0 0.0
  %263 = vmatpush.msra.mxu0 0.0
  %264 = vmatpush.msra.mxu0 0.0
  %265 = vmatpush.msra.mxu0 0.0
  %266 = vmatpush.msra.mxu0 %v18
  %267 = vmatmul.f32.gmra.mxu0 %v189
  %v268 = vpop.f32.mrf.mxu0
  %v269 = vadd.f32 %v146, %v268
  %270 = vdwg.mxu0
  %271 = vmatpush.msra.mxu0 0.0
  %272 = vmatpush.msra.mxu0 0.0
  %273 = vmatpush.msra.mxu0 0.0
  %274 = vmatpush.msra.mxu0 0.0
  %275 = vmatpush.msra.mxu0 0.0
  %276 = vmatpush.msra.mxu0 0.0
  %277 = vmatpush.msra.mxu0 0.0
  %278 = vmatpush.msra.mxu0 0.0
  %279 = vmatpush.msra.mxu0 0.0
  %280 = vmatpush.msra.mxu0 0.0
  %281 = vmatpush.msra.mxu0 0.0
  %282 = vmatpush.msra.mxu0 0.0
  %283 = vmatpush.msra.mxu0 0.0
  %284 = vmatpush.msra.mxu0 0.0
  %285 = vmatpush.msra.mxu0 0.0
  %286 = vmatpush.msra.mxu0 %v19
  %287 = vmatmul.f32.gmra.mxu0 %v189
  %v288 = vpop.f32.mrf.mxu0
  %v289 = vadd.f32 %v166, %v288
  %290 = vdwg.mxu0
  %291 = vmatpush.msra.mxu0 0.0
  %292 = vmatpush.msra.mxu0 0.0
  %293 = vmatpush.msra.mxu0 0.0
  %294 = vmatpush.msra.mxu0 0.0
  %295 = vmatpush.msra.mxu0 0.0
  %296 = vmatpush.msra.mxu0 0.0
  %297 = vmatpush.msra.mxu0 0.0
  %298 = vmatpush.msra.mxu0 0.0
  %299 = vmatpush.msra.mxu0 0.0
  %300 = vmatpush.msra.mxu0 0.0
  %301 = vmatpush.msra.mxu0 0.0
  %302 = vmatpush.msra.mxu0 0.0
  %303 = vmatpush.msra.mxu0 0.0
  %304 = vmatpush.msra.mxu0 0.0
  %305 = vmatpush.msra.mxu0 0.0
  %306 = vmatpush.msra.mxu0 %v20
  %307 = vmatmul.f32.gmra.mxu0 %v189
  %v308 = vpop.f32.mrf.mxu0
  %v309 = vadd.f32 %v186, %v308
  %310 = vdwg.mxu0
  %s311 = scalar_lea.vmem %s1, 16
  %v312 = vld [vmem:[%s311] sm:$0xff]
  %313 = vrot.lane.b32.xlu0 %v23, 126
  %v314 = vpop.permute.xlu0 %313
  %315 = vrot.lane.b32.xlu0 %v24, 126
  %v316 = vpop.permute.xlu0 %315
  %317 = vrot.lane.b32.xlu0 %v25, 126
  %v318 = vpop.permute.xlu0 %317
  %319 = vrot.lane.b32.xlu0 %v26, 126
  %v320 = vpop.permute.xlu0 %319
  %321 = vrot.lane.b32.xlu0 %v27, 126
  %v322 = vpop.permute.xlu0 %321
  %323 = vrot.lane.b32.xlu0 %v28, 126
  %v324 = vpop.permute.xlu0 %323
  %325 = vrot.lane.b32.xlu0 %v29, 126
  %v326 = vpop.permute.xlu0 %325
  %vm327 = vcmask 1031168
  %v328 = vsel %vm327, %v314, %v316
  %v329 = vsel %vm327, %v316, %v318
  %v330 = vsel %vm327, %v318, %v320
  %v331 = vsel %vm327, %v320, %v322
  %v332 = vsel %vm327, %v322, %v324
  %v333 = vsel %vm327, %v324, %v326
  %v341 = vsel %vm64, %v312, 0
  %343 = vmatpush.msra.mxu0 0.0
  %344 = vmatpush.msra.mxu0 0.0
  %345 = vmatpush.msra.mxu0 0.0
  %346 = vmatpush.msra.mxu0 0.0
  %347 = vmatpush.msra.mxu0 0.0
  %348 = vmatpush.msra.mxu0 0.0
  %349 = vmatpush.msra.mxu0 0.0
  %350 = vmatpush.msra.mxu0 0.0
  %351 = vmatpush.msra.mxu0 0.0
  %352 = vmatpush.msra.mxu0 0.0
  %353 = vmatpush.msra.mxu0 0.0
  %354 = vmatpush.msra.mxu0 0.0
  %355 = vmatpush.msra.mxu0 0.0
  %356 = vmatpush.msra.mxu0 0.0
  %357 = vmatpush.msra.mxu0 0.0
  %358 = vmatpush.msra.mxu0 %v328
  %359 = vmatmul.f32.gmra.mxu0 %v341
  %v360 = vpop.f32.mrf.mxu0
  %v361 = vadd.f32 0.0, %v360
  %362 = vdwg.mxu0
  %363 = vmatpush.msra.mxu0 0.0
  %364 = vmatpush.msra.mxu0 0.0
  %365 = vmatpush.msra.mxu0 0.0
  %366 = vmatpush.msra.mxu0 0.0
  %367 = vmatpush.msra.mxu0 0.0
  %368 = vmatpush.msra.mxu0 0.0
  %369 = vmatpush.msra.mxu0 0.0
  %370 = vmatpush.msra.mxu0 0.0
  %371 = vmatpush.msra.mxu0 0.0
  %372 = vmatpush.msra.mxu0 0.0
  %373 = vmatpush.msra.mxu0 0.0
  %374 = vmatpush.msra.mxu0 0.0
  %375 = vmatpush.msra.mxu0 0.0
  %376 = vmatpush.msra.mxu0 0.0
  %377 = vmatpush.msra.mxu0 0.0
  %378 = vmatpush.msra.mxu0 %v329
  %379 = vmatmul.f32.gmra.mxu0 %v341
  %v380 = vpop.f32.mrf.mxu0
  %v381 = vadd.f32 0.0, %v380
  %382 = vdwg.mxu0
  %383 = vmatpush.msra.mxu0 0.0
  %384 = vmatpush.msra.mxu0 0.0
  %385 = vmatpush.msra.mxu0 0.0
  %386 = vmatpush.msra.mxu0 0.0
  %387 = vmatpush.msra.mxu0 0.0
  %388 = vmatpush.msra.mxu0 0.0
  %389 = vmatpush.msra.mxu0 0.0
  %390 = vmatpush.msra.mxu0 0.0
  %391 = vmatpush.msra.mxu0 0.0
  %392 = vmatpush.msra.mxu0 0.0
  %393 = vmatpush.msra.mxu0 0.0
  %394 = vmatpush.msra.mxu0 0.0
  %395 = vmatpush.msra.mxu0 0.0
  %396 = vmatpush.msra.mxu0 0.0
  %397 = vmatpush.msra.mxu0 0.0
  %398 = vmatpush.msra.mxu0 %v330
  %399 = vmatmul.f32.gmra.mxu0 %v341
  %v400 = vpop.f32.mrf.mxu0
  %v401 = vadd.f32 0.0, %v400
  %402 = vdwg.mxu0
  %403 = vmatpush.msra.mxu0 0.0
  %404 = vmatpush.msra.mxu0 0.0
  %405 = vmatpush.msra.mxu0 0.0
  %406 = vmatpush.msra.mxu0 0.0
  %407 = vmatpush.msra.mxu0 0.0
  %408 = vmatpush.msra.mxu0 0.0
  %409 = vmatpush.msra.mxu0 0.0
  %410 = vmatpush.msra.mxu0 0.0
  %411 = vmatpush.msra.mxu0 0.0
  %412 = vmatpush.msra.mxu0 0.0
  %413 = vmatpush.msra.mxu0 0.0
  %414 = vmatpush.msra.mxu0 0.0
  %415 = vmatpush.msra.mxu0 0.0
  %416 = vmatpush.msra.mxu0 0.0
  %417 = vmatpush.msra.mxu0 0.0
  %418 = vmatpush.msra.mxu0 %v331
  %419 = vmatmul.f32.gmra.mxu0 %v341
  %v420 = vpop.f32.mrf.mxu0
  %v421 = vadd.f32 0.0, %v420
  %422 = vdwg.mxu0
  %423 = vmatpush.msra.mxu0 0.0
  %424 = vmatpush.msra.mxu0 0.0
  %425 = vmatpush.msra.mxu0 0.0
  %426 = vmatpush.msra.mxu0 0.0
  %427 = vmatpush.msra.mxu0 0.0
  %428 = vmatpush.msra.mxu0 0.0
  %429 = vmatpush.msra.mxu0 0.0
  %430 = vmatpush.msra.mxu0 0.0
  %431 = vmatpush.msra.mxu0 0.0
  %432 = vmatpush.msra.mxu0 0.0
  %433 = vmatpush.msra.mxu0 0.0
  %434 = vmatpush.msra.mxu0 0.0
  %435 = vmatpush.msra.mxu0 0.0
  %436 = vmatpush.msra.mxu0 0.0
  %437 = vmatpush.msra.mxu0 0.0
  %438 = vmatpush.msra.mxu0 %v332
  %439 = vmatmul.f32.gmra.mxu0 %v341
  %v440 = vpop.f32.mrf.mxu0
  %v441 = vadd.f32 0.0, %v440
  %442 = vdwg.mxu0
  %443 = vmatpush.msra.mxu0 0.0
  %444 = vmatpush.msra.mxu0 0.0
  %445 = vmatpush.msra.mxu0 0.0
  %446 = vmatpush.msra.mxu0 0.0
  %447 = vmatpush.msra.mxu0 0.0
  %448 = vmatpush.msra.mxu0 0.0
  %449 = vmatpush.msra.mxu0 0.0
  %450 = vmatpush.msra.mxu0 0.0
  %451 = vmatpush.msra.mxu0 0.0
  %452 = vmatpush.msra.mxu0 0.0
  %453 = vmatpush.msra.mxu0 0.0
  %454 = vmatpush.msra.mxu0 0.0
  %455 = vmatpush.msra.mxu0 0.0
  %456 = vmatpush.msra.mxu0 0.0
  %457 = vmatpush.msra.mxu0 0.0
  %458 = vmatpush.msra.mxu0 %v333
  %459 = vmatmul.f32.gmra.mxu0 %v341
  %v460 = vpop.f32.mrf.mxu0
  %v461 = vadd.f32 0.0, %v460
  %462 = vdwg.mxu0
  %v463 = vadd.f32 %v209, %v361
  %v464 = vadd.f32 %v229, %v381
  %v465 = vadd.f32 %v249, %v401
  %v466 = vadd.f32 %v269, %v421
  %v467 = vadd.f32 %v289, %v441
  %v468 = vadd.f32 %v309, %v461
  %s469 = scalar_lea.vmem %s1, 24
  %v470 = vld [vmem:[%s469] sm:$0xff]
  %471 = vrot.lane.b32.xlu0 %v23, 110
  %v472 = vpop.permute.xlu0 %471
  %473 = vrot.lane.b32.xlu0 %v24, 110
  %v474 = vpop.permute.xlu0 %473
  %475 = vrot.lane.b32.xlu0 %v25, 110
  %v476 = vpop.permute.xlu0 %475
  %477 = vrot.lane.b32.xlu0 %v26, 110
  %v478 = vpop.permute.xlu0 %477
  %479 = vrot.lane.b32.xlu0 %v27, 110
  %v480 = vpop.permute.xlu0 %479
  %481 = vrot.lane.b32.xlu0 %v28, 110
  %v482 = vpop.permute.xlu0 %481
  %483 = vrot.lane.b32.xlu0 %v29, 110
  %v484 = vpop.permute.xlu0 %483
  %vm485 = vcmask 900096
  %v486 = vsel %vm485, %v472, %v474
  %v487 = vsel %vm485, %v474, %v476
  %v488 = vsel %vm485, %v476, %v478
  %v489 = vsel %vm485, %v478, %v480
  %v490 = vsel %vm485, %v480, %v482
  %v491 = vsel %vm485, %v482, %v484
  %v499 = vsel %vm64, %v470, 0
  %501 = vmatpush.msra.mxu0 0.0
  %502 = vmatpush.msra.mxu0 0.0
  %503 = vmatpush.msra.mxu0 0.0
  %504 = vmatpush.msra.mxu0 0.0
  %505 = vmatpush.msra.mxu0 0.0
  %506 = vmatpush.msra.mxu0 0.0
  %507 = vmatpush.msra.mxu0 0.0
  %508 = vmatpush.msra.mxu0 0.0
  %509 = vmatpush.msra.mxu0 0.0
  %510 = vmatpush.msra.mxu0 0.0
  %511 = vmatpush.msra.mxu0 0.0
  %512 = vmatpush.msra.mxu0 0.0
  %513 = vmatpush.msra.mxu0 0.0
  %514 = vmatpush.msra.mxu0 0.0
  %515 = vmatpush.msra.mxu0 0.0
  %516 = vmatpush.msra.mxu0 %v486
  %517 = vmatmul.f32.gmra.mxu0 %v499
  %v518 = vpop.f32.mrf.mxu0
  %v519 = vadd.f32 0.0, %v518
  %520 = vdwg.mxu0
  %521 = vmatpush.msra.mxu0 0.0
  %522 = vmatpush.msra.mxu0 0.0
  %523 = vmatpush.msra.mxu0 0.0
  %524 = vmatpush.msra.mxu0 0.0
  %525 = vmatpush.msra.mxu0 0.0
  %526 = vmatpush.msra.mxu0 0.0
  %527 = vmatpush.msra.mxu0 0.0
  %528 = vmatpush.msra.mxu0 0.0
  %529 = vmatpush.msra.mxu0 0.0
  %530 = vmatpush.msra.mxu0 0.0
  %531 = vmatpush.msra.mxu0 0.0
  %532 = vmatpush.msra.mxu0 0.0
  %533 = vmatpush.msra.mxu0 0.0
  %534 = vmatpush.msra.mxu0 0.0
  %535 = vmatpush.msra.mxu0 0.0
  %536 = vmatpush.msra.mxu0 %v487
  %537 = vmatmul.f32.gmra.mxu0 %v499
  %v538 = vpop.f32.mrf.mxu0
  %v539 = vadd.f32 0.0, %v538
  %540 = vdwg.mxu0
  %541 = vmatpush.msra.mxu0 0.0
  %542 = vmatpush.msra.mxu0 0.0
  %543 = vmatpush.msra.mxu0 0.0
  %544 = vmatpush.msra.mxu0 0.0
  %545 = vmatpush.msra.mxu0 0.0
  %546 = vmatpush.msra.mxu0 0.0
  %547 = vmatpush.msra.mxu0 0.0
  %548 = vmatpush.msra.mxu0 0.0
  %549 = vmatpush.msra.mxu0 0.0
  %550 = vmatpush.msra.mxu0 0.0
  %551 = vmatpush.msra.mxu0 0.0
  %552 = vmatpush.msra.mxu0 0.0
  %553 = vmatpush.msra.mxu0 0.0
  %554 = vmatpush.msra.mxu0 0.0
  %555 = vmatpush.msra.mxu0 0.0
  %556 = vmatpush.msra.mxu0 %v488
  %557 = vmatmul.f32.gmra.mxu0 %v499
  %v558 = vpop.f32.mrf.mxu0
  %v559 = vadd.f32 0.0, %v558
  %560 = vdwg.mxu0
  %561 = vmatpush.msra.mxu0 0.0
  %562 = vmatpush.msra.mxu0 0.0
  %563 = vmatpush.msra.mxu0 0.0
  %564 = vmatpush.msra.mxu0 0.0
  %565 = vmatpush.msra.mxu0 0.0
  %566 = vmatpush.msra.mxu0 0.0
  %567 = vmatpush.msra.mxu0 0.0
  %568 = vmatpush.msra.mxu0 0.0
  %569 = vmatpush.msra.mxu0 0.0
  %570 = vmatpush.msra.mxu0 0.0
  %571 = vmatpush.msra.mxu0 0.0
  %572 = vmatpush.msra.mxu0 0.0
  %573 = vmatpush.msra.mxu0 0.0
  %574 = vmatpush.msra.mxu0 0.0
  %575 = vmatpush.msra.mxu0 0.0
  %576 = vmatpush.msra.mxu0 %v489
  %577 = vmatmul.f32.gmra.mxu0 %v499
  %v578 = vpop.f32.mrf.mxu0
  %v579 = vadd.f32 0.0, %v578
  %580 = vdwg.mxu0
  %581 = vmatpush.msra.mxu0 0.0
  %582 = vmatpush.msra.mxu0 0.0
  %583 = vmatpush.msra.mxu0 0.0
  %584 = vmatpush.msra.mxu0 0.0
  %585 = vmatpush.msra.mxu0 0.0
  %586 = vmatpush.msra.mxu0 0.0
  %587 = vmatpush.msra.mxu0 0.0
  %588 = vmatpush.msra.mxu0 0.0
  %589 = vmatpush.msra.mxu0 0.0
  %590 = vmatpush.msra.mxu0 0.0
  %591 = vmatpush.msra.mxu0 0.0
  %592 = vmatpush.msra.mxu0 0.0
  %593 = vmatpush.msra.mxu0 0.0
  %594 = vmatpush.msra.mxu0 0.0
  %595 = vmatpush.msra.mxu0 0.0
  %596 = vmatpush.msra.mxu0 %v490
  %597 = vmatmul.f32.gmra.mxu0 %v499
  %v598 = vpop.f32.mrf.mxu0
  %v599 = vadd.f32 0.0, %v598
  %600 = vdwg.mxu0
  %601 = vmatpush.msra.mxu0 0.0
  %602 = vmatpush.msra.mxu0 0.0
  %603 = vmatpush.msra.mxu0 0.0
  %604 = vmatpush.msra.mxu0 0.0
  %605 = vmatpush.msra.mxu0 0.0
  %606 = vmatpush.msra.mxu0 0.0
  %607 = vmatpush.msra.mxu0 0.0
  %608 = vmatpush.msra.mxu0 0.0
  %609 = vmatpush.msra.mxu0 0.0
  %610 = vmatpush.msra.mxu0 0.0
  %611 = vmatpush.msra.mxu0 0.0
  %612 = vmatpush.msra.mxu0 0.0
  %613 = vmatpush.msra.mxu0 0.0
  %614 = vmatpush.msra.mxu0 0.0
  %615 = vmatpush.msra.mxu0 0.0
  %616 = vmatpush.msra.mxu0 %v491
  %617 = vmatmul.f32.gmra.mxu0 %v499
  %v618 = vpop.f32.mrf.mxu0
  %v619 = vadd.f32 0.0, %v618
  %620 = vdwg.mxu0
  %v621 = vadd.f32 %v463, %v519
  %v622 = vadd.f32 %v464, %v539
  %v623 = vadd.f32 %v465, %v559
  %v624 = vadd.f32 %v466, %v579
  %v625 = vadd.f32 %v467, %v599
  %v626 = vadd.f32 %v468, %v619
  %s627 = scalar_lea.vmem %s1, 32
  %v628 = vld [vmem:[%s627] sm:$0xff]
  %629 = vrot.lane.b32.xlu0 %v23, 109
  %v630 = vpop.permute.xlu0 %629
  %631 = vrot.lane.b32.xlu0 %v24, 109
  %v632 = vpop.permute.xlu0 %631
  %633 = vrot.lane.b32.xlu0 %v25, 109
  %v634 = vpop.permute.xlu0 %633
  %635 = vrot.lane.b32.xlu0 %v26, 109
  %v636 = vpop.permute.xlu0 %635
  %637 = vrot.lane.b32.xlu0 %v27, 109
  %v638 = vpop.permute.xlu0 %637
  %639 = vrot.lane.b32.xlu0 %v28, 109
  %v640 = vpop.permute.xlu0 %639
  %641 = vrot.lane.b32.xlu0 %v29, 109
  %v642 = vpop.permute.xlu0 %641
  %vm643 = vcmask 891904
  %v644 = vsel %vm643, %v630, %v632
  %v645 = vsel %vm643, %v632, %v634
  %v646 = vsel %vm643, %v634, %v636
  %v647 = vsel %vm643, %v636, %v638
  %v648 = vsel %vm643, %v638, %v640
  %v649 = vsel %vm643, %v640, %v642
  %v657 = vsel %vm64, %v628, 0
  %659 = vmatpush.msra.mxu0 0.0
  %660 = vmatpush.msra.mxu0 0.0
  %661 = vmatpush.msra.mxu0 0.0
  %662 = vmatpush.msra.mxu0 0.0
  %663 = vmatpush.msra.mxu0 0.0
  %664 = vmatpush.msra.mxu0 0.0
  %665 = vmatpush.msra.mxu0 0.0
  %666 = vmatpush.msra.mxu0 0.0
  %667 = vmatpush.msra.mxu0 0.0
  %668 = vmatpush.msra.mxu0 0.0
  %669 = vmatpush.msra.mxu0 0.0
  %670 = vmatpush.msra.mxu0 0.0
  %671 = vmatpush.msra.mxu0 0.0
  %672 = vmatpush.msra.mxu0 0.0
  %673 = vmatpush.msra.mxu0 0.0
  %674 = vmatpush.msra.mxu0 %v644
  %675 = vmatmul.f32.gmra.mxu0 %v657
  %v676 = vpop.f32.mrf.mxu0
  %v677 = vadd.f32 0.0, %v676
  %678 = vdwg.mxu0
  %679 = vmatpush.msra.mxu0 0.0
  %680 = vmatpush.msra.mxu0 0.0
  %681 = vmatpush.msra.mxu0 0.0
  %682 = vmatpush.msra.mxu0 0.0
  %683 = vmatpush.msra.mxu0 0.0
  %684 = vmatpush.msra.mxu0 0.0
  %685 = vmatpush.msra.mxu0 0.0
  %686 = vmatpush.msra.mxu0 0.0
  %687 = vmatpush.msra.mxu0 0.0
  %688 = vmatpush.msra.mxu0 0.0
  %689 = vmatpush.msra.mxu0 0.0
  %690 = vmatpush.msra.mxu0 0.0
  %691 = vmatpush.msra.mxu0 0.0
  %692 = vmatpush.msra.mxu0 0.0
  %693 = vmatpush.msra.mxu0 0.0
  %694 = vmatpush.msra.mxu0 %v645
  %695 = vmatmul.f32.gmra.mxu0 %v657
  %v696 = vpop.f32.mrf.mxu0
  %v697 = vadd.f32 0.0, %v696
  %698 = vdwg.mxu0
  %699 = vmatpush.msra.mxu0 0.0
  %700 = vmatpush.msra.mxu0 0.0
  %701 = vmatpush.msra.mxu0 0.0
  %702 = vmatpush.msra.mxu0 0.0
  %703 = vmatpush.msra.mxu0 0.0
  %704 = vmatpush.msra.mxu0 0.0
  %705 = vmatpush.msra.mxu0 0.0
  %706 = vmatpush.msra.mxu0 0.0
  %707 = vmatpush.msra.mxu0 0.0
  %708 = vmatpush.msra.mxu0 0.0
  %709 = vmatpush.msra.mxu0 0.0
  %710 = vmatpush.msra.mxu0 0.0
  %711 = vmatpush.msra.mxu0 0.0
  %712 = vmatpush.msra.mxu0 0.0
  %713 = vmatpush.msra.mxu0 0.0
  %714 = vmatpush.msra.mxu0 %v646
  %715 = vmatmul.f32.gmra.mxu0 %v657
  %v716 = vpop.f32.mrf.mxu0
  %v717 = vadd.f32 0.0, %v716
  %718 = vdwg.mxu0
  %719 = vmatpush.msra.mxu0 0.0
  %720 = vmatpush.msra.mxu0 0.0
  %721 = vmatpush.msra.mxu0 0.0
  %722 = vmatpush.msra.mxu0 0.0
  %723 = vmatpush.msra.mxu0 0.0
  %724 = vmatpush.msra.mxu0 0.0
  %725 = vmatpush.msra.mxu0 0.0
  %726 = vmatpush.msra.mxu0 0.0
  %727 = vmatpush.msra.mxu0 0.0
  %728 = vmatpush.msra.mxu0 0.0
  %729 = vmatpush.msra.mxu0 0.0
  %730 = vmatpush.msra.mxu0 0.0
  %731 = vmatpush.msra.mxu0 0.0
  %732 = vmatpush.msra.mxu0 0.0
  %733 = vmatpush.msra.mxu0 0.0
  %734 = vmatpush.msra.mxu0 %v647
  %735 = vmatmul.f32.gmra.mxu0 %v657
  %v736 = vpop.f32.mrf.mxu0
  %v737 = vadd.f32 0.0, %v736
  %738 = vdwg.mxu0
  %739 = vmatpush.msra.mxu0 0.0
  %740 = vmatpush.msra.mxu0 0.0
  %741 = vmatpush.msra.mxu0 0.0
  %742 = vmatpush.msra.mxu0 0.0
  %743 = vmatpush.msra.mxu0 0.0
  %744 = vmatpush.msra.mxu0 0.0
  %745 = vmatpush.msra.mxu0 0.0
  %746 = vmatpush.msra.mxu0 0.0
  %747 = vmatpush.msra.mxu0 0.0
  %748 = vmatpush.msra.mxu0 0.0
  %749 = vmatpush.msra.mxu0 0.0
  %750 = vmatpush.msra.mxu0 0.0
  %751 = vmatpush.msra.mxu0 0.0
  %752 = vmatpush.msra.mxu0 0.0
  %753 = vmatpush.msra.mxu0 0.0
  %754 = vmatpush.msra.mxu0 %v648
  %755 = vmatmul.f32.gmra.mxu0 %v657
  %v756 = vpop.f32.mrf.mxu0
  %v757 = vadd.f32 0.0, %v756
  %758 = vdwg.mxu0
  %759 = vmatpush.msra.mxu0 0.0
  %760 = vmatpush.msra.mxu0 0.0
  %761 = vmatpush.msra.mxu0 0.0
  %762 = vmatpush.msra.mxu0 0.0
  %763 = vmatpush.msra.mxu0 0.0
  %764 = vmatpush.msra.mxu0 0.0
  %765 = vmatpush.msra.mxu0 0.0
  %766 = vmatpush.msra.mxu0 0.0
  %767 = vmatpush.msra.mxu0 0.0
  %768 = vmatpush.msra.mxu0 0.0
  %769 = vmatpush.msra.mxu0 0.0
  %770 = vmatpush.msra.mxu0 0.0
  %771 = vmatpush.msra.mxu0 0.0
  %772 = vmatpush.msra.mxu0 0.0
  %773 = vmatpush.msra.mxu0 0.0
  %774 = vmatpush.msra.mxu0 %v649
  %775 = vmatmul.f32.gmra.mxu0 %v657
  %v776 = vpop.f32.mrf.mxu0
  %v777 = vadd.f32 0.0, %v776
  %778 = vdwg.mxu0
  %v779 = vadd.f32 %v621, %v677
  %v780 = vadd.f32 %v622, %v697
  %v781 = vadd.f32 %v623, %v717
  %v782 = vadd.f32 %v624, %v737
  %v783 = vadd.f32 %v625, %v757
  %v784 = vadd.f32 %v626, %v777
  %s785 = scalar_lea.vmem %s1, 40
  %v786 = vld [vmem:[%s785] sm:$0xff]
  %787 = vrot.lane.b32.xlu0 %v23, 108
  %v788 = vpop.permute.xlu0 %787
  %789 = vrot.lane.b32.xlu0 %v24, 108
  %v790 = vpop.permute.xlu0 %789
  %791 = vrot.lane.b32.xlu0 %v25, 108
  %v792 = vpop.permute.xlu0 %791
  %793 = vrot.lane.b32.xlu0 %v26, 108
  %v794 = vpop.permute.xlu0 %793
  %795 = vrot.lane.b32.xlu0 %v27, 108
  %v796 = vpop.permute.xlu0 %795
  %797 = vrot.lane.b32.xlu0 %v28, 108
  %v798 = vpop.permute.xlu0 %797
  %799 = vrot.lane.b32.xlu0 %v29, 108
  %v800 = vpop.permute.xlu0 %799
  %vm801 = vcmask 883712
  %v802 = vsel %vm801, %v788, %v790
  %v803 = vsel %vm801, %v790, %v792
  %v804 = vsel %vm801, %v792, %v794
  %v805 = vsel %vm801, %v794, %v796
  %v806 = vsel %vm801, %v796, %v798
  %v807 = vsel %vm801, %v798, %v800
  %v815 = vsel %vm64, %v786, 0
  %817 = vmatpush.msra.mxu0 0.0
  %818 = vmatpush.msra.mxu0 0.0
  %819 = vmatpush.msra.mxu0 0.0
  %820 = vmatpush.msra.mxu0 0.0
  %821 = vmatpush.msra.mxu0 0.0
  %822 = vmatpush.msra.mxu0 0.0
  %823 = vmatpush.msra.mxu0 0.0
  %824 = vmatpush.msra.mxu0 0.0
  %825 = vmatpush.msra.mxu0 0.0
  %826 = vmatpush.msra.mxu0 0.0
  %827 = vmatpush.msra.mxu0 0.0
  %828 = vmatpush.msra.mxu0 0.0
  %829 = vmatpush.msra.mxu0 0.0
  %830 = vmatpush.msra.mxu0 0.0
  %831 = vmatpush.msra.mxu0 0.0
  %832 = vmatpush.msra.mxu0 %v802
  %833 = vmatmul.f32.gmra.mxu0 %v815
  %v834 = vpop.f32.mrf.mxu0
  %v835 = vadd.f32 0.0, %v834
  %836 = vdwg.mxu0
  %837 = vmatpush.msra.mxu0 0.0
  %838 = vmatpush.msra.mxu0 0.0
  %839 = vmatpush.msra.mxu0 0.0
  %840 = vmatpush.msra.mxu0 0.0
  %841 = vmatpush.msra.mxu0 0.0
  %842 = vmatpush.msra.mxu0 0.0
  %843 = vmatpush.msra.mxu0 0.0
  %844 = vmatpush.msra.mxu0 0.0
  %845 = vmatpush.msra.mxu0 0.0
  %846 = vmatpush.msra.mxu0 0.0
  %847 = vmatpush.msra.mxu0 0.0
  %848 = vmatpush.msra.mxu0 0.0
  %849 = vmatpush.msra.mxu0 0.0
  %850 = vmatpush.msra.mxu0 0.0
  %851 = vmatpush.msra.mxu0 0.0
  %852 = vmatpush.msra.mxu0 %v803
  %853 = vmatmul.f32.gmra.mxu0 %v815
  %v854 = vpop.f32.mrf.mxu0
  %v855 = vadd.f32 0.0, %v854
  %856 = vdwg.mxu0
  %857 = vmatpush.msra.mxu0 0.0
  %858 = vmatpush.msra.mxu0 0.0
  %859 = vmatpush.msra.mxu0 0.0
  %860 = vmatpush.msra.mxu0 0.0
  %861 = vmatpush.msra.mxu0 0.0
  %862 = vmatpush.msra.mxu0 0.0
  %863 = vmatpush.msra.mxu0 0.0
  %864 = vmatpush.msra.mxu0 0.0
  %865 = vmatpush.msra.mxu0 0.0
  %866 = vmatpush.msra.mxu0 0.0
  %867 = vmatpush.msra.mxu0 0.0
  %868 = vmatpush.msra.mxu0 0.0
  %869 = vmatpush.msra.mxu0 0.0
  %870 = vmatpush.msra.mxu0 0.0
  %871 = vmatpush.msra.mxu0 0.0
  %872 = vmatpush.msra.mxu0 %v804
  %873 = vmatmul.f32.gmra.mxu0 %v815
  %v874 = vpop.f32.mrf.mxu0
  %v875 = vadd.f32 0.0, %v874
  %876 = vdwg.mxu0
  %877 = vmatpush.msra.mxu0 0.0
  %878 = vmatpush.msra.mxu0 0.0
  %879 = vmatpush.msra.mxu0 0.0
  %880 = vmatpush.msra.mxu0 0.0
  %881 = vmatpush.msra.mxu0 0.0
  %882 = vmatpush.msra.mxu0 0.0
  %883 = vmatpush.msra.mxu0 0.0
  %884 = vmatpush.msra.mxu0 0.0
  %885 = vmatpush.msra.mxu0 0.0
  %886 = vmatpush.msra.mxu0 0.0
  %887 = vmatpush.msra.mxu0 0.0
  %888 = vmatpush.msra.mxu0 0.0
  %889 = vmatpush.msra.mxu0 0.0
  %890 = vmatpush.msra.mxu0 0.0
  %891 = vmatpush.msra.mxu0 0.0
  %892 = vmatpush.msra.mxu0 %v805
  %893 = vmatmul.f32.gmra.mxu0 %v815
  %v894 = vpop.f32.mrf.mxu0
  %v895 = vadd.f32 0.0, %v894
  %896 = vdwg.mxu0
  %897 = vmatpush.msra.mxu0 0.0
  %898 = vmatpush.msra.mxu0 0.0
  %899 = vmatpush.msra.mxu0 0.0
  %900 = vmatpush.msra.mxu0 0.0
  %901 = vmatpush.msra.mxu0 0.0
  %902 = vmatpush.msra.mxu0 0.0
  %903 = vmatpush.msra.mxu0 0.0
  %904 = vmatpush.msra.mxu0 0.0
  %905 = vmatpush.msra.mxu0 0.0
  %906 = vmatpush.msra.mxu0 0.0
  %907 = vmatpush.msra.mxu0 0.0
  %908 = vmatpush.msra.mxu0 0.0
  %909 = vmatpush.msra.mxu0 0.0
  %910 = vmatpush.msra.mxu0 0.0
  %911 = vmatpush.msra.mxu0 0.0
  %912 = vmatpush.msra.mxu0 %v806
  %913 = vmatmul.f32.gmra.mxu0 %v815
  %v914 = vpop.f32.mrf.mxu0
  %v915 = vadd.f32 0.0, %v914
  %916 = vdwg.mxu0
  %917 = vmatpush.msra.mxu0 0.0
  %918 = vmatpush.msra.mxu0 0.0
  %919 = vmatpush.msra.mxu0 0.0
  %920 = vmatpush.msra.mxu0 0.0
  %921 = vmatpush.msra.mxu0 0.0
  %922 = vmatpush.msra.mxu0 0.0
  %923 = vmatpush.msra.mxu0 0.0
  %924 = vmatpush.msra.mxu0 0.0
  %925 = vmatpush.msra.mxu0 0.0
  %926 = vmatpush.msra.mxu0 0.0
  %927 = vmatpush.msra.mxu0 0.0
  %928 = vmatpush.msra.mxu0 0.0
  %929 = vmatpush.msra.mxu0 0.0
  %930 = vmatpush.msra.mxu0 0.0
  %931 = vmatpush.msra.mxu0 0.0
  %932 = vmatpush.msra.mxu0 %v807
  %933 = vmatmul.f32.gmra.mxu0 %v815
  %v934 = vpop.f32.mrf.mxu0
  %v935 = vadd.f32 0.0, %v934
  %936 = vdwg.mxu0
  %v937 = vadd.f32 %v779, %v835
  %v938 = vadd.f32 %v780, %v855
  %v939 = vadd.f32 %v781, %v875
  %v940 = vadd.f32 %v782, %v895
  %v941 = vadd.f32 %v783, %v915
  %v942 = vadd.f32 %v784, %v935
  %s943 = scalar_lea.vmem %s1, 48
  %v944 = vld [vmem:[%s943] sm:$0xff]
  %945 = vrot.lane.b32.xlu0 %v23, 92
  %v946 = vpop.permute.xlu0 %945
  %947 = vrot.lane.b32.xlu0 %v24, 92
  %v948 = vpop.permute.xlu0 %947
  %949 = vrot.lane.b32.xlu0 %v25, 92
  %v950 = vpop.permute.xlu0 %949
  %951 = vrot.lane.b32.xlu0 %v26, 92
  %v952 = vpop.permute.xlu0 %951
  %953 = vrot.lane.b32.xlu0 %v27, 92
  %v954 = vpop.permute.xlu0 %953
  %955 = vrot.lane.b32.xlu0 %v28, 92
  %v956 = vpop.permute.xlu0 %955
  %957 = vrot.lane.b32.xlu0 %v29, 92
  %v958 = vpop.permute.xlu0 %957
  %vm959 = vcmask 752640
  %v960 = vsel %vm959, %v946, %v948
  %v961 = vsel %vm959, %v948, %v950
  %v962 = vsel %vm959, %v950, %v952
  %v963 = vsel %vm959, %v952, %v954
  %v964 = vsel %vm959, %v954, %v956
  %v965 = vsel %vm959, %v956, %v958
  %v973 = vsel %vm64, %v944, 0
  %975 = vmatpush.msra.mxu0 0.0
  %976 = vmatpush.msra.mxu0 0.0
  %977 = vmatpush.msra.mxu0 0.0
  %978 = vmatpush.msra.mxu0 0.0
  %979 = vmatpush.msra.mxu0 0.0
  %980 = vmatpush.msra.mxu0 0.0
  %981 = vmatpush.msra.mxu0 0.0
  %982 = vmatpush.msra.mxu0 0.0
  %983 = vmatpush.msra.mxu0 0.0
  %984 = vmatpush.msra.mxu0 0.0
  %985 = vmatpush.msra.mxu0 0.0
  %986 = vmatpush.msra.mxu0 0.0
  %987 = vmatpush.msra.mxu0 0.0
  %988 = vmatpush.msra.mxu0 0.0
  %989 = vmatpush.msra.mxu0 0.0
  %990 = vmatpush.msra.mxu0 %v960
  %991 = vmatmul.f32.gmra.mxu0 %v973
  %v992 = vpop.f32.mrf.mxu0
  %v993 = vadd.f32 0.0, %v992
  %994 = vdwg.mxu0
  %995 = vmatpush.msra.mxu0 0.0
  %996 = vmatpush.msra.mxu0 0.0
  %997 = vmatpush.msra.mxu0 0.0
  %998 = vmatpush.msra.mxu0 0.0
  %999 = vmatpush.msra.mxu0 0.0
  %1000 = vmatpush.msra.mxu0 0.0
  %1001 = vmatpush.msra.mxu0 0.0
  %1002 = vmatpush.msra.mxu0 0.0
  %1003 = vmatpush.msra.mxu0 0.0
  %1004 = vmatpush.msra.mxu0 0.0
  %1005 = vmatpush.msra.mxu0 0.0
  %1006 = vmatpush.msra.mxu0 0.0
  %1007 = vmatpush.msra.mxu0 0.0
  %1008 = vmatpush.msra.mxu0 0.0
  %1009 = vmatpush.msra.mxu0 0.0
  %1010 = vmatpush.msra.mxu0 %v961
  %1011 = vmatmul.f32.gmra.mxu0 %v973
  %v1012 = vpop.f32.mrf.mxu0
  %v1013 = vadd.f32 0.0, %v1012
  %1014 = vdwg.mxu0
  %1015 = vmatpush.msra.mxu0 0.0
  %1016 = vmatpush.msra.mxu0 0.0
  %1017 = vmatpush.msra.mxu0 0.0
  %1018 = vmatpush.msra.mxu0 0.0
  %1019 = vmatpush.msra.mxu0 0.0
  %1020 = vmatpush.msra.mxu0 0.0
  %1021 = vmatpush.msra.mxu0 0.0
  %1022 = vmatpush.msra.mxu0 0.0
  %1023 = vmatpush.msra.mxu0 0.0
  %1024 = vmatpush.msra.mxu0 0.0
  %1025 = vmatpush.msra.mxu0 0.0
  %1026 = vmatpush.msra.mxu0 0.0
  %1027 = vmatpush.msra.mxu0 0.0
  %1028 = vmatpush.msra.mxu0 0.0
  %1029 = vmatpush.msra.mxu0 0.0
  %1030 = vmatpush.msra.mxu0 %v962
  %1031 = vmatmul.f32.gmra.mxu0 %v973
  %v1032 = vpop.f32.mrf.mxu0
  %v1033 = vadd.f32 0.0, %v1032
  %1034 = vdwg.mxu0
  %1035 = vmatpush.msra.mxu0 0.0
  %1036 = vmatpush.msra.mxu0 0.0
  %1037 = vmatpush.msra.mxu0 0.0
  %1038 = vmatpush.msra.mxu0 0.0
  %1039 = vmatpush.msra.mxu0 0.0
  %1040 = vmatpush.msra.mxu0 0.0
  %1041 = vmatpush.msra.mxu0 0.0
  %1042 = vmatpush.msra.mxu0 0.0
  %1043 = vmatpush.msra.mxu0 0.0
  %1044 = vmatpush.msra.mxu0 0.0
  %1045 = vmatpush.msra.mxu0 0.0
  %1046 = vmatpush.msra.mxu0 0.0
  %1047 = vmatpush.msra.mxu0 0.0
  %1048 = vmatpush.msra.mxu0 0.0
  %1049 = vmatpush.msra.mxu0 0.0
  %1050 = vmatpush.msra.mxu0 %v963
  %1051 = vmatmul.f32.gmra.mxu0 %v973
  %v1052 = vpop.f32.mrf.mxu0
  %v1053 = vadd.f32 0.0, %v1052
  %1054 = vdwg.mxu0
  %1055 = vmatpush.msra.mxu0 0.0
  %1056 = vmatpush.msra.mxu0 0.0
  %1057 = vmatpush.msra.mxu0 0.0
  %1058 = vmatpush.msra.mxu0 0.0
  %1059 = vmatpush.msra.mxu0 0.0
  %1060 = vmatpush.msra.mxu0 0.0
  %1061 = vmatpush.msra.mxu0 0.0
  %1062 = vmatpush.msra.mxu0 0.0
  %1063 = vmatpush.msra.mxu0 0.0
  %1064 = vmatpush.msra.mxu0 0.0
  %1065 = vmatpush.msra.mxu0 0.0
  %1066 = vmatpush.msra.mxu0 0.0
  %1067 = vmatpush.msra.mxu0 0.0
  %1068 = vmatpush.msra.mxu0 0.0
  %1069 = vmatpush.msra.mxu0 0.0
  %1070 = vmatpush.msra.mxu0 %v964
  %1071 = vmatmul.f32.gmra.mxu0 %v973
  %v1072 = vpop.f32.mrf.mxu0
  %v1073 = vadd.f32 0.0, %v1072
  %1074 = vdwg.mxu0
  %1075 = vmatpush.msra.mxu0 0.0
  %1076 = vmatpush.msra.mxu0 0.0
  %1077 = vmatpush.msra.mxu0 0.0
  %1078 = vmatpush.msra.mxu0 0.0
  %1079 = vmatpush.msra.mxu0 0.0
  %1080 = vmatpush.msra.mxu0 0.0
  %1081 = vmatpush.msra.mxu0 0.0
  %1082 = vmatpush.msra.mxu0 0.0
  %1083 = vmatpush.msra.mxu0 0.0
  %1084 = vmatpush.msra.mxu0 0.0
  %1085 = vmatpush.msra.mxu0 0.0
  %1086 = vmatpush.msra.mxu0 0.0
  %1087 = vmatpush.msra.mxu0 0.0
  %1088 = vmatpush.msra.mxu0 0.0
  %1089 = vmatpush.msra.mxu0 0.0
  %1090 = vmatpush.msra.mxu0 %v965
  %1091 = vmatmul.f32.gmra.mxu0 %v973
  %v1092 = vpop.f32.mrf.mxu0
  %v1093 = vadd.f32 0.0, %v1092
  %1094 = vdwg.mxu0
  %v1095 = vadd.f32 %v937, %v993
  %v1096 = vadd.f32 %v938, %v1013
  %v1097 = vadd.f32 %v939, %v1033
  %v1098 = vadd.f32 %v940, %v1053
  %v1099 = vadd.f32 %v941, %v1073
  %v1100 = vadd.f32 %v942, %v1093
  %s1101 = scalar_lea.vmem %s1, 56
  %v1102 = vld [vmem:[%s1101] sm:$0xff]
  %1103 = vrot.lane.b32.xlu0 %v23, 91
  %v1104 = vpop.permute.xlu0 %1103
  %1105 = vrot.lane.b32.xlu0 %v24, 91
  %v1106 = vpop.permute.xlu0 %1105
  %1107 = vrot.lane.b32.xlu0 %v25, 91
  %v1108 = vpop.permute.xlu0 %1107
  %1109 = vrot.lane.b32.xlu0 %v26, 91
  %v1110 = vpop.permute.xlu0 %1109
  %1111 = vrot.lane.b32.xlu0 %v27, 91
  %v1112 = vpop.permute.xlu0 %1111
  %1113 = vrot.lane.b32.xlu0 %v28, 91
  %v1114 = vpop.permute.xlu0 %1113
  %1115 = vrot.lane.b32.xlu0 %v29, 91
  %v1116 = vpop.permute.xlu0 %1115
  %vm1117 = vcmask 744448
  %v1118 = vsel %vm1117, %v1104, %v1106
  %v1119 = vsel %vm1117, %v1106, %v1108
  %v1120 = vsel %vm1117, %v1108, %v1110
  %v1121 = vsel %vm1117, %v1110, %v1112
  %v1122 = vsel %vm1117, %v1112, %v1114
  %v1123 = vsel %vm1117, %v1114, %v1116
  %v1131 = vsel %vm64, %v1102, 0
  %1133 = vmatpush.msra.mxu0 0.0
  %1134 = vmatpush.msra.mxu0 0.0
  %1135 = vmatpush.msra.mxu0 0.0
  %1136 = vmatpush.msra.mxu0 0.0
  %1137 = vmatpush.msra.mxu0 0.0
  %1138 = vmatpush.msra.mxu0 0.0
  %1139 = vmatpush.msra.mxu0 0.0
  %1140 = vmatpush.msra.mxu0 0.0
  %1141 = vmatpush.msra.mxu0 0.0
  %1142 = vmatpush.msra.mxu0 0.0
  %1143 = vmatpush.msra.mxu0 0.0
  %1144 = vmatpush.msra.mxu0 0.0
  %1145 = vmatpush.msra.mxu0 0.0
  %1146 = vmatpush.msra.mxu0 0.0
  %1147 = vmatpush.msra.mxu0 0.0
  %1148 = vmatpush.msra.mxu0 %v1118
  %1149 = vmatmul.f32.gmra.mxu0 %v1131
  %v1150 = vpop.f32.mrf.mxu0
  %v1151 = vadd.f32 0.0, %v1150
  %1152 = vdwg.mxu0
  %1153 = vmatpush.msra.mxu0 0.0
  %1154 = vmatpush.msra.mxu0 0.0
  %1155 = vmatpush.msra.mxu0 0.0
  %1156 = vmatpush.msra.mxu0 0.0
  %1157 = vmatpush.msra.mxu0 0.0
  %1158 = vmatpush.msra.mxu0 0.0
  %1159 = vmatpush.msra.mxu0 0.0
  %1160 = vmatpush.msra.mxu0 0.0
  %1161 = vmatpush.msra.mxu0 0.0
  %1162 = vmatpush.msra.mxu0 0.0
  %1163 = vmatpush.msra.mxu0 0.0
  %1164 = vmatpush.msra.mxu0 0.0
  %1165 = vmatpush.msra.mxu0 0.0
  %1166 = vmatpush.msra.mxu0 0.0
  %1167 = vmatpush.msra.mxu0 0.0
  %1168 = vmatpush.msra.mxu0 %v1119
  %1169 = vmatmul.f32.gmra.mxu0 %v1131
  %v1170 = vpop.f32.mrf.mxu0
  %v1171 = vadd.f32 0.0, %v1170
  %1172 = vdwg.mxu0
  %1173 = vmatpush.msra.mxu0 0.0
  %1174 = vmatpush.msra.mxu0 0.0
  %1175 = vmatpush.msra.mxu0 0.0
  %1176 = vmatpush.msra.mxu0 0.0
  %1177 = vmatpush.msra.mxu0 0.0
  %1178 = vmatpush.msra.mxu0 0.0
  %1179 = vmatpush.msra.mxu0 0.0
  %1180 = vmatpush.msra.mxu0 0.0
  %1181 = vmatpush.msra.mxu0 0.0
  %1182 = vmatpush.msra.mxu0 0.0
  %1183 = vmatpush.msra.mxu0 0.0
  %1184 = vmatpush.msra.mxu0 0.0
  %1185 = vmatpush.msra.mxu0 0.0
  %1186 = vmatpush.msra.mxu0 0.0
  %1187 = vmatpush.msra.mxu0 0.0
  %1188 = vmatpush.msra.mxu0 %v1120
  %1189 = vmatmul.f32.gmra.mxu0 %v1131
  %v1190 = vpop.f32.mrf.mxu0
  %v1191 = vadd.f32 0.0, %v1190
  %1192 = vdwg.mxu0
  %1193 = vmatpush.msra.mxu0 0.0
  %1194 = vmatpush.msra.mxu0 0.0
  %1195 = vmatpush.msra.mxu0 0.0
  %1196 = vmatpush.msra.mxu0 0.0
  %1197 = vmatpush.msra.mxu0 0.0
  %1198 = vmatpush.msra.mxu0 0.0
  %1199 = vmatpush.msra.mxu0 0.0
  %1200 = vmatpush.msra.mxu0 0.0
  %1201 = vmatpush.msra.mxu0 0.0
  %1202 = vmatpush.msra.mxu0 0.0
  %1203 = vmatpush.msra.mxu0 0.0
  %1204 = vmatpush.msra.mxu0 0.0
  %1205 = vmatpush.msra.mxu0 0.0
  %1206 = vmatpush.msra.mxu0 0.0
  %1207 = vmatpush.msra.mxu0 0.0
  %1208 = vmatpush.msra.mxu0 %v1121
  %1209 = vmatmul.f32.gmra.mxu0 %v1131
  %v1210 = vpop.f32.mrf.mxu0
  %v1211 = vadd.f32 0.0, %v1210
  %1212 = vdwg.mxu0
  %1213 = vmatpush.msra.mxu0 0.0
  %1214 = vmatpush.msra.mxu0 0.0
  %1215 = vmatpush.msra.mxu0 0.0
  %1216 = vmatpush.msra.mxu0 0.0
  %1217 = vmatpush.msra.mxu0 0.0
  %1218 = vmatpush.msra.mxu0 0.0
  %1219 = vmatpush.msra.mxu0 0.0
  %1220 = vmatpush.msra.mxu0 0.0
  %1221 = vmatpush.msra.mxu0 0.0
  %1222 = vmatpush.msra.mxu0 0.0
  %1223 = vmatpush.msra.mxu0 0.0
  %1224 = vmatpush.msra.mxu0 0.0
  %1225 = vmatpush.msra.mxu0 0.0
  %1226 = vmatpush.msra.mxu0 0.0
  %1227 = vmatpush.msra.mxu0 0.0
  %1228 = vmatpush.msra.mxu0 %v1122
  %1229 = vmatmul.f32.gmra.mxu0 %v1131
  %v1230 = vpop.f32.mrf.mxu0
  %v1231 = vadd.f32 0.0, %v1230
  %1232 = vdwg.mxu0
  %1233 = vmatpush.msra.mxu0 0.0
  %1234 = vmatpush.msra.mxu0 0.0
  %1235 = vmatpush.msra.mxu0 0.0
  %1236 = vmatpush.msra.mxu0 0.0
  %1237 = vmatpush.msra.mxu0 0.0
  %1238 = vmatpush.msra.mxu0 0.0
  %1239 = vmatpush.msra.mxu0 0.0
  %1240 = vmatpush.msra.mxu0 0.0
  %1241 = vmatpush.msra.mxu0 0.0
  %1242 = vmatpush.msra.mxu0 0.0
  %1243 = vmatpush.msra.mxu0 0.0
  %1244 = vmatpush.msra.mxu0 0.0
  %1245 = vmatpush.msra.mxu0 0.0
  %1246 = vmatpush.msra.mxu0 0.0
  %1247 = vmatpush.msra.mxu0 0.0
  %1248 = vmatpush.msra.mxu0 %v1123
  %1249 = vmatmul.f32.gmra.mxu0 %v1131
  %v1250 = vpop.f32.mrf.mxu0
  %v1251 = vadd.f32 0.0, %v1250
  %1252 = vdwg.mxu0
  %v1253 = vadd.f32 %v1095, %v1151
  %v1254 = vadd.f32 %v1096, %v1171
  %v1255 = vadd.f32 %v1097, %v1191
  %v1256 = vadd.f32 %v1098, %v1211
  %v1257 = vadd.f32 %v1099, %v1231
  %v1258 = vadd.f32 %v1100, %v1251
  %s1259 = scalar_lea.vmem %s1, 64
  %v1260 = vld [vmem:[%s1259] sm:$0xff]
  %1261 = vrot.lane.b32.xlu0 %v23, 90
  %v1262 = vpop.permute.xlu0 %1261
  %1263 = vrot.lane.b32.xlu0 %v24, 90
  %v1264 = vpop.permute.xlu0 %1263
  %1265 = vrot.lane.b32.xlu0 %v25, 90
  %v1266 = vpop.permute.xlu0 %1265
  %1267 = vrot.lane.b32.xlu0 %v26, 90
  %v1268 = vpop.permute.xlu0 %1267
  %1269 = vrot.lane.b32.xlu0 %v27, 90
  %v1270 = vpop.permute.xlu0 %1269
  %1271 = vrot.lane.b32.xlu0 %v28, 90
  %v1272 = vpop.permute.xlu0 %1271
  %1273 = vrot.lane.b32.xlu0 %v29, 90
  %v1274 = vpop.permute.xlu0 %1273
  %vm1275 = vcmask 736256
  %v1276 = vsel %vm1275, %v1262, %v1264
  %v1277 = vsel %vm1275, %v1264, %v1266
  %v1278 = vsel %vm1275, %v1266, %v1268
  %v1279 = vsel %vm1275, %v1268, %v1270
  %v1280 = vsel %vm1275, %v1270, %v1272
  %v1281 = vsel %vm1275, %v1272, %v1274
  %v1289 = vsel %vm64, %v1260, 0
  %1291 = vmatpush.msra.mxu0 0.0
  %1292 = vmatpush.msra.mxu0 0.0
  %1293 = vmatpush.msra.mxu0 0.0
  %1294 = vmatpush.msra.mxu0 0.0
  %1295 = vmatpush.msra.mxu0 0.0
  %1296 = vmatpush.msra.mxu0 0.0
  %1297 = vmatpush.msra.mxu0 0.0
  %1298 = vmatpush.msra.mxu0 0.0
  %1299 = vmatpush.msra.mxu0 0.0
  %1300 = vmatpush.msra.mxu0 0.0
  %1301 = vmatpush.msra.mxu0 0.0
  %1302 = vmatpush.msra.mxu0 0.0
  %1303 = vmatpush.msra.mxu0 0.0
  %1304 = vmatpush.msra.mxu0 0.0
  %1305 = vmatpush.msra.mxu0 0.0
  %1306 = vmatpush.msra.mxu0 %v1276
  %1307 = vmatmul.f32.gmra.mxu0 %v1289
  %v1308 = vpop.f32.mrf.mxu0
  %v1309 = vadd.f32 0.0, %v1308
  %1310 = vdwg.mxu0
  %1311 = vmatpush.msra.mxu0 0.0
  %1312 = vmatpush.msra.mxu0 0.0
  %1313 = vmatpush.msra.mxu0 0.0
  %1314 = vmatpush.msra.mxu0 0.0
  %1315 = vmatpush.msra.mxu0 0.0
  %1316 = vmatpush.msra.mxu0 0.0
  %1317 = vmatpush.msra.mxu0 0.0
  %1318 = vmatpush.msra.mxu0 0.0
  %1319 = vmatpush.msra.mxu0 0.0
  %1320 = vmatpush.msra.mxu0 0.0
  %1321 = vmatpush.msra.mxu0 0.0
  %1322 = vmatpush.msra.mxu0 0.0
  %1323 = vmatpush.msra.mxu0 0.0
  %1324 = vmatpush.msra.mxu0 0.0
  %1325 = vmatpush.msra.mxu0 0.0
  %1326 = vmatpush.msra.mxu0 %v1277
  %1327 = vmatmul.f32.gmra.mxu0 %v1289
  %v1328 = vpop.f32.mrf.mxu0
  %v1329 = vadd.f32 0.0, %v1328
  %1330 = vdwg.mxu0
  %1331 = vmatpush.msra.mxu0 0.0
  %1332 = vmatpush.msra.mxu0 0.0
  %1333 = vmatpush.msra.mxu0 0.0
  %1334 = vmatpush.msra.mxu0 0.0
  %1335 = vmatpush.msra.mxu0 0.0
  %1336 = vmatpush.msra.mxu0 0.0
  %1337 = vmatpush.msra.mxu0 0.0
  %1338 = vmatpush.msra.mxu0 0.0
  %1339 = vmatpush.msra.mxu0 0.0
  %1340 = vmatpush.msra.mxu0 0.0
  %1341 = vmatpush.msra.mxu0 0.0
  %1342 = vmatpush.msra.mxu0 0.0
  %1343 = vmatpush.msra.mxu0 0.0
  %1344 = vmatpush.msra.mxu0 0.0
  %1345 = vmatpush.msra.mxu0 0.0
  %1346 = vmatpush.msra.mxu0 %v1278
  %1347 = vmatmul.f32.gmra.mxu0 %v1289
  %v1348 = vpop.f32.mrf.mxu0
  %v1349 = vadd.f32 0.0, %v1348
  %1350 = vdwg.mxu0
  %1351 = vmatpush.msra.mxu0 0.0
  %1352 = vmatpush.msra.mxu0 0.0
  %1353 = vmatpush.msra.mxu0 0.0
  %1354 = vmatpush.msra.mxu0 0.0
  %1355 = vmatpush.msra.mxu0 0.0
  %1356 = vmatpush.msra.mxu0 0.0
  %1357 = vmatpush.msra.mxu0 0.0
  %1358 = vmatpush.msra.mxu0 0.0
  %1359 = vmatpush.msra.mxu0 0.0
  %1360 = vmatpush.msra.mxu0 0.0
  %1361 = vmatpush.msra.mxu0 0.0
  %1362 = vmatpush.msra.mxu0 0.0
  %1363 = vmatpush.msra.mxu0 0.0
  %1364 = vmatpush.msra.mxu0 0.0
  %1365 = vmatpush.msra.mxu0 0.0
  %1366 = vmatpush.msra.mxu0 %v1279
  %1367 = vmatmul.f32.gmra.mxu0 %v1289
  %v1368 = vpop.f32.mrf.mxu0
  %v1369 = vadd.f32 0.0, %v1368
  %1370 = vdwg.mxu0
  %1371 = vmatpush.msra.mxu0 0.0
  %1372 = vmatpush.msra.mxu0 0.0
  %1373 = vmatpush.msra.mxu0 0.0
  %1374 = vmatpush.msra.mxu0 0.0
  %1375 = vmatpush.msra.mxu0 0.0
  %1376 = vmatpush.msra.mxu0 0.0
  %1377 = vmatpush.msra.mxu0 0.0
  %1378 = vmatpush.msra.mxu0 0.0
  %1379 = vmatpush.msra.mxu0 0.0
  %1380 = vmatpush.msra.mxu0 0.0
  %1381 = vmatpush.msra.mxu0 0.0
  %1382 = vmatpush.msra.mxu0 0.0
  %1383 = vmatpush.msra.mxu0 0.0
  %1384 = vmatpush.msra.mxu0 0.0
  %1385 = vmatpush.msra.mxu0 0.0
  %1386 = vmatpush.msra.mxu0 %v1280
  %1387 = vmatmul.f32.gmra.mxu0 %v1289
  %v1388 = vpop.f32.mrf.mxu0
  %v1389 = vadd.f32 0.0, %v1388
  %1390 = vdwg.mxu0
  %1391 = vmatpush.msra.mxu0 0.0
  %1392 = vmatpush.msra.mxu0 0.0
  %1393 = vmatpush.msra.mxu0 0.0
  %1394 = vmatpush.msra.mxu0 0.0
  %1395 = vmatpush.msra.mxu0 0.0
  %1396 = vmatpush.msra.mxu0 0.0
  %1397 = vmatpush.msra.mxu0 0.0
  %1398 = vmatpush.msra.mxu0 0.0
  %1399 = vmatpush.msra.mxu0 0.0
  %1400 = vmatpush.msra.mxu0 0.0
  %1401 = vmatpush.msra.mxu0 0.0
  %1402 = vmatpush.msra.mxu0 0.0
  %1403 = vmatpush.msra.mxu0 0.0
  %1404 = vmatpush.msra.mxu0 0.0
  %1405 = vmatpush.msra.mxu0 0.0
  %1406 = vmatpush.msra.mxu0 %v1281
  %1407 = vmatmul.f32.gmra.mxu0 %v1289
  %v1408 = vpop.f32.mrf.mxu0
  %v1409 = vadd.f32 0.0, %v1408
  %1410 = vdwg.mxu0
  %v1411 = vadd.f32 %v1253, %v1309
  %v1412 = vadd.f32 %v1254, %v1329
  %v1413 = vadd.f32 %v1255, %v1349
  %v1414 = vadd.f32 %v1256, %v1369
  %v1415 = vadd.f32 %v1257, %v1389
  %v1416 = vadd.f32 %v1258, %v1409
  %v1417 = vld [vmem:[%s2] sm:$0xff]
  %1419 = vset.pattern.permute.xlu0 0
  %1420 = vperm.xlu0 %1419, %v1417
  %v1421 = vpop.permute.xlu0 %1420
  %v1423 = vadd.f32 %v1411, %v1421
  %v1424 = vadd.f32 %v1412, %v1421
  %v1425 = vadd.f32 %v1413, %v1421
  %v1426 = vadd.f32 %v1414, %v1421
  %v1427 = vadd.f32 %v1415, %v1421
  %v1428 = vadd.f32 %v1416, %v1421
  %v1429 = vmax.f32 %v1423, 0.0
  %v1430 = vmax.f32 %v1424, 0.0
  %v1431 = vmax.f32 %v1425, 0.0
  %v1432 = vmax.f32 %v1426, 0.0
  %v1433 = vmax.f32 %v1427, 0.0
  %v1434 = vmax.f32 %v1428, 0.0
  %1435 = vst [vmem:[%s3] sm:$0xff] %v1429
  %1436 = vst [vmem:[%s3 + $0x8] sm:$0xff] %v1430
  %1437 = vst [vmem:[%s3 + $0x10] sm:$0xff] %v1431
  %1438 = vst [vmem:[%s3 + $0x18] sm:$0xff] %v1432
  %1439 = vst [vmem:[%s3 + $0x20] sm:$0xff] %v1433
  %1440 = vst [vmem:[%s3 + $0x28] sm:$0xff] %v1434
  // Predicated region
  $region14: #{vae_forward.15} parent=0 // pred_check
    _
  $region15: #{vae_forward.15} parent=0 // pred_check_branch
    %1442 = sbr.rel (0) target = $region17
  $region16: #{vae_forward.15} parent=0 // pred_region
    _
  $region17: #{vae_forward.15} parent=0 // pred_fallthru
    _
  // Predicated region
  $region18: #{vae_forward.15} parent=0 // pred_check
    _
  $region19: #{vae_forward.15} parent=0 // pred_check_branch
    %1444 = sbr.rel (0) target = $region21
  $region20: #{vae_forward.15} parent=0 // pred_region
    _
  $region21: #{vae_forward.15} parent=0 // pred_fallthru
    _

</llo_original>
